<compile_context>
chip_gen: v7x
topology: tpu7x:2x2x1
jax: 0.10.0
libtpu: 0.0.40
codegen_flags: <defaults>
</compile_context>

<pallas_src>
import numpy as np
import jax
import jax.numpy as jnp
from jax.experimental import pallas as pl
from jax.experimental.pallas import tpu as pltpu


Z_DIM = 32
H_DIM = 1024


# ----------------------------------------------------------------------------
# The single fused Pallas kernel
# ----------------------------------------------------------------------------
def _vae_kernel(x_ref, eps_ref,
                we1, be1, we2, be2, we3, be3, we4, be4,
                wfc12, bfc12, wfc3, bfc3,
                wd1, bd1, wd2, bd2, wd3, bd3, wd4, bd4,
                out_ref):
    """Whole VAE forward.

    x_ref   : (B, 4*C)   raw NCHW flatten of the 2x2 input
    eps_ref : (B, Z)     N(0,1) noise for the reparameterization
    we{l}   : block-diagonal encoder operators (one matmul per conv layer), bf16
    wfc12   : (1024, 2Z) fused fc1|fc2, rows permuted to (pixel, channel) order
    wfc3    : (Z, 1024)
    wd1     : (1024, 512)  ConvT1 central-crop matmul       (1x1 -> 2x2 map)
    wd2     : (512, 1024)  ConvT2 exact unrolled operator   (2x2 -> 4x4 map)
    wd3     : (1024, 1152) ConvT3 unrolled operator w/ crop (4x4 -> 6x6 map)
    wd4     : (1152, 432)  ConvT4 unrolled operator         (6x6 -> 12x12 map, (OH,OW,co))
    out_ref : (B, 432 + 2Z)  [decoder (OH,OW,co) | mu | logvar]
    """
    z_dim = eps_ref.shape[-1]

    def mm(a, w_ref, b_ref):               # bf16 MXU operands, f32 accumulation
        return jnp.dot(a.astype(jnp.bfloat16), w_ref[...],
                       preferred_element_type=jnp.float32) + b_ref[...]

    # ---- encoder: 4 block-diagonal matmuls (k=2/s=2/p=1 convs on the fixed 2x2 map)
    h = x_ref[...]
    for w_ref, b_ref in ((we1, be1), (we2, be2), (we3, be3), (we4, be4)):
        h = jnp.maximum(mm(h, w_ref, b_ref), 0.0)          # final: (B, 1024)

    # ---- bottleneck: fused fc1+fc2, reparameterize, fc3
    mlv = mm(h, wfc12, bfc12)                               # (B, 2Z) = [mu | logvar]
    mu = mlv[:, :z_dim]
    logvar = mlv[:, z_dim:]
    z = mu + jnp.exp(logvar * 0.5) * eps_ref[...]
    d = mm(z, wfc3, bfc3)                                   # (B, 1024)  (== UnFlatten)

    # ---- decoder: four transposed convs as pre-built linear operators
    t = jnp.maximum(mm(d, wd1, bd1), 0.0)                   # (B, 512)   = (2,2,128)
    t = jnp.maximum(mm(t, wd2, bd2), 0.0)                   # (B, 1024)  = (4,4,64)
    t = jnp.maximum(mm(t, wd3, bd3), 0.0)                   # (B, 1152)  = (6,6,32)
    y = jax.nn.sigmoid(mm(t, wd4, bd4))                     # (B, 432)   = (12,12,C)

    out_ref[...] = jnp.concatenate([y, mlv], axis=1)        # lane-dense single store


# ----------------------------------------------------------------------------
# Forward pass wrapper
# ----------------------------------------------------------------------------
def vae_forward(p, x, eps):
    """x: (B, C, 2, 2) NCHW, eps: (B, Z) -> (recon (B, C, 12, 12), mu, logvar)."""
    B, C, H, W = x.shape
    assert H == 2 and W == 2, "h_dim=1024 in the reference module pins the encoder map to 2x2"
    x_flat = x.reshape(B, C * H * W)          # raw NCHW flatten; we1 rows are permuted to match
    n_dec = 144 * C

    out = pl.pallas_call(
        _vae_kernel,
        out_shape=jax.ShapeDtypeStruct((B, n_dec + 2 * Z_DIM), jnp.float32),
        compiler_params=pltpu.CompilerParams(vmem_limit_bytes=32 * 1024 * 1024),
    )(x_flat, eps,
      p["we1"], p["be1"], p["we2"], p["be2"],
      p["we3"], p["be3"], p["we4"], p["be4"],
      p["wfc12"], p["bfc12"], p["wfc3"], p["bfc3"],
      p["wd1"], p["bd1"], p["wd2"], p["bd2"],
      p["wd3"], p["bd3"], p["wd4"], p["bd4"])

    recon = out[:, :n_dec].reshape(B, 12, 12, C).transpose(0, 3, 1, 2)   # only remaining XLA glue
    mu = out[:, n_dec:n_dec + Z_DIM]
    logvar = out[:, n_dec + Z_DIM:]
    return recon, mu, logvar


# ----------------------------------------------------------------------------
# Parameters (PyTorch layout) + one-time host-side pre-transform
# ----------------------------------------------------------------------------
def init_params(key, image_channels=3, h_dim=1024, z_dim=32):
    shapes = {
        "ce1_w": (32, image_channels, 2, 2), "ce1_b": (32,),
        "ce2_w": (64, 32, 2, 2),             "ce2_b": (64,),
        "ce3_w": (128, 64, 2, 2),            "ce3_b": (128,),
        "ce4_w": (256, 128, 2, 2),           "ce4_b": (256,),
        "fc1_w": (z_dim, h_dim),             "fc1_b": (z_dim,),
        "fc2_w": (z_dim, h_dim),             "fc2_b": (z_dim,),
        "fc3_w": (h_dim, z_dim),             "fc3_b": (h_dim,),
        "cd1_w": (h_dim, 128, 4, 4),         "cd1_b": (128,),
        "cd2_w": (128, 64, 4, 4),            "cd2_b": (64,),
        "cd3_w": (64, 32, 2, 2),             "cd3_b": (32,),
        "cd4_w": (32, image_channels, 2, 2), "cd4_b": (image_channels,),
    }
    keys = jax.random.split(key, len(shapes))
    return {name: 0.05 * jax.random.normal(k, shp, dtype=jnp.float32)
            for (name, shp), k in zip(shapes.items(), keys)}


def prepare_params(tp):
    """One-time (outside jit) conversion of PyTorch-layout parameters into
    matmul-ready operators (bf16 weights for the MXU, f32 biases)."""
    g = lambda a: np.asarray(jax.device_get(a), np.float32)
    wq = lambda a: jnp.asarray(a, jnp.bfloat16)
    bq = lambda a: jnp.asarray(np.asarray(a, np.float32)[None, :], jnp.float32)
    p = {}
    pix_list = ((0, 0), (0, 1), (1, 0), (1, 1))   # pix = oh*2 + ow

    # Encoder convs (k=2,s=2,p=1 on a 2x2 map): output pixel (oh,ow) sees only kernel tap
    # (1-oh,1-ow) of its own input pixel -> each layer is one block-diagonal matmul.
    # Layer 1 rows are ordered (c*4 + pix) to consume the raw NCHW flatten directly.
    w = g(tp["ce1_w"])                                        # (32, C, 2, 2)
    C = w.shape[1]
    W1 = np.zeros((4 * C, 4 * 32), np.float32)
    for pix, (oh, ow) in enumerate(pix_list):
        W1[np.arange(C) * 4 + pix, pix * 32:(pix + 1) * 32] = w[:, :, 1 - oh, 1 - ow].T
    p["we1"] = wq(W1)
    p["be1"] = bq(np.tile(g(tp["ce1_b"]), 4))

    def enc_blockdiag(w):                                     # (Cout, Cin, 2, 2)
        co, ci = w.shape[0], w.shape[1]
        W = np.zeros((4 * ci, 4 * co), np.float32)
        for pix, (oh, ow) in enumerate(pix_list):
            W[pix * ci:(pix + 1) * ci, pix * co:(pix + 1) * co] = w[:, :, 1 - oh, 1 - ow].T
        return W

    for l, name in ((2, "ce2"), (3, "ce3"), (4, "ce4")):
        p[f"we{l}"] = wq(enc_blockdiag(g(tp[f"{name}_w"])))
        p[f"be{l}"] = bq(np.tile(g(tp[f"{name}_b"]), 4))

    # fc1 | fc2 fused; rows permuted from torch Flatten order (c, oh, ow) to (pixel, c).
    def fc_in_perm(w):                                        # (Z, 1024) -> (1024, Z)
        z = w.shape[0]
        return w.reshape(z, 256, 4).transpose(2, 1, 0).reshape(1024, z)

    p["wfc12"] = wq(np.concatenate(
        [fc_in_perm(g(tp["fc1_w"])), fc_in_perm(g(tp["fc2_w"]))], axis=1))
    p["bfc12"] = bq(np.concatenate([g(tp["fc1_b"]), g(tp["fc2_b"])]))
    p["wfc3"] = wq(g(tp["fc3_w"]).T)                          # (Z, 1024)
    p["bfc3"] = bq(g(tp["fc3_b"]))

    # ConvT1 (1024->128, k4, s2, p1) on a 1x1 map: output pixel (oh,ow) uses kernel tap
    # (oh+1, ow+1) -> direct matmul with the central 2x2 crop; columns ordered (oh,ow,co).
    w = g(tp["cd1_w"])[:, :, 1:3, 1:3]                        # (1024, 128, 2, 2)
    p["wd1"] = wq(w.transpose(0, 2, 3, 1).reshape(1024, 4 * 128))
    p["bd1"] = bq(np.tile(g(tp["cd1_b"]), 4))

    # ConvT2 (128->64, k4, s2, p1) on the fixed 2x2 map: exact unrolled (512, 1024) operator.
    w = g(tp["cd2_w"])                                        # (128, 64, 4, 4)
    T2 = np.zeros((4 * 128, 16 * 64), np.float32)
    for i in range(2):
        for j in range(2):
            for oh in range(4):
                for ow in range(4):
                    kh, kw = oh + 1 - 2 * i, ow + 1 - 2 * j
                    if 0 <= kh < 4 and 0 <= kw < 4:
                        r, c = (i * 2 + j) * 128, (oh * 4 + ow) * 64
                        T2[r:r + 128, c:c + 64] = w[:, :, kh, kw]
    p["wd2"] = wq(T2)
    p["bd2"] = bq(np.tile(g(tp["cd2_b"]), 16))

    # ConvT3 (64->32, k2, s2, p1) on the fixed 4x4 map: exact unrolled (1024, 1152) operator
    # with the padding crop folded in (6x6 output, columns ordered (OH, OW, co)).
    w = g(tp["cd3_w"])                                        # (64, 32, 2, 2)
    T3 = np.zeros((16 * 64, 36 * 32), np.float32)
    for i in range(4):
        for j in range(4):
            for kh in range(2):
                for kw in range(2):
                    OH, OW = 2 * i + kh - 1, 2 * j + kw - 1
                    if 0 <= OH < 6 and 0 <= OW < 6:
                        r, c = (i * 4 + j) * 64, (OH * 6 + OW) * 32
                        T3[r:r + 64, c:c + 32] = w[:, :, kh, kw]
    p["wd3"] = wq(T3)
    p["bd3"] = bq(np.tile(g(tp["cd3_b"]), 36))

    # ConvT4 (32->C, k2, s2, p0) on the fixed 6x6 map: exact unrolled (1152, 432) operator
    # (12x12 output, columns ordered (OH, OW, co) -> one reshape+transpose outside).
    w = g(tp["cd4_w"])                                        # (32, C, 2, 2)
    T4 = np.zeros((36 * 32, 144 * C), np.float32)
    for i in range(6):
        for j in range(6):
            for kh in range(2):
                for kw in range(2):
                    OH, OW = 2 * i + kh, 2 * j + kw
                    r, c = (i * 6 + j) * 32, (OH * 12 + OW) * C
                    T4[r:r + 32, c:c + C] = w[:, :, kh, kw]
    p["wd4"] = wq(T4)
    p["bd4"] = bq(np.tile(g(tp["cd4_b"]), 144))
    return p


# ----------------------------------------------------------------------------
# Pure-f32 NumPy reference of the PyTorch module (for a tolerance check)
# ----------------------------------------------------------------------------
def _np_conv2d(x, w, b, stride, pad):
    B, Cin, H, W = x.shape
    Cout, _, kh, kw = w.shape
    xp = np.pad(x, ((0, 0), (0, 0), (pad, pad), (pad, pad)))
    Ho = (H + 2 * pad - kh) // stride + 1
    Wo = (W + 2 * pad - kw) // stride + 1
    out = np.zeros((B, Cout, Ho, Wo), np.float32)
    for oh in range(Ho):
        for ow in range(Wo):
            patch = xp[:, :, oh * stride:oh * stride + kh, ow * stride:ow * stride + kw]
            out[:, :, oh, ow] = np.einsum('bchw,ochw->bo', patch, w)
    return out + b[None, :, None, None]


def _np_conv_transpose2d(x, w, b, stride, pad):
    B, Cin, H, W = x.shape
    _, Cout, kh, kw = w.shape
    out = np.zeros((B, Cout, (H - 1) * stride + kh, (W - 1) * stride + kw), np.float32)
    for i in range(H):
        for j in range(W):
            out[:, :, i * stride:i * stride + kh, j * stride:j * stride + kw] += np.einsum(
                'bc,cohw->bohw', x[:, :, i, j], w)
    out = out + b[None, :, None, None]
    if pad:
        out = out[:, :, pad:-pad, pad:-pad]
    return out


def vae_reference(tp, x, eps):
    relu = lambda a: np.maximum(a, 0.0)
    h = x
    for name in ("ce1", "ce2", "ce3", "ce4"):
        h = relu(_np_conv2d(h, tp[f"{name}_w"], tp[f"{name}_b"], 2, 1))
    B = x.shape[0]
    hflat = h.reshape(B, -1)                                  # torch Flatten (c, oh, ow)
    mu = hflat @ tp["fc1_w"].T + tp["fc1_b"]
    logvar = hflat @ tp["fc2_w"].T + tp["fc2_b"]
    z = mu + np.exp(0.5 * logvar) * eps
    d = (z @ tp["fc3_w"].T + tp["fc3_b"]).reshape(B, H_DIM, 1, 1)
    d = relu(_np_conv_transpose2d(d, tp["cd1_w"], tp["cd1_b"], 2, 1))
    d = relu(_np_conv_transpose2d(d, tp["cd2_w"], tp["cd2_b"], 2, 1))
    d = relu(_np_conv_transpose2d(d, tp["cd3_w"], tp["cd3_b"], 2, 1))
    d = _np_conv_transpose2d(d, tp["cd4_w"], tp["cd4_b"], 2, 0)
    recon = 1.0 / (1.0 + np.exp(-d))
    return recon, mu, logvar


if __name__ == "__main__":
    key = jax.random.PRNGKey(0)
    k_param, k_x, k_eps = jax.random.split(key, 3)

    # h_dim=1024 with the kernel-2/stride-2/pad-1 encoder implies a 2x2 spatial input.
    B, C, H, W = 2, 3, 2, 2
    x = jax.random.normal(k_x, (B, C, H, W), dtype=jnp.float32)
    eps = jax.random.normal(k_eps, (B, Z_DIM), dtype=jnp.float32)   # torch.randn replacement

    torch_params = init_params(k_param, image_channels=C)
    params = prepare_params(torch_params)        # one-time weight pre-transform, outside jit

    fwd = jax.jit(vae_forward)
    recon, mu, logvar = fwd(params, x, eps)
    jax.block_until_ready((recon, mu, logvar))

    assert recon.shape == (B, C, 12, 12), recon.shape
    assert mu.shape == (B, Z_DIM) and logvar.shape == (B, Z_DIM)
    assert bool(jnp.all(jnp.isfinite(recon)))

    # Tolerance check against a pure-f32 reference (weights are bf16 in the kernel).
    np_params = {k: np.asarray(jax.device_get(v), np.float32) for k, v in torch_params.items()}
    ref_recon, ref_mu, ref_logvar = vae_reference(
        np_params, np.asarray(jax.device_get(x), np.float32),
        np.asarray(jax.device_get(eps), np.float32))
    np.testing.assert_allclose(np.asarray(recon), ref_recon, atol=3e-2, rtol=3e-2)
    np.testing.assert_allclose(np.asarray(mu), ref_mu, atol=2e-2, rtol=2e-2)
    np.testing.assert_allclose(np.asarray(logvar), ref_logvar, atol=2e-2, rtol=2e-2)

    print("KERNEL_OK")
</pallas_src>

<mosaic_0001>
module attributes {stable_mosaic.version = 11 : i64} {
  func.func @_vae_kernel(%arg0: memref<2x12xf32, #tpu.memory_space<vmem>>, %arg1: memref<2x32xf32, #tpu.memory_space<vmem>>, %arg2: memref<12x128xbf16, #tpu.memory_space<vmem>>, %arg3: memref<1x128xf32, #tpu.memory_space<vmem>>, %arg4: memref<128x256xbf16, #tpu.memory_space<vmem>>, %arg5: memref<1x256xf32, #tpu.memory_space<vmem>>, %arg6: memref<256x512xbf16, #tpu.memory_space<vmem>>, %arg7: memref<1x512xf32, #tpu.memory_space<vmem>>, %arg8: memref<512x1024xbf16, #tpu.memory_space<vmem>>, %arg9: memref<1x1024xf32, #tpu.memory_space<vmem>>, %arg10: memref<1024x64xbf16, #tpu.memory_space<vmem>>, %arg11: memref<1x64xf32, #tpu.memory_space<vmem>>, %arg12: memref<32x1024xbf16, #tpu.memory_space<vmem>>, %arg13: memref<1x1024xf32, #tpu.memory_space<vmem>>, %arg14: memref<1024x512xbf16, #tpu.memory_space<vmem>>, %arg15: memref<1x512xf32, #tpu.memory_space<vmem>>, %arg16: memref<512x1024xbf16, #tpu.memory_space<vmem>>, %arg17: memref<1x1024xf32, #tpu.memory_space<vmem>>, %arg18: memref<1024x1152xbf16, #tpu.memory_space<vmem>>, %arg19: memref<1x1152xf32, #tpu.memory_space<vmem>>, %arg20: memref<1152x432xbf16, #tpu.memory_space<vmem>>, %arg21: memref<1x432xf32, #tpu.memory_space<vmem>>, %arg22: memref<2x496xf32, #tpu.memory_space<vmem>>) attributes {dimension_semantics = [], scalar_prefetch = 0 : i64, scratch_operands = 0 : i64, tpu.core_type = #tpu.core_type<tc>} {
    %c0 = arith.constant 0 : index
    %c0_0 = arith.constant 0 : index
    %0 = vector.load %arg0[%c0, %c0_0] : memref<2x12xf32, #tpu.memory_space<vmem>>, vector<2x12xf32>
    %1 = arith.truncf %0 : vector<2x12xf32> to vector<2x12xbf16>
    %c0_1 = arith.constant 0 : index
    %c0_2 = arith.constant 0 : index
    %2 = vector.load %arg2[%c0_1, %c0_2] : memref<12x128xbf16, #tpu.memory_space<vmem>>, vector<12x128xbf16>
    %cst = arith.constant dense<0.000000e+00> : vector<2x128xf32>
    %3 = tpu.matmul %1, %2, %cst {dimension_numbers = #tpu.dot_dimension_numbers<[1], [0], [0], [1], [0, 0, 1, 1], [], []>} : vector<2x12xbf16>, vector<12x128xbf16>, vector<2x128xf32> -> vector<2x128xf32>
    %c0_3 = arith.constant 0 : index
    %c0_4 = arith.constant 0 : index
    %4 = vector.load %arg3[%c0_3, %c0_4] : memref<1x128xf32, #tpu.memory_space<vmem>>, vector<1x128xf32>
    %5 = vector.broadcast %4 : vector<1x128xf32> to vector<2x128xf32>
    %6 = arith.addf %3, %5 : vector<2x128xf32>
    %cst_5 = arith.constant 0.000000e+00 : f32
    %7 = vector.broadcast %cst_5 : f32 to vector<2x128xf32>
    %8 = arith.maximumf %6, %7 : vector<2x128xf32>
    %9 = arith.truncf %8 : vector<2x128xf32> to vector<2x128xbf16>
    %c0_6 = arith.constant 0 : index
    %c0_7 = arith.constant 0 : index
    %10 = vector.load %arg4[%c0_6, %c0_7] : memref<128x256xbf16, #tpu.memory_space<vmem>>, vector<128x256xbf16>
    %cst_8 = arith.constant dense<0.000000e+00> : vector<2x256xf32>
    %11 = tpu.matmul %9, %10, %cst_8 {dimension_numbers = #tpu.dot_dimension_numbers<[1], [0], [0], [1], [0, 0, 1, 1], [], []>} : vector<2x128xbf16>, vector<128x256xbf16>, vector<2x256xf32> -> vector<2x256xf32>
    %c0_9 = arith.constant 0 : index
    %c0_10 = arith.constant 0 : index
    %12 = vector.load %arg5[%c0_9, %c0_10] : memref<1x256xf32, #tpu.memory_space<vmem>>, vector<1x256xf32>
    %13 = vector.broadcast %12 : vector<1x256xf32> to vector<2x256xf32>
    %14 = arith.addf %11, %13 : vector<2x256xf32>
    %cst_11 = arith.constant 0.000000e+00 : f32
    %15 = vector.broadcast %cst_11 : f32 to vector<2x256xf32>
    %16 = arith.maximumf %14, %15 : vector<2x256xf32>
    %17 = arith.truncf %16 : vector<2x256xf32> to vector<2x256xbf16>
    %c0_12 = arith.constant 0 : index
    %c0_13 = arith.constant 0 : index
    %18 = vector.load %arg6[%c0_12, %c0_13] : memref<256x512xbf16, #tpu.memory_space<vmem>>, vector<256x512xbf16>
    %cst_14 = arith.constant dense<0.000000e+00> : vector<2x512xf32>
    %19 = tpu.matmul %17, %18, %cst_14 {dimension_numbers = #tpu.dot_dimension_numbers<[1], [0], [0], [1], [0, 0, 1, 1], [], []>} : vector<2x256xbf16>, vector<256x512xbf16>, vector<2x512xf32> -> vector<2x512xf32>
    %c0_15 = arith.constant 0 : index
    %c0_16 = arith.constant 0 : index
    %20 = vector.load %arg7[%c0_15, %c0_16] : memref<1x512xf32, #tpu.memory_space<vmem>>, vector<1x512xf32>
    %21 = vector.broadcast %20 : vector<1x512xf32> to vector<2x512xf32>
    %22 = arith.addf %19, %21 : vector<2x512xf32>
    %cst_17 = arith.constant 0.000000e+00 : f32
    %23 = vector.broadcast %cst_17 : f32 to vector<2x512xf32>
    %24 = arith.maximumf %22, %23 : vector<2x512xf32>
    %25 = arith.truncf %24 : vector<2x512xf32> to vector<2x512xbf16>
    %c0_18 = arith.constant 0 : index
    %c0_19 = arith.constant 0 : index
    %26 = vector.load %arg8[%c0_18, %c0_19] : memref<512x1024xbf16, #tpu.memory_space<vmem>>, vector<512x1024xbf16>
    %cst_20 = arith.constant dense<0.000000e+00> : vector<2x1024xf32>
    %27 = tpu.matmul %25, %26, %cst_20 {dimension_numbers = #tpu.dot_dimension_numbers<[1], [0], [0], [1], [0, 0, 1, 1], [], []>} : vector<2x512xbf16>, vector<512x1024xbf16>, vector<2x1024xf32> -> vector<2x1024xf32>
    %c0_21 = arith.constant 0 : index
    %c0_22 = arith.constant 0 : index
    %28 = vector.load %arg9[%c0_21, %c0_22] : memref<1x1024xf32, #tpu.memory_space<vmem>>, vector<1x1024xf32>
    %29 = vector.broadcast %28 : vector<1x1024xf32> to vector<2x1024xf32>
    %30 = arith.addf %27, %29 : vector<2x1024xf32>
    %cst_23 = arith.constant 0.000000e+00 : f32
    %31 = vector.broadcast %cst_23 : f32 to vector<2x1024xf32>
    %32 = arith.maximumf %30, %31 : vector<2x1024xf32>
    %33 = arith.truncf %32 : vector<2x1024xf32> to vector<2x1024xbf16>
    %c0_24 = arith.constant 0 : index
    %c0_25 = arith.constant 0 : index
    %34 = vector.load %arg10[%c0_24, %c0_25] : memref<1024x64xbf16, #tpu.memory_space<vmem>>, vector<1024x64xbf16>
    %cst_26 = arith.constant dense<0.000000e+00> : vector<2x64xf32>
    %35 = tpu.matmul %33, %34, %cst_26 {dimension_numbers = #tpu.dot_dimension_numbers<[1], [0], [0], [1], [0, 0, 1, 1], [], []>} : vector<2x1024xbf16>, vector<1024x64xbf16>, vector<2x64xf32> -> vector<2x64xf32>
    %c0_27 = arith.constant 0 : index
    %c0_28 = arith.constant 0 : index
    %36 = vector.load %arg11[%c0_27, %c0_28] : memref<1x64xf32, #tpu.memory_space<vmem>>, vector<1x64xf32>
    %37 = vector.broadcast %36 : vector<1x64xf32> to vector<2x64xf32>
    %38 = arith.addf %35, %37 : vector<2x64xf32>
    %39 = vector.extract_strided_slice %38 {offsets = [0, 0], sizes = [2, 32], strides = [1, 1]} : vector<2x64xf32> to vector<2x32xf32>
    %40 = vector.extract_strided_slice %38 {offsets = [0, 32], sizes = [2, 32], strides = [1, 1]} : vector<2x64xf32> to vector<2x32xf32>
    %cst_29 = arith.constant 5.000000e-01 : f32
    %41 = vector.broadcast %cst_29 : f32 to vector<2x32xf32>
    %42 = arith.mulf %40, %41 : vector<2x32xf32>
    %43 = math.exp %42 : vector<2x32xf32>
    %c0_30 = arith.constant 0 : index
    %c0_31 = arith.constant 0 : index
    %44 = vector.load %arg1[%c0_30, %c0_31] : memref<2x32xf32, #tpu.memory_space<vmem>>, vector<2x32xf32>
    %45 = arith.mulf %43, %44 : vector<2x32xf32>
    %46 = arith.addf %39, %45 : vector<2x32xf32>
    %47 = arith.truncf %46 : vector<2x32xf32> to vector<2x32xbf16>
    %c0_32 = arith.constant 0 : index
    %c0_33 = arith.constant 0 : index
    %48 = vector.load %arg12[%c0_32, %c0_33] : memref<32x1024xbf16, #tpu.memory_space<vmem>>, vector<32x1024xbf16>
    %cst_34 = arith.constant dense<0.000000e+00> : vector<2x1024xf32>
    %49 = tpu.matmul %47, %48, %cst_34 {dimension_numbers = #tpu.dot_dimension_numbers<[1], [0], [0], [1], [0, 0, 1, 1], [], []>} : vector<2x32xbf16>, vector<32x1024xbf16>, vector<2x1024xf32> -> vector<2x1024xf32>
    %c0_35 = arith.constant 0 : index
    %c0_36 = arith.constant 0 : index
    %50 = vector.load %arg13[%c0_35, %c0_36] : memref<1x1024xf32, #tpu.memory_space<vmem>>, vector<1x1024xf32>
    %51 = vector.broadcast %50 : vector<1x1024xf32> to vector<2x1024xf32>
    %52 = arith.addf %49, %51 : vector<2x1024xf32>
    %53 = arith.truncf %52 : vector<2x1024xf32> to vector<2x1024xbf16>
    %c0_37 = arith.constant 0 : index
    %c0_38 = arith.constant 0 : index
    %54 = vector.load %arg14[%c0_37, %c0_38] : memref<1024x512xbf16, #tpu.memory_space<vmem>>, vector<1024x512xbf16>
    %cst_39 = arith.constant dense<0.000000e+00> : vector<2x512xf32>
    %55 = tpu.matmul %53, %54, %cst_39 {dimension_numbers = #tpu.dot_dimension_numbers<[1], [0], [0], [1], [0, 0, 1, 1], [], []>} : vector<2x1024xbf16>, vector<1024x512xbf16>, vector<2x512xf32> -> vector<2x512xf32>
    %c0_40 = arith.constant 0 : index
    %c0_41 = arith.constant 0 : index
    %56 = vector.load %arg15[%c0_40, %c0_41] : memref<1x512xf32, #tpu.memory_space<vmem>>, vector<1x512xf32>
    %57 = vector.broadcast %56 : vector<1x512xf32> to vector<2x512xf32>
    %58 = arith.addf %55, %57 : vector<2x512xf32>
    %cst_42 = arith.constant 0.000000e+00 : f32
    %59 = vector.broadcast %cst_42 : f32 to vector<2x512xf32>
    %60 = arith.maximumf %58, %59 : vector<2x512xf32>
    %61 = arith.truncf %60 : vector<2x512xf32> to vector<2x512xbf16>
    %c0_43 = arith.constant 0 : index
    %c0_44 = arith.constant 0 : index
    %62 = vector.load %arg16[%c0_43, %c0_44] : memref<512x1024xbf16, #tpu.memory_space<vmem>>, vector<512x1024xbf16>
    %cst_45 = arith.constant dense<0.000000e+00> : vector<2x1024xf32>
    %63 = tpu.matmul %61, %62, %cst_45 {dimension_numbers = #tpu.dot_dimension_numbers<[1], [0], [0], [1], [0, 0, 1, 1], [], []>} : vector<2x512xbf16>, vector<512x1024xbf16>, vector<2x1024xf32> -> vector<2x1024xf32>
    %c0_46 = arith.constant 0 : index
    %c0_47 = arith.constant 0 : index
    %64 = vector.load %arg17[%c0_46, %c0_47] : memref<1x1024xf32, #tpu.memory_space<vmem>>, vector<1x1024xf32>
    %65 = vector.broadcast %64 : vector<1x1024xf32> to vector<2x1024xf32>
    %66 = arith.addf %63, %65 : vector<2x1024xf32>
    %cst_48 = arith.constant 0.000000e+00 : f32
    %67 = vector.broadcast %cst_48 : f32 to vector<2x1024xf32>
    %68 = arith.maximumf %66, %67 : vector<2x1024xf32>
    %69 = arith.truncf %68 : vector<2x1024xf32> to vector<2x1024xbf16>
    %c0_49 = arith.constant 0 : index
    %c0_50 = arith.constant 0 : index
    %70 = vector.load %arg18[%c0_49, %c0_50] : memref<1024x1152xbf16, #tpu.memory_space<vmem>>, vector<1024x1152xbf16>
    %cst_51 = arith.constant dense<0.000000e+00> : vector<2x1152xf32>
    %71 = tpu.matmul %69, %70, %cst_51 {dimension_numbers = #tpu.dot_dimension_numbers<[1], [0], [0], [1], [0, 0, 1, 1], [], []>} : vector<2x1024xbf16>, vector<1024x1152xbf16>, vector<2x1152xf32> -> vector<2x1152xf32>
    %c0_52 = arith.constant 0 : index
    %c0_53 = arith.constant 0 : index
    %72 = vector.load %arg19[%c0_52, %c0_53] : memref<1x1152xf32, #tpu.memory_space<vmem>>, vector<1x1152xf32>
    %73 = vector.broadcast %72 : vector<1x1152xf32> to vector<2x1152xf32>
    %74 = arith.addf %71, %73 : vector<2x1152xf32>
    %cst_54 = arith.constant 0.000000e+00 : f32
    %75 = vector.broadcast %cst_54 : f32 to vector<2x1152xf32>
    %76 = arith.maximumf %74, %75 : vector<2x1152xf32>
    %77 = arith.truncf %76 : vector<2x1152xf32> to vector<2x1152xbf16>
    %c0_55 = arith.constant 0 : index
    %c0_56 = arith.constant 0 : index
    %78 = vector.load %arg20[%c0_55, %c0_56] : memref<1152x432xbf16, #tpu.memory_space<vmem>>, vector<1152x432xbf16>
    %cst_57 = arith.constant dense<0.000000e+00> : vector<2x432xf32>
    %79 = tpu.matmul %77, %78, %cst_57 {dimension_numbers = #tpu.dot_dimension_numbers<[1], [0], [0], [1], [0, 0, 1, 1], [], []>} : vector<2x1152xbf16>, vector<1152x432xbf16>, vector<2x432xf32> -> vector<2x432xf32>
    %c0_58 = arith.constant 0 : index
    %c0_59 = arith.constant 0 : index
    %80 = vector.load %arg21[%c0_58, %c0_59] : memref<1x432xf32, #tpu.memory_space<vmem>>, vector<1x432xf32>
    %81 = vector.broadcast %80 : vector<1x432xf32> to vector<2x432xf32>
    %82 = arith.addf %79, %81 : vector<2x432xf32>
    %83 = arith.negf %82 : vector<2x432xf32>
    %84 = math.exp %83 : vector<2x432xf32>
    %cst_60 = arith.constant 1.000000e+00 : f32
    %85 = vector.broadcast %cst_60 : f32 to vector<2x432xf32>
    %86 = arith.addf %85, %84 : vector<2x432xf32>
    %87 = arith.divf %85, %86 : vector<2x432xf32>
    %88 = tpu.concatenate %87, %38 in 1 : vector<2x432xf32>, vector<2x64xf32> -> vector<2x496xf32>
    %c0_61 = arith.constant 0 : index
    %c0_62 = arith.constant 0 : index
    %89 = vector.load %arg22[%c0_61, %c0_62] : memref<2x496xf32, #tpu.memory_space<vmem>>, vector<2x496xf32>
    tpu.vector_store %arg22[%c0_61, %c0_62], %88 {strides = array<i32>} : memref<2x496xf32, #tpu.memory_space<vmem>>, vector<2x496xf32>,
    return
  }
}

</mosaic_0001>

<llo_original>
// kernel: vae_forward.1
$region0: #{vae_forward.1}
  #allocation0 [shape = 'u32[]', space=smem, size = 0x4, offset = 0x4, fixed_abs, tag = 'smem constant byte address 0x4 - core index']
  #allocation1 [shape = 'u32[144,128]{1,0:T(1,128)}', space=vmem, size = 0x12000, scoped, tag = 'internal scratch']
  %s0 = inlined_call_operand.vmem [shape: f32[2,12], index: 0, kind: input, shape index: {}]
  %s1 = inlined_call_operand.vmem [shape: f32[2,32], index: 1, kind: input, shape index: {}]
  %s2 = inlined_call_operand.vmem [shape: bf16[12,128], index: 2, kind: input, shape index: {}]
  %s3 = inlined_call_operand.vmem [shape: f32[1,128], index: 3, kind: input, shape index: {}]
  %s4 = inlined_call_operand.vmem [shape: bf16[128,256], index: 4, kind: input, shape index: {}]
  %s5 = inlined_call_operand.vmem [shape: f32[1,256], index: 5, kind: input, shape index: {}]
  %s6 = inlined_call_operand.hbm [shape: bf16[256,512], index: 6, kind: input, shape index: {}]
  %s7 = inlined_call_operand.vmem [shape: f32[1,512], index: 7, kind: input, shape index: {}]
  %s8 = inlined_call_operand.hbm [shape: bf16[512,1024], index: 8, kind: input, shape index: {}]
  %s9 = inlined_call_operand.vmem [shape: f32[1,1024], index: 9, kind: input, shape index: {}]
  %s10 = inlined_call_operand.vmem [shape: bf16[1024,64], index: 10, kind: input, shape index: {}]
  %s11 = inlined_call_operand.vmem [shape: f32[1,64], index: 11, kind: input, shape index: {}]
  %s12 = inlined_call_operand.vmem [shape: bf16[32,1024], index: 12, kind: input, shape index: {}]
  %s13 = inlined_call_operand.vmem [shape: f32[1,1024], index: 13, kind: input, shape index: {}]
  %s14 = inlined_call_operand.hbm [shape: bf16[1024,512], index: 14, kind: input, shape index: {}]
  %s15 = inlined_call_operand.vmem [shape: f32[1,512], index: 15, kind: input, shape index: {}]
  %s16 = inlined_call_operand.hbm [shape: bf16[512,1024], index: 16, kind: input, shape index: {}]
  %s17 = inlined_call_operand.vmem [shape: f32[1,1024], index: 17, kind: input, shape index: {}]
  %s18 = inlined_call_operand.vmem [shape: bf16[1024,1152], index: 18, kind: input, shape index: {}]
  %s19 = inlined_call_operand.vmem [shape: f32[1,1152], index: 19, kind: input, shape index: {}]
  %s20 = inlined_call_operand.vmem [shape: bf16[1152,432], index: 20, kind: input, shape index: {}]
  %s21 = inlined_call_operand.vmem [shape: f32[1,432], index: 21, kind: input, shape index: {}]
  %s22 = inlined_call_operand.vmem [shape: f32[2,496], index: 22, kind: output, shape index: {}]
  %s23 = sld [smem:[#allocation0]]
  $region114: #{vae_forward.1} parent=0
    _
  %s25 = ssub.s32 1, %s23
  %s26 = scalar_select 0, %s25, %s23
  $region1: #{vae_forward.1} parent=0
    #allocation2 [shape = 'u8[262144]{0}', space=vmem, size = 0x40000, scoped, tag = 'input window, operand 6, single buffered']
    #allocation3 [shape = 's32[1]{0}', space=sflag, size = 0x4, scoped, tag = 'scoped memory for vae_forward.1']
    #allocation4 [shape = 'u8[1048576]{0}', space=vmem, size = 0x100000, scoped, tag = 'input window, operand 8, single buffered']
    #allocation5 [shape = 's32[1]{0}', space=sflag, size = 0x4, scoped, tag = 'scoped memory for vae_forward.1']
    #allocation6 [shape = 'u8[1048576]{0}', space=vmem, size = 0x100000, scoped, tag = 'input window, operand 14, single buffered']
    #allocation7 [shape = 'u8[1048576]{0}', space=vmem, size = 0x100000, scoped, tag = 'input window, operand 16, single buffered']
    #allocation8 [shape = 's32[1]{0}', space=sflag, size = 0x4, scoped, tag = 'scoped memory for vae_forward.1']
    %27 = vsyncpa [#allocation3], 0
    %28 = vsyncpa [#allocation5], 0
    %29 = vsyncpa [#allocation8], 0
    // Predicated region
    $region2: #{vae_forward.1} parent=1 // pred_check
      _
    $region3: #{vae_forward.1} parent=1 // pred_check_branch
      %31 = sbr.rel (0) target = $region5
    $region4: #{vae_forward.1} parent=1 // pred_region
      _
    $region5: #{vae_forward.1} parent=1 // pred_fallthru
      _
    // Predicated region
    $region6: #{vae_forward.1} parent=1 // pred_check
      _
    $region7: #{vae_forward.1} parent=1 // pred_check_branch
      %33 = sbr.rel (0) target = $region9
    $region8: #{vae_forward.1} parent=1 // pred_region
      _
    $region9: #{vae_forward.1} parent=1 // pred_fallthru
      _
    // Predicated region
    $region10: #{vae_forward.1} parent=1 // pred_check
      _
    $region11: #{vae_forward.1} parent=1 // pred_check_branch
      %35 = sbr.rel (0) target = $region13
    $region12: #{vae_forward.1} parent=1 // pred_region
      _
    $region13: #{vae_forward.1} parent=1 // pred_fallthru
      _
    // Predicated region
    $region14: #{vae_forward.1} parent=1 // pred_check
      _
    $region15: #{vae_forward.1} parent=1 // pred_check_branch
      %37 = sbr.rel (0) target = $region17
    $region16: #{vae_forward.1} parent=1 // pred_region
      _
    $region17: #{vae_forward.1} parent=1 // pred_fallthru
      _
    // Predicated region
    $region18: #{vae_forward.1} parent=1 // pred_check
      _
    $region19: #{vae_forward.1} parent=1 // pred_check_branch
      %39 = sbr.rel (0) target = $region21
    $region20: #{vae_forward.1} parent=1 // pred_region
      _
    $region21: #{vae_forward.1} parent=1 // pred_fallthru
      _
    // Predicated region
    $region22: #{vae_forward.1} parent=1 // pred_check
      _
    $region23: #{vae_forward.1} parent=1 // pred_check_branch
      %41 = sbr.rel (0) target = $region25
    $region24: #{vae_forward.1} parent=1 // pred_region
      _
    $region25: #{vae_forward.1} parent=1 // pred_fallthru
      _
    // Predicated region
    $region26: #{vae_forward.1} parent=1 // pred_check
      _
    $region27: #{vae_forward.1} parent=1 // pred_check_branch
      %43 = sbr.rel (0) target = $region29
    $region28: #{vae_forward.1} parent=1 // pred_region
      %s45 = ssub.s32 8192, 8192
      %46 = vsyncadd [#allocation3], %s45
      %s47 = sshll.u32 [#allocation2], 4
      %s48 = int_to_ptr.vmem [resolvable:$true] %s47
      %53 = dma.hbm_to_vmem [thread:$0]  %s6, 8192, %s48, [#allocation3], 256, 256, 16
    $region29: #{vae_forward.1} parent=1 // pred_fallthru
      _
    // Predicated region
    $region30: #{vae_forward.1} parent=1 // pred_check
      _
    $region31: #{vae_forward.1} parent=1 // pred_check_branch
      %55 = sbr.rel (0) target = $region33
    $region32: #{vae_forward.1} parent=1 // pred_region
      _
    $region33: #{vae_forward.1} parent=1 // pred_fallthru
      _
    // Predicated region
    $region34: #{vae_forward.1} parent=1 // pred_check
      _
    $region35: #{vae_forward.1} parent=1 // pred_check_branch
      %57 = sbr.rel (0) target = $region37
    $region36: #{vae_forward.1} parent=1 // pred_region
      %s59 = ssub.s32 32768, 32768
      %60 = vsyncadd [#allocation5], %s59
      %s61 = sshll.u32 [#allocation4], 4
      %s62 = int_to_ptr.vmem [resolvable:$true] %s61
      %67 = dma.hbm_to_vmem [thread:$0]  %s8, 32768, %s62, [#allocation5], 512, 512, 32
    $region37: #{vae_forward.1} parent=1 // pred_fallthru
      _
    // Predicated region
    $region38: #{vae_forward.1} parent=1 // pred_check
      _
    $region39: #{vae_forward.1} parent=1 // pred_check_branch
      %69 = sbr.rel (0) target = $region41
    $region40: #{vae_forward.1} parent=1 // pred_region
      _
    $region41: #{vae_forward.1} parent=1 // pred_fallthru
      _
    // Predicated region
    $region42: #{vae_forward.1} parent=1 // pred_check
      _
    $region43: #{vae_forward.1} parent=1 // pred_check_branch
      %71 = sbr.rel (0) target = $region45
    $region44: #{vae_forward.1} parent=1 // pred_region
      _
    $region45: #{vae_forward.1} parent=1 // pred_fallthru
      _
    // Predicated region
    $region46: #{vae_forward.1} parent=1 // pred_check
      _
    $region47: #{vae_forward.1} parent=1 // pred_check_branch
      %73 = sbr.rel (0) target = $region49
    $region48: #{vae_forward.1} parent=1 // pred_region
      _
    $region49: #{vae_forward.1} parent=1 // pred_fallthru
      _
    // Predicated region
    $region50: #{vae_forward.1} parent=1 // pred_check
      _
    $region51: #{vae_forward.1} parent=1 // pred_check_branch
      %75 = sbr.rel (0) target = $region53
    $region52: #{vae_forward.1} parent=1 // pred_region
      _
    $region53: #{vae_forward.1} parent=1 // pred_fallthru
      _
    // Predicated region
    $region54: #{vae_forward.1} parent=1 // pred_check
      _
    $region55: #{vae_forward.1} parent=1 // pred_check_branch
      %77 = sbr.rel (0) target = $region57
    $region56: #{vae_forward.1} parent=1 // pred_region
      _
    $region57: #{vae_forward.1} parent=1 // pred_fallthru
      _
    // Predicated region
    $region58: #{vae_forward.1} parent=1 // pred_check
      _
    $region59: #{vae_forward.1} parent=1 // pred_check_branch
      %79 = sbr.rel (0) target = $region61
    $region60: #{vae_forward.1} parent=1 // pred_region
      %s81 = ssub.s32 32768, 32768
      %82 = vsyncadd [#allocation5], %s81
      %s83 = sshll.u32 [#allocation6], 4
      %s84 = int_to_ptr.vmem [resolvable:$true] %s83
      %89 = dma.hbm_to_vmem [thread:$0]  %s14, 32768, %s84, [#allocation5], 256, 256, 16
    $region61: #{vae_forward.1} parent=1 // pred_fallthru
      _
    // Predicated region
    $region62: #{vae_forward.1} parent=1 // pred_check
      _
    $region63: #{vae_forward.1} parent=1 // pred_check_branch
      %91 = sbr.rel (0) target = $region65
    $region64: #{vae_forward.1} parent=1 // pred_region
      _
    $region65: #{vae_forward.1} parent=1 // pred_fallthru
      _
    // Predicated region
    $region66: #{vae_forward.1} parent=1 // pred_check
      _
    $region67: #{vae_forward.1} parent=1 // pred_check_branch
      %93 = sbr.rel (0) target = $region69
    $region68: #{vae_forward.1} parent=1 // pred_region
      %s95 = ssub.s32 32768, 32768
      %96 = vsyncadd [#allocation8], %s95
      %s97 = sshll.u32 [#allocation7], 4
      %s98 = int_to_ptr.vmem [resolvable:$true] %s97
      %103 = dma.hbm_to_vmem [thread:$0]  %s16, 32768, %s98, [#allocation8], 512, 512, 32
    $region69: #{vae_forward.1} parent=1 // pred_fallthru
      _
    // Predicated region
    $region70: #{vae_forward.1} parent=1 // pred_check
      _
    $region71: #{vae_forward.1} parent=1 // pred_check_branch
      %105 = sbr.rel (0) target = $region73
    $region72: #{vae_forward.1} parent=1 // pred_region
      _
    $region73: #{vae_forward.1} parent=1 // pred_fallthru
      _
    // Predicated region
    $region74: #{vae_forward.1} parent=1 // pred_check
      _
    $region75: #{vae_forward.1} parent=1 // pred_check_branch
      %107 = sbr.rel (0) target = $region77
    $region76: #{vae_forward.1} parent=1 // pred_region
      _
    $region77: #{vae_forward.1} parent=1 // pred_fallthru
      _
    // Predicated region
    $region78: #{vae_forward.1} parent=1 // pred_check
      _
    $region79: #{vae_forward.1} parent=1 // pred_check_branch
      %109 = sbr.rel (0) target = $region81
    $region80: #{vae_forward.1} parent=1 // pred_region
      _
    $region81: #{vae_forward.1} parent=1 // pred_fallthru
      _
    // Predicated region
    $region82: #{vae_forward.1} parent=1 // pred_check
      _
    $region83: #{vae_forward.1} parent=1 // pred_check_branch
      %111 = sbr.rel (0) target = $region85
    $region84: #{vae_forward.1} parent=1 // pred_region
      _
    $region85: #{vae_forward.1} parent=1 // pred_fallthru
      _
    // Predicated region
    $region86: #{vae_forward.1} parent=1 // pred_check
      _
    $region87: #{vae_forward.1} parent=1 // pred_check_branch
      %113 = sbr.rel (0) target = $region89
    $region88: #{vae_forward.1} parent=1 // pred_region
      _
    $region89: #{vae_forward.1} parent=1 // pred_fallthru
      _
    // Predicated region
    $region90: #{vae_forward.1} parent=1 // pred_check
      _
    $region91: #{vae_forward.1} parent=1 // pred_check_branch
      %115 = sbr.rel (0) target = $region93
    $region92: #{vae_forward.1} parent=1 // pred_region
      %116 = dma.done [#allocation3], 8192
    $region93: #{vae_forward.1} parent=1 // pred_fallthru
      _
    // Predicated region
    $region94: #{vae_forward.1} parent=1 // pred_check
      _
    $region95: #{vae_forward.1} parent=1 // pred_check_branch
      %118 = sbr.rel (0) target = $region97
    $region96: #{vae_forward.1} parent=1 // pred_region
      %119 = dma.done [#allocation5], 32768
    $region97: #{vae_forward.1} parent=1 // pred_fallthru
      _
    // Predicated region
    $region98: #{vae_forward.1} parent=1 // pred_check
      _
    $region99: #{vae_forward.1} parent=1 // pred_check_branch
      %121 = sbr.rel (0) target = $region101
    $region100: #{vae_forward.1} parent=1 // pred_region
      %122 = dma.done [#allocation5], 32768
    $region101: #{vae_forward.1} parent=1 // pred_fallthru
      _
    // Predicated region
    $region102: #{vae_forward.1} parent=1 // pred_check
      _
    $region103: #{vae_forward.1} parent=1 // pred_check_branch
      %124 = sbr.rel (0) target = $region105
    $region104: #{vae_forward.1} parent=1 // pred_region
      %125 = dma.done [#allocation8], 32768
    $region105: #{vae_forward.1} parent=1 // pred_fallthru
      _
    %v127 = vld [vmem:[%s0] sm:$0x3]
    %v128 = vpack.c.bf16 %v127, %v127
    %v129 = vld [vmem:[%s2] sm:$0xf]
    %v130 = vld [vmem:[%s2 + $0x4] sm:$0x3]
    %v131 = vld [vmem:[%s3] sm:$0x1]
    %v133 = vlaneseq
    %v134 = vshrl.u32 %v133, 7
    %v135 = vsub.s32 0, %v134
    %v136 = vrot.slane %v131, %v135
    %v140 = vunpack.c.l.b16 %v129
    %v141 = vunpack.c.l.b16 %v130
    %v142 = vpack.c.b16 %v141, %v140
    %vm143 = vcmask 97280
    %v145 = vsel %vm143, %v128, 0
    %vm147 = vcmask 1045504
    %v149 = vsel %vm147, %v142, 0
    %151 = vmatprep.subr.bf16.mxu0 0
    %152 = vmatpush1.bf16.msra.mxu0 %v149
    %153 = vmatprep.subr.bf16.mxu0 0
    %154 = vmatpush1.bf16.msra.mxu0 0
    %155 = vmatprep.subr.bf16.mxu0 0
    %156 = vmatpush1.bf16.msra.mxu0 0
    %157 = vmatprep.subr.bf16.mxu0 0
    %158 = vmatpush1.bf16.msra.mxu0 0
    %159 = vmatprep.subr.bf16.mxu0 0
    %160 = vmatpush1.bf16.msra.mxu0 0
    %161 = vmatprep.subr.bf16.mxu0 0
    %162 = vmatpush1.bf16.msra.mxu0 0
    %163 = vmatprep.subr.bf16.mxu0 0
    %164 = vmatpush1.bf16.msra.mxu0 0
    %165 = vmatprep.subr.bf16.mxu0 0
    %166 = vmatpush1.bf16.msra.mxu0 0
    %167 = vmatprep.subr.bf16.mxu0 0
    %168 = vmatpush1.bf16.msra.mxu0 0
    %169 = vmatprep.subr.bf16.mxu0 0
    %170 = vmatpush1.bf16.msra.mxu0 0
    %171 = vmatprep.subr.bf16.mxu0 0
    %172 = vmatpush1.bf16.msra.mxu0 0
    %173 = vmatprep.subr.bf16.mxu0 0
    %174 = vmatpush1.bf16.msra.mxu0 0
    %175 = vmatprep.subr.bf16.mxu0 0
    %176 = vmatpush1.bf16.msra.mxu0 0
    %177 = vmatprep.subr.bf16.mxu0 0
    %178 = vmatpush1.bf16.msra.mxu0 0
    %179 = vmatprep.subr.bf16.mxu0 0
    %180 = vmatpush1.bf16.msra.mxu0 0
    %181 = vmatprep.subr.bf16.mxu0 0
    %182 = vmatpush1.bf16.msra.mxu0 0
    %183 = vmatprep.mubr.bf16.mxu0 0
    %184 = vmatmul.mubr.bf16.gmra.mrb[0].mxu0 %v145
    %v185 = vpop.f32.mrb[0].mxu0
    %v186 = vadd.f32 %v136, %v185
    %v187 = vpop.f32.mrb[0].mxu0
    %v188 = vpop.f32.mrb[0].mxu0
    %v189 = vpop.f32.mrb[0].mxu0
    %190 = vdwg.mxu0
    %v191 = vmax.f32 %v186, 0.0
    %v192 = vpack.c.bf16 %v191, %v191
    %v193 = vld [vmem:[%s4] sm:$0xff]
    %v194 = vld [vmem:[%s4 + $0x8] sm:$0xff]
    %v195 = vld [vmem:[%s4 + $0x10] sm:$0xff]
    %v196 = vld [vmem:[%s4 + $0x18] sm:$0xff]
    %v197 = vld [vmem:[%s4 + $0x20] sm:$0xff]
    %v198 = vld [vmem:[%s4 + $0x28] sm:$0xff]
    %v199 = vld [vmem:[%s4 + $0x30] sm:$0xff]
    %v200 = vld [vmem:[%s4 + $0x38] sm:$0xff]
    %v201 = vld [vmem:[%s4 + $0x40] sm:$0xff]
    %v202 = vld [vmem:[%s4 + $0x48] sm:$0xff]
    %v203 = vld [vmem:[%s4 + $0x50] sm:$0xff]
    %v204 = vld [vmem:[%s4 + $0x58] sm:$0xff]
    %v205 = vld [vmem:[%s4 + $0x60] sm:$0xff]
    %v206 = vld [vmem:[%s4 + $0x68] sm:$0xff]
    %v207 = vld [vmem:[%s4 + $0x70] sm:$0xff]
    %v208 = vld [vmem:[%s4 + $0x78] sm:$0xff]
    %v209 = vld [vmem:[%s5] sm:$0x3]
    %v211 = vlaneseq
    %v212 = vshrl.u32 %v211, 7
    %v213 = vsub.s32 0, %v212
    %v214 = vrot.slane %v209, %v213
    %v215 = vlaneseq
    %v216 = vshrl.u32 %v215, 7
    %v217 = vsub.s32 1, %v216
    %v218 = vrot.slane %v209, %v217
    %v237 = vunpack.c.l.b16 %v193
    %v238 = vunpack.c.h.b16 %v193
    %v239 = vunpack.c.l.b16 %v194
    %v240 = vunpack.c.h.b16 %v194
    %v241 = vunpack.c.l.b16 %v195
    %v242 = vunpack.c.h.b16 %v195
    %v243 = vunpack.c.l.b16 %v196
    %v244 = vunpack.c.h.b16 %v196
    %v245 = vunpack.c.l.b16 %v197
    %v246 = vunpack.c.h.b16 %v197
    %v247 = vunpack.c.l.b16 %v198
    %v248 = vunpack.c.h.b16 %v198
    %v249 = vunpack.c.l.b16 %v199
    %v250 = vunpack.c.h.b16 %v199
    %v251 = vunpack.c.l.b16 %v200
    %v252 = vunpack.c.h.b16 %v200
    %v253 = vunpack.c.l.b16 %v201
    %v254 = vunpack.c.h.b16 %v201
    %v255 = vunpack.c.l.b16 %v202
    %v256 = vunpack.c.h.b16 %v202
    %v257 = vunpack.c.l.b16 %v203
    %v258 = vunpack.c.h.b16 %v203
    %v259 = vunpack.c.l.b16 %v204
    %v260 = vunpack.c.h.b16 %v204
    %v261 = vunpack.c.l.b16 %v205
    %v262 = vunpack.c.h.b16 %v205
    %v263 = vunpack.c.l.b16 %v206
    %v264 = vunpack.c.h.b16 %v206
    %v265 = vunpack.c.l.b16 %v207
    %v266 = vunpack.c.h.b16 %v207
    %v267 = vunpack.c.l.b16 %v208
    %v268 = vunpack.c.h.b16 %v208
    %v269 = vpack.c.b16 %v239, %v237
    %v270 = vpack.c.b16 %v240, %v238
    %v271 = vpack.c.b16 %v243, %v241
    %v272 = vpack.c.b16 %v244, %v242
    %v273 = vpack.c.b16 %v247, %v245
    %v274 = vpack.c.b16 %v248, %v246
    %v275 = vpack.c.b16 %v251, %v249
    %v276 = vpack.c.b16 %v252, %v250
    %v277 = vpack.c.b16 %v255, %v253
    %v278 = vpack.c.b16 %v256, %v254
    %v279 = vpack.c.b16 %v259, %v257
    %v280 = vpack.c.b16 %v260, %v258
    %v281 = vpack.c.b16 %v263, %v261
    %v282 = vpack.c.b16 %v264, %v262
    %v283 = vpack.c.b16 %v267, %v265
    %v284 = vpack.c.b16 %v268, %v266
    %301 = vmatprep.subr.bf16.mxu0 %v270
    %302 = vmatpush1.bf16.msra.mxu0 %v269
    %303 = vmatprep.subr.bf16.mxu0 %v272
    %304 = vmatpush1.bf16.msra.mxu0 %v271
    %305 = vmatprep.subr.bf16.mxu0 %v274
    %306 = vmatpush1.bf16.msra.mxu0 %v273
    %307 = vmatprep.subr.bf16.mxu0 %v276
    %308 = vmatpush1.bf16.msra.mxu0 %v275
    %309 = vmatprep.subr.bf16.mxu0 %v278
    %310 = vmatpush1.bf16.msra.mxu0 %v277
    %311 = vmatprep.subr.bf16.mxu0 %v280
    %312 = vmatpush1.bf16.msra.mxu0 %v279
    %313 = vmatprep.subr.bf16.mxu0 %v282
    %314 = vmatpush1.bf16.msra.mxu0 %v281
    %315 = vmatprep.subr.bf16.mxu0 %v284
    %316 = vmatpush1.bf16.msra.mxu0 %v283
    %317 = vmatprep.subr.bf16.mxu0 0
    %318 = vmatpush1.bf16.msra.mxu0 0
    %319 = vmatprep.subr.bf16.mxu0 0
    %320 = vmatpush1.bf16.msra.mxu0 0
    %321 = vmatprep.subr.bf16.mxu0 0
    %322 = vmatpush1.bf16.msra.mxu0 0
    %323 = vmatprep.subr.bf16.mxu0 0
    %324 = vmatpush1.bf16.msra.mxu0 0
    %325 = vmatprep.subr.bf16.mxu0 0
    %326 = vmatpush1.bf16.msra.mxu0 0
    %327 = vmatprep.subr.bf16.mxu0 0
    %328 = vmatpush1.bf16.msra.mxu0 0
    %329 = vmatprep.subr.bf16.mxu0 0
    %330 = vmatpush1.bf16.msra.mxu0 0
    %331 = vmatprep.subr.bf16.mxu0 0
    %332 = vmatpush1.bf16.msra.mxu0 0
    %333 = vmatprep.mubr.bf16.mxu0 0
    %334 = vmatmul.mubr.bf16.gmra.mrb[0].mxu0 %v192
    %v335 = vpop.f32.mrb[0].mxu0
    %v336 = vadd.f32 %v214, %v335
    %v337 = vpop.f32.mrb[0].mxu0
    %v338 = vadd.f32 %v218, %v337
    %v339 = vpop.f32.mrb[0].mxu0
    %v340 = vpop.f32.mrb[0].mxu0
    %341 = vdwg.mxu0
    %v342 = vmax.f32 %v336, 0.0
    %v343 = vmax.f32 %v338, 0.0
    %v344 = vpack.c.bf16 %v342, %v342
    %v345 = vpack.c.bf16 %v343, %v343
    %v346 = vld [vmem:[#allocation2] sm:$0xff]
    %v347 = vld [vmem:[#allocation2 + $0x8] sm:$0xff]
    %v348 = vld [vmem:[#allocation2 + $0x10] sm:$0xff]
    %v349 = vld [vmem:[#allocation2 + $0x18] sm:$0xff]
    %v350 = vld [vmem:[#allocation2 + $0x20] sm:$0xff]
    %v351 = vld [vmem:[#allocation2 + $0x28] sm:$0xff]
    %v352 = vld [vmem:[#allocation2 + $0x30] sm:$0xff]
    %v353 = vld [vmem:[#allocation2 + $0x38] sm:$0xff]
    %v354 = vld [vmem:[#allocation2 + $0x40] sm:$0xff]
    %v355 = vld [vmem:[#allocation2 + $0x48] sm:$0xff]
    %v356 = vld [vmem:[#allocation2 + $0x50] sm:$0xff]
    %v357 = vld [vmem:[#allocation2 + $0x58] sm:$0xff]
    %v358 = vld [vmem:[#allocation2 + $0x60] sm:$0xff]
    %v359 = vld [vmem:[#allocation2 + $0x68] sm:$0xff]
    %v360 = vld [vmem:[#allocation2 + $0x70] sm:$0xff]
    %v361 = vld [vmem:[#allocation2 + $0x78] sm:$0xff]
    %v362 = vld [vmem:[#allocation2 + $0x80] sm:$0xff]
    %v363 = vld [vmem:[#allocation2 + $0x88] sm:$0xff]
    %v364 = vld [vmem:[#allocation2 + $0x90] sm:$0xff]
    %v365 = vld [vmem:[#allocation2 + $0x98] sm:$0xff]
    %v366 = vld [vmem:[#allocation2 + $0xa0] sm:$0xff]
    %v367 = vld [vmem:[#allocation2 + $0xa8] sm:$0xff]
    %v368 = vld [vmem:[#allocation2 + $0xb0] sm:$0xff]
    %v369 = vld [vmem:[#allocation2 + $0xb8] sm:$0xff]
    %v370 = vld [vmem:[#allocation2 + $0xc0] sm:$0xff]
    %v371 = vld [vmem:[#allocation2 + $0xc8] sm:$0xff]
    %v372 = vld [vmem:[#allocation2 + $0xd0] sm:$0xff]
    %v373 = vld [vmem:[#allocation2 + $0xd8] sm:$0xff]
    %v374 = vld [vmem:[#allocation2 + $0xe0] sm:$0xff]
    %v375 = vld [vmem:[#allocation2 + $0xe8] sm:$0xff]
    %v376 = vld [vmem:[#allocation2 + $0xf0] sm:$0xff]
    %v377 = vld [vmem:[#allocation2 + $0xf8] sm:$0xff]
    %v378 = vld [vmem:[#allocation2 + $0x100] sm:$0xff]
    %v379 = vld [vmem:[#allocation2 + $0x108] sm:$0xff]
    %v380 = vld [vmem:[#allocation2 + $0x110] sm:$0xff]
    %v381 = vld [vmem:[#allocation2 + $0x118] sm:$0xff]
    %v382 = vld [vmem:[#allocation2 + $0x120] sm:$0xff]
    %v383 = vld [vmem:[#allocation2 + $0x128] sm:$0xff]
    %v384 = vld [vmem:[#allocation2 + $0x130] sm:$0xff]
    %v385 = vld [vmem:[#allocation2 + $0x138] sm:$0xff]
    %v386 = vld [vmem:[#allocation2 + $0x140] sm:$0xff]
    %v387 = vld [vmem:[#allocation2 + $0x148] sm:$0xff]
    %v388 = vld [vmem:[#allocation2 + $0x150] sm:$0xff]
    %v389 = vld [vmem:[#allocation2 + $0x158] sm:$0xff]
    %v390 = vld [vmem:[#allocation2 + $0x160] sm:$0xff]
    %v391 = vld [vmem:[#allocation2 + $0x168] sm:$0xff]
    %v392 = vld [vmem:[#allocation2 + $0x170] sm:$0xff]
    %v393 = vld [vmem:[#allocation2 + $0x178] sm:$0xff]
    %v394 = vld [vmem:[#allocation2 + $0x180] sm:$0xff]
    %v395 = vld [vmem:[#allocation2 + $0x188] sm:$0xff]
    %v396 = vld [vmem:[#allocation2 + $0x190] sm:$0xff]
    %v397 = vld [vmem:[#allocation2 + $0x198] sm:$0xff]
    %v398 = vld [vmem:[#allocation2 + $0x1a0] sm:$0xff]
    %v399 = vld [vmem:[#allocation2 + $0x1a8] sm:$0xff]
    %v400 = vld [vmem:[#allocation2 + $0x1b0] sm:$0xff]
    %v401 = vld [vmem:[#allocation2 + $0x1b8] sm:$0xff]
    %v402 = vld [vmem:[#allocation2 + $0x1c0] sm:$0xff]
    %v403 = vld [vmem:[#allocation2 + $0x1c8] sm:$0xff]
    %v404 = vld [vmem:[#allocation2 + $0x1d0] sm:$0xff]
    %v405 = vld [vmem:[#allocation2 + $0x1d8] sm:$0xff]
    %v406 = vld [vmem:[#allocation2 + $0x1e0] sm:$0xff]
    %v407 = vld [vmem:[#allocation2 + $0x1e8] sm:$0xff]
    %v408 = vld [vmem:[#allocation2 + $0x1f0] sm:$0xff]
    %v409 = vld [vmem:[#allocation2 + $0x1f8] sm:$0xff]
    %v410 = vld [vmem:[%s7] sm:$0xf]
    %v412 = vlaneseq
    %v413 = vshrl.u32 %v412, 7
    %v414 = vsub.s32 0, %v413
    %v415 = vrot.slane %v410, %v414
    %v416 = vlaneseq
    %v417 = vshrl.u32 %v416, 7
    %v418 = vsub.s32 1, %v417
    %v419 = vrot.slane %v410, %v418
    %v420 = vlaneseq
    %v421 = vshrl.u32 %v420, 7
    %v422 = vsub.s32 2, %v421
    %v423 = vrot.slane %v410, %v422
    %v424 = vlaneseq
    %v425 = vshrl.u32 %v424, 7
    %v426 = vsub.s32 3, %v425
    %v427 = vrot.slane %v410, %v426
    %v496 = vunpack.c.l.b16 %v346
    %v497 = vunpack.c.h.b16 %v346
    %v498 = vunpack.c.l.b16 %v347
    %v499 = vunpack.c.h.b16 %v347
    %v500 = vunpack.c.l.b16 %v348
    %v501 = vunpack.c.h.b16 %v348
    %v502 = vunpack.c.l.b16 %v349
    %v503 = vunpack.c.h.b16 %v349
    %v504 = vunpack.c.l.b16 %v350
    %v505 = vunpack.c.h.b16 %v350
    %v506 = vunpack.c.l.b16 %v351
    %v507 = vunpack.c.h.b16 %v351
    %v508 = vunpack.c.l.b16 %v352
    %v509 = vunpack.c.h.b16 %v352
    %v510 = vunpack.c.l.b16 %v353
    %v511 = vunpack.c.h.b16 %v353
    %v512 = vunpack.c.l.b16 %v354
    %v513 = vunpack.c.h.b16 %v354
    %v514 = vunpack.c.l.b16 %v355
    %v515 = vunpack.c.h.b16 %v355
    %v516 = vunpack.c.l.b16 %v356
    %v517 = vunpack.c.h.b16 %v356
    %v518 = vunpack.c.l.b16 %v357
    %v519 = vunpack.c.h.b16 %v357
    %v520 = vunpack.c.l.b16 %v358
    %v521 = vunpack.c.h.b16 %v358
    %v522 = vunpack.c.l.b16 %v359
    %v523 = vunpack.c.h.b16 %v359
    %v524 = vunpack.c.l.b16 %v360
    %v525 = vunpack.c.h.b16 %v360
    %v526 = vunpack.c.l.b16 %v361
    %v527 = vunpack.c.h.b16 %v361
    %v528 = vunpack.c.l.b16 %v362
    %v529 = vunpack.c.h.b16 %v362
    %v530 = vunpack.c.l.b16 %v363
    %v531 = vunpack.c.h.b16 %v363
    %v532 = vunpack.c.l.b16 %v364
    %v533 = vunpack.c.h.b16 %v364
    %v534 = vunpack.c.l.b16 %v365
    %v535 = vunpack.c.h.b16 %v365
    %v536 = vunpack.c.l.b16 %v366
    %v537 = vunpack.c.h.b16 %v366
    %v538 = vunpack.c.l.b16 %v367
    %v539 = vunpack.c.h.b16 %v367
    %v540 = vunpack.c.l.b16 %v368
    %v541 = vunpack.c.h.b16 %v368
    %v542 = vunpack.c.l.b16 %v369
    %v543 = vunpack.c.h.b16 %v369
    %v544 = vunpack.c.l.b16 %v370
    %v545 = vunpack.c.h.b16 %v370
    %v546 = vunpack.c.l.b16 %v371
    %v547 = vunpack.c.h.b16 %v371
    %v548 = vunpack.c.l.b16 %v372
    %v549 = vunpack.c.h.b16 %v372
    %v550 = vunpack.c.l.b16 %v373
    %v551 = vunpack.c.h.b16 %v373
    %v552 = vunpack.c.l.b16 %v374
    %v553 = vunpack.c.h.b16 %v374
    %v554 = vunpack.c.l.b16 %v375
    %v555 = vunpack.c.h.b16 %v375
    %v556 = vunpack.c.l.b16 %v376
    %v557 = vunpack.c.h.b16 %v376
    %v558 = vunpack.c.l.b16 %v377
    %v559 = vunpack.c.h.b16 %v377
    %v560 = vunpack.c.l.b16 %v378
    %v561 = vunpack.c.h.b16 %v378
    %v562 = vunpack.c.l.b16 %v379
    %v563 = vunpack.c.h.b16 %v379
    %v564 = vunpack.c.l.b16 %v380
    %v565 = vunpack.c.h.b16 %v380
    %v566 = vunpack.c.l.b16 %v381
    %v567 = vunpack.c.h.b16 %v381
    %v568 = vunpack.c.l.b16 %v382
    %v569 = vunpack.c.h.b16 %v382
    %v570 = vunpack.c.l.b16 %v383
    %v571 = vunpack.c.h.b16 %v383
    %v572 = vunpack.c.l.b16 %v384
    %v573 = vunpack.c.h.b16 %v384
    %v574 = vunpack.c.l.b16 %v385
    %v575 = vunpack.c.h.b16 %v385
    %v576 = vunpack.c.l.b16 %v386
    %v577 = vunpack.c.h.b16 %v386
    %v578 = vunpack.c.l.b16 %v387
    %v579 = vunpack.c.h.b16 %v387
    %v580 = vunpack.c.l.b16 %v388
    %v581 = vunpack.c.h.b16 %v388
    %v582 = vunpack.c.l.b16 %v389
    %v583 = vunpack.c.h.b16 %v389
    %v584 = vunpack.c.l.b16 %v390
    %v585 = vunpack.c.h.b16 %v390
    %v586 = vunpack.c.l.b16 %v391
    %v587 = vunpack.c.h.b16 %v391
    %v588 = vunpack.c.l.b16 %v392
    %v589 = vunpack.c.h.b16 %v392
    %v590 = vunpack.c.l.b16 %v393
    %v591 = vunpack.c.h.b16 %v393
    %v592 = vunpack.c.l.b16 %v394
    %v593 = vunpack.c.h.b16 %v394
    %v594 = vunpack.c.l.b16 %v395
    %v595 = vunpack.c.h.b16 %v395
    %v596 = vunpack.c.l.b16 %v396
    %v597 = vunpack.c.h.b16 %v396
    %v598 = vunpack.c.l.b16 %v397
    %v599 = vunpack.c.h.b16 %v397
    %v600 = vunpack.c.l.b16 %v398
    %v601 = vunpack.c.h.b16 %v398
    %v602 = vunpack.c.l.b16 %v399
    %v603 = vunpack.c.h.b16 %v399
    %v604 = vunpack.c.l.b16 %v400
    %v605 = vunpack.c.h.b16 %v400
    %v606 = vunpack.c.l.b16 %v401
    %v607 = vunpack.c.h.b16 %v401
    %v608 = vunpack.c.l.b16 %v402
    %v609 = vunpack.c.h.b16 %v402
    %v610 = vunpack.c.l.b16 %v403
    %v611 = vunpack.c.h.b16 %v403
    %v612 = vunpack.c.l.b16 %v404
    %v613 = vunpack.c.h.b16 %v404
    %v614 = vunpack.c.l.b16 %v405
    %v615 = vunpack.c.h.b16 %v405
    %v616 = vunpack.c.l.b16 %v406
    %v617 = vunpack.c.h.b16 %v406
    %v618 = vunpack.c.l.b16 %v407
    %v619 = vunpack.c.h.b16 %v407
    %v620 = vunpack.c.l.b16 %v408
    %v621 = vunpack.c.h.b16 %v408
    %v622 = vunpack.c.l.b16 %v409
    %v623 = vunpack.c.h.b16 %v409
    %v624 = vpack.c.b16 %v500, %v496
    %v625 = vpack.c.b16 %v501, %v497
    %v626 = vpack.c.b16 %v502, %v498
    %v627 = vpack.c.b16 %v503, %v499
    %v628 = vpack.c.b16 %v508, %v504
    %v629 = vpack.c.b16 %v509, %v505
    %v630 = vpack.c.b16 %v510, %v506
    %v631 = vpack.c.b16 %v511, %v507
    %v632 = vpack.c.b16 %v516, %v512
    %v633 = vpack.c.b16 %v517, %v513
    %v634 = vpack.c.b16 %v518, %v514
    %v635 = vpack.c.b16 %v519, %v515
    %v636 = vpack.c.b16 %v524, %v520
    %v637 = vpack.c.b16 %v525, %v521
    %v638 = vpack.c.b16 %v526, %v522
    %v639 = vpack.c.b16 %v527, %v523
    %v640 = vpack.c.b16 %v532, %v528
    %v641 = vpack.c.b16 %v533, %v529
    %v642 = vpack.c.b16 %v534, %v530
    %v643 = vpack.c.b16 %v535, %v531
    %v644 = vpack.c.b16 %v540, %v536
    %v645 = vpack.c.b16 %v541, %v537
    %v646 = vpack.c.b16 %v542, %v538
    %v647 = vpack.c.b16 %v543, %v539
    %v648 = vpack.c.b16 %v548, %v544
    %v649 = vpack.c.b16 %v549, %v545
    %v650 = vpack.c.b16 %v550, %v546
    %v651 = vpack.c.b16 %v551, %v547
    %v652 = vpack.c.b16 %v556, %v552
    %v653 = vpack.c.b16 %v557, %v553
    %v654 = vpack.c.b16 %v558, %v554
    %v655 = vpack.c.b16 %v559, %v555
    %v656 = vpack.c.b16 %v564, %v560
    %v657 = vpack.c.b16 %v565, %v561
    %v658 = vpack.c.b16 %v566, %v562
    %v659 = vpack.c.b16 %v567, %v563
    %v660 = vpack.c.b16 %v572, %v568
    %v661 = vpack.c.b16 %v573, %v569
    %v662 = vpack.c.b16 %v574, %v570
    %v663 = vpack.c.b16 %v575, %v571
    %v664 = vpack.c.b16 %v580, %v576
    %v665 = vpack.c.b16 %v581, %v577
    %v666 = vpack.c.b16 %v582, %v578
    %v667 = vpack.c.b16 %v583, %v579
    %v668 = vpack.c.b16 %v588, %v584
    %v669 = vpack.c.b16 %v589, %v585
    %v670 = vpack.c.b16 %v590, %v586
    %v671 = vpack.c.b16 %v591, %v587
    %v672 = vpack.c.b16 %v596, %v592
    %v673 = vpack.c.b16 %v597, %v593
    %v674 = vpack.c.b16 %v598, %v594
    %v675 = vpack.c.b16 %v599, %v595
    %v676 = vpack.c.b16 %v604, %v600
    %v677 = vpack.c.b16 %v605, %v601
    %v678 = vpack.c.b16 %v606, %v602
    %v679 = vpack.c.b16 %v607, %v603
    %v680 = vpack.c.b16 %v612, %v608
    %v681 = vpack.c.b16 %v613, %v609
    %v682 = vpack.c.b16 %v614, %v610
    %v683 = vpack.c.b16 %v615, %v611
    %v684 = vpack.c.b16 %v620, %v616
    %v685 = vpack.c.b16 %v621, %v617
    %v686 = vpack.c.b16 %v622, %v618
    %v687 = vpack.c.b16 %v623, %v619
    %752 = vmatprep.subr.bf16.mxu0 %v625
    %753 = vmatpush1.bf16.msra.mxu0 %v624
    %754 = vmatprep.subr.bf16.mxu0 %v629
    %755 = vmatpush1.bf16.msra.mxu0 %v628
    %756 = vmatprep.subr.bf16.mxu0 %v633
    %757 = vmatpush1.bf16.msra.mxu0 %v632
    %758 = vmatprep.subr.bf16.mxu0 %v637
    %759 = vmatpush1.bf16.msra.mxu0 %v636
    %760 = vmatprep.subr.bf16.mxu0 %v641
    %761 = vmatpush1.bf16.msra.mxu0 %v640
    %762 = vmatprep.subr.bf16.mxu0 %v645
    %763 = vmatpush1.bf16.msra.mxu0 %v644
    %764 = vmatprep.subr.bf16.mxu0 %v649
    %765 = vmatpush1.bf16.msra.mxu0 %v648
    %766 = vmatprep.subr.bf16.mxu0 %v653
    %767 = vmatpush1.bf16.msra.mxu0 %v652
    %768 = vmatprep.subr.bf16.mxu0 %v657
    %769 = vmatpush1.bf16.msra.mxu0 %v656
    %770 = vmatprep.subr.bf16.mxu0 %v661
    %771 = vmatpush1.bf16.msra.mxu0 %v660
    %772 = vmatprep.subr.bf16.mxu0 %v665
    %773 = vmatpush1.bf16.msra.mxu0 %v664
    %774 = vmatprep.subr.bf16.mxu0 %v669
    %775 = vmatpush1.bf16.msra.mxu0 %v668
    %776 = vmatprep.subr.bf16.mxu0 %v673
    %777 = vmatpush1.bf16.msra.mxu0 %v672
    %778 = vmatprep.subr.bf16.mxu0 %v677
    %779 = vmatpush1.bf16.msra.mxu0 %v676
    %780 = vmatprep.subr.bf16.mxu0 %v681
    %781 = vmatpush1.bf16.msra.mxu0 %v680
    %782 = vmatprep.subr.bf16.mxu0 %v685
    %783 = vmatpush1.bf16.msra.mxu0 %v684
    %784 = vmatprep.mubr.bf16.mxu0 %v345
    %785 = vmatmul.mubr.bf16.gmra.mrb[0].mxu0 %v344
    %v786 = vpop.f32.mrb[0].mxu0
    %v787 = vadd.f32 %v415, %v786
    %v788 = vpop.f32.mrb[0].mxu0
    %v789 = vadd.f32 %v419, %v788
    %v790 = vpop.f32.mrb[0].mxu0
    %v791 = vpop.f32.mrb[0].mxu0
    %792 = vdwg.mxu0
    %793 = vmatprep.subr.bf16.mxu0 %v627
    %794 = vmatpush1.bf16.msra.mxu0 %v626
    %795 = vmatprep.subr.bf16.mxu0 %v631
    %796 = vmatpush1.bf16.msra.mxu0 %v630
    %797 = vmatprep.subr.bf16.mxu0 %v635
    %798 = vmatpush1.bf16.msra.mxu0 %v634
    %799 = vmatprep.subr.bf16.mxu0 %v639
    %800 = vmatpush1.bf16.msra.mxu0 %v638
    %801 = vmatprep.subr.bf16.mxu0 %v643
    %802 = vmatpush1.bf16.msra.mxu0 %v642
    %803 = vmatprep.subr.bf16.mxu0 %v647
    %804 = vmatpush1.bf16.msra.mxu0 %v646
    %805 = vmatprep.subr.bf16.mxu0 %v651
    %806 = vmatpush1.bf16.msra.mxu0 %v650
    %807 = vmatprep.subr.bf16.mxu0 %v655
    %808 = vmatpush1.bf16.msra.mxu0 %v654
    %809 = vmatprep.subr.bf16.mxu0 %v659
    %810 = vmatpush1.bf16.msra.mxu0 %v658
    %811 = vmatprep.subr.bf16.mxu0 %v663
    %812 = vmatpush1.bf16.msra.mxu0 %v662
    %813 = vmatprep.subr.bf16.mxu0 %v667
    %814 = vmatpush1.bf16.msra.mxu0 %v666
    %815 = vmatprep.subr.bf16.mxu0 %v671
    %816 = vmatpush1.bf16.msra.mxu0 %v670
    %817 = vmatprep.subr.bf16.mxu0 %v675
    %818 = vmatpush1.bf16.msra.mxu0 %v674
    %819 = vmatprep.subr.bf16.mxu0 %v679
    %820 = vmatpush1.bf16.msra.mxu0 %v678
    %821 = vmatprep.subr.bf16.mxu0 %v683
    %822 = vmatpush1.bf16.msra.mxu0 %v682
    %823 = vmatprep.subr.bf16.mxu0 %v687
    %824 = vmatpush1.bf16.msra.mxu0 %v686
    %825 = vmatprep.mubr.bf16.mxu0 %v345
    %826 = vmatmul.mubr.bf16.gmra.mrb[0].mxu0 %v344
    %v827 = vpop.f32.mrb[0].mxu0
    %v828 = vadd.f32 %v423, %v827
    %v829 = vpop.f32.mrb[0].mxu0
    %v830 = vadd.f32 %v427, %v829
    %v831 = vpop.f32.mrb[0].mxu0
    %v832 = vpop.f32.mrb[0].mxu0
    %833 = vdwg.mxu0
    %v834 = vmax.f32 %v787, 0.0
    %v835 = vmax.f32 %v789, 0.0
    %v836 = vmax.f32 %v828, 0.0
    %v837 = vmax.f32 %v830, 0.0
    %v838 = vpack.c.bf16 %v834, %v834
    %v839 = vpack.c.bf16 %v835, %v835
    %v840 = vpack.c.bf16 %v836, %v836
    %v841 = vpack.c.bf16 %v837, %v837
    %v842 = vld [vmem:[#allocation4] sm:$0xff]
    %v843 = vld [vmem:[#allocation4 + $0x8] sm:$0xff]
    %v844 = vld [vmem:[#allocation4 + $0x10] sm:$0xff]
    %v845 = vld [vmem:[#allocation4 + $0x18] sm:$0xff]
    %v846 = vld [vmem:[#allocation4 + $0x20] sm:$0xff]
    %v847 = vld [vmem:[#allocation4 + $0x28] sm:$0xff]
    %v848 = vld [vmem:[#allocation4 + $0x30] sm:$0xff]
    %v849 = vld [vmem:[#allocation4 + $0x38] sm:$0xff]
    %v850 = vld [vmem:[#allocation4 + $0x40] sm:$0xff]
    %v851 = vld [vmem:[#allocation4 + $0x48] sm:$0xff]
    %v852 = vld [vmem:[#allocation4 + $0x50] sm:$0xff]
    %v853 = vld [vmem:[#allocation4 + $0x58] sm:$0xff]
    %v854 = vld [vmem:[#allocation4 + $0x60] sm:$0xff]
    %v855 = vld [vmem:[#allocation4 + $0x68] sm:$0xff]
    %v856 = vld [vmem:[#allocation4 + $0x70] sm:$0xff]
    %v857 = vld [vmem:[#allocation4 + $0x78] sm:$0xff]
    %v858 = vld [vmem:[#allocation4 + $0x80] sm:$0xff]
    %v859 = vld [vmem:[#allocation4 + $0x88] sm:$0xff]
    %v860 = vld [vmem:[#allocation4 + $0x90] sm:$0xff]
    %v861 = vld [vmem:[#allocation4 + $0x98] sm:$0xff]
    %v862 = vld [vmem:[#allocation4 + $0xa0] sm:$0xff]
    %v863 = vld [vmem:[#allocation4 + $0xa8] sm:$0xff]
    %v864 = vld [vmem:[#allocation4 + $0xb0] sm:$0xff]
    %v865 = vld [vmem:[#allocation4 + $0xb8] sm:$0xff]
    %v866 = vld [vmem:[#allocation4 + $0xc0] sm:$0xff]
    %v867 = vld [vmem:[#allocation4 + $0xc8] sm:$0xff]
    %v868 = vld [vmem:[#allocation4 + $0xd0] sm:$0xff]
    %v869 = vld [vmem:[#allocation4 + $0xd8] sm:$0xff]
    %v870 = vld [vmem:[#allocation4 + $0xe0] sm:$0xff]
    %v871 = vld [vmem:[#allocation4 + $0xe8] sm:$0xff]
    %v872 = vld [vmem:[#allocation4 + $0xf0] sm:$0xff]
    %v873 = vld [vmem:[#allocation4 + $0xf8] sm:$0xff]
    %v874 = vld [vmem:[#allocation4 + $0x100] sm:$0xff]
    %v875 = vld [vmem:[#allocation4 + $0x108] sm:$0xff]
    %v876 = vld [vmem:[#allocation4 + $0x110] sm:$0xff]
    %v877 = vld [vmem:[#allocation4 + $0x118] sm:$0xff]
    %v878 = vld [vmem:[#allocation4 + $0x120] sm:$0xff]
    %v879 = vld [vmem:[#allocation4 + $0x128] sm:$0xff]
    %v880 = vld [vmem:[#allocation4 + $0x130] sm:$0xff]
    %v881 = vld [vmem:[#allocation4 + $0x138] sm:$0xff]
    %v882 = vld [vmem:[#allocation4 + $0x140] sm:$0xff]
    %v883 = vld [vmem:[#allocation4 + $0x148] sm:$0xff]
    %v884 = vld [vmem:[#allocation4 + $0x150] sm:$0xff]
    %v885 = vld [vmem:[#allocation4 + $0x158] sm:$0xff]
    %v886 = vld [vmem:[#allocation4 + $0x160] sm:$0xff]
    %v887 = vld [vmem:[#allocation4 + $0x168] sm:$0xff]
    %v888 = vld [vmem:[#allocation4 + $0x170] sm:$0xff]
    %v889 = vld [vmem:[#allocation4 + $0x178] sm:$0xff]
    %v890 = vld [vmem:[#allocation4 + $0x180] sm:$0xff]
    %v891 = vld [vmem:[#allocation4 + $0x188] sm:$0xff]
    %v892 = vld [vmem:[#allocation4 + $0x190] sm:$0xff]
    %v893 = vld [vmem:[#allocation4 + $0x198] sm:$0xff]
    %v894 = vld [vmem:[#allocation4 + $0x1a0] sm:$0xff]
    %v895 = vld [vmem:[#allocation4 + $0x1a8] sm:$0xff]
    %v896 = vld [vmem:[#allocation4 + $0x1b0] sm:$0xff]
    %v897 = vld [vmem:[#allocation4 + $0x1b8] sm:$0xff]
    %v898 = vld [vmem:[#allocation4 + $0x1c0] sm:$0xff]
    %v899 = vld [vmem:[#allocation4 + $0x1c8] sm:$0xff]
    %v900 = vld [vmem:[#allocation4 + $0x1d0] sm:$0xff]
    %v901 = vld [vmem:[#allocation4 + $0x1d8] sm:$0xff]
    %v902 = vld [vmem:[#allocation4 + $0x1e0] sm:$0xff]
    %v903 = vld [vmem:[#allocation4 + $0x1e8] sm:$0xff]
    %v904 = vld [vmem:[#allocation4 + $0x1f0] sm:$0xff]
    %v905 = vld [vmem:[#allocation4 + $0x1f8] sm:$0xff]
    %v906 = vld [vmem:[#allocation4 + $0x200] sm:$0xff]
    %v907 = vld [vmem:[#allocation4 + $0x208] sm:$0xff]
    %v908 = vld [vmem:[#allocation4 + $0x210] sm:$0xff]
    %v909 = vld [vmem:[#allocation4 + $0x218] sm:$0xff]
    %v910 = vld [vmem:[#allocation4 + $0x220] sm:$0xff]
    %v911 = vld [vmem:[#allocation4 + $0x228] sm:$0xff]
    %v912 = vld [vmem:[#allocation4 + $0x230] sm:$0xff]
    %v913 = vld [vmem:[#allocation4 + $0x238] sm:$0xff]
    %v914 = vld [vmem:[#allocation4 + $0x240] sm:$0xff]
    %v915 = vld [vmem:[#allocation4 + $0x248] sm:$0xff]
    %v916 = vld [vmem:[#allocation4 + $0x250] sm:$0xff]
    %v917 = vld [vmem:[#allocation4 + $0x258] sm:$0xff]
    %v918 = vld [vmem:[#allocation4 + $0x260] sm:$0xff]
    %v919 = vld [vmem:[#allocation4 + $0x268] sm:$0xff]
    %v920 = vld [vmem:[#allocation4 + $0x270] sm:$0xff]
    %v921 = vld [vmem:[#allocation4 + $0x278] sm:$0xff]
    %v922 = vld [vmem:[#allocation4 + $0x280] sm:$0xff]
    %v923 = vld [vmem:[#allocation4 + $0x288] sm:$0xff]
    %v924 = vld [vmem:[#allocation4 + $0x290] sm:$0xff]
    %v925 = vld [vmem:[#allocation4 + $0x298] sm:$0xff]
    %v926 = vld [vmem:[#allocation4 + $0x2a0] sm:$0xff]
    %v927 = vld [vmem:[#allocation4 + $0x2a8] sm:$0xff]
    %v928 = vld [vmem:[#allocation4 + $0x2b0] sm:$0xff]
    %v929 = vld [vmem:[#allocation4 + $0x2b8] sm:$0xff]
    %v930 = vld [vmem:[#allocation4 + $0x2c0] sm:$0xff]
    %v931 = vld [vmem:[#allocation4 + $0x2c8] sm:$0xff]
    %v932 = vld [vmem:[#allocation4 + $0x2d0] sm:$0xff]
    %v933 = vld [vmem:[#allocation4 + $0x2d8] sm:$0xff]
    %v934 = vld [vmem:[#allocation4 + $0x2e0] sm:$0xff]
    %v935 = vld [vmem:[#allocation4 + $0x2e8] sm:$0xff]
    %v936 = vld [vmem:[#allocation4 + $0x2f0] sm:$0xff]
    %v937 = vld [vmem:[#allocation4 + $0x2f8] sm:$0xff]
    %v938 = vld [vmem:[#allocation4 + $0x300] sm:$0xff]
    %v939 = vld [vmem:[#allocation4 + $0x308] sm:$0xff]
    %v940 = vld [vmem:[#allocation4 + $0x310] sm:$0xff]
    %v941 = vld [vmem:[#allocation4 + $0x318] sm:$0xff]
    %v942 = vld [vmem:[#allocation4 + $0x320] sm:$0xff]
    %v943 = vld [vmem:[#allocation4 + $0x328] sm:$0xff]
    %v944 = vld [vmem:[#allocation4 + $0x330] sm:$0xff]
    %v945 = vld [vmem:[#allocation4 + $0x338] sm:$0xff]
    %v946 = vld [vmem:[#allocation4 + $0x340] sm:$0xff]
    %v947 = vld [vmem:[#allocation4 + $0x348] sm:$0xff]
    %v948 = vld [vmem:[#allocation4 + $0x350] sm:$0xff]
    %v949 = vld [vmem:[#allocation4 + $0x358] sm:$0xff]
    %v950 = vld [vmem:[#allocation4 + $0x360] sm:$0xff]
    %v951 = vld [vmem:[#allocation4 + $0x368] sm:$0xff]
    %v952 = vld [vmem:[#allocation4 + $0x370] sm:$0xff]
    %v953 = vld [vmem:[#allocation4 + $0x378] sm:$0xff]
    %v954 = vld [vmem:[#allocation4 + $0x380] sm:$0xff]
    %v955 = vld [vmem:[#allocation4 + $0x388] sm:$0xff]
    %v956 = vld [vmem:[#allocation4 + $0x390] sm:$0xff]
    %v957 = vld [vmem:[#allocation4 + $0x398] sm:$0xff]
    %v958 = vld [vmem:[#allocation4 + $0x3a0] sm:$0xff]
    %v959 = vld [vmem:[#allocation4 + $0x3a8] sm:$0xff]
    %v960 = vld [vmem:[#allocation4 + $0x3b0] sm:$0xff]
    %v961 = vld [vmem:[#allocation4 + $0x3b8] sm:$0xff]
    %v962 = vld [vmem:[#allocation4 + $0x3c0] sm:$0xff]
    %v963 = vld [vmem:[#allocation4 + $0x3c8] sm:$0xff]
    %v964 = vld [vmem:[#allocation4 + $0x3d0] sm:$0xff]
    %v965 = vld [vmem:[#allocation4 + $0x3d8] sm:$0xff]
    %v966 = vld [vmem:[#allocation4 + $0x3e0] sm:$0xff]
    %v967 = vld [vmem:[#allocation4 + $0x3e8] sm:$0xff]
    %v968 = vld [vmem:[#allocation4 + $0x3f0] sm:$0xff]
    %v969 = vld [vmem:[#allocation4 + $0x3f8] sm:$0xff]
    %v970 = vld [vmem:[#allocation4 + $0x400] sm:$0xff]
    %v971 = vld [vmem:[#allocation4 + $0x408] sm:$0xff]
    %v972 = vld [vmem:[#allocation4 + $0x410] sm:$0xff]
    %v973 = vld [vmem:[#allocation4 + $0x418] sm:$0xff]
    %v974 = vld [vmem:[#allocation4 + $0x420] sm:$0xff]
    %v975 = vld [vmem:[#allocation4 + $0x428] sm:$0xff]
    %v976 = vld [vmem:[#allocation4 + $0x430] sm:$0xff]
    %v977 = vld [vmem:[#allocation4 + $0x438] sm:$0xff]
    %v978 = vld [vmem:[#allocation4 + $0x440] sm:$0xff]
    %v979 = vld [vmem:[#allocation4 + $0x448] sm:$0xff]
    %v980 = vld [vmem:[#allocation4 + $0x450] sm:$0xff]
    %v981 = vld [vmem:[#allocation4 + $0x458] sm:$0xff]
    %v982 = vld [vmem:[#allocation4 + $0x460] sm:$0xff]
    %v983 = vld [vmem:[#allocation4 + $0x468] sm:$0xff]
    %v984 = vld [vmem:[#allocation4 + $0x470] sm:$0xff]
    %v985 = vld [vmem:[#allocation4 + $0x478] sm:$0xff]
    %v986 = vld [vmem:[#allocation4 + $0x480] sm:$0xff]
    %v987 = vld [vmem:[#allocation4 + $0x488] sm:$0xff]
    %v988 = vld [vmem:[#allocation4 + $0x490] sm:$0xff]
    %v989 = vld [vmem:[#allocation4 + $0x498] sm:$0xff]
    %v990 = vld [vmem:[#allocation4 + $0x4a0] sm:$0xff]
    %v991 = vld [vmem:[#allocation4 + $0x4a8] sm:$0xff]
    %v992 = vld [vmem:[#allocation4 + $0x4b0] sm:$0xff]
    %v993 = vld [vmem:[#allocation4 + $0x4b8] sm:$0xff]
    %v994 = vld [vmem:[#allocation4 + $0x4c0] sm:$0xff]
    %v995 = vld [vmem:[#allocation4 + $0x4c8] sm:$0xff]
    %v996 = vld [vmem:[#allocation4 + $0x4d0] sm:$0xff]
    %v997 = vld [vmem:[#allocation4 + $0x4d8] sm:$0xff]
    %v998 = vld [vmem:[#allocation4 + $0x4e0] sm:$0xff]
    %v999 = vld [vmem:[#allocation4 + $0x4e8] sm:$0xff]
    %v1000 = vld [vmem:[#allocation4 + $0x4f0] sm:$0xff]
    %v1001 = vld [vmem:[#allocation4 + $0x4f8] sm:$0xff]
    %v1002 = vld [vmem:[#allocation4 + $0x500] sm:$0xff]
    %v1003 = vld [vmem:[#allocation4 + $0x508] sm:$0xff]
    %v1004 = vld [vmem:[#allocation4 + $0x510] sm:$0xff]
    %v1005 = vld [vmem:[#allocation4 + $0x518] sm:$0xff]
    %v1006 = vld [vmem:[#allocation4 + $0x520] sm:$0xff]
    %v1007 = vld [vmem:[#allocation4 + $0x528] sm:$0xff]
    %v1008 = vld [vmem:[#allocation4 + $0x530] sm:$0xff]
    %v1009 = vld [vmem:[#allocation4 + $0x538] sm:$0xff]
    %v1010 = vld [vmem:[#allocation4 + $0x540] sm:$0xff]
    %v1011 = vld [vmem:[#allocation4 + $0x548] sm:$0xff]
    %v1012 = vld [vmem:[#allocation4 + $0x550] sm:$0xff]
    %v1013 = vld [vmem:[#allocation4 + $0x558] sm:$0xff]
    %v1014 = vld [vmem:[#allocation4 + $0x560] sm:$0xff]
    %v1015 = vld [vmem:[#allocation4 + $0x568] sm:$0xff]
    %v1016 = vld [vmem:[#allocation4 + $0x570] sm:$0xff]
    %v1017 = vld [vmem:[#allocation4 + $0x578] sm:$0xff]
    %v1018 = vld [vmem:[#allocation4 + $0x580] sm:$0xff]
    %v1019 = vld [vmem:[#allocation4 + $0x588] sm:$0xff]
    %v1020 = vld [vmem:[#allocation4 + $0x590] sm:$0xff]
    %v1021 = vld [vmem:[#allocation4 + $0x598] sm:$0xff]
    %v1022 = vld [vmem:[#allocation4 + $0x5a0] sm:$0xff]
    %v1023 = vld [vmem:[#allocation4 + $0x5a8] sm:$0xff]
    %v1024 = vld [vmem:[#allocation4 + $0x5b0] sm:$0xff]
    %v1025 = vld [vmem:[#allocation4 + $0x5b8] sm:$0xff]
    %v1026 = vld [vmem:[#allocation4 + $0x5c0] sm:$0xff]
    %v1027 = vld [vmem:[#allocation4 + $0x5c8] sm:$0xff]
    %v1028 = vld [vmem:[#allocation4 + $0x5d0] sm:$0xff]
    %v1029 = vld [vmem:[#allocation4 + $0x5d8] sm:$0xff]
    %v1030 = vld [vmem:[#allocation4 + $0x5e0] sm:$0xff]
    %v1031 = vld [vmem:[#allocation4 + $0x5e8] sm:$0xff]
    %v1032 = vld [vmem:[#allocation4 + $0x5f0] sm:$0xff]
    %v1033 = vld [vmem:[#allocation4 + $0x5f8] sm:$0xff]
    %v1034 = vld [vmem:[#allocation4 + $0x600] sm:$0xff]
    %v1035 = vld [vmem:[#allocation4 + $0x608] sm:$0xff]
    %v1036 = vld [vmem:[#allocation4 + $0x610] sm:$0xff]
    %v1037 = vld [vmem:[#allocation4 + $0x618] sm:$0xff]
    %v1038 = vld [vmem:[#allocation4 + $0x620] sm:$0xff]
    %v1039 = vld [vmem:[#allocation4 + $0x628] sm:$0xff]
    %v1040 = vld [vmem:[#allocation4 + $0x630] sm:$0xff]
    %v1041 = vld [vmem:[#allocation4 + $0x638] sm:$0xff]
    %v1042 = vld [vmem:[#allocation4 + $0x640] sm:$0xff]
    %v1043 = vld [vmem:[#allocation4 + $0x648] sm:$0xff]
    %v1044 = vld [vmem:[#allocation4 + $0x650] sm:$0xff]
    %v1045 = vld [vmem:[#allocation4 + $0x658] sm:$0xff]
    %v1046 = vld [vmem:[#allocation4 + $0x660] sm:$0xff]
    %v1047 = vld [vmem:[#allocation4 + $0x668] sm:$0xff]
    %v1048 = vld [vmem:[#allocation4 + $0x670] sm:$0xff]
    %v1049 = vld [vmem:[#allocation4 + $0x678] sm:$0xff]
    %v1050 = vld [vmem:[#allocation4 + $0x680] sm:$0xff]
    %v1051 = vld [vmem:[#allocation4 + $0x688] sm:$0xff]
    %v1052 = vld [vmem:[#allocation4 + $0x690] sm:$0xff]
    %v1053 = vld [vmem:[#allocation4 + $0x698] sm:$0xff]
    %v1054 = vld [vmem:[#allocation4 + $0x6a0] sm:$0xff]
    %v1055 = vld [vmem:[#allocation4 + $0x6a8] sm:$0xff]
    %v1056 = vld [vmem:[#allocation4 + $0x6b0] sm:$0xff]
    %v1057 = vld [vmem:[#allocation4 + $0x6b8] sm:$0xff]
    %v1058 = vld [vmem:[#allocation4 + $0x6c0] sm:$0xff]
    %v1059 = vld [vmem:[#allocation4 + $0x6c8] sm:$0xff]
    %v1060 = vld [vmem:[#allocation4 + $0x6d0] sm:$0xff]
    %v1061 = vld [vmem:[#allocation4 + $0x6d8] sm:$0xff]
    %v1062 = vld [vmem:[#allocation4 + $0x6e0] sm:$0xff]
    %v1063 = vld [vmem:[#allocation4 + $0x6e8] sm:$0xff]
    %v1064 = vld [vmem:[#allocation4 + $0x6f0] sm:$0xff]
    %v1065 = vld [vmem:[#allocation4 + $0x6f8] sm:$0xff]
    %v1066 = vld [vmem:[#allocation4 + $0x700] sm:$0xff]
    %v1067 = vld [vmem:[#allocation4 + $0x708] sm:$0xff]
    %v1068 = vld [vmem:[#allocation4 + $0x710] sm:$0xff]
    %v1069 = vld [vmem:[#allocation4 + $0x718] sm:$0xff]
    %v1070 = vld [vmem:[#allocation4 + $0x720] sm:$0xff]
    %v1071 = vld [vmem:[#allocation4 + $0x728] sm:$0xff]
    %v1072 = vld [vmem:[#allocation4 + $0x730] sm:$0xff]
    %v1073 = vld [vmem:[#allocation4 + $0x738] sm:$0xff]
    %v1074 = vld [vmem:[#allocation4 + $0x740] sm:$0xff]
    %v1075 = vld [vmem:[#allocation4 + $0x748] sm:$0xff]
    %v1076 = vld [vmem:[#allocation4 + $0x750] sm:$0xff]
    %v1077 = vld [vmem:[#allocation4 + $0x758] sm:$0xff]
    %v1078 = vld [vmem:[#allocation4 + $0x760] sm:$0xff]
    %v1079 = vld [vmem:[#allocation4 + $0x768] sm:$0xff]
    %v1080 = vld [vmem:[#allocation4 + $0x770] sm:$0xff]
    %v1081 = vld [vmem:[#allocation4 + $0x778] sm:$0xff]
    %v1082 = vld [vmem:[#allocation4 + $0x780] sm:$0xff]
    %v1083 = vld [vmem:[#allocation4 + $0x788] sm:$0xff]
    %v1084 = vld [vmem:[#allocation4 + $0x790] sm:$0xff]
    %v1085 = vld [vmem:[#allocation4 + $0x798] sm:$0xff]
    %v1086 = vld [vmem:[#allocation4 + $0x7a0] sm:$0xff]
    %v1087 = vld [vmem:[#allocation4 + $0x7a8] sm:$0xff]
    %v1088 = vld [vmem:[#allocation4 + $0x7b0] sm:$0xff]
    %v1089 = vld [vmem:[#allocation4 + $0x7b8] sm:$0xff]
    %v1090 = vld [vmem:[#allocation4 + $0x7c0] sm:$0xff]
    %v1091 = vld [vmem:[#allocation4 + $0x7c8] sm:$0xff]
    %v1092 = vld [vmem:[#allocation4 + $0x7d0] sm:$0xff]
    %v1093 = vld [vmem:[#allocation4 + $0x7d8] sm:$0xff]
    %v1094 = vld [vmem:[#allocation4 + $0x7e0] sm:$0xff]
    %v1095 = vld [vmem:[#allocation4 + $0x7e8] sm:$0xff]
    %v1096 = vld [vmem:[#allocation4 + $0x7f0] sm:$0xff]
    %v1097 = vld [vmem:[#allocation4 + $0x7f8] sm:$0xff]
    %v1098 = vld [vmem:[%s9] sm:$0xff]
    %v1100 = vlaneseq
    %v1101 = vshrl.u32 %v1100, 7
    %v1102 = vsub.s32 0, %v1101
    %v1103 = vrot.slane %v1098, %v1102
    %v1104 = vlaneseq
    %v1105 = vshrl.u32 %v1104, 7
    %v1106 = vsub.s32 1, %v1105
    %v1107 = vrot.slane %v1098, %v1106
    %v1108 = vlaneseq
    %v1109 = vshrl.u32 %v1108, 7
    %v1110 = vsub.s32 2, %v1109
    %v1111 = vrot.slane %v1098, %v1110
    %v1112 = vlaneseq
    %v1113 = vshrl.u32 %v1112, 7
    %v1114 = vsub.s32 3, %v1113
    %v1115 = vrot.slane %v1098, %v1114
    %v1116 = vlaneseq
    %v1117 = vshrl.u32 %v1116, 7
    %v1118 = vsub.s32 4, %v1117
    %v1119 = vrot.slane %v1098, %v1118
    %v1120 = vlaneseq
    %v1121 = vshrl.u32 %v1120, 7
    %v1122 = vsub.s32 5, %v1121
    %v1123 = vrot.slane %v1098, %v1122
    %v1124 = vlaneseq
    %v1125 = vshrl.u32 %v1124, 7
    %v1126 = vsub.s32 6, %v1125
    %v1127 = vrot.slane %v1098, %v1126
    %v1128 = vlaneseq
    %v1129 = vshrl.u32 %v1128, 7
    %v1130 = vsub.s32 7, %v1129
    %v1131 = vrot.slane %v1098, %v1130
    %v1396 = vunpack.c.l.b16 %v842
    %v1397 = vunpack.c.h.b16 %v842
    %v1398 = vunpack.c.l.b16 %v843
    %v1399 = vunpack.c.h.b16 %v843
    %v1400 = vunpack.c.l.b16 %v844
    %v1401 = vunpack.c.h.b16 %v844
    %v1402 = vunpack.c.l.b16 %v845
    %v1403 = vunpack.c.h.b16 %v845
    %v1404 = vunpack.c.l.b16 %v846
    %v1405 = vunpack.c.h.b16 %v846
    %v1406 = vunpack.c.l.b16 %v847
    %v1407 = vunpack.c.h.b16 %v847
    %v1408 = vunpack.c.l.b16 %v848
    %v1409 = vunpack.c.h.b16 %v848
    %v1410 = vunpack.c.l.b16 %v849
    %v1411 = vunpack.c.h.b16 %v849
    %v1412 = vunpack.c.l.b16 %v850
    %v1413 = vunpack.c.h.b16 %v850
    %v1414 = vunpack.c.l.b16 %v851
    %v1415 = vunpack.c.h.b16 %v851
    %v1416 = vunpack.c.l.b16 %v852
    %v1417 = vunpack.c.h.b16 %v852
    %v1418 = vunpack.c.l.b16 %v853
    %v1419 = vunpack.c.h.b16 %v853
    %v1420 = vunpack.c.l.b16 %v854
    %v1421 = vunpack.c.h.b16 %v854
    %v1422 = vunpack.c.l.b16 %v855
    %v1423 = vunpack.c.h.b16 %v855
    %v1424 = vunpack.c.l.b16 %v856
    %v1425 = vunpack.c.h.b16 %v856
    %v1426 = vunpack.c.l.b16 %v857
    %v1427 = vunpack.c.h.b16 %v857
    %v1428 = vunpack.c.l.b16 %v858
    %v1429 = vunpack.c.h.b16 %v858
    %v1430 = vunpack.c.l.b16 %v859
    %v1431 = vunpack.c.h.b16 %v859
    %v1432 = vunpack.c.l.b16 %v860
    %v1433 = vunpack.c.h.b16 %v860
    %v1434 = vunpack.c.l.b16 %v861
    %v1435 = vunpack.c.h.b16 %v861
    %v1436 = vunpack.c.l.b16 %v862
    %v1437 = vunpack.c.h.b16 %v862
    %v1438 = vunpack.c.l.b16 %v863
    %v1439 = vunpack.c.h.b16 %v863
    %v1440 = vunpack.c.l.b16 %v864
    %v1441 = vunpack.c.h.b16 %v864
    %v1442 = vunpack.c.l.b16 %v865
    %v1443 = vunpack.c.h.b16 %v865
    %v1444 = vunpack.c.l.b16 %v866
    %v1445 = vunpack.c.h.b16 %v866
    %v1446 = vunpack.c.l.b16 %v867
    %v1447 = vunpack.c.h.b16 %v867
    %v1448 = vunpack.c.l.b16 %v868
    %v1449 = vunpack.c.h.b16 %v868
    %v1450 = vunpack.c.l.b16 %v869
    %v1451 = vunpack.c.h.b16 %v869
    %v1452 = vunpack.c.l.b16 %v870
    %v1453 = vunpack.c.h.b16 %v870
    %v1454 = vunpack.c.l.b16 %v871
    %v1455 = vunpack.c.h.b16 %v871
    %v1456 = vunpack.c.l.b16 %v872
    %v1457 = vunpack.c.h.b16 %v872
    %v1458 = vunpack.c.l.b16 %v873
    %v1459 = vunpack.c.h.b16 %v873
    %v1460 = vunpack.c.l.b16 %v874
    %v1461 = vunpack.c.h.b16 %v874
    %v1462 = vunpack.c.l.b16 %v875
    %v1463 = vunpack.c.h.b16 %v875
    %v1464 = vunpack.c.l.b16 %v876
    %v1465 = vunpack.c.h.b16 %v876
    %v1466 = vunpack.c.l.b16 %v877
    %v1467 = vunpack.c.h.b16 %v877
    %v1468 = vunpack.c.l.b16 %v878
    %v1469 = vunpack.c.h.b16 %v878
    %v1470 = vunpack.c.l.b16 %v879
    %v1471 = vunpack.c.h.b16 %v879
    %v1472 = vunpack.c.l.b16 %v880
    %v1473 = vunpack.c.h.b16 %v880
    %v1474 = vunpack.c.l.b16 %v881
    %v1475 = vunpack.c.h.b16 %v881
    %v1476 = vunpack.c.l.b16 %v882
    %v1477 = vunpack.c.h.b16 %v882
    %v1478 = vunpack.c.l.b16 %v883
    %v1479 = vunpack.c.h.b16 %v883
    %v1480 = vunpack.c.l.b16 %v884
    %v1481 = vunpack.c.h.b16 %v884
    %v1482 = vunpack.c.l.b16 %v885
    %v1483 = vunpack.c.h.b16 %v885
    %v1484 = vunpack.c.l.b16 %v886
    %v1485 = vunpack.c.h.b16 %v886
    %v1486 = vunpack.c.l.b16 %v887
    %v1487 = vunpack.c.h.b16 %v887
    %v1488 = vunpack.c.l.b16 %v888
    %v1489 = vunpack.c.h.b16 %v888
    %v1490 = vunpack.c.l.b16 %v889
    %v1491 = vunpack.c.h.b16 %v889
    %v1492 = vunpack.c.l.b16 %v890
    %v1493 = vunpack.c.h.b16 %v890
    %v1494 = vunpack.c.l.b16 %v891
    %v1495 = vunpack.c.h.b16 %v891
    %v1496 = vunpack.c.l.b16 %v892
    %v1497 = vunpack.c.h.b16 %v892
    %v1498 = vunpack.c.l.b16 %v893
    %v1499 = vunpack.c.h.b16 %v893
    %v1500 = vunpack.c.l.b16 %v894
    %v1501 = vunpack.c.h.b16 %v894
    %v1502 = vunpack.c.l.b16 %v895
    %v1503 = vunpack.c.h.b16 %v895
    %v1504 = vunpack.c.l.b16 %v896
    %v1505 = vunpack.c.h.b16 %v896
    %v1506 = vunpack.c.l.b16 %v897
    %v1507 = vunpack.c.h.b16 %v897
    %v1508 = vunpack.c.l.b16 %v898
    %v1509 = vunpack.c.h.b16 %v898
    %v1510 = vunpack.c.l.b16 %v899
    %v1511 = vunpack.c.h.b16 %v899
    %v1512 = vunpack.c.l.b16 %v900
    %v1513 = vunpack.c.h.b16 %v900
    %v1514 = vunpack.c.l.b16 %v901
    %v1515 = vunpack.c.h.b16 %v901
    %v1516 = vunpack.c.l.b16 %v902
    %v1517 = vunpack.c.h.b16 %v902
    %v1518 = vunpack.c.l.b16 %v903
    %v1519 = vunpack.c.h.b16 %v903
    %v1520 = vunpack.c.l.b16 %v904
    %v1521 = vunpack.c.h.b16 %v904
    %v1522 = vunpack.c.l.b16 %v905
    %v1523 = vunpack.c.h.b16 %v905
    %v1524 = vunpack.c.l.b16 %v906
    %v1525 = vunpack.c.h.b16 %v906
    %v1526 = vunpack.c.l.b16 %v907
    %v1527 = vunpack.c.h.b16 %v907
    %v1528 = vunpack.c.l.b16 %v908
    %v1529 = vunpack.c.h.b16 %v908
    %v1530 = vunpack.c.l.b16 %v909
    %v1531 = vunpack.c.h.b16 %v909
    %v1532 = vunpack.c.l.b16 %v910
    %v1533 = vunpack.c.h.b16 %v910
    %v1534 = vunpack.c.l.b16 %v911
    %v1535 = vunpack.c.h.b16 %v911
    %v1536 = vunpack.c.l.b16 %v912
    %v1537 = vunpack.c.h.b16 %v912
    %v1538 = vunpack.c.l.b16 %v913
    %v1539 = vunpack.c.h.b16 %v913
    %v1540 = vunpack.c.l.b16 %v914
    %v1541 = vunpack.c.h.b16 %v914
    %v1542 = vunpack.c.l.b16 %v915
    %v1543 = vunpack.c.h.b16 %v915
    %v1544 = vunpack.c.l.b16 %v916
    %v1545 = vunpack.c.h.b16 %v916
    %v1546 = vunpack.c.l.b16 %v917
    %v1547 = vunpack.c.h.b16 %v917
    %v1548 = vunpack.c.l.b16 %v918
    %v1549 = vunpack.c.h.b16 %v918
    %v1550 = vunpack.c.l.b16 %v919
    %v1551 = vunpack.c.h.b16 %v919
    %v1552 = vunpack.c.l.b16 %v920
    %v1553 = vunpack.c.h.b16 %v920
    %v1554 = vunpack.c.l.b16 %v921
    %v1555 = vunpack.c.h.b16 %v921
    %v1556 = vunpack.c.l.b16 %v922
    %v1557 = vunpack.c.h.b16 %v922
    %v1558 = vunpack.c.l.b16 %v923
    %v1559 = vunpack.c.h.b16 %v923
    %v1560 = vunpack.c.l.b16 %v924
    %v1561 = vunpack.c.h.b16 %v924
    %v1562 = vunpack.c.l.b16 %v925
    %v1563 = vunpack.c.h.b16 %v925
    %v1564 = vunpack.c.l.b16 %v926
    %v1565 = vunpack.c.h.b16 %v926
    %v1566 = vunpack.c.l.b16 %v927
    %v1567 = vunpack.c.h.b16 %v927
    %v1568 = vunpack.c.l.b16 %v928
    %v1569 = vunpack.c.h.b16 %v928
    %v1570 = vunpack.c.l.b16 %v929
    %v1571 = vunpack.c.h.b16 %v929
    %v1572 = vunpack.c.l.b16 %v930
    %v1573 = vunpack.c.h.b16 %v930
    %v1574 = vunpack.c.l.b16 %v931
    %v1575 = vunpack.c.h.b16 %v931
    %v1576 = vunpack.c.l.b16 %v932
    %v1577 = vunpack.c.h.b16 %v932
    %v1578 = vunpack.c.l.b16 %v933
    %v1579 = vunpack.c.h.b16 %v933
    %v1580 = vunpack.c.l.b16 %v934
    %v1581 = vunpack.c.h.b16 %v934
    %v1582 = vunpack.c.l.b16 %v935
    %v1583 = vunpack.c.h.b16 %v935
    %v1584 = vunpack.c.l.b16 %v936
    %v1585 = vunpack.c.h.b16 %v936
    %v1586 = vunpack.c.l.b16 %v937
    %v1587 = vunpack.c.h.b16 %v937
    %v1588 = vunpack.c.l.b16 %v938
    %v1589 = vunpack.c.h.b16 %v938
    %v1590 = vunpack.c.l.b16 %v939
    %v1591 = vunpack.c.h.b16 %v939
    %v1592 = vunpack.c.l.b16 %v940
    %v1593 = vunpack.c.h.b16 %v940
    %v1594 = vunpack.c.l.b16 %v941
    %v1595 = vunpack.c.h.b16 %v941
    %v1596 = vunpack.c.l.b16 %v942
    %v1597 = vunpack.c.h.b16 %v942
    %v1598 = vunpack.c.l.b16 %v943
    %v1599 = vunpack.c.h.b16 %v943
    %v1600 = vunpack.c.l.b16 %v944
    %v1601 = vunpack.c.h.b16 %v944
    %v1602 = vunpack.c.l.b16 %v945
    %v1603 = vunpack.c.h.b16 %v945
    %v1604 = vunpack.c.l.b16 %v946
    %v1605 = vunpack.c.h.b16 %v946
    %v1606 = vunpack.c.l.b16 %v947
    %v1607 = vunpack.c.h.b16 %v947
    %v1608 = vunpack.c.l.b16 %v948
    %v1609 = vunpack.c.h.b16 %v948
    %v1610 = vunpack.c.l.b16 %v949
    %v1611 = vunpack.c.h.b16 %v949
    %v1612 = vunpack.c.l.b16 %v950
    %v1613 = vunpack.c.h.b16 %v950
    %v1614 = vunpack.c.l.b16 %v951
    %v1615 = vunpack.c.h.b16 %v951
    %v1616 = vunpack.c.l.b16 %v952
    %v1617 = vunpack.c.h.b16 %v952
    %v1618 = vunpack.c.l.b16 %v953
    %v1619 = vunpack.c.h.b16 %v953
    %v1620 = vunpack.c.l.b16 %v954
    %v1621 = vunpack.c.h.b16 %v954
    %v1622 = vunpack.c.l.b16 %v955
    %v1623 = vunpack.c.h.b16 %v955
    %v1624 = vunpack.c.l.b16 %v956
    %v1625 = vunpack.c.h.b16 %v956
    %v1626 = vunpack.c.l.b16 %v957
    %v1627 = vunpack.c.h.b16 %v957
    %v1628 = vunpack.c.l.b16 %v958
    %v1629 = vunpack.c.h.b16 %v958
    %v1630 = vunpack.c.l.b16 %v959
    %v1631 = vunpack.c.h.b16 %v959
    %v1632 = vunpack.c.l.b16 %v960
    %v1633 = vunpack.c.h.b16 %v960
    %v1634 = vunpack.c.l.b16 %v961
    %v1635 = vunpack.c.h.b16 %v961
    %v1636 = vunpack.c.l.b16 %v962
    %v1637 = vunpack.c.h.b16 %v962
    %v1638 = vunpack.c.l.b16 %v963
    %v1639 = vunpack.c.h.b16 %v963
    %v1640 = vunpack.c.l.b16 %v964
    %v1641 = vunpack.c.h.b16 %v964
    %v1642 = vunpack.c.l.b16 %v965
    %v1643 = vunpack.c.h.b16 %v965
    %v1644 = vunpack.c.l.b16 %v966
    %v1645 = vunpack.c.h.b16 %v966
    %v1646 = vunpack.c.l.b16 %v967
    %v1647 = vunpack.c.h.b16 %v967
    %v1648 = vunpack.c.l.b16 %v968
    %v1649 = vunpack.c.h.b16 %v968
    %v1650 = vunpack.c.l.b16 %v969
    %v1651 = vunpack.c.h.b16 %v969
    %v1652 = vunpack.c.l.b16 %v970
    %v1653 = vunpack.c.h.b16 %v970
    %v1654 = vunpack.c.l.b16 %v971
    %v1655 = vunpack.c.h.b16 %v971
    %v1656 = vunpack.c.l.b16 %v972
    %v1657 = vunpack.c.h.b16 %v972
    %v1658 = vunpack.c.l.b16 %v973
    %v1659 = vunpack.c.h.b16 %v973
    %v1660 = vunpack.c.l.b16 %v974
    %v1661 = vunpack.c.h.b16 %v974
    %v1662 = vunpack.c.l.b16 %v975
    %v1663 = vunpack.c.h.b16 %v975
    %v1664 = vunpack.c.l.b16 %v976
    %v1665 = vunpack.c.h.b16 %v976
    %v1666 = vunpack.c.l.b16 %v977
    %v1667 = vunpack.c.h.b16 %v977
    %v1668 = vunpack.c.l.b16 %v978
    %v1669 = vunpack.c.h.b16 %v978
    %v1670 = vunpack.c.l.b16 %v979
    %v1671 = vunpack.c.h.b16 %v979
    %v1672 = vunpack.c.l.b16 %v980
    %v1673 = vunpack.c.h.b16 %v980
    %v1674 = vunpack.c.l.b16 %v981
    %v1675 = vunpack.c.h.b16 %v981
    %v1676 = vunpack.c.l.b16 %v982
    %v1677 = vunpack.c.h.b16 %v982
    %v1678 = vunpack.c.l.b16 %v983
    %v1679 = vunpack.c.h.b16 %v983
    %v1680 = vunpack.c.l.b16 %v984
    %v1681 = vunpack.c.h.b16 %v984
    %v1682 = vunpack.c.l.b16 %v985
    %v1683 = vunpack.c.h.b16 %v985
    %v1684 = vunpack.c.l.b16 %v986
    %v1685 = vunpack.c.h.b16 %v986
    %v1686 = vunpack.c.l.b16 %v987
    %v1687 = vunpack.c.h.b16 %v987
    %v1688 = vunpack.c.l.b16 %v988
    %v1689 = vunpack.c.h.b16 %v988
    %v1690 = vunpack.c.l.b16 %v989
    %v1691 = vunpack.c.h.b16 %v989
    %v1692 = vunpack.c.l.b16 %v990
    %v1693 = vunpack.c.h.b16 %v990
    %v1694 = vunpack.c.l.b16 %v991
    %v1695 = vunpack.c.h.b16 %v991
    %v1696 = vunpack.c.l.b16 %v992
    %v1697 = vunpack.c.h.b16 %v992
    %v1698 = vunpack.c.l.b16 %v993
    %v1699 = vunpack.c.h.b16 %v993
    %v1700 = vunpack.c.l.b16 %v994
    %v1701 = vunpack.c.h.b16 %v994
    %v1702 = vunpack.c.l.b16 %v995
    %v1703 = vunpack.c.h.b16 %v995
    %v1704 = vunpack.c.l.b16 %v996
    %v1705 = vunpack.c.h.b16 %v996
    %v1706 = vunpack.c.l.b16 %v997
    %v1707 = vunpack.c.h.b16 %v997
    %v1708 = vunpack.c.l.b16 %v998
    %v1709 = vunpack.c.h.b16 %v998
    %v1710 = vunpack.c.l.b16 %v999
    %v1711 = vunpack.c.h.b16 %v999
    %v1712 = vunpack.c.l.b16 %v1000
    %v1713 = vunpack.c.h.b16 %v1000
    %v1714 = vunpack.c.l.b16 %v1001
    %v1715 = vunpack.c.h.b16 %v1001
    %v1716 = vunpack.c.l.b16 %v1002
    %v1717 = vunpack.c.h.b16 %v1002
    %v1718 = vunpack.c.l.b16 %v1003
    %v1719 = vunpack.c.h.b16 %v1003
    %v1720 = vunpack.c.l.b16 %v1004
    %v1721 = vunpack.c.h.b16 %v1004
    %v1722 = vunpack.c.l.b16 %v1005
    %v1723 = vunpack.c.h.b16 %v1005
    %v1724 = vunpack.c.l.b16 %v1006
    %v1725 = vunpack.c.h.b16 %v1006
    %v1726 = vunpack.c.l.b16 %v1007
    %v1727 = vunpack.c.h.b16 %v1007
    %v1728 = vunpack.c.l.b16 %v1008
    %v1729 = vunpack.c.h.b16 %v1008
    %v1730 = vunpack.c.l.b16 %v1009
    %v1731 = vunpack.c.h.b16 %v1009
    %v1732 = vunpack.c.l.b16 %v1010
    %v1733 = vunpack.c.h.b16 %v1010
    %v1734 = vunpack.c.l.b16 %v1011
    %v1735 = vunpack.c.h.b16 %v1011
    %v1736 = vunpack.c.l.b16 %v1012
    %v1737 = vunpack.c.h.b16 %v1012
    %v1738 = vunpack.c.l.b16 %v1013
    %v1739 = vunpack.c.h.b16 %v1013
    %v1740 = vunpack.c.l.b16 %v1014
    %v1741 = vunpack.c.h.b16 %v1014
    %v1742 = vunpack.c.l.b16 %v1015
    %v1743 = vunpack.c.h.b16 %v1015
    %v1744 = vunpack.c.l.b16 %v1016
    %v1745 = vunpack.c.h.b16 %v1016
    %v1746 = vunpack.c.l.b16 %v1017
    %v1747 = vunpack.c.h.b16 %v1017
    %v1748 = vunpack.c.l.b16 %v1018
    %v1749 = vunpack.c.h.b16 %v1018
    %v1750 = vunpack.c.l.b16 %v1019
    %v1751 = vunpack.c.h.b16 %v1019
    %v1752 = vunpack.c.l.b16 %v1020
    %v1753 = vunpack.c.h.b16 %v1020
    %v1754 = vunpack.c.l.b16 %v1021
    %v1755 = vunpack.c.h.b16 %v1021
    %v1756 = vunpack.c.l.b16 %v1022
    %v1757 = vunpack.c.h.b16 %v1022
    %v1758 = vunpack.c.l.b16 %v1023
    %v1759 = vunpack.c.h.b16 %v1023
    %v1760 = vunpack.c.l.b16 %v1024
    %v1761 = vunpack.c.h.b16 %v1024
    %v1762 = vunpack.c.l.b16 %v1025
    %v1763 = vunpack.c.h.b16 %v1025
    %v1764 = vunpack.c.l.b16 %v1026
    %v1765 = vunpack.c.h.b16 %v1026
    %v1766 = vunpack.c.l.b16 %v1027
    %v1767 = vunpack.c.h.b16 %v1027
    %v1768 = vunpack.c.l.b16 %v1028
    %v1769 = vunpack.c.h.b16 %v1028
    %v1770 = vunpack.c.l.b16 %v1029
    %v1771 = vunpack.c.h.b16 %v1029
    %v1772 = vunpack.c.l.b16 %v1030
    %v1773 = vunpack.c.h.b16 %v1030
    %v1774 = vunpack.c.l.b16 %v1031
    %v1775 = vunpack.c.h.b16 %v1031
    %v1776 = vunpack.c.l.b16 %v1032
    %v1777 = vunpack.c.h.b16 %v1032
    %v1778 = vunpack.c.l.b16 %v1033
    %v1779 = vunpack.c.h.b16 %v1033
    %v1780 = vunpack.c.l.b16 %v1034
    %v1781 = vunpack.c.h.b16 %v1034
    %v1782 = vunpack.c.l.b16 %v1035
    %v1783 = vunpack.c.h.b16 %v1035
    %v1784 = vunpack.c.l.b16 %v1036
    %v1785 = vunpack.c.h.b16 %v1036
    %v1786 = vunpack.c.l.b16 %v1037
    %v1787 = vunpack.c.h.b16 %v1037
    %v1788 = vunpack.c.l.b16 %v1038
    %v1789 = vunpack.c.h.b16 %v1038
    %v1790 = vunpack.c.l.b16 %v1039
    %v1791 = vunpack.c.h.b16 %v1039
    %v1792 = vunpack.c.l.b16 %v1040
    %v1793 = vunpack.c.h.b16 %v1040
    %v1794 = vunpack.c.l.b16 %v1041
    %v1795 = vunpack.c.h.b16 %v1041
    %v1796 = vunpack.c.l.b16 %v1042
    %v1797 = vunpack.c.h.b16 %v1042
    %v1798 = vunpack.c.l.b16 %v1043
    %v1799 = vunpack.c.h.b16 %v1043
    %v1800 = vunpack.c.l.b16 %v1044
    %v1801 = vunpack.c.h.b16 %v1044
    %v1802 = vunpack.c.l.b16 %v1045
    %v1803 = vunpack.c.h.b16 %v1045
    %v1804 = vunpack.c.l.b16 %v1046
    %v1805 = vunpack.c.h.b16 %v1046
    %v1806 = vunpack.c.l.b16 %v1047
    %v1807 = vunpack.c.h.b16 %v1047
    %v1808 = vunpack.c.l.b16 %v1048
    %v1809 = vunpack.c.h.b16 %v1048
    %v1810 = vunpack.c.l.b16 %v1049
    %v1811 = vunpack.c.h.b16 %v1049
    %v1812 = vunpack.c.l.b16 %v1050
    %v1813 = vunpack.c.h.b16 %v1050
    %v1814 = vunpack.c.l.b16 %v1051
    %v1815 = vunpack.c.h.b16 %v1051
    %v1816 = vunpack.c.l.b16 %v1052
    %v1817 = vunpack.c.h.b16 %v1052
    %v1818 = vunpack.c.l.b16 %v1053
    %v1819 = vunpack.c.h.b16 %v1053
    %v1820 = vunpack.c.l.b16 %v1054
    %v1821 = vunpack.c.h.b16 %v1054
    %v1822 = vunpack.c.l.b16 %v1055
    %v1823 = vunpack.c.h.b16 %v1055
    %v1824 = vunpack.c.l.b16 %v1056
    %v1825 = vunpack.c.h.b16 %v1056
    %v1826 = vunpack.c.l.b16 %v1057
    %v1827 = vunpack.c.h.b16 %v1057
    %v1828 = vunpack.c.l.b16 %v1058
    %v1829 = vunpack.c.h.b16 %v1058
    %v1830 = vunpack.c.l.b16 %v1059
    %v1831 = vunpack.c.h.b16 %v1059
    %v1832 = vunpack.c.l.b16 %v1060
    %v1833 = vunpack.c.h.b16 %v1060
    %v1834 = vunpack.c.l.b16 %v1061
    %v1835 = vunpack.c.h.b16 %v1061
    %v1836 = vunpack.c.l.b16 %v1062
    %v1837 = vunpack.c.h.b16 %v1062
    %v1838 = vunpack.c.l.b16 %v1063
    %v1839 = vunpack.c.h.b16 %v1063
    %v1840 = vunpack.c.l.b16 %v1064
    %v1841 = vunpack.c.h.b16 %v1064
    %v1842 = vunpack.c.l.b16 %v1065
    %v1843 = vunpack.c.h.b16 %v1065
    %v1844 = vunpack.c.l.b16 %v1066
    %v1845 = vunpack.c.h.b16 %v1066
    %v1846 = vunpack.c.l.b16 %v1067
    %v1847 = vunpack.c.h.b16 %v1067
    %v1848 = vunpack.c.l.b16 %v1068
    %v1849 = vunpack.c.h.b16 %v1068
    %v1850 = vunpack.c.l.b16 %v1069
    %v1851 = vunpack.c.h.b16 %v1069
    %v1852 = vunpack.c.l.b16 %v1070
    %v1853 = vunpack.c.h.b16 %v1070
    %v1854 = vunpack.c.l.b16 %v1071
    %v1855 = vunpack.c.h.b16 %v1071
    %v1856 = vunpack.c.l.b16 %v1072
    %v1857 = vunpack.c.h.b16 %v1072
    %v1858 = vunpack.c.l.b16 %v1073
    %v1859 = vunpack.c.h.b16 %v1073
    %v1860 = vunpack.c.l.b16 %v1074
    %v1861 = vunpack.c.h.b16 %v1074
    %v1862 = vunpack.c.l.b16 %v1075
    %v1863 = vunpack.c.h.b16 %v1075
    %v1864 = vunpack.c.l.b16 %v1076
    %v1865 = vunpack.c.h.b16 %v1076
    %v1866 = vunpack.c.l.b16 %v1077
    %v1867 = vunpack.c.h.b16 %v1077
    %v1868 = vunpack.c.l.b16 %v1078
    %v1869 = vunpack.c.h.b16 %v1078
    %v1870 = vunpack.c.l.b16 %v1079
    %v1871 = vunpack.c.h.b16 %v1079
    %v1872 = vunpack.c.l.b16 %v1080
    %v1873 = vunpack.c.h.b16 %v1080
    %v1874 = vunpack.c.l.b16 %v1081
    %v1875 = vunpack.c.h.b16 %v1081
    %v1876 = vunpack.c.l.b16 %v1082
    %v1877 = vunpack.c.h.b16 %v1082
    %v1878 = vunpack.c.l.b16 %v1083
    %v1879 = vunpack.c.h.b16 %v1083
    %v1880 = vunpack.c.l.b16 %v1084
    %v1881 = vunpack.c.h.b16 %v1084
    %v1882 = vunpack.c.l.b16 %v1085
    %v1883 = vunpack.c.h.b16 %v1085
    %v1884 = vunpack.c.l.b16 %v1086
    %v1885 = vunpack.c.h.b16 %v1086
    %v1886 = vunpack.c.l.b16 %v1087
    %v1887 = vunpack.c.h.b16 %v1087
    %v1888 = vunpack.c.l.b16 %v1088
    %v1889 = vunpack.c.h.b16 %v1088
    %v1890 = vunpack.c.l.b16 %v1089
    %v1891 = vunpack.c.h.b16 %v1089
    %v1892 = vunpack.c.l.b16 %v1090
    %v1893 = vunpack.c.h.b16 %v1090
    %v1894 = vunpack.c.l.b16 %v1091
    %v1895 = vunpack.c.h.b16 %v1091
    %v1896 = vunpack.c.l.b16 %v1092
    %v1897 = vunpack.c.h.b16 %v1092
    %v1898 = vunpack.c.l.b16 %v1093
    %v1899 = vunpack.c.h.b16 %v1093
    %v1900 = vunpack.c.l.b16 %v1094
    %v1901 = vunpack.c.h.b16 %v1094
    %v1902 = vunpack.c.l.b16 %v1095
    %v1903 = vunpack.c.h.b16 %v1095
    %v1904 = vunpack.c.l.b16 %v1096
    %v1905 = vunpack.c.h.b16 %v1096
    %v1906 = vunpack.c.l.b16 %v1097
    %v1907 = vunpack.c.h.b16 %v1097
    %v1908 = vpack.c.b16 %v1404, %v1396
    %v1909 = vpack.c.b16 %v1405, %v1397
    %v1910 = vpack.c.b16 %v1406, %v1398
    %v1911 = vpack.c.b16 %v1407, %v1399
    %v1912 = vpack.c.b16 %v1408, %v1400
    %v1913 = vpack.c.b16 %v1409, %v1401
    %v1914 = vpack.c.b16 %v1410, %v1402
    %v1915 = vpack.c.b16 %v1411, %v1403
    %v1916 = vpack.c.b16 %v1420, %v1412
    %v1917 = vpack.c.b16 %v1421, %v1413
    %v1918 = vpack.c.b16 %v1422, %v1414
    %v1919 = vpack.c.b16 %v1423, %v1415
    %v1920 = vpack.c.b16 %v1424, %v1416
    %v1921 = vpack.c.b16 %v1425, %v1417
    %v1922 = vpack.c.b16 %v1426, %v1418
    %v1923 = vpack.c.b16 %v1427, %v1419
    %v1924 = vpack.c.b16 %v1436, %v1428
    %v1925 = vpack.c.b16 %v1437, %v1429
    %v1926 = vpack.c.b16 %v1438, %v1430
    %v1927 = vpack.c.b16 %v1439, %v1431
    %v1928 = vpack.c.b16 %v1440, %v1432
    %v1929 = vpack.c.b16 %v1441, %v1433
    %v1930 = vpack.c.b16 %v1442, %v1434
    %v1931 = vpack.c.b16 %v1443, %v1435
    %v1932 = vpack.c.b16 %v1452, %v1444
    %v1933 = vpack.c.b16 %v1453, %v1445
    %v1934 = vpack.c.b16 %v1454, %v1446
    %v1935 = vpack.c.b16 %v1455, %v1447
    %v1936 = vpack.c.b16 %v1456, %v1448
    %v1937 = vpack.c.b16 %v1457, %v1449
    %v1938 = vpack.c.b16 %v1458, %v1450
    %v1939 = vpack.c.b16 %v1459, %v1451
    %v1940 = vpack.c.b16 %v1468, %v1460
    %v1941 = vpack.c.b16 %v1469, %v1461
    %v1942 = vpack.c.b16 %v1470, %v1462
    %v1943 = vpack.c.b16 %v1471, %v1463
    %v1944 = vpack.c.b16 %v1472, %v1464
    %v1945 = vpack.c.b16 %v1473, %v1465
    %v1946 = vpack.c.b16 %v1474, %v1466
    %v1947 = vpack.c.b16 %v1475, %v1467
    %v1948 = vpack.c.b16 %v1484, %v1476
    %v1949 = vpack.c.b16 %v1485, %v1477
    %v1950 = vpack.c.b16 %v1486, %v1478
    %v1951 = vpack.c.b16 %v1487, %v1479
    %v1952 = vpack.c.b16 %v1488, %v1480
    %v1953 = vpack.c.b16 %v1489, %v1481
    %v1954 = vpack.c.b16 %v1490, %v1482
    %v1955 = vpack.c.b16 %v1491, %v1483
    %v1956 = vpack.c.b16 %v1500, %v1492
    %v1957 = vpack.c.b16 %v1501, %v1493
    %v1958 = vpack.c.b16 %v1502, %v1494
    %v1959 = vpack.c.b16 %v1503, %v1495
    %v1960 = vpack.c.b16 %v1504, %v1496
    %v1961 = vpack.c.b16 %v1505, %v1497
    %v1962 = vpack.c.b16 %v1506, %v1498
    %v1963 = vpack.c.b16 %v1507, %v1499
    %v1964 = vpack.c.b16 %v1516, %v1508
    %v1965 = vpack.c.b16 %v1517, %v1509
    %v1966 = vpack.c.b16 %v1518, %v1510
    %v1967 = vpack.c.b16 %v1519, %v1511
    %v1968 = vpack.c.b16 %v1520, %v1512
    %v1969 = vpack.c.b16 %v1521, %v1513
    %v1970 = vpack.c.b16 %v1522, %v1514
    %v1971 = vpack.c.b16 %v1523, %v1515
    %v1972 = vpack.c.b16 %v1532, %v1524
    %v1973 = vpack.c.b16 %v1533, %v1525
    %v1974 = vpack.c.b16 %v1534, %v1526
    %v1975 = vpack.c.b16 %v1535, %v1527
    %v1976 = vpack.c.b16 %v1536, %v1528
    %v1977 = vpack.c.b16 %v1537, %v1529
    %v1978 = vpack.c.b16 %v1538, %v1530
    %v1979 = vpack.c.b16 %v1539, %v1531
    %v1980 = vpack.c.b16 %v1548, %v1540
    %v1981 = vpack.c.b16 %v1549, %v1541
    %v1982 = vpack.c.b16 %v1550, %v1542
    %v1983 = vpack.c.b16 %v1551, %v1543
    %v1984 = vpack.c.b16 %v1552, %v1544
    %v1985 = vpack.c.b16 %v1553, %v1545
    %v1986 = vpack.c.b16 %v1554, %v1546
    %v1987 = vpack.c.b16 %v1555, %v1547
    %v1988 = vpack.c.b16 %v1564, %v1556
    %v1989 = vpack.c.b16 %v1565, %v1557
    %v1990 = vpack.c.b16 %v1566, %v1558
    %v1991 = vpack.c.b16 %v1567, %v1559
    %v1992 = vpack.c.b16 %v1568, %v1560
    %v1993 = vpack.c.b16 %v1569, %v1561
    %v1994 = vpack.c.b16 %v1570, %v1562
    %v1995 = vpack.c.b16 %v1571, %v1563
    %v1996 = vpack.c.b16 %v1580, %v1572
    %v1997 = vpack.c.b16 %v1581, %v1573
    %v1998 = vpack.c.b16 %v1582, %v1574
    %v1999 = vpack.c.b16 %v1583, %v1575
    %v2000 = vpack.c.b16 %v1584, %v1576
    %v2001 = vpack.c.b16 %v1585, %v1577
    %v2002 = vpack.c.b16 %v1586, %v1578
    %v2003 = vpack.c.b16 %v1587, %v1579
    %v2004 = vpack.c.b16 %v1596, %v1588
    %v2005 = vpack.c.b16 %v1597, %v1589
    %v2006 = vpack.c.b16 %v1598, %v1590
    %v2007 = vpack.c.b16 %v1599, %v1591
    %v2008 = vpack.c.b16 %v1600, %v1592
    %v2009 = vpack.c.b16 %v1601, %v1593
    %v2010 = vpack.c.b16 %v1602, %v1594
    %v2011 = vpack.c.b16 %v1603, %v1595
    %v2012 = vpack.c.b16 %v1612, %v1604
    %v2013 = vpack.c.b16 %v1613, %v1605
    %v2014 = vpack.c.b16 %v1614, %v1606
    %v2015 = vpack.c.b16 %v1615, %v1607
    %v2016 = vpack.c.b16 %v1616, %v1608
    %v2017 = vpack.c.b16 %v1617, %v1609
    %v2018 = vpack.c.b16 %v1618, %v1610
    %v2019 = vpack.c.b16 %v1619, %v1611
    %v2020 = vpack.c.b16 %v1628, %v1620
    %v2021 = vpack.c.b16 %v1629, %v1621
    %v2022 = vpack.c.b16 %v1630, %v1622
    %v2023 = vpack.c.b16 %v1631, %v1623
    %v2024 = vpack.c.b16 %v1632, %v1624
    %v2025 = vpack.c.b16 %v1633, %v1625
    %v2026 = vpack.c.b16 %v1634, %v1626
    %v2027 = vpack.c.b16 %v1635, %v1627
    %v2028 = vpack.c.b16 %v1644, %v1636
    %v2029 = vpack.c.b16 %v1645, %v1637
    %v2030 = vpack.c.b16 %v1646, %v1638
    %v2031 = vpack.c.b16 %v1647, %v1639
    %v2032 = vpack.c.b16 %v1648, %v1640
    %v2033 = vpack.c.b16 %v1649, %v1641
    %v2034 = vpack.c.b16 %v1650, %v1642
    %v2035 = vpack.c.b16 %v1651, %v1643
    %v2036 = vpack.c.b16 %v1660, %v1652
    %v2037 = vpack.c.b16 %v1661, %v1653
    %v2038 = vpack.c.b16 %v1662, %v1654
    %v2039 = vpack.c.b16 %v1663, %v1655
    %v2040 = vpack.c.b16 %v1664, %v1656
    %v2041 = vpack.c.b16 %v1665, %v1657
    %v2042 = vpack.c.b16 %v1666, %v1658
    %v2043 = vpack.c.b16 %v1667, %v1659
    %v2044 = vpack.c.b16 %v1676, %v1668
    %v2045 = vpack.c.b16 %v1677, %v1669
    %v2046 = vpack.c.b16 %v1678, %v1670
    %v2047 = vpack.c.b16 %v1679, %v1671
    %v2048 = vpack.c.b16 %v1680, %v1672
    %v2049 = vpack.c.b16 %v1681, %v1673
    %v2050 = vpack.c.b16 %v1682, %v1674
    %v2051 = vpack.c.b16 %v1683, %v1675
    %v2052 = vpack.c.b16 %v1692, %v1684
    %v2053 = vpack.c.b16 %v1693, %v1685
    %v2054 = vpack.c.b16 %v1694, %v1686
    %v2055 = vpack.c.b16 %v1695, %v1687
    %v2056 = vpack.c.b16 %v1696, %v1688
    %v2057 = vpack.c.b16 %v1697, %v1689
    %v2058 = vpack.c.b16 %v1698, %v1690
    %v2059 = vpack.c.b16 %v1699, %v1691
    %v2060 = vpack.c.b16 %v1708, %v1700
    %v2061 = vpack.c.b16 %v1709, %v1701
    %v2062 = vpack.c.b16 %v1710, %v1702
    %v2063 = vpack.c.b16 %v1711, %v1703
    %v2064 = vpack.c.b16 %v1712, %v1704
    %v2065 = vpack.c.b16 %v1713, %v1705
    %v2066 = vpack.c.b16 %v1714, %v1706
    %v2067 = vpack.c.b16 %v1715, %v1707
    %v2068 = vpack.c.b16 %v1724, %v1716
    %v2069 = vpack.c.b16 %v1725, %v1717
    %v2070 = vpack.c.b16 %v1726, %v1718
    %v2071 = vpack.c.b16 %v1727, %v1719
    %v2072 = vpack.c.b16 %v1728, %v1720
    %v2073 = vpack.c.b16 %v1729, %v1721
    %v2074 = vpack.c.b16 %v1730, %v1722
    %v2075 = vpack.c.b16 %v1731, %v1723
    %v2076 = vpack.c.b16 %v1740, %v1732
    %v2077 = vpack.c.b16 %v1741, %v1733
    %v2078 = vpack.c.b16 %v1742, %v1734
    %v2079 = vpack.c.b16 %v1743, %v1735
    %v2080 = vpack.c.b16 %v1744, %v1736
    %v2081 = vpack.c.b16 %v1745, %v1737
    %v2082 = vpack.c.b16 %v1746, %v1738
    %v2083 = vpack.c.b16 %v1747, %v1739
    %v2084 = vpack.c.b16 %v1756, %v1748
    %v2085 = vpack.c.b16 %v1757, %v1749
    %v2086 = vpack.c.b16 %v1758, %v1750
    %v2087 = vpack.c.b16 %v1759, %v1751
    %v2088 = vpack.c.b16 %v1760, %v1752
    %v2089 = vpack.c.b16 %v1761, %v1753
    %v2090 = vpack.c.b16 %v1762, %v1754
    %v2091 = vpack.c.b16 %v1763, %v1755
    %v2092 = vpack.c.b16 %v1772, %v1764
    %v2093 = vpack.c.b16 %v1773, %v1765
    %v2094 = vpack.c.b16 %v1774, %v1766
    %v2095 = vpack.c.b16 %v1775, %v1767
    %v2096 = vpack.c.b16 %v1776, %v1768
    %v2097 = vpack.c.b16 %v1777, %v1769
    %v2098 = vpack.c.b16 %v1778, %v1770
    %v2099 = vpack.c.b16 %v1779, %v1771
    %v2100 = vpack.c.b16 %v1788, %v1780
    %v2101 = vpack.c.b16 %v1789, %v1781
    %v2102 = vpack.c.b16 %v1790, %v1782
    %v2103 = vpack.c.b16 %v1791, %v1783
    %v2104 = vpack.c.b16 %v1792, %v1784
    %v2105 = vpack.c.b16 %v1793, %v1785
    %v2106 = vpack.c.b16 %v1794, %v1786
    %v2107 = vpack.c.b16 %v1795, %v1787
    %v2108 = vpack.c.b16 %v1804, %v1796
    %v2109 = vpack.c.b16 %v1805, %v1797
    %v2110 = vpack.c.b16 %v1806, %v1798
    %v2111 = vpack.c.b16 %v1807, %v1799
    %v2112 = vpack.c.b16 %v1808, %v1800
    %v2113 = vpack.c.b16 %v1809, %v1801
    %v2114 = vpack.c.b16 %v1810, %v1802
    %v2115 = vpack.c.b16 %v1811, %v1803
    %v2116 = vpack.c.b16 %v1820, %v1812
    %v2117 = vpack.c.b16 %v1821, %v1813
    %v2118 = vpack.c.b16 %v1822, %v1814
    %v2119 = vpack.c.b16 %v1823, %v1815
    %v2120 = vpack.c.b16 %v1824, %v1816
    %v2121 = vpack.c.b16 %v1825, %v1817
    %v2122 = vpack.c.b16 %v1826, %v1818
    %v2123 = vpack.c.b16 %v1827, %v1819
    %v2124 = vpack.c.b16 %v1836, %v1828
    %v2125 = vpack.c.b16 %v1837, %v1829
    %v2126 = vpack.c.b16 %v1838, %v1830
    %v2127 = vpack.c.b16 %v1839, %v1831
    %v2128 = vpack.c.b16 %v1840, %v1832
    %v2129 = vpack.c.b16 %v1841, %v1833
    %v2130 = vpack.c.b16 %v1842, %v1834
    %v2131 = vpack.c.b16 %v1843, %v1835
    %v2132 = vpack.c.b16 %v1852, %v1844
    %v2133 = vpack.c.b16 %v1853, %v1845
    %v2134 = vpack.c.b16 %v1854, %v1846
    %v2135 = vpack.c.b16 %v1855, %v1847
    %v2136 = vpack.c.b16 %v1856, %v1848
    %v2137 = vpack.c.b16 %v1857, %v1849
    %v2138 = vpack.c.b16 %v1858, %v1850
    %v2139 = vpack.c.b16 %v1859, %v1851
    %v2140 = vpack.c.b16 %v1868, %v1860
    %v2141 = vpack.c.b16 %v1869, %v1861
    %v2142 = vpack.c.b16 %v1870, %v1862
    %v2143 = vpack.c.b16 %v1871, %v1863
    %v2144 = vpack.c.b16 %v1872, %v1864
    %v2145 = vpack.c.b16 %v1873, %v1865
    %v2146 = vpack.c.b16 %v1874, %v1866
    %v2147 = vpack.c.b16 %v1875, %v1867
    %v2148 = vpack.c.b16 %v1884, %v1876
    %v2149 = vpack.c.b16 %v1885, %v1877
    %v2150 = vpack.c.b16 %v1886, %v1878
    %v2151 = vpack.c.b16 %v1887, %v1879
    %v2152 = vpack.c.b16 %v1888, %v1880
    %v2153 = vpack.c.b16 %v1889, %v1881
    %v2154 = vpack.c.b16 %v1890, %v1882
    %v2155 = vpack.c.b16 %v1891, %v1883
    %v2156 = vpack.c.b16 %v1900, %v1892
    %v2157 = vpack.c.b16 %v1901, %v1893
    %v2158 = vpack.c.b16 %v1902, %v1894
    %v2159 = vpack.c.b16 %v1903, %v1895
    %v2160 = vpack.c.b16 %v1904, %v1896
    %v2161 = vpack.c.b16 %v1905, %v1897
    %v2162 = vpack.c.b16 %v1906, %v1898
    %v2163 = vpack.c.b16 %v1907, %v1899
    %2420 = vmatprep.subr.bf16.mxu0 %v1909
    %2421 = vmatpush1.bf16.msra.mxu0 %v1908
    %2422 = vmatprep.subr.bf16.mxu0 %v1917
    %2423 = vmatpush1.bf16.msra.mxu0 %v1916
    %2424 = vmatprep.subr.bf16.mxu0 %v1925
    %2425 = vmatpush1.bf16.msra.mxu0 %v1924
    %2426 = vmatprep.subr.bf16.mxu0 %v1933
    %2427 = vmatpush1.bf16.msra.mxu0 %v1932
    %2428 = vmatprep.subr.bf16.mxu0 %v1941
    %2429 = vmatpush1.bf16.msra.mxu0 %v1940
    %2430 = vmatprep.subr.bf16.mxu0 %v1949
    %2431 = vmatpush1.bf16.msra.mxu0 %v1948
    %2432 = vmatprep.subr.bf16.mxu0 %v1957
    %2433 = vmatpush1.bf16.msra.mxu0 %v1956
    %2434 = vmatprep.subr.bf16.mxu0 %v1965
    %2435 = vmatpush1.bf16.msra.mxu0 %v1964
    %2436 = vmatprep.subr.bf16.mxu0 %v1973
    %2437 = vmatpush1.bf16.msra.mxu0 %v1972
    %2438 = vmatprep.subr.bf16.mxu0 %v1981
    %2439 = vmatpush1.bf16.msra.mxu0 %v1980
    %2440 = vmatprep.subr.bf16.mxu0 %v1989
    %2441 = vmatpush1.bf16.msra.mxu0 %v1988
    %2442 = vmatprep.subr.bf16.mxu0 %v1997
    %2443 = vmatpush1.bf16.msra.mxu0 %v1996
    %2444 = vmatprep.subr.bf16.mxu0 %v2005
    %2445 = vmatpush1.bf16.msra.mxu0 %v2004
    %2446 = vmatprep.subr.bf16.mxu0 %v2013
    %2447 = vmatpush1.bf16.msra.mxu0 %v2012
    %2448 = vmatprep.subr.bf16.mxu0 %v2021
    %2449 = vmatpush1.bf16.msra.mxu0 %v2020
    %2450 = vmatprep.subr.bf16.mxu0 %v2029
    %2451 = vmatpush1.bf16.msra.mxu0 %v2028
    %2452 = vmatprep.mubr.bf16.mxu0 %v839
    %2453 = vmatmul.mubr.bf16.gmra.mrb[0].mxu0 %v838
    %v2454 = vpop.f32.mrb[0].mxu0
    %v2455 = vadd.f32 %v1103, %v2454
    %v2456 = vpop.f32.mrb[0].mxu0
    %v2457 = vadd.f32 %v1107, %v2456
    %v2458 = vpop.f32.mrb[0].mxu0
    %v2459 = vpop.f32.mrb[0].mxu0
    %2460 = vdwg.mxu0
    %2461 = vmatprep.subr.bf16.mxu0 %v2037
    %2462 = vmatpush1.bf16.msra.mxu0 %v2036
    %2463 = vmatprep.subr.bf16.mxu0 %v2045
    %2464 = vmatpush1.bf16.msra.mxu0 %v2044
    %2465 = vmatprep.subr.bf16.mxu0 %v2053
    %2466 = vmatpush1.bf16.msra.mxu0 %v2052
    %2467 = vmatprep.subr.bf16.mxu0 %v2061
    %2468 = vmatpush1.bf16.msra.mxu0 %v2060
    %2469 = vmatprep.subr.bf16.mxu0 %v2069
    %2470 = vmatpush1.bf16.msra.mxu0 %v2068
    %2471 = vmatprep.subr.bf16.mxu0 %v2077
    %2472 = vmatpush1.bf16.msra.mxu0 %v2076
    %2473 = vmatprep.subr.bf16.mxu0 %v2085
    %2474 = vmatpush1.bf16.msra.mxu0 %v2084
    %2475 = vmatprep.subr.bf16.mxu0 %v2093
    %2476 = vmatpush1.bf16.msra.mxu0 %v2092
    %2477 = vmatprep.subr.bf16.mxu0 %v2101
    %2478 = vmatpush1.bf16.msra.mxu0 %v2100
    %2479 = vmatprep.subr.bf16.mxu0 %v2109
    %2480 = vmatpush1.bf16.msra.mxu0 %v2108
    %2481 = vmatprep.subr.bf16.mxu0 %v2117
    %2482 = vmatpush1.bf16.msra.mxu0 %v2116
    %2483 = vmatprep.subr.bf16.mxu0 %v2125
    %2484 = vmatpush1.bf16.msra.mxu0 %v2124
    %2485 = vmatprep.subr.bf16.mxu0 %v2133
    %2486 = vmatpush1.bf16.msra.mxu0 %v2132
    %2487 = vmatprep.subr.bf16.mxu0 %v2141
    %2488 = vmatpush1.bf16.msra.mxu0 %v2140
    %2489 = vmatprep.subr.bf16.mxu0 %v2149
    %2490 = vmatpush1.bf16.msra.mxu0 %v2148
    %2491 = vmatprep.subr.bf16.mxu0 %v2157
    %2492 = vmatpush1.bf16.msra.mxu0 %v2156
    %2493 = vmatprep.mubr.bf16.mxu0 %v841
    %2494 = vmatmul.mubr.bf16.gmra.mrb[0].mxu0 %v840
    %v2495 = vpop.f32.mrb[0].mxu0
    %v2496 = vadd.f32 %v2455, %v2495
    %v2497 = vpop.f32.mrb[0].mxu0
    %v2498 = vadd.f32 %v2457, %v2497
    %v2499 = vpop.f32.mrb[0].mxu0
    %v2500 = vpop.f32.mrb[0].mxu0
    %2501 = vdwg.mxu0
    %2502 = vmatprep.subr.bf16.mxu0 %v1911
    %2503 = vmatpush1.bf16.msra.mxu0 %v1910
    %2504 = vmatprep.subr.bf16.mxu0 %v1919
    %2505 = vmatpush1.bf16.msra.mxu0 %v1918
    %2506 = vmatprep.subr.bf16.mxu0 %v1927
    %2507 = vmatpush1.bf16.msra.mxu0 %v1926
    %2508 = vmatprep.subr.bf16.mxu0 %v1935
    %2509 = vmatpush1.bf16.msra.mxu0 %v1934
    %2510 = vmatprep.subr.bf16.mxu0 %v1943
    %2511 = vmatpush1.bf16.msra.mxu0 %v1942
    %2512 = vmatprep.subr.bf16.mxu0 %v1951
    %2513 = vmatpush1.bf16.msra.mxu0 %v1950
    %2514 = vmatprep.subr.bf16.mxu0 %v1959
    %2515 = vmatpush1.bf16.msra.mxu0 %v1958
    %2516 = vmatprep.subr.bf16.mxu0 %v1967
    %2517 = vmatpush1.bf16.msra.mxu0 %v1966
    %2518 = vmatprep.subr.bf16.mxu0 %v1975
    %2519 = vmatpush1.bf16.msra.mxu0 %v1974
    %2520 = vmatprep.subr.bf16.mxu0 %v1983
    %2521 = vmatpush1.bf16.msra.mxu0 %v1982
    %2522 = vmatprep.subr.bf16.mxu0 %v1991
    %2523 = vmatpush1.bf16.msra.mxu0 %v1990
    %2524 = vmatprep.subr.bf16.mxu0 %v1999
    %2525 = vmatpush1.bf16.msra.mxu0 %v1998
    %2526 = vmatprep.subr.bf16.mxu0 %v2007
    %2527 = vmatpush1.bf16.msra.mxu0 %v2006
    %2528 = vmatprep.subr.bf16.mxu0 %v2015
    %2529 = vmatpush1.bf16.msra.mxu0 %v2014
    %2530 = vmatprep.subr.bf16.mxu0 %v2023
    %2531 = vmatpush1.bf16.msra.mxu0 %v2022
    %2532 = vmatprep.subr.bf16.mxu0 %v2031
    %2533 = vmatpush1.bf16.msra.mxu0 %v2030
    %2534 = vmatprep.mubr.bf16.mxu0 %v839
    %2535 = vmatmul.mubr.bf16.gmra.mrb[0].mxu0 %v838
    %v2536 = vpop.f32.mrb[0].mxu0
    %v2537 = vadd.f32 %v1111, %v2536
    %v2538 = vpop.f32.mrb[0].mxu0
    %v2539 = vadd.f32 %v1115, %v2538
    %v2540 = vpop.f32.mrb[0].mxu0
    %v2541 = vpop.f32.mrb[0].mxu0
    %2542 = vdwg.mxu0
    %2543 = vmatprep.subr.bf16.mxu0 %v2039
    %2544 = vmatpush1.bf16.msra.mxu0 %v2038
    %2545 = vmatprep.subr.bf16.mxu0 %v2047
    %2546 = vmatpush1.bf16.msra.mxu0 %v2046
    %2547 = vmatprep.subr.bf16.mxu0 %v2055
    %2548 = vmatpush1.bf16.msra.mxu0 %v2054
    %2549 = vmatprep.subr.bf16.mxu0 %v2063
    %2550 = vmatpush1.bf16.msra.mxu0 %v2062
    %2551 = vmatprep.subr.bf16.mxu0 %v2071
    %2552 = vmatpush1.bf16.msra.mxu0 %v2070
    %2553 = vmatprep.subr.bf16.mxu0 %v2079
    %2554 = vmatpush1.bf16.msra.mxu0 %v2078
    %2555 = vmatprep.subr.bf16.mxu0 %v2087
    %2556 = vmatpush1.bf16.msra.mxu0 %v2086
    %2557 = vmatprep.subr.bf16.mxu0 %v2095
    %2558 = vmatpush1.bf16.msra.mxu0 %v2094
    %2559 = vmatprep.subr.bf16.mxu0 %v2103
    %2560 = vmatpush1.bf16.msra.mxu0 %v2102
    %2561 = vmatprep.subr.bf16.mxu0 %v2111
    %2562 = vmatpush1.bf16.msra.mxu0 %v2110
    %2563 = vmatprep.subr.bf16.mxu0 %v2119
    %2564 = vmatpush1.bf16.msra.mxu0 %v2118
    %2565 = vmatprep.subr.bf16.mxu0 %v2127
    %2566 = vmatpush1.bf16.msra.mxu0 %v2126
    %2567 = vmatprep.subr.bf16.mxu0 %v2135
    %2568 = vmatpush1.bf16.msra.mxu0 %v2134
    %2569 = vmatprep.subr.bf16.mxu0 %v2143
    %2570 = vmatpush1.bf16.msra.mxu0 %v2142
    %2571 = vmatprep.subr.bf16.mxu0 %v2151
    %2572 = vmatpush1.bf16.msra.mxu0 %v2150
    %2573 = vmatprep.subr.bf16.mxu0 %v2159
    %2574 = vmatpush1.bf16.msra.mxu0 %v2158
    %2575 = vmatprep.mubr.bf16.mxu0 %v841
    %2576 = vmatmul.mubr.bf16.gmra.mrb[0].mxu0 %v840
    %v2577 = vpop.f32.mrb[0].mxu0
    %v2578 = vadd.f32 %v2537, %v2577
    %v2579 = vpop.f32.mrb[0].mxu0
    %v2580 = vadd.f32 %v2539, %v2579
    %v2581 = vpop.f32.mrb[0].mxu0
    %v2582 = vpop.f32.mrb[0].mxu0
    %2583 = vdwg.mxu0
    %2584 = vmatprep.subr.bf16.mxu0 %v1913
    %2585 = vmatpush1.bf16.msra.mxu0 %v1912
    %2586 = vmatprep.subr.bf16.mxu0 %v1921
    %2587 = vmatpush1.bf16.msra.mxu0 %v1920
    %2588 = vmatprep.subr.bf16.mxu0 %v1929
    %2589 = vmatpush1.bf16.msra.mxu0 %v1928
    %2590 = vmatprep.subr.bf16.mxu0 %v1937
    %2591 = vmatpush1.bf16.msra.mxu0 %v1936
    %2592 = vmatprep.subr.bf16.mxu0 %v1945
    %2593 = vmatpush1.bf16.msra.mxu0 %v1944
    %2594 = vmatprep.subr.bf16.mxu0 %v1953
    %2595 = vmatpush1.bf16.msra.mxu0 %v1952
    %2596 = vmatprep.subr.bf16.mxu0 %v1961
    %2597 = vmatpush1.bf16.msra.mxu0 %v1960
    %2598 = vmatprep.subr.bf16.mxu0 %v1969
    %2599 = vmatpush1.bf16.msra.mxu0 %v1968
    %2600 = vmatprep.subr.bf16.mxu0 %v1977
    %2601 = vmatpush1.bf16.msra.mxu0 %v1976
    %2602 = vmatprep.subr.bf16.mxu0 %v1985
    %2603 = vmatpush1.bf16.msra.mxu0 %v1984
    %2604 = vmatprep.subr.bf16.mxu0 %v1993
    %2605 = vmatpush1.bf16.msra.mxu0 %v1992
    %2606 = vmatprep.subr.bf16.mxu0 %v2001
    %2607 = vmatpush1.bf16.msra.mxu0 %v2000
    %2608 = vmatprep.subr.bf16.mxu0 %v2009
    %2609 = vmatpush1.bf16.msra.mxu0 %v2008
    %2610 = vmatprep.subr.bf16.mxu0 %v2017
    %2611 = vmatpush1.bf16.msra.mxu0 %v2016
    %2612 = vmatprep.subr.bf16.mxu0 %v2025
    %2613 = vmatpush1.bf16.msra.mxu0 %v2024
    %2614 = vmatprep.subr.bf16.mxu0 %v2033
    %2615 = vmatpush1.bf16.msra.mxu0 %v2032
    %2616 = vmatprep.mubr.bf16.mxu0 %v839
    %2617 = vmatmul.mubr.bf16.gmra.mrb[0].mxu0 %v838
    %v2618 = vpop.f32.mrb[0].mxu0
    %v2619 = vadd.f32 %v1119, %v2618
    %v2620 = vpop.f32.mrb[0].mxu0
    %v2621 = vadd.f32 %v1123, %v2620
    %v2622 = vpop.f32.mrb[0].mxu0
    %v2623 = vpop.f32.mrb[0].mxu0
    %2624 = vdwg.mxu0
    %2625 = vmatprep.subr.bf16.mxu0 %v2041
    %2626 = vmatpush1.bf16.msra.mxu0 %v2040
    %2627 = vmatprep.subr.bf16.mxu0 %v2049
    %2628 = vmatpush1.bf16.msra.mxu0 %v2048
    %2629 = vmatprep.subr.bf16.mxu0 %v2057
    %2630 = vmatpush1.bf16.msra.mxu0 %v2056
    %2631 = vmatprep.subr.bf16.mxu0 %v2065
    %2632 = vmatpush1.bf16.msra.mxu0 %v2064
    %2633 = vmatprep.subr.bf16.mxu0 %v2073
    %2634 = vmatpush1.bf16.msra.mxu0 %v2072
    %2635 = vmatprep.subr.bf16.mxu0 %v2081
    %2636 = vmatpush1.bf16.msra.mxu0 %v2080
    %2637 = vmatprep.subr.bf16.mxu0 %v2089
    %2638 = vmatpush1.bf16.msra.mxu0 %v2088
    %2639 = vmatprep.subr.bf16.mxu0 %v2097
    %2640 = vmatpush1.bf16.msra.mxu0 %v2096
    %2641 = vmatprep.subr.bf16.mxu0 %v2105
    %2642 = vmatpush1.bf16.msra.mxu0 %v2104
    %2643 = vmatprep.subr.bf16.mxu0 %v2113
    %2644 = vmatpush1.bf16.msra.mxu0 %v2112
    %2645 = vmatprep.subr.bf16.mxu0 %v2121
    %2646 = vmatpush1.bf16.msra.mxu0 %v2120
    %2647 = vmatprep.subr.bf16.mxu0 %v2129
    %2648 = vmatpush1.bf16.msra.mxu0 %v2128
    %2649 = vmatprep.subr.bf16.mxu0 %v2137
    %2650 = vmatpush1.bf16.msra.mxu0 %v2136
    %2651 = vmatprep.subr.bf16.mxu0 %v2145
    %2652 = vmatpush1.bf16.msra.mxu0 %v2144
    %2653 = vmatprep.subr.bf16.mxu0 %v2153
    %2654 = vmatpush1.bf16.msra.mxu0 %v2152
    %2655 = vmatprep.subr.bf16.mxu0 %v2161
    %2656 = vmatpush1.bf16.msra.mxu0 %v2160
    %2657 = vmatprep.mubr.bf16.mxu0 %v841
    %2658 = vmatmul.mubr.bf16.gmra.mrb[0].mxu0 %v840
    %v2659 = vpop.f32.mrb[0].mxu0
    %v2660 = vadd.f32 %v2619, %v2659
    %v2661 = vpop.f32.mrb[0].mxu0
    %v2662 = vadd.f32 %v2621, %v2661
    %v2663 = vpop.f32.mrb[0].mxu0
    %v2664 = vpop.f32.mrb[0].mxu0
    %2665 = vdwg.mxu0
    %2666 = vmatprep.subr.bf16.mxu0 %v1915
    %2667 = vmatpush1.bf16.msra.mxu0 %v1914
    %2668 = vmatprep.subr.bf16.mxu0 %v1923
    %2669 = vmatpush1.bf16.msra.mxu0 %v1922
    %2670 = vmatprep.subr.bf16.mxu0 %v1931
    %2671 = vmatpush1.bf16.msra.mxu0 %v1930
    %2672 = vmatprep.subr.bf16.mxu0 %v1939
    %2673 = vmatpush1.bf16.msra.mxu0 %v1938
    %2674 = vmatprep.subr.bf16.mxu0 %v1947
    %2675 = vmatpush1.bf16.msra.mxu0 %v1946
    %2676 = vmatprep.subr.bf16.mxu0 %v1955
    %2677 = vmatpush1.bf16.msra.mxu0 %v1954
    %2678 = vmatprep.subr.bf16.mxu0 %v1963
    %2679 = vmatpush1.bf16.msra.mxu0 %v1962
    %2680 = vmatprep.subr.bf16.mxu0 %v1971
    %2681 = vmatpush1.bf16.msra.mxu0 %v1970
    %2682 = vmatprep.subr.bf16.mxu0 %v1979
    %2683 = vmatpush1.bf16.msra.mxu0 %v1978
    %2684 = vmatprep.subr.bf16.mxu0 %v1987
    %2685 = vmatpush1.bf16.msra.mxu0 %v1986
    %2686 = vmatprep.subr.bf16.mxu0 %v1995
    %2687 = vmatpush1.bf16.msra.mxu0 %v1994
    %2688 = vmatprep.subr.bf16.mxu0 %v2003
    %2689 = vmatpush1.bf16.msra.mxu0 %v2002
    %2690 = vmatprep.subr.bf16.mxu0 %v2011
    %2691 = vmatpush1.bf16.msra.mxu0 %v2010
    %2692 = vmatprep.subr.bf16.mxu0 %v2019
    %2693 = vmatpush1.bf16.msra.mxu0 %v2018
    %2694 = vmatprep.subr.bf16.mxu0 %v2027
    %2695 = vmatpush1.bf16.msra.mxu0 %v2026
    %2696 = vmatprep.subr.bf16.mxu0 %v2035
    %2697 = vmatpush1.bf16.msra.mxu0 %v2034
    %2698 = vmatprep.mubr.bf16.mxu0 %v839
    %2699 = vmatmul.mubr.bf16.gmra.mrb[0].mxu0 %v838
    %v2700 = vpop.f32.mrb[0].mxu0
    %v2701 = vadd.f32 %v1127, %v2700
    %v2702 = vpop.f32.mrb[0].mxu0
    %v2703 = vadd.f32 %v1131, %v2702
    %v2704 = vpop.f32.mrb[0].mxu0
    %v2705 = vpop.f32.mrb[0].mxu0
    %2706 = vdwg.mxu0
    %2707 = vmatprep.subr.bf16.mxu0 %v2043
    %2708 = vmatpush1.bf16.msra.mxu0 %v2042
    %2709 = vmatprep.subr.bf16.mxu0 %v2051
    %2710 = vmatpush1.bf16.msra.mxu0 %v2050
    %2711 = vmatprep.subr.bf16.mxu0 %v2059
    %2712 = vmatpush1.bf16.msra.mxu0 %v2058
    %2713 = vmatprep.subr.bf16.mxu0 %v2067
    %2714 = vmatpush1.bf16.msra.mxu0 %v2066
    %2715 = vmatprep.subr.bf16.mxu0 %v2075
    %2716 = vmatpush1.bf16.msra.mxu0 %v2074
    %2717 = vmatprep.subr.bf16.mxu0 %v2083
    %2718 = vmatpush1.bf16.msra.mxu0 %v2082
    %2719 = vmatprep.subr.bf16.mxu0 %v2091
    %2720 = vmatpush1.bf16.msra.mxu0 %v2090
    %2721 = vmatprep.subr.bf16.mxu0 %v2099
    %2722 = vmatpush1.bf16.msra.mxu0 %v2098
    %2723 = vmatprep.subr.bf16.mxu0 %v2107
    %2724 = vmatpush1.bf16.msra.mxu0 %v2106
    %2725 = vmatprep.subr.bf16.mxu0 %v2115
    %2726 = vmatpush1.bf16.msra.mxu0 %v2114
    %2727 = vmatprep.subr.bf16.mxu0 %v2123
    %2728 = vmatpush1.bf16.msra.mxu0 %v2122
    %2729 = vmatprep.subr.bf16.mxu0 %v2131
    %2730 = vmatpush1.bf16.msra.mxu0 %v2130
    %2731 = vmatprep.subr.bf16.mxu0 %v2139
    %2732 = vmatpush1.bf16.msra.mxu0 %v2138
    %2733 = vmatprep.subr.bf16.mxu0 %v2147
    %2734 = vmatpush1.bf16.msra.mxu0 %v2146
    %2735 = vmatprep.subr.bf16.mxu0 %v2155
    %2736 = vmatpush1.bf16.msra.mxu0 %v2154
    %2737 = vmatprep.subr.bf16.mxu0 %v2163
    %2738 = vmatpush1.bf16.msra.mxu0 %v2162
    %2739 = vmatprep.mubr.bf16.mxu0 %v841
    %2740 = vmatmul.mubr.bf16.gmra.mrb[0].mxu0 %v840
    %v2741 = vpop.f32.mrb[0].mxu0
    %v2742 = vadd.f32 %v2701, %v2741
    %v2743 = vpop.f32.mrb[0].mxu0
    %v2744 = vadd.f32 %v2703, %v2743
    %v2745 = vpop.f32.mrb[0].mxu0
    %v2746 = vpop.f32.mrb[0].mxu0
    %2747 = vdwg.mxu0
    %v2748 = vmax.f32 %v2496, 0.0
    %v2749 = vmax.f32 %v2498, 0.0
    %v2750 = vmax.f32 %v2578, 0.0
    %v2751 = vmax.f32 %v2580, 0.0
    %v2752 = vmax.f32 %v2660, 0.0
    %v2753 = vmax.f32 %v2662, 0.0
    %v2754 = vmax.f32 %v2742, 0.0
    %v2755 = vmax.f32 %v2744, 0.0
    %v2756 = vpack.c.bf16 %v2748, %v2748
    %v2757 = vpack.c.bf16 %v2749, %v2749
    %v2758 = vpack.c.bf16 %v2750, %v2750
    %v2759 = vpack.c.bf16 %v2751, %v2751
    %v2760 = vpack.c.bf16 %v2752, %v2752
    %v2761 = vpack.c.bf16 %v2753, %v2753
    %v2762 = vpack.c.bf16 %v2754, %v2754
    %v2763 = vpack.c.bf16 %v2755, %v2755
    %v2764 = vld [vmem:[%s10] sm:$0xf]
    %v2765 = vld [vmem:[%s10 + $0x4] sm:$0xf]
    %v2766 = vld [vmem:[%s10 + $0x8] sm:$0xf]
    %v2767 = vld [vmem:[%s10 + $0xc] sm:$0xf]
    %v2768 = vld [vmem:[%s10 + $0x10] sm:$0xf]
    %v2769 = vld [vmem:[%s10 + $0x14] sm:$0xf]
    %v2770 = vld [vmem:[%s10 + $0x18] sm:$0xf]
    %v2771 = vld [vmem:[%s10 + $0x1c] sm:$0xf]
    %v2772 = vld [vmem:[%s10 + $0x20] sm:$0xf]
    %v2773 = vld [vmem:[%s10 + $0x24] sm:$0xf]
    %v2774 = vld [vmem:[%s10 + $0x28] sm:$0xf]
    %v2775 = vld [vmem:[%s10 + $0x2c] sm:$0xf]
    %v2776 = vld [vmem:[%s10 + $0x30] sm:$0xf]
    %v2777 = vld [vmem:[%s10 + $0x34] sm:$0xf]
    %v2778 = vld [vmem:[%s10 + $0x38] sm:$0xf]
    %v2779 = vld [vmem:[%s10 + $0x3c] sm:$0xf]
    %v2780 = vld [vmem:[%s10 + $0x40] sm:$0xf]
    %v2781 = vld [vmem:[%s10 + $0x44] sm:$0xf]
    %v2782 = vld [vmem:[%s10 + $0x48] sm:$0xf]
    %v2783 = vld [vmem:[%s10 + $0x4c] sm:$0xf]
    %v2784 = vld [vmem:[%s10 + $0x50] sm:$0xf]
    %v2785 = vld [vmem:[%s10 + $0x54] sm:$0xf]
    %v2786 = vld [vmem:[%s10 + $0x58] sm:$0xf]
    %v2787 = vld [vmem:[%s10 + $0x5c] sm:$0xf]
    %v2788 = vld [vmem:[%s10 + $0x60] sm:$0xf]
    %v2789 = vld [vmem:[%s10 + $0x64] sm:$0xf]
    %v2790 = vld [vmem:[%s10 + $0x68] sm:$0xf]
    %v2791 = vld [vmem:[%s10 + $0x6c] sm:$0xf]
    %v2792 = vld [vmem:[%s10 + $0x70] sm:$0xf]
    %v2793 = vld [vmem:[%s10 + $0x74] sm:$0xf]
    %v2794 = vld [vmem:[%s10 + $0x78] sm:$0xf]
    %v2795 = vld [vmem:[%s10 + $0x7c] sm:$0xf]
    %v2796 = vld [vmem:[%s10 + $0x80] sm:$0xf]
    %v2797 = vld [vmem:[%s10 + $0x84] sm:$0xf]
    %v2798 = vld [vmem:[%s10 + $0x88] sm:$0xf]
    %v2799 = vld [vmem:[%s10 + $0x8c] sm:$0xf]
    %v2800 = vld [vmem:[%s10 + $0x90] sm:$0xf]
    %v2801 = vld [vmem:[%s10 + $0x94] sm:$0xf]
    %v2802 = vld [vmem:[%s10 + $0x98] sm:$0xf]
    %v2803 = vld [vmem:[%s10 + $0x9c] sm:$0xf]
    %v2804 = vld [vmem:[%s10 + $0xa0] sm:$0xf]
    %v2805 = vld [vmem:[%s10 + $0xa4] sm:$0xf]
    %v2806 = vld [vmem:[%s10 + $0xa8] sm:$0xf]
    %v2807 = vld [vmem:[%s10 + $0xac] sm:$0xf]
    %v2808 = vld [vmem:[%s10 + $0xb0] sm:$0xf]
    %v2809 = vld [vmem:[%s10 + $0xb4] sm:$0xf]
    %v2810 = vld [vmem:[%s10 + $0xb8] sm:$0xf]
    %v2811 = vld [vmem:[%s10 + $0xbc] sm:$0xf]
    %v2812 = vld [vmem:[%s10 + $0xc0] sm:$0xf]
    %v2813 = vld [vmem:[%s10 + $0xc4] sm:$0xf]
    %v2814 = vld [vmem:[%s10 + $0xc8] sm:$0xf]
    %v2815 = vld [vmem:[%s10 + $0xcc] sm:$0xf]
    %v2816 = vld [vmem:[%s10 + $0xd0] sm:$0xf]
    %v2817 = vld [vmem:[%s10 + $0xd4] sm:$0xf]
    %v2818 = vld [vmem:[%s10 + $0xd8] sm:$0xf]
    %v2819 = vld [vmem:[%s10 + $0xdc] sm:$0xf]
    %v2820 = vld [vmem:[%s10 + $0xe0] sm:$0xf]
    %v2821 = vld [vmem:[%s10 + $0xe4] sm:$0xf]
    %v2822 = vld [vmem:[%s10 + $0xe8] sm:$0xf]
    %v2823 = vld [vmem:[%s10 + $0xec] sm:$0xf]
    %v2824 = vld [vmem:[%s10 + $0xf0] sm:$0xf]
    %v2825 = vld [vmem:[%s10 + $0xf4] sm:$0xf]
    %v2826 = vld [vmem:[%s10 + $0xf8] sm:$0xf]
    %v2827 = vld [vmem:[%s10 + $0xfc] sm:$0xf]
    %v2828 = vld [vmem:[%s10 + $0x100] sm:$0xf]
    %v2829 = vld [vmem:[%s10 + $0x104] sm:$0xf]
    %v2830 = vld [vmem:[%s10 + $0x108] sm:$0xf]
    %v2831 = vld [vmem:[%s10 + $0x10c] sm:$0xf]
    %v2832 = vld [vmem:[%s10 + $0x110] sm:$0xf]
    %v2833 = vld [vmem:[%s10 + $0x114] sm:$0xf]
    %v2834 = vld [vmem:[%s10 + $0x118] sm:$0xf]
    %v2835 = vld [vmem:[%s10 + $0x11c] sm:$0xf]
    %v2836 = vld [vmem:[%s10 + $0x120] sm:$0xf]
    %v2837 = vld [vmem:[%s10 + $0x124] sm:$0xf]
    %v2838 = vld [vmem:[%s10 + $0x128] sm:$0xf]
    %v2839 = vld [vmem:[%s10 + $0x12c] sm:$0xf]
    %v2840 = vld [vmem:[%s10 + $0x130] sm:$0xf]
    %v2841 = vld [vmem:[%s10 + $0x134] sm:$0xf]
    %v2842 = vld [vmem:[%s10 + $0x138] sm:$0xf]
    %v2843 = vld [vmem:[%s10 + $0x13c] sm:$0xf]
    %v2844 = vld [vmem:[%s10 + $0x140] sm:$0xf]
    %v2845 = vld [vmem:[%s10 + $0x144] sm:$0xf]
    %v2846 = vld [vmem:[%s10 + $0x148] sm:$0xf]
    %v2847 = vld [vmem:[%s10 + $0x14c] sm:$0xf]
    %v2848 = vld [vmem:[%s10 + $0x150] sm:$0xf]
    %v2849 = vld [vmem:[%s10 + $0x154] sm:$0xf]
    %v2850 = vld [vmem:[%s10 + $0x158] sm:$0xf]
    %v2851 = vld [vmem:[%s10 + $0x15c] sm:$0xf]
    %v2852 = vld [vmem:[%s10 + $0x160] sm:$0xf]
    %v2853 = vld [vmem:[%s10 + $0x164] sm:$0xf]
    %v2854 = vld [vmem:[%s10 + $0x168] sm:$0xf]
    %v2855 = vld [vmem:[%s10 + $0x16c] sm:$0xf]
    %v2856 = vld [vmem:[%s10 + $0x170] sm:$0xf]
    %v2857 = vld [vmem:[%s10 + $0x174] sm:$0xf]
    %v2858 = vld [vmem:[%s10 + $0x178] sm:$0xf]
    %v2859 = vld [vmem:[%s10 + $0x17c] sm:$0xf]
    %v2860 = vld [vmem:[%s10 + $0x180] sm:$0xf]
    %v2861 = vld [vmem:[%s10 + $0x184] sm:$0xf]
    %v2862 = vld [vmem:[%s10 + $0x188] sm:$0xf]
    %v2863 = vld [vmem:[%s10 + $0x18c] sm:$0xf]
    %v2864 = vld [vmem:[%s10 + $0x190] sm:$0xf]
    %v2865 = vld [vmem:[%s10 + $0x194] sm:$0xf]
    %v2866 = vld [vmem:[%s10 + $0x198] sm:$0xf]
    %v2867 = vld [vmem:[%s10 + $0x19c] sm:$0xf]
    %v2868 = vld [vmem:[%s10 + $0x1a0] sm:$0xf]
    %v2869 = vld [vmem:[%s10 + $0x1a4] sm:$0xf]
    %v2870 = vld [vmem:[%s10 + $0x1a8] sm:$0xf]
    %v2871 = vld [vmem:[%s10 + $0x1ac] sm:$0xf]
    %v2872 = vld [vmem:[%s10 + $0x1b0] sm:$0xf]
    %v2873 = vld [vmem:[%s10 + $0x1b4] sm:$0xf]
    %v2874 = vld [vmem:[%s10 + $0x1b8] sm:$0xf]
    %v2875 = vld [vmem:[%s10 + $0x1bc] sm:$0xf]
    %v2876 = vld [vmem:[%s10 + $0x1c0] sm:$0xf]
    %v2877 = vld [vmem:[%s10 + $0x1c4] sm:$0xf]
    %v2878 = vld [vmem:[%s10 + $0x1c8] sm:$0xf]
    %v2879 = vld [vmem:[%s10 + $0x1cc] sm:$0xf]
    %v2880 = vld [vmem:[%s10 + $0x1d0] sm:$0xf]
    %v2881 = vld [vmem:[%s10 + $0x1d4] sm:$0xf]
    %v2882 = vld [vmem:[%s10 + $0x1d8] sm:$0xf]
    %v2883 = vld [vmem:[%s10 + $0x1dc] sm:$0xf]
    %v2884 = vld [vmem:[%s10 + $0x1e0] sm:$0xf]
    %v2885 = vld [vmem:[%s10 + $0x1e4] sm:$0xf]
    %v2886 = vld [vmem:[%s10 + $0x1e8] sm:$0xf]
    %v2887 = vld [vmem:[%s10 + $0x1ec] sm:$0xf]
    %v2888 = vld [vmem:[%s10 + $0x1f0] sm:$0xf]
    %v2889 = vld [vmem:[%s10 + $0x1f4] sm:$0xf]
    %v2890 = vld [vmem:[%s10 + $0x1f8] sm:$0xf]
    %v2891 = vld [vmem:[%s10 + $0x1fc] sm:$0xf]
    %v2892 = vld [vmem:[%s11] sm:$0x1]
    %v2894 = vlaneseq
    %v2895 = vshrl.u32 %v2894, 7
    %v2896 = vsub.s32 0, %v2895
    %v2897 = vrot.slane %v2892, %v2896
    %v3027 = vunpack.c.l.b16 %v2764
    %v3028 = vunpack.c.l.b16 %v2765
    %v3029 = vunpack.c.l.b16 %v2766
    %v3030 = vunpack.c.l.b16 %v2767
    %v3031 = vunpack.c.l.b16 %v2768
    %v3032 = vunpack.c.l.b16 %v2769
    %v3033 = vunpack.c.l.b16 %v2770
    %v3034 = vunpack.c.l.b16 %v2771
    %v3035 = vunpack.c.l.b16 %v2772
    %v3036 = vunpack.c.l.b16 %v2773
    %v3037 = vunpack.c.l.b16 %v2774
    %v3038 = vunpack.c.l.b16 %v2775
    %v3039 = vunpack.c.l.b16 %v2776
    %v3040 = vunpack.c.l.b16 %v2777
    %v3041 = vunpack.c.l.b16 %v2778
    %v3042 = vunpack.c.l.b16 %v2779
    %v3043 = vunpack.c.l.b16 %v2780
    %v3044 = vunpack.c.l.b16 %v2781
    %v3045 = vunpack.c.l.b16 %v2782
    %v3046 = vunpack.c.l.b16 %v2783
    %v3047 = vunpack.c.l.b16 %v2784
    %v3048 = vunpack.c.l.b16 %v2785
    %v3049 = vunpack.c.l.b16 %v2786
    %v3050 = vunpack.c.l.b16 %v2787
    %v3051 = vunpack.c.l.b16 %v2788
    %v3052 = vunpack.c.l.b16 %v2789
    %v3053 = vunpack.c.l.b16 %v2790
    %v3054 = vunpack.c.l.b16 %v2791
    %v3055 = vunpack.c.l.b16 %v2792
    %v3056 = vunpack.c.l.b16 %v2793
    %v3057 = vunpack.c.l.b16 %v2794
    %v3058 = vunpack.c.l.b16 %v2795
    %v3059 = vunpack.c.l.b16 %v2796
    %v3060 = vunpack.c.l.b16 %v2797
    %v3061 = vunpack.c.l.b16 %v2798
    %v3062 = vunpack.c.l.b16 %v2799
    %v3063 = vunpack.c.l.b16 %v2800
    %v3064 = vunpack.c.l.b16 %v2801
    %v3065 = vunpack.c.l.b16 %v2802
    %v3066 = vunpack.c.l.b16 %v2803
    %v3067 = vunpack.c.l.b16 %v2804
    %v3068 = vunpack.c.l.b16 %v2805
    %v3069 = vunpack.c.l.b16 %v2806
    %v3070 = vunpack.c.l.b16 %v2807
    %v3071 = vunpack.c.l.b16 %v2808
    %v3072 = vunpack.c.l.b16 %v2809
    %v3073 = vunpack.c.l.b16 %v2810
    %v3074 = vunpack.c.l.b16 %v2811
    %v3075 = vunpack.c.l.b16 %v2812
    %v3076 = vunpack.c.l.b16 %v2813
    %v3077 = vunpack.c.l.b16 %v2814
    %v3078 = vunpack.c.l.b16 %v2815
    %v3079 = vunpack.c.l.b16 %v2816
    %v3080 = vunpack.c.l.b16 %v2817
    %v3081 = vunpack.c.l.b16 %v2818
    %v3082 = vunpack.c.l.b16 %v2819
    %v3083 = vunpack.c.l.b16 %v2820
    %v3084 = vunpack.c.l.b16 %v2821
    %v3085 = vunpack.c.l.b16 %v2822
    %v3086 = vunpack.c.l.b16 %v2823
    %v3087 = vunpack.c.l.b16 %v2824
    %v3088 = vunpack.c.l.b16 %v2825
    %v3089 = vunpack.c.l.b16 %v2826
    %v3090 = vunpack.c.l.b16 %v2827
    %v3091 = vunpack.c.l.b16 %v2828
    %v3092 = vunpack.c.l.b16 %v2829
    %v3093 = vunpack.c.l.b16 %v2830
    %v3094 = vunpack.c.l.b16 %v2831
    %v3095 = vunpack.c.l.b16 %v2832
    %v3096 = vunpack.c.l.b16 %v2833
    %v3097 = vunpack.c.l.b16 %v2834
    %v3098 = vunpack.c.l.b16 %v2835
    %v3099 = vunpack.c.l.b16 %v2836
    %v3100 = vunpack.c.l.b16 %v2837
    %v3101 = vunpack.c.l.b16 %v2838
    %v3102 = vunpack.c.l.b16 %v2839
    %v3103 = vunpack.c.l.b16 %v2840
    %v3104 = vunpack.c.l.b16 %v2841
    %v3105 = vunpack.c.l.b16 %v2842
    %v3106 = vunpack.c.l.b16 %v2843
    %v3107 = vunpack.c.l.b16 %v2844
    %v3108 = vunpack.c.l.b16 %v2845
    %v3109 = vunpack.c.l.b16 %v2846
    %v3110 = vunpack.c.l.b16 %v2847
    %v3111 = vunpack.c.l.b16 %v2848
    %v3112 = vunpack.c.l.b16 %v2849
    %v3113 = vunpack.c.l.b16 %v2850
    %v3114 = vunpack.c.l.b16 %v2851
    %v3115 = vunpack.c.l.b16 %v2852
    %v3116 = vunpack.c.l.b16 %v2853
    %v3117 = vunpack.c.l.b16 %v2854
    %v3118 = vunpack.c.l.b16 %v2855
    %v3119 = vunpack.c.l.b16 %v2856
    %v3120 = vunpack.c.l.b16 %v2857
    %v3121 = vunpack.c.l.b16 %v2858
    %v3122 = vunpack.c.l.b16 %v2859
    %v3123 = vunpack.c.l.b16 %v2860
    %v3124 = vunpack.c.l.b16 %v2861
    %v3125 = vunpack.c.l.b16 %v2862
    %v3126 = vunpack.c.l.b16 %v2863
    %v3127 = vunpack.c.l.b16 %v2864
    %v3128 = vunpack.c.l.b16 %v2865
    %v3129 = vunpack.c.l.b16 %v2866
    %v3130 = vunpack.c.l.b16 %v2867
    %v3131 = vunpack.c.l.b16 %v2868
    %v3132 = vunpack.c.l.b16 %v2869
    %v3133 = vunpack.c.l.b16 %v2870
    %v3134 = vunpack.c.l.b16 %v2871
    %v3135 = vunpack.c.l.b16 %v2872
    %v3136 = vunpack.c.l.b16 %v2873
    %v3137 = vunpack.c.l.b16 %v2874
    %v3138 = vunpack.c.l.b16 %v2875
    %v3139 = vunpack.c.l.b16 %v2876
    %v3140 = vunpack.c.l.b16 %v2877
    %v3141 = vunpack.c.l.b16 %v2878
    %v3142 = vunpack.c.l.b16 %v2879
    %v3143 = vunpack.c.l.b16 %v2880
    %v3144 = vunpack.c.l.b16 %v2881
    %v3145 = vunpack.c.l.b16 %v2882
    %v3146 = vunpack.c.l.b16 %v2883
    %v3147 = vunpack.c.l.b16 %v2884
    %v3148 = vunpack.c.l.b16 %v2885
    %v3149 = vunpack.c.l.b16 %v2886
    %v3150 = vunpack.c.l.b16 %v2887
    %v3151 = vunpack.c.l.b16 %v2888
    %v3152 = vunpack.c.l.b16 %v2889
    %v3153 = vunpack.c.l.b16 %v2890
    %v3154 = vunpack.c.l.b16 %v2891
    %v3155 = vpack.c.b16 %v3028, %v3027
    %v3156 = vpack.c.b16 %v3030, %v3029
    %v3157 = vpack.c.b16 %v3032, %v3031
    %v3158 = vpack.c.b16 %v3034, %v3033
    %v3159 = vpack.c.b16 %v3036, %v3035
    %v3160 = vpack.c.b16 %v3038, %v3037
    %v3161 = vpack.c.b16 %v3040, %v3039
    %v3162 = vpack.c.b16 %v3042, %v3041
    %v3163 = vpack.c.b16 %v3044, %v3043
    %v3164 = vpack.c.b16 %v3046, %v3045
    %v3165 = vpack.c.b16 %v3048, %v3047
    %v3166 = vpack.c.b16 %v3050, %v3049
    %v3167 = vpack.c.b16 %v3052, %v3051
    %v3168 = vpack.c.b16 %v3054, %v3053
    %v3169 = vpack.c.b16 %v3056, %v3055
    %v3170 = vpack.c.b16 %v3058, %v3057
    %v3171 = vpack.c.b16 %v3060, %v3059
    %v3172 = vpack.c.b16 %v3062, %v3061
    %v3173 = vpack.c.b16 %v3064, %v3063
    %v3174 = vpack.c.b16 %v3066, %v3065
    %v3175 = vpack.c.b16 %v3068, %v3067
    %v3176 = vpack.c.b16 %v3070, %v3069
    %v3177 = vpack.c.b16 %v3072, %v3071
    %v3178 = vpack.c.b16 %v3074, %v3073
    %v3179 = vpack.c.b16 %v3076, %v3075
    %v3180 = vpack.c.b16 %v3078, %v3077
    %v3181 = vpack.c.b16 %v3080, %v3079
    %v3182 = vpack.c.b16 %v3082, %v3081
    %v3183 = vpack.c.b16 %v3084, %v3083
    %v3184 = vpack.c.b16 %v3086, %v3085
    %v3185 = vpack.c.b16 %v3088, %v3087
    %v3186 = vpack.c.b16 %v3090, %v3089
    %v3187 = vpack.c.b16 %v3092, %v3091
    %v3188 = vpack.c.b16 %v3094, %v3093
    %v3189 = vpack.c.b16 %v3096, %v3095
    %v3190 = vpack.c.b16 %v3098, %v3097
    %v3191 = vpack.c.b16 %v3100, %v3099
    %v3192 = vpack.c.b16 %v3102, %v3101
    %v3193 = vpack.c.b16 %v3104, %v3103
    %v3194 = vpack.c.b16 %v3106, %v3105
    %v3195 = vpack.c.b16 %v3108, %v3107
    %v3196 = vpack.c.b16 %v3110, %v3109
    %v3197 = vpack.c.b16 %v3112, %v3111
    %v3198 = vpack.c.b16 %v3114, %v3113
    %v3199 = vpack.c.b16 %v3116, %v3115
    %v3200 = vpack.c.b16 %v3118, %v3117
    %v3201 = vpack.c.b16 %v3120, %v3119
    %v3202 = vpack.c.b16 %v3122, %v3121
    %v3203 = vpack.c.b16 %v3124, %v3123
    %v3204 = vpack.c.b16 %v3126, %v3125
    %v3205 = vpack.c.b16 %v3128, %v3127
    %v3206 = vpack.c.b16 %v3130, %v3129
    %v3207 = vpack.c.b16 %v3132, %v3131
    %v3208 = vpack.c.b16 %v3134, %v3133
    %v3209 = vpack.c.b16 %v3136, %v3135
    %v3210 = vpack.c.b16 %v3138, %v3137
    %v3211 = vpack.c.b16 %v3140, %v3139
    %v3212 = vpack.c.b16 %v3142, %v3141
    %v3213 = vpack.c.b16 %v3144, %v3143
    %v3214 = vpack.c.b16 %v3146, %v3145
    %v3215 = vpack.c.b16 %v3148, %v3147
    %v3216 = vpack.c.b16 %v3150, %v3149
    %v3217 = vpack.c.b16 %v3152, %v3151
    %v3218 = vpack.c.b16 %v3154, %v3153
    %3283 = vmatprep.subr.bf16.mxu0 0
    %3284 = vmatpush1.bf16.msra.mxu0 %v3155
    %3285 = vmatprep.subr.bf16.mxu0 0
    %3286 = vmatpush1.bf16.msra.mxu0 %v3156
    %3287 = vmatprep.subr.bf16.mxu0 0
    %3288 = vmatpush1.bf16.msra.mxu0 %v3157
    %3289 = vmatprep.subr.bf16.mxu0 0
    %3290 = vmatpush1.bf16.msra.mxu0 %v3158
    %3291 = vmatprep.subr.bf16.mxu0 0
    %3292 = vmatpush1.bf16.msra.mxu0 %v3159
    %3293 = vmatprep.subr.bf16.mxu0 0
    %3294 = vmatpush1.bf16.msra.mxu0 %v3160
    %3295 = vmatprep.subr.bf16.mxu0 0
    %3296 = vmatpush1.bf16.msra.mxu0 %v3161
    %3297 = vmatprep.subr.bf16.mxu0 0
    %3298 = vmatpush1.bf16.msra.mxu0 %v3162
    %3299 = vmatprep.subr.bf16.mxu0 0
    %3300 = vmatpush1.bf16.msra.mxu0 %v3163
    %3301 = vmatprep.subr.bf16.mxu0 0
    %3302 = vmatpush1.bf16.msra.mxu0 %v3164
    %3303 = vmatprep.subr.bf16.mxu0 0
    %3304 = vmatpush1.bf16.msra.mxu0 %v3165
    %3305 = vmatprep.subr.bf16.mxu0 0
    %3306 = vmatpush1.bf16.msra.mxu0 %v3166
    %3307 = vmatprep.subr.bf16.mxu0 0
    %3308 = vmatpush1.bf16.msra.mxu0 %v3167
    %3309 = vmatprep.subr.bf16.mxu0 0
    %3310 = vmatpush1.bf16.msra.mxu0 %v3168
    %3311 = vmatprep.subr.bf16.mxu0 0
    %3312 = vmatpush1.bf16.msra.mxu0 %v3169
    %3313 = vmatprep.subr.bf16.mxu0 0
    %3314 = vmatpush1.bf16.msra.mxu0 %v3170
    %3315 = vmatprep.mubr.bf16.mxu0 %v2757
    %3316 = vmatmul.mubr.bf16.gmra.mrb[0].mxu0 %v2756
    %v3317 = vpop.f32.mrb[0].mxu0
    %v3318 = vadd.f32 %v2897, %v3317
    %v3319 = vpop.f32.mrb[0].mxu0
    %v3320 = vpop.f32.mrb[0].mxu0
    %v3321 = vpop.f32.mrb[0].mxu0
    %3322 = vdwg.mxu0
    %3323 = vmatprep.subr.bf16.mxu0 0
    %3324 = vmatpush1.bf16.msra.mxu0 %v3171
    %3325 = vmatprep.subr.bf16.mxu0 0
    %3326 = vmatpush1.bf16.msra.mxu0 %v3172
    %3327 = vmatprep.subr.bf16.mxu0 0
    %3328 = vmatpush1.bf16.msra.mxu0 %v3173
    %3329 = vmatprep.subr.bf16.mxu0 0
    %3330 = vmatpush1.bf16.msra.mxu0 %v3174
    %3331 = vmatprep.subr.bf16.mxu0 0
    %3332 = vmatpush1.bf16.msra.mxu0 %v3175
    %3333 = vmatprep.subr.bf16.mxu0 0
    %3334 = vmatpush1.bf16.msra.mxu0 %v3176
    %3335 = vmatprep.subr.bf16.mxu0 0
    %3336 = vmatpush1.bf16.msra.mxu0 %v3177
    %3337 = vmatprep.subr.bf16.mxu0 0
    %3338 = vmatpush1.bf16.msra.mxu0 %v3178
    %3339 = vmatprep.subr.bf16.mxu0 0
    %3340 = vmatpush1.bf16.msra.mxu0 %v3179
    %3341 = vmatprep.subr.bf16.mxu0 0
    %3342 = vmatpush1.bf16.msra.mxu0 %v3180
    %3343 = vmatprep.subr.bf16.mxu0 0
    %3344 = vmatpush1.bf16.msra.mxu0 %v3181
    %3345 = vmatprep.subr.bf16.mxu0 0
    %3346 = vmatpush1.bf16.msra.mxu0 %v3182
    %3347 = vmatprep.subr.bf16.mxu0 0
    %3348 = vmatpush1.bf16.msra.mxu0 %v3183
    %3349 = vmatprep.subr.bf16.mxu0 0
    %3350 = vmatpush1.bf16.msra.mxu0 %v3184
    %3351 = vmatprep.subr.bf16.mxu0 0
    %3352 = vmatpush1.bf16.msra.mxu0 %v3185
    %3353 = vmatprep.subr.bf16.mxu0 0
    %3354 = vmatpush1.bf16.msra.mxu0 %v3186
    %3355 = vmatprep.mubr.bf16.mxu0 %v2759
    %3356 = vmatmul.mubr.bf16.gmra.mrb[0].mxu0 %v2758
    %v3357 = vpop.f32.mrb[0].mxu0
    %v3358 = vadd.f32 %v3318, %v3357
    %v3359 = vpop.f32.mrb[0].mxu0
    %v3360 = vpop.f32.mrb[0].mxu0
    %v3361 = vpop.f32.mrb[0].mxu0
    %3362 = vdwg.mxu0
    %3363 = vmatprep.subr.bf16.mxu0 0
    %3364 = vmatpush1.bf16.msra.mxu0 %v3187
    %3365 = vmatprep.subr.bf16.mxu0 0
    %3366 = vmatpush1.bf16.msra.mxu0 %v3188
    %3367 = vmatprep.subr.bf16.mxu0 0
    %3368 = vmatpush1.bf16.msra.mxu0 %v3189
    %3369 = vmatprep.subr.bf16.mxu0 0
    %3370 = vmatpush1.bf16.msra.mxu0 %v3190
    %3371 = vmatprep.subr.bf16.mxu0 0
    %3372 = vmatpush1.bf16.msra.mxu0 %v3191
    %3373 = vmatprep.subr.bf16.mxu0 0
    %3374 = vmatpush1.bf16.msra.mxu0 %v3192
    %3375 = vmatprep.subr.bf16.mxu0 0
    %3376 = vmatpush1.bf16.msra.mxu0 %v3193
    %3377 = vmatprep.subr.bf16.mxu0 0
    %3378 = vmatpush1.bf16.msra.mxu0 %v3194
    %3379 = vmatprep.subr.bf16.mxu0 0
    %3380 = vmatpush1.bf16.msra.mxu0 %v3195
    %3381 = vmatprep.subr.bf16.mxu0 0
    %3382 = vmatpush1.bf16.msra.mxu0 %v3196
    %3383 = vmatprep.subr.bf16.mxu0 0
    %3384 = vmatpush1.bf16.msra.mxu0 %v3197
    %3385 = vmatprep.subr.bf16.mxu0 0
    %3386 = vmatpush1.bf16.msra.mxu0 %v3198
    %3387 = vmatprep.subr.bf16.mxu0 0
    %3388 = vmatpush1.bf16.msra.mxu0 %v3199
    %3389 = vmatprep.subr.bf16.mxu0 0
    %3390 = vmatpush1.bf16.msra.mxu0 %v3200
    %3391 = vmatprep.subr.bf16.mxu0 0
    %3392 = vmatpush1.bf16.msra.mxu0 %v3201
    %3393 = vmatprep.subr.bf16.mxu0 0
    %3394 = vmatpush1.bf16.msra.mxu0 %v3202
    %3395 = vmatprep.mubr.bf16.mxu0 %v2761
    %3396 = vmatmul.mubr.bf16.gmra.mrb[0].mxu0 %v2760
    %v3397 = vpop.f32.mrb[0].mxu0
    %v3398 = vadd.f32 %v3358, %v3397
    %v3399 = vpop.f32.mrb[0].mxu0
    %v3400 = vpop.f32.mrb[0].mxu0
    %v3401 = vpop.f32.mrb[0].mxu0
    %3402 = vdwg.mxu0
    %3403 = vmatprep.subr.bf16.mxu0 0
    %3404 = vmatpush1.bf16.msra.mxu0 %v3203
    %3405 = vmatprep.subr.bf16.mxu0 0
    %3406 = vmatpush1.bf16.msra.mxu0 %v3204
    %3407 = vmatprep.subr.bf16.mxu0 0
    %3408 = vmatpush1.bf16.msra.mxu0 %v3205
    %3409 = vmatprep.subr.bf16.mxu0 0
    %3410 = vmatpush1.bf16.msra.mxu0 %v3206
    %3411 = vmatprep.subr.bf16.mxu0 0
    %3412 = vmatpush1.bf16.msra.mxu0 %v3207
    %3413 = vmatprep.subr.bf16.mxu0 0
    %3414 = vmatpush1.bf16.msra.mxu0 %v3208
    %3415 = vmatprep.subr.bf16.mxu0 0
    %3416 = vmatpush1.bf16.msra.mxu0 %v3209
    %3417 = vmatprep.subr.bf16.mxu0 0
    %3418 = vmatpush1.bf16.msra.mxu0 %v3210
    %3419 = vmatprep.subr.bf16.mxu0 0
    %3420 = vmatpush1.bf16.msra.mxu0 %v3211
    %3421 = vmatprep.subr.bf16.mxu0 0
    %3422 = vmatpush1.bf16.msra.mxu0 %v3212
    %3423 = vmatprep.subr.bf16.mxu0 0
    %3424 = vmatpush1.bf16.msra.mxu0 %v3213
    %3425 = vmatprep.subr.bf16.mxu0 0
    %3426 = vmatpush1.bf16.msra.mxu0 %v3214
    %3427 = vmatprep.subr.bf16.mxu0 0
    %3428 = vmatpush1.bf16.msra.mxu0 %v3215
    %3429 = vmatprep.subr.bf16.mxu0 0
    %3430 = vmatpush1.bf16.msra.mxu0 %v3216
    %3431 = vmatprep.subr.bf16.mxu0 0
    %3432 = vmatpush1.bf16.msra.mxu0 %v3217
    %3433 = vmatprep.subr.bf16.mxu0 0
    %3434 = vmatpush1.bf16.msra.mxu0 %v3218
    %3435 = vmatprep.mubr.bf16.mxu0 %v2763
    %3436 = vmatmul.mubr.bf16.gmra.mrb[0].mxu0 %v2762
    %v3437 = vpop.f32.mrb[0].mxu0
    %v3438 = vadd.f32 %v3398, %v3437
    %v3439 = vpop.f32.mrb[0].mxu0
    %v3440 = vpop.f32.mrb[0].mxu0
    %v3441 = vpop.f32.mrb[0].mxu0
    %3442 = vdwg.mxu0
    %v3443 = vmul.f32 %v3438, 0.5
    %v3444 = vmul.f32 %v3443, 1.442695
    %v3445 = vpow.pop %v3444
    %v3446 = vld [vmem:[%s1] sm:$0x3]
    %3448 = vrot.lane.b32.xlu0 %v3446, 32
    %v3449 = vpop.permute.xlu0 %3448
    %v3451 = vmul.f32 %v3445, %v3449
    %3453 = vrot.lane.b32.xlu0 %v3451, 96
    %v3454 = vpop.permute.xlu0 %3453
    %v3456 = vadd.f32 %v3438, %v3454
    %v3457 = vpack.c.bf16 %v3456, %v3456
    %v3458 = vld [vmem:[%s12] sm:$0xff]
    %v3459 = vld [vmem:[%s12 + $0x8] sm:$0xff]
    %v3460 = vld [vmem:[%s12 + $0x10] sm:$0xff]
    %v3461 = vld [vmem:[%s12 + $0x18] sm:$0xff]
    %v3462 = vld [vmem:[%s12 + $0x20] sm:$0xff]
    %v3463 = vld [vmem:[%s12 + $0x28] sm:$0xff]
    %v3464 = vld [vmem:[%s12 + $0x30] sm:$0xff]
    %v3465 = vld [vmem:[%s12 + $0x38] sm:$0xff]
    %v3466 = vld [vmem:[%s12 + $0x40] sm:$0xff]
    %v3467 = vld [vmem:[%s12 + $0x48] sm:$0xff]
    %v3468 = vld [vmem:[%s12 + $0x50] sm:$0xff]
    %v3469 = vld [vmem:[%s12 + $0x58] sm:$0xff]
    %v3470 = vld [vmem:[%s12 + $0x60] sm:$0xff]
    %v3471 = vld [vmem:[%s12 + $0x68] sm:$0xff]
    %v3472 = vld [vmem:[%s12 + $0x70] sm:$0xff]
    %v3473 = vld [vmem:[%s12 + $0x78] sm:$0xff]
    %v3474 = vld [vmem:[%s13] sm:$0xff]
    %v3476 = vlaneseq
    %v3477 = vshrl.u32 %v3476, 7
    %v3478 = vsub.s32 0, %v3477
    %v3479 = vrot.slane %v3474, %v3478
    %v3480 = vlaneseq
    %v3481 = vshrl.u32 %v3480, 7
    %v3482 = vsub.s32 1, %v3481
    %v3483 = vrot.slane %v3474, %v3482
    %v3484 = vlaneseq
    %v3485 = vshrl.u32 %v3484, 7
    %v3486 = vsub.s32 2, %v3485
    %v3487 = vrot.slane %v3474, %v3486
    %v3488 = vlaneseq
    %v3489 = vshrl.u32 %v3488, 7
    %v3490 = vsub.s32 3, %v3489
    %v3491 = vrot.slane %v3474, %v3490
    %v3492 = vlaneseq
    %v3493 = vshrl.u32 %v3492, 7
    %v3494 = vsub.s32 4, %v3493
    %v3495 = vrot.slane %v3474, %v3494
    %v3496 = vlaneseq
    %v3497 = vshrl.u32 %v3496, 7
    %v3498 = vsub.s32 5, %v3497
    %v3499 = vrot.slane %v3474, %v3498
    %v3500 = vlaneseq
    %v3501 = vshrl.u32 %v3500, 7
    %v3502 = vsub.s32 6, %v3501
    %v3503 = vrot.slane %v3474, %v3502
    %v3504 = vlaneseq
    %v3505 = vshrl.u32 %v3504, 7
    %v3506 = vsub.s32 7, %v3505
    %v3507 = vrot.slane %v3474, %v3506
    %v3532 = vunpack.c.l.b16 %v3458
    %v3533 = vunpack.c.h.b16 %v3458
    %v3534 = vunpack.c.l.b16 %v3459
    %v3535 = vunpack.c.h.b16 %v3459
    %v3536 = vunpack.c.l.b16 %v3460
    %v3537 = vunpack.c.h.b16 %v3460
    %v3538 = vunpack.c.l.b16 %v3461
    %v3539 = vunpack.c.h.b16 %v3461
    %v3540 = vunpack.c.l.b16 %v3462
    %v3541 = vunpack.c.h.b16 %v3462
    %v3542 = vunpack.c.l.b16 %v3463
    %v3543 = vunpack.c.h.b16 %v3463
    %v3544 = vunpack.c.l.b16 %v3464
    %v3545 = vunpack.c.h.b16 %v3464
    %v3546 = vunpack.c.l.b16 %v3465
    %v3547 = vunpack.c.h.b16 %v3465
    %v3548 = vunpack.c.l.b16 %v3466
    %v3549 = vunpack.c.h.b16 %v3466
    %v3550 = vunpack.c.l.b16 %v3467
    %v3551 = vunpack.c.h.b16 %v3467
    %v3552 = vunpack.c.l.b16 %v3468
    %v3553 = vunpack.c.h.b16 %v3468
    %v3554 = vunpack.c.l.b16 %v3469
    %v3555 = vunpack.c.h.b16 %v3469
    %v3556 = vunpack.c.l.b16 %v3470
    %v3557 = vunpack.c.h.b16 %v3470
    %v3558 = vunpack.c.l.b16 %v3471
    %v3559 = vunpack.c.h.b16 %v3471
    %v3560 = vunpack.c.l.b16 %v3472
    %v3561 = vunpack.c.h.b16 %v3472
    %v3562 = vunpack.c.l.b16 %v3473
    %v3563 = vunpack.c.h.b16 %v3473
    %v3564 = vpack.c.b16 %v3540, %v3532
    %v3565 = vpack.c.b16 %v3541, %v3533
    %v3566 = vpack.c.b16 %v3542, %v3534
    %v3567 = vpack.c.b16 %v3543, %v3535
    %v3568 = vpack.c.b16 %v3544, %v3536
    %v3569 = vpack.c.b16 %v3545, %v3537
    %v3570 = vpack.c.b16 %v3546, %v3538
    %v3571 = vpack.c.b16 %v3547, %v3539
    %v3572 = vpack.c.b16 %v3556, %v3548
    %v3573 = vpack.c.b16 %v3557, %v3549
    %v3574 = vpack.c.b16 %v3558, %v3550
    %v3575 = vpack.c.b16 %v3559, %v3551
    %v3576 = vpack.c.b16 %v3560, %v3552
    %v3577 = vpack.c.b16 %v3561, %v3553
    %v3578 = vpack.c.b16 %v3562, %v3554
    %v3579 = vpack.c.b16 %v3563, %v3555
    %vm3596 = vcmask 261120
    %v3598 = vsel %vm3596, %v3457, 0
    %3600 = vmatprep.subr.bf16.mxu0 %v3565
    %3601 = vmatpush1.bf16.msra.mxu0 %v3564
    %3602 = vmatprep.subr.bf16.mxu0 %v3573
    %3603 = vmatpush1.bf16.msra.mxu0 %v3572
    %3604 = vmatprep.subr.bf16.mxu0 0
    %3605 = vmatpush1.bf16.msra.mxu0 0
    %3606 = vmatprep.subr.bf16.mxu0 0
    %3607 = vmatpush1.bf16.msra.mxu0 0
    %3608 = vmatprep.subr.bf16.mxu0 0
    %3609 = vmatpush1.bf16.msra.mxu0 0
    %3610 = vmatprep.subr.bf16.mxu0 0
    %3611 = vmatpush1.bf16.msra.mxu0 0
    %3612 = vmatprep.subr.bf16.mxu0 0
    %3613 = vmatpush1.bf16.msra.mxu0 0
    %3614 = vmatprep.subr.bf16.mxu0 0
    %3615 = vmatpush1.bf16.msra.mxu0 0
    %3616 = vmatprep.subr.bf16.mxu0 0
    %3617 = vmatpush1.bf16.msra.mxu0 0
    %3618 = vmatprep.subr.bf16.mxu0 0
    %3619 = vmatpush1.bf16.msra.mxu0 0
    %3620 = vmatprep.subr.bf16.mxu0 0
    %3621 = vmatpush1.bf16.msra.mxu0 0
    %3622 = vmatprep.subr.bf16.mxu0 0
    %3623 = vmatpush1.bf16.msra.mxu0 0
    %3624 = vmatprep.subr.bf16.mxu0 0
    %3625 = vmatpush1.bf16.msra.mxu0 0
    %3626 = vmatprep.subr.bf16.mxu0 0
    %3627 = vmatpush1.bf16.msra.mxu0 0
    %3628 = vmatprep.subr.bf16.mxu0 0
    %3629 = vmatpush1.bf16.msra.mxu0 0
    %3630 = vmatprep.subr.bf16.mxu0 0
    %3631 = vmatpush1.bf16.msra.mxu0 0
    %3632 = vmatprep.mubr.bf16.mxu0 0
    %3633 = vmatmul.mubr.bf16.gmra.mrb[0].mxu0 %v3598
    %v3634 = vpop.f32.mrb[0].mxu0
    %v3635 = vadd.f32 %v3479, %v3634
    %v3636 = vpop.f32.mrb[0].mxu0
    %v3637 = vadd.f32 %v3483, %v3636
    %v3638 = vpop.f32.mrb[0].mxu0
    %v3639 = vpop.f32.mrb[0].mxu0
    %3640 = vdwg.mxu0
    %3641 = vmatprep.subr.bf16.mxu0 %v3567
    %3642 = vmatpush1.bf16.msra.mxu0 %v3566
    %3643 = vmatprep.subr.bf16.mxu0 %v3575
    %3644 = vmatpush1.bf16.msra.mxu0 %v3574
    %3645 = vmatprep.subr.bf16.mxu0 0
    %3646 = vmatpush1.bf16.msra.mxu0 0
    %3647 = vmatprep.subr.bf16.mxu0 0
    %3648 = vmatpush1.bf16.msra.mxu0 0
    %3649 = vmatprep.subr.bf16.mxu0 0
    %3650 = vmatpush1.bf16.msra.mxu0 0
    %3651 = vmatprep.subr.bf16.mxu0 0
    %3652 = vmatpush1.bf16.msra.mxu0 0
    %3653 = vmatprep.subr.bf16.mxu0 0
    %3654 = vmatpush1.bf16.msra.mxu0 0
    %3655 = vmatprep.subr.bf16.mxu0 0
    %3656 = vmatpush1.bf16.msra.mxu0 0
    %3657 = vmatprep.subr.bf16.mxu0 0
    %3658 = vmatpush1.bf16.msra.mxu0 0
    %3659 = vmatprep.subr.bf16.mxu0 0
    %3660 = vmatpush1.bf16.msra.mxu0 0
    %3661 = vmatprep.subr.bf16.mxu0 0
    %3662 = vmatpush1.bf16.msra.mxu0 0
    %3663 = vmatprep.subr.bf16.mxu0 0
    %3664 = vmatpush1.bf16.msra.mxu0 0
    %3665 = vmatprep.subr.bf16.mxu0 0
    %3666 = vmatpush1.bf16.msra.mxu0 0
    %3667 = vmatprep.subr.bf16.mxu0 0
    %3668 = vmatpush1.bf16.msra.mxu0 0
    %3669 = vmatprep.subr.bf16.mxu0 0
    %3670 = vmatpush1.bf16.msra.mxu0 0
    %3671 = vmatprep.subr.bf16.mxu0 0
    %3672 = vmatpush1.bf16.msra.mxu0 0
    %3673 = vmatprep.mubr.bf16.mxu0 0
    %3674 = vmatmul.mubr.bf16.gmra.mrb[0].mxu0 %v3598
    %v3675 = vpop.f32.mrb[0].mxu0
    %v3676 = vadd.f32 %v3487, %v3675
    %v3677 = vpop.f32.mrb[0].mxu0
    %v3678 = vadd.f32 %v3491, %v3677
    %v3679 = vpop.f32.mrb[0].mxu0
    %v3680 = vpop.f32.mrb[0].mxu0
    %3681 = vdwg.mxu0
    %3682 = vmatprep.subr.bf16.mxu0 %v3569
    %3683 = vmatpush1.bf16.msra.mxu0 %v3568
    %3684 = vmatprep.subr.bf16.mxu0 %v3577
    %3685 = vmatpush1.bf16.msra.mxu0 %v3576
    %3686 = vmatprep.subr.bf16.mxu0 0
    %3687 = vmatpush1.bf16.msra.mxu0 0
    %3688 = vmatprep.subr.bf16.mxu0 0
    %3689 = vmatpush1.bf16.msra.mxu0 0
    %3690 = vmatprep.subr.bf16.mxu0 0
    %3691 = vmatpush1.bf16.msra.mxu0 0
    %3692 = vmatprep.subr.bf16.mxu0 0
    %3693 = vmatpush1.bf16.msra.mxu0 0
    %3694 = vmatprep.subr.bf16.mxu0 0
    %3695 = vmatpush1.bf16.msra.mxu0 0
    %3696 = vmatprep.subr.bf16.mxu0 0
    %3697 = vmatpush1.bf16.msra.mxu0 0
    %3698 = vmatprep.subr.bf16.mxu0 0
    %3699 = vmatpush1.bf16.msra.mxu0 0
    %3700 = vmatprep.subr.bf16.mxu0 0
    %3701 = vmatpush1.bf16.msra.mxu0 0
    %3702 = vmatprep.subr.bf16.mxu0 0
    %3703 = vmatpush1.bf16.msra.mxu0 0
    %3704 = vmatprep.subr.bf16.mxu0 0
    %3705 = vmatpush1.bf16.msra.mxu0 0
    %3706 = vmatprep.subr.bf16.mxu0 0
    %3707 = vmatpush1.bf16.msra.mxu0 0
    %3708 = vmatprep.subr.bf16.mxu0 0
    %3709 = vmatpush1.bf16.msra.mxu0 0
    %3710 = vmatprep.subr.bf16.mxu0 0
    %3711 = vmatpush1.bf16.msra.mxu0 0
    %3712 = vmatprep.subr.bf16.mxu0 0
    %3713 = vmatpush1.bf16.msra.mxu0 0
    %3714 = vmatprep.mubr.bf16.mxu0 0
    %3715 = vmatmul.mubr.bf16.gmra.mrb[0].mxu0 %v3598
    %v3716 = vpop.f32.mrb[0].mxu0
    %v3717 = vadd.f32 %v3495, %v3716
    %v3718 = vpop.f32.mrb[0].mxu0
    %v3719 = vadd.f32 %v3499, %v3718
    %v3720 = vpop.f32.mrb[0].mxu0
    %v3721 = vpop.f32.mrb[0].mxu0
    %3722 = vdwg.mxu0
    %3723 = vmatprep.subr.bf16.mxu0 %v3571
    %3724 = vmatpush1.bf16.msra.mxu0 %v3570
    %3725 = vmatprep.subr.bf16.mxu0 %v3579
    %3726 = vmatpush1.bf16.msra.mxu0 %v3578
    %3727 = vmatprep.subr.bf16.mxu0 0
    %3728 = vmatpush1.bf16.msra.mxu0 0
    %3729 = vmatprep.subr.bf16.mxu0 0
    %3730 = vmatpush1.bf16.msra.mxu0 0
    %3731 = vmatprep.subr.bf16.mxu0 0
    %3732 = vmatpush1.bf16.msra.mxu0 0
    %3733 = vmatprep.subr.bf16.mxu0 0
    %3734 = vmatpush1.bf16.msra.mxu0 0
    %3735 = vmatprep.subr.bf16.mxu0 0
    %3736 = vmatpush1.bf16.msra.mxu0 0
    %3737 = vmatprep.subr.bf16.mxu0 0
    %3738 = vmatpush1.bf16.msra.mxu0 0
    %3739 = vmatprep.subr.bf16.mxu0 0
    %3740 = vmatpush1.bf16.msra.mxu0 0
    %3741 = vmatprep.subr.bf16.mxu0 0
    %3742 = vmatpush1.bf16.msra.mxu0 0
    %3743 = vmatprep.subr.bf16.mxu0 0
    %3744 = vmatpush1.bf16.msra.mxu0 0
    %3745 = vmatprep.subr.bf16.mxu0 0
    %3746 = vmatpush1.bf16.msra.mxu0 0
    %3747 = vmatprep.subr.bf16.mxu0 0
    %3748 = vmatpush1.bf16.msra.mxu0 0
    %3749 = vmatprep.subr.bf16.mxu0 0
    %3750 = vmatpush1.bf16.msra.mxu0 0
    %3751 = vmatprep.subr.bf16.mxu0 0
    %3752 = vmatpush1.bf16.msra.mxu0 0
    %3753 = vmatprep.subr.bf16.mxu0 0
    %3754 = vmatpush1.bf16.msra.mxu0 0
    %3755 = vmatprep.mubr.bf16.mxu0 0
    %3756 = vmatmul.mubr.bf16.gmra.mrb[0].mxu0 %v3598
    %v3757 = vpop.f32.mrb[0].mxu0
    %v3758 = vadd.f32 %v3503, %v3757
    %v3759 = vpop.f32.mrb[0].mxu0
    %v3760 = vadd.f32 %v3507, %v3759
    %v3761 = vpop.f32.mrb[0].mxu0
    %v3762 = vpop.f32.mrb[0].mxu0
    %3763 = vdwg.mxu0
    %v3764 = vpack.c.bf16 %v3635, %v3635
    %v3765 = vpack.c.bf16 %v3637, %v3637
    %v3766 = vpack.c.bf16 %v3676, %v3676
    %v3767 = vpack.c.bf16 %v3678, %v3678
    %v3768 = vpack.c.bf16 %v3717, %v3717
    %v3769 = vpack.c.bf16 %v3719, %v3719
    %v3770 = vpack.c.bf16 %v3758, %v3758
    %v3771 = vpack.c.bf16 %v3760, %v3760
    %v3772 = vld [vmem:[#allocation6] sm:$0xff]
    %v3773 = vld [vmem:[#allocation6 + $0x8] sm:$0xff]
    %v3774 = vld [vmem:[#allocation6 + $0x10] sm:$0xff]
    %v3775 = vld [vmem:[#allocation6 + $0x18] sm:$0xff]
    %v3776 = vld [vmem:[#allocation6 + $0x20] sm:$0xff]
    %v3777 = vld [vmem:[#allocation6 + $0x28] sm:$0xff]
    %v3778 = vld [vmem:[#allocation6 + $0x30] sm:$0xff]
    %v3779 = vld [vmem:[#allocation6 + $0x38] sm:$0xff]
    %v3780 = vld [vmem:[#allocation6 + $0x40] sm:$0xff]
    %v3781 = vld [vmem:[#allocation6 + $0x48] sm:$0xff]
    %v3782 = vld [vmem:[#allocation6 + $0x50] sm:$0xff]
    %v3783 = vld [vmem:[#allocation6 + $0x58] sm:$0xff]
    %v3784 = vld [vmem:[#allocation6 + $0x60] sm:$0xff]
    %v3785 = vld [vmem:[#allocation6 + $0x68] sm:$0xff]
    %v3786 = vld [vmem:[#allocation6 + $0x70] sm:$0xff]
    %v3787 = vld [vmem:[#allocation6 + $0x78] sm:$0xff]
    %v3788 = vld [vmem:[#allocation6 + $0x80] sm:$0xff]
    %v3789 = vld [vmem:[#allocation6 + $0x88] sm:$0xff]
    %v3790 = vld [vmem:[#allocation6 + $0x90] sm:$0xff]
    %v3791 = vld [vmem:[#allocation6 + $0x98] sm:$0xff]
    %v3792 = vld [vmem:[#allocation6 + $0xa0] sm:$0xff]
    %v3793 = vld [vmem:[#allocation6 + $0xa8] sm:$0xff]
    %v3794 = vld [vmem:[#allocation6 + $0xb0] sm:$0xff]
    %v3795 = vld [vmem:[#allocation6 + $0xb8] sm:$0xff]
    %v3796 = vld [vmem:[#allocation6 + $0xc0] sm:$0xff]
    %v3797 = vld [vmem:[#allocation6 + $0xc8] sm:$0xff]
    %v3798 = vld [vmem:[#allocation6 + $0xd0] sm:$0xff]
    %v3799 = vld [vmem:[#allocation6 + $0xd8] sm:$0xff]
    %v3800 = vld [vmem:[#allocation6 + $0xe0] sm:$0xff]
    %v3801 = vld [vmem:[#allocation6 + $0xe8] sm:$0xff]
    %v3802 = vld [vmem:[#allocation6 + $0xf0] sm:$0xff]
    %v3803 = vld [vmem:[#allocation6 + $0xf8] sm:$0xff]
    %v3804 = vld [vmem:[#allocation6 + $0x100] sm:$0xff]
    %v3805 = vld [vmem:[#allocation6 + $0x108] sm:$0xff]
    %v3806 = vld [vmem:[#allocation6 + $0x110] sm:$0xff]
    %v3807 = vld [vmem:[#allocation6 + $0x118] sm:$0xff]
    %v3808 = vld [vmem:[#allocation6 + $0x120] sm:$0xff]
    %v3809 = vld [vmem:[#allocation6 + $0x128] sm:$0xff]
    %v3810 = vld [vmem:[#allocation6 + $0x130] sm:$0xff]
    %v3811 = vld [vmem:[#allocation6 + $0x138] sm:$0xff]
    %v3812 = vld [vmem:[#allocation6 + $0x140] sm:$0xff]
    %v3813 = vld [vmem:[#allocation6 + $0x148] sm:$0xff]
    %v3814 = vld [vmem:[#allocation6 + $0x150] sm:$0xff]
    %v3815 = vld [vmem:[#allocation6 + $0x158] sm:$0xff]
    %v3816 = vld [vmem:[#allocation6 + $0x160] sm:$0xff]
    %v3817 = vld [vmem:[#allocation6 + $0x168] sm:$0xff]
    %v3818 = vld [vmem:[#allocation6 + $0x170] sm:$0xff]
    %v3819 = vld [vmem:[#allocation6 + $0x178] sm:$0xff]
    %v3820 = vld [vmem:[#allocation6 + $0x180] sm:$0xff]
    %v3821 = vld [vmem:[#allocation6 + $0x188] sm:$0xff]
    %v3822 = vld [vmem:[#allocation6 + $0x190] sm:$0xff]
    %v3823 = vld [vmem:[#allocation6 + $0x198] sm:$0xff]
    %v3824 = vld [vmem:[#allocation6 + $0x1a0] sm:$0xff]
    %v3825 = vld [vmem:[#allocation6 + $0x1a8] sm:$0xff]
    %v3826 = vld [vmem:[#allocation6 + $0x1b0] sm:$0xff]
    %v3827 = vld [vmem:[#allocation6 + $0x1b8] sm:$0xff]
    %v3828 = vld [vmem:[#allocation6 + $0x1c0] sm:$0xff]
    %v3829 = vld [vmem:[#allocation6 + $0x1c8] sm:$0xff]
    %v3830 = vld [vmem:[#allocation6 + $0x1d0] sm:$0xff]
    %v3831 = vld [vmem:[#allocation6 + $0x1d8] sm:$0xff]
    %v3832 = vld [vmem:[#allocation6 + $0x1e0] sm:$0xff]
    %v3833 = vld [vmem:[#allocation6 + $0x1e8] sm:$0xff]
    %v3834 = vld [vmem:[#allocation6 + $0x1f0] sm:$0xff]
    %v3835 = vld [vmem:[#allocation6 + $0x1f8] sm:$0xff]
    %v3836 = vld [vmem:[#allocation6 + $0x200] sm:$0xff]
    %v3837 = vld [vmem:[#allocation6 + $0x208] sm:$0xff]
    %v3838 = vld [vmem:[#allocation6 + $0x210] sm:$0xff]
    %v3839 = vld [vmem:[#allocation6 + $0x218] sm:$0xff]
    %v3840 = vld [vmem:[#allocation6 + $0x220] sm:$0xff]
    %v3841 = vld [vmem:[#allocation6 + $0x228] sm:$0xff]
    %v3842 = vld [vmem:[#allocation6 + $0x230] sm:$0xff]
    %v3843 = vld [vmem:[#allocation6 + $0x238] sm:$0xff]
    %v3844 = vld [vmem:[#allocation6 + $0x240] sm:$0xff]
    %v3845 = vld [vmem:[#allocation6 + $0x248] sm:$0xff]
    %v3846 = vld [vmem:[#allocation6 + $0x250] sm:$0xff]
    %v3847 = vld [vmem:[#allocation6 + $0x258] sm:$0xff]
    %v3848 = vld [vmem:[#allocation6 + $0x260] sm:$0xff]
    %v3849 = vld [vmem:[#allocation6 + $0x268] sm:$0xff]
    %v3850 = vld [vmem:[#allocation6 + $0x270] sm:$0xff]
    %v3851 = vld [vmem:[#allocation6 + $0x278] sm:$0xff]
    %v3852 = vld [vmem:[#allocation6 + $0x280] sm:$0xff]
    %v3853 = vld [vmem:[#allocation6 + $0x288] sm:$0xff]
    %v3854 = vld [vmem:[#allocation6 + $0x290] sm:$0xff]
    %v3855 = vld [vmem:[#allocation6 + $0x298] sm:$0xff]
    %v3856 = vld [vmem:[#allocation6 + $0x2a0] sm:$0xff]
    %v3857 = vld [vmem:[#allocation6 + $0x2a8] sm:$0xff]
    %v3858 = vld [vmem:[#allocation6 + $0x2b0] sm:$0xff]
    %v3859 = vld [vmem:[#allocation6 + $0x2b8] sm:$0xff]
    %v3860 = vld [vmem:[#allocation6 + $0x2c0] sm:$0xff]
    %v3861 = vld [vmem:[#allocation6 + $0x2c8] sm:$0xff]
    %v3862 = vld [vmem:[#allocation6 + $0x2d0] sm:$0xff]
    %v3863 = vld [vmem:[#allocation6 + $0x2d8] sm:$0xff]
    %v3864 = vld [vmem:[#allocation6 + $0x2e0] sm:$0xff]
    %v3865 = vld [vmem:[#allocation6 + $0x2e8] sm:$0xff]
    %v3866 = vld [vmem:[#allocation6 + $0x2f0] sm:$0xff]
    %v3867 = vld [vmem:[#allocation6 + $0x2f8] sm:$0xff]
    %v3868 = vld [vmem:[#allocation6 + $0x300] sm:$0xff]
    %v3869 = vld [vmem:[#allocation6 + $0x308] sm:$0xff]
    %v3870 = vld [vmem:[#allocation6 + $0x310] sm:$0xff]
    %v3871 = vld [vmem:[#allocation6 + $0x318] sm:$0xff]
    %v3872 = vld [vmem:[#allocation6 + $0x320] sm:$0xff]
    %v3873 = vld [vmem:[#allocation6 + $0x328] sm:$0xff]
    %v3874 = vld [vmem:[#allocation6 + $0x330] sm:$0xff]
    %v3875 = vld [vmem:[#allocation6 + $0x338] sm:$0xff]
    %v3876 = vld [vmem:[#allocation6 + $0x340] sm:$0xff]
    %v3877 = vld [vmem:[#allocation6 + $0x348] sm:$0xff]
    %v3878 = vld [vmem:[#allocation6 + $0x350] sm:$0xff]
    %v3879 = vld [vmem:[#allocation6 + $0x358] sm:$0xff]
    %v3880 = vld [vmem:[#allocation6 + $0x360] sm:$0xff]
    %v3881 = vld [vmem:[#allocation6 + $0x368] sm:$0xff]
    %v3882 = vld [vmem:[#allocation6 + $0x370] sm:$0xff]
    %v3883 = vld [vmem:[#allocation6 + $0x378] sm:$0xff]
    %v3884 = vld [vmem:[#allocation6 + $0x380] sm:$0xff]
    %v3885 = vld [vmem:[#allocation6 + $0x388] sm:$0xff]
    %v3886 = vld [vmem:[#allocation6 + $0x390] sm:$0xff]
    %v3887 = vld [vmem:[#allocation6 + $0x398] sm:$0xff]
    %v3888 = vld [vmem:[#allocation6 + $0x3a0] sm:$0xff]
    %v3889 = vld [vmem:[#allocation6 + $0x3a8] sm:$0xff]
    %v3890 = vld [vmem:[#allocation6 + $0x3b0] sm:$0xff]
    %v3891 = vld [vmem:[#allocation6 + $0x3b8] sm:$0xff]
    %v3892 = vld [vmem:[#allocation6 + $0x3c0] sm:$0xff]
    %v3893 = vld [vmem:[#allocation6 + $0x3c8] sm:$0xff]
    %v3894 = vld [vmem:[#allocation6 + $0x3d0] sm:$0xff]
    %v3895 = vld [vmem:[#allocation6 + $0x3d8] sm:$0xff]
    %v3896 = vld [vmem:[#allocation6 + $0x3e0] sm:$0xff]
    %v3897 = vld [vmem:[#allocation6 + $0x3e8] sm:$0xff]
    %v3898 = vld [vmem:[#allocation6 + $0x3f0] sm:$0xff]
    %v3899 = vld [vmem:[#allocation6 + $0x3f8] sm:$0xff]
    %v3900 = vld [vmem:[#allocation6 + $0x400] sm:$0xff]
    %v3901 = vld [vmem:[#allocation6 + $0x408] sm:$0xff]
    %v3902 = vld [vmem:[#allocation6 + $0x410] sm:$0xff]
    %v3903 = vld [vmem:[#allocation6 + $0x418] sm:$0xff]
    %v3904 = vld [vmem:[#allocation6 + $0x420] sm:$0xff]
    %v3905 = vld [vmem:[#allocation6 + $0x428] sm:$0xff]
    %v3906 = vld [vmem:[#allocation6 + $0x430] sm:$0xff]
    %v3907 = vld [vmem:[#allocation6 + $0x438] sm:$0xff]
    %v3908 = vld [vmem:[#allocation6 + $0x440] sm:$0xff]
    %v3909 = vld [vmem:[#allocation6 + $0x448] sm:$0xff]
    %v3910 = vld [vmem:[#allocation6 + $0x450] sm:$0xff]
    %v3911 = vld [vmem:[#allocation6 + $0x458] sm:$0xff]
    %v3912 = vld [vmem:[#allocation6 + $0x460] sm:$0xff]
    %v3913 = vld [vmem:[#allocation6 + $0x468] sm:$0xff]
    %v3914 = vld [vmem:[#allocation6 + $0x470] sm:$0xff]
    %v3915 = vld [vmem:[#allocation6 + $0x478] sm:$0xff]
    %v3916 = vld [vmem:[#allocation6 + $0x480] sm:$0xff]
    %v3917 = vld [vmem:[#allocation6 + $0x488] sm:$0xff]
    %v3918 = vld [vmem:[#allocation6 + $0x490] sm:$0xff]
    %v3919 = vld [vmem:[#allocation6 + $0x498] sm:$0xff]
    %v3920 = vld [vmem:[#allocation6 + $0x4a0] sm:$0xff]
    %v3921 = vld [vmem:[#allocation6 + $0x4a8] sm:$0xff]
    %v3922 = vld [vmem:[#allocation6 + $0x4b0] sm:$0xff]
    %v3923 = vld [vmem:[#allocation6 + $0x4b8] sm:$0xff]
    %v3924 = vld [vmem:[#allocation6 + $0x4c0] sm:$0xff]
    %v3925 = vld [vmem:[#allocation6 + $0x4c8] sm:$0xff]
    %v3926 = vld [vmem:[#allocation6 + $0x4d0] sm:$0xff]
    %v3927 = vld [vmem:[#allocation6 + $0x4d8] sm:$0xff]
    %v3928 = vld [vmem:[#allocation6 + $0x4e0] sm:$0xff]
    %v3929 = vld [vmem:[#allocation6 + $0x4e8] sm:$0xff]
    %v3930 = vld [vmem:[#allocation6 + $0x4f0] sm:$0xff]
    %v3931 = vld [vmem:[#allocation6 + $0x4f8] sm:$0xff]
    %v3932 = vld [vmem:[#allocation6 + $0x500] sm:$0xff]
    %v3933 = vld [vmem:[#allocation6 + $0x508] sm:$0xff]
    %v3934 = vld [vmem:[#allocation6 + $0x510] sm:$0xff]
    %v3935 = vld [vmem:[#allocation6 + $0x518] sm:$0xff]
    %v3936 = vld [vmem:[#allocation6 + $0x520] sm:$0xff]
    %v3937 = vld [vmem:[#allocation6 + $0x528] sm:$0xff]
    %v3938 = vld [vmem:[#allocation6 + $0x530] sm:$0xff]
    %v3939 = vld [vmem:[#allocation6 + $0x538] sm:$0xff]
    %v3940 = vld [vmem:[#allocation6 + $0x540] sm:$0xff]
    %v3941 = vld [vmem:[#allocation6 + $0x548] sm:$0xff]
    %v3942 = vld [vmem:[#allocation6 + $0x550] sm:$0xff]
    %v3943 = vld [vmem:[#allocation6 + $0x558] sm:$0xff]
    %v3944 = vld [vmem:[#allocation6 + $0x560] sm:$0xff]
    %v3945 = vld [vmem:[#allocation6 + $0x568] sm:$0xff]
    %v3946 = vld [vmem:[#allocation6 + $0x570] sm:$0xff]
    %v3947 = vld [vmem:[#allocation6 + $0x578] sm:$0xff]
    %v3948 = vld [vmem:[#allocation6 + $0x580] sm:$0xff]
    %v3949 = vld [vmem:[#allocation6 + $0x588] sm:$0xff]
    %v3950 = vld [vmem:[#allocation6 + $0x590] sm:$0xff]
    %v3951 = vld [vmem:[#allocation6 + $0x598] sm:$0xff]
    %v3952 = vld [vmem:[#allocation6 + $0x5a0] sm:$0xff]
    %v3953 = vld [vmem:[#allocation6 + $0x5a8] sm:$0xff]
    %v3954 = vld [vmem:[#allocation6 + $0x5b0] sm:$0xff]
    %v3955 = vld [vmem:[#allocation6 + $0x5b8] sm:$0xff]
    %v3956 = vld [vmem:[#allocation6 + $0x5c0] sm:$0xff]
    %v3957 = vld [vmem:[#allocation6 + $0x5c8] sm:$0xff]
    %v3958 = vld [vmem:[#allocation6 + $0x5d0] sm:$0xff]
    %v3959 = vld [vmem:[#allocation6 + $0x5d8] sm:$0xff]
    %v3960 = vld [vmem:[#allocation6 + $0x5e0] sm:$0xff]
    %v3961 = vld [vmem:[#allocation6 + $0x5e8] sm:$0xff]
    %v3962 = vld [vmem:[#allocation6 + $0x5f0] sm:$0xff]
    %v3963 = vld [vmem:[#allocation6 + $0x5f8] sm:$0xff]
    %v3964 = vld [vmem:[#allocation6 + $0x600] sm:$0xff]
    %v3965 = vld [vmem:[#allocation6 + $0x608] sm:$0xff]
    %v3966 = vld [vmem:[#allocation6 + $0x610] sm:$0xff]
    %v3967 = vld [vmem:[#allocation6 + $0x618] sm:$0xff]
    %v3968 = vld [vmem:[#allocation6 + $0x620] sm:$0xff]
    %v3969 = vld [vmem:[#allocation6 + $0x628] sm:$0xff]
    %v3970 = vld [vmem:[#allocation6 + $0x630] sm:$0xff]
    %v3971 = vld [vmem:[#allocation6 + $0x638] sm:$0xff]
    %v3972 = vld [vmem:[#allocation6 + $0x640] sm:$0xff]
    %v3973 = vld [vmem:[#allocation6 + $0x648] sm:$0xff]
    %v3974 = vld [vmem:[#allocation6 + $0x650] sm:$0xff]
    %v3975 = vld [vmem:[#allocation6 + $0x658] sm:$0xff]
    %v3976 = vld [vmem:[#allocation6 + $0x660] sm:$0xff]
    %v3977 = vld [vmem:[#allocation6 + $0x668] sm:$0xff]
    %v3978 = vld [vmem:[#allocation6 + $0x670] sm:$0xff]
    %v3979 = vld [vmem:[#allocation6 + $0x678] sm:$0xff]
    %v3980 = vld [vmem:[#allocation6 + $0x680] sm:$0xff]
    %v3981 = vld [vmem:[#allocation6 + $0x688] sm:$0xff]
    %v3982 = vld [vmem:[#allocation6 + $0x690] sm:$0xff]
    %v3983 = vld [vmem:[#allocation6 + $0x698] sm:$0xff]
    %v3984 = vld [vmem:[#allocation6 + $0x6a0] sm:$0xff]
    %v3985 = vld [vmem:[#allocation6 + $0x6a8] sm:$0xff]
    %v3986 = vld [vmem:[#allocation6 + $0x6b0] sm:$0xff]
    %v3987 = vld [vmem:[#allocation6 + $0x6b8] sm:$0xff]
    %v3988 = vld [vmem:[#allocation6 + $0x6c0] sm:$0xff]
    %v3989 = vld [vmem:[#allocation6 + $0x6c8] sm:$0xff]
    %v3990 = vld [vmem:[#allocation6 + $0x6d0] sm:$0xff]
    %v3991 = vld [vmem:[#allocation6 + $0x6d8] sm:$0xff]
    %v3992 = vld [vmem:[#allocation6 + $0x6e0] sm:$0xff]
    %v3993 = vld [vmem:[#allocation6 + $0x6e8] sm:$0xff]
    %v3994 = vld [vmem:[#allocation6 + $0x6f0] sm:$0xff]
    %v3995 = vld [vmem:[#allocation6 + $0x6f8] sm:$0xff]
    %v3996 = vld [vmem:[#allocation6 + $0x700] sm:$0xff]
    %v3997 = vld [vmem:[#allocation6 + $0x708] sm:$0xff]
    %v3998 = vld [vmem:[#allocation6 + $0x710] sm:$0xff]
    %v3999 = vld [vmem:[#allocation6 + $0x718] sm:$0xff]
    %v4000 = vld [vmem:[#allocation6 + $0x720] sm:$0xff]
    %v4001 = vld [vmem:[#allocation6 + $0x728] sm:$0xff]
    %v4002 = vld [vmem:[#allocation6 + $0x730] sm:$0xff]
    %v4003 = vld [vmem:[#allocation6 + $0x738] sm:$0xff]
    %v4004 = vld [vmem:[#allocation6 + $0x740] sm:$0xff]
    %v4005 = vld [vmem:[#allocation6 + $0x748] sm:$0xff]
    %v4006 = vld [vmem:[#allocation6 + $0x750] sm:$0xff]
    %v4007 = vld [vmem:[#allocation6 + $0x758] sm:$0xff]
    %v4008 = vld [vmem:[#allocation6 + $0x760] sm:$0xff]
    %v4009 = vld [vmem:[#allocation6 + $0x768] sm:$0xff]
    %v4010 = vld [vmem:[#allocation6 + $0x770] sm:$0xff]
    %v4011 = vld [vmem:[#allocation6 + $0x778] sm:$0xff]
    %v4012 = vld [vmem:[#allocation6 + $0x780] sm:$0xff]
    %v4013 = vld [vmem:[#allocation6 + $0x788] sm:$0xff]
    %v4014 = vld [vmem:[#allocation6 + $0x790] sm:$0xff]
    %v4015 = vld [vmem:[#allocation6 + $0x798] sm:$0xff]
    %v4016 = vld [vmem:[#allocation6 + $0x7a0] sm:$0xff]
    %v4017 = vld [vmem:[#allocation6 + $0x7a8] sm:$0xff]
    %v4018 = vld [vmem:[#allocation6 + $0x7b0] sm:$0xff]
    %v4019 = vld [vmem:[#allocation6 + $0x7b8] sm:$0xff]
    %v4020 = vld [vmem:[#allocation6 + $0x7c0] sm:$0xff]
    %v4021 = vld [vmem:[#allocation6 + $0x7c8] sm:$0xff]
    %v4022 = vld [vmem:[#allocation6 + $0x7d0] sm:$0xff]
    %v4023 = vld [vmem:[#allocation6 + $0x7d8] sm:$0xff]
    %v4024 = vld [vmem:[#allocation6 + $0x7e0] sm:$0xff]
    %v4025 = vld [vmem:[#allocation6 + $0x7e8] sm:$0xff]
    %v4026 = vld [vmem:[#allocation6 + $0x7f0] sm:$0xff]
    %v4027 = vld [vmem:[#allocation6 + $0x7f8] sm:$0xff]
    %v4028 = vld [vmem:[%s15] sm:$0xf]
    %v4030 = vlaneseq
    %v4031 = vshrl.u32 %v4030, 7
    %v4032 = vsub.s32 0, %v4031
    %v4033 = vrot.slane %v4028, %v4032
    %v4034 = vlaneseq
    %v4035 = vshrl.u32 %v4034, 7
    %v4036 = vsub.s32 1, %v4035
    %v4037 = vrot.slane %v4028, %v4036
    %v4038 = vlaneseq
    %v4039 = vshrl.u32 %v4038, 7
    %v4040 = vsub.s32 2, %v4039
    %v4041 = vrot.slane %v4028, %v4040
    %v4042 = vlaneseq
    %v4043 = vshrl.u32 %v4042, 7
    %v4044 = vsub.s32 3, %v4043
    %v4045 = vrot.slane %v4028, %v4044
    %v4306 = vunpack.c.l.b16 %v3772
    %v4307 = vunpack.c.h.b16 %v3772
    %v4308 = vunpack.c.l.b16 %v3773
    %v4309 = vunpack.c.h.b16 %v3773
    %v4310 = vunpack.c.l.b16 %v3774
    %v4311 = vunpack.c.h.b16 %v3774
    %v4312 = vunpack.c.l.b16 %v3775
    %v4313 = vunpack.c.h.b16 %v3775
    %v4314 = vunpack.c.l.b16 %v3776
    %v4315 = vunpack.c.h.b16 %v3776
    %v4316 = vunpack.c.l.b16 %v3777
    %v4317 = vunpack.c.h.b16 %v3777
    %v4318 = vunpack.c.l.b16 %v3778
    %v4319 = vunpack.c.h.b16 %v3778
    %v4320 = vunpack.c.l.b16 %v3779
    %v4321 = vunpack.c.h.b16 %v3779
    %v4322 = vunpack.c.l.b16 %v3780
    %v4323 = vunpack.c.h.b16 %v3780
    %v4324 = vunpack.c.l.b16 %v3781
    %v4325 = vunpack.c.h.b16 %v3781
    %v4326 = vunpack.c.l.b16 %v3782
    %v4327 = vunpack.c.h.b16 %v3782
    %v4328 = vunpack.c.l.b16 %v3783
    %v4329 = vunpack.c.h.b16 %v3783
    %v4330 = vunpack.c.l.b16 %v3784
    %v4331 = vunpack.c.h.b16 %v3784
    %v4332 = vunpack.c.l.b16 %v3785
    %v4333 = vunpack.c.h.b16 %v3785
    %v4334 = vunpack.c.l.b16 %v3786
    %v4335 = vunpack.c.h.b16 %v3786
    %v4336 = vunpack.c.l.b16 %v3787
    %v4337 = vunpack.c.h.b16 %v3787
    %v4338 = vunpack.c.l.b16 %v3788
    %v4339 = vunpack.c.h.b16 %v3788
    %v4340 = vunpack.c.l.b16 %v3789
    %v4341 = vunpack.c.h.b16 %v3789
    %v4342 = vunpack.c.l.b16 %v3790
    %v4343 = vunpack.c.h.b16 %v3790
    %v4344 = vunpack.c.l.b16 %v3791
    %v4345 = vunpack.c.h.b16 %v3791
    %v4346 = vunpack.c.l.b16 %v3792
    %v4347 = vunpack.c.h.b16 %v3792
    %v4348 = vunpack.c.l.b16 %v3793
    %v4349 = vunpack.c.h.b16 %v3793
    %v4350 = vunpack.c.l.b16 %v3794
    %v4351 = vunpack.c.h.b16 %v3794
    %v4352 = vunpack.c.l.b16 %v3795
    %v4353 = vunpack.c.h.b16 %v3795
    %v4354 = vunpack.c.l.b16 %v3796
    %v4355 = vunpack.c.h.b16 %v3796
    %v4356 = vunpack.c.l.b16 %v3797
    %v4357 = vunpack.c.h.b16 %v3797
    %v4358 = vunpack.c.l.b16 %v3798
    %v4359 = vunpack.c.h.b16 %v3798
    %v4360 = vunpack.c.l.b16 %v3799
    %v4361 = vunpack.c.h.b16 %v3799
    %v4362 = vunpack.c.l.b16 %v3800
    %v4363 = vunpack.c.h.b16 %v3800
    %v4364 = vunpack.c.l.b16 %v3801
    %v4365 = vunpack.c.h.b16 %v3801
    %v4366 = vunpack.c.l.b16 %v3802
    %v4367 = vunpack.c.h.b16 %v3802
    %v4368 = vunpack.c.l.b16 %v3803
    %v4369 = vunpack.c.h.b16 %v3803
    %v4370 = vunpack.c.l.b16 %v3804
    %v4371 = vunpack.c.h.b16 %v3804
    %v4372 = vunpack.c.l.b16 %v3805
    %v4373 = vunpack.c.h.b16 %v3805
    %v4374 = vunpack.c.l.b16 %v3806
    %v4375 = vunpack.c.h.b16 %v3806
    %v4376 = vunpack.c.l.b16 %v3807
    %v4377 = vunpack.c.h.b16 %v3807
    %v4378 = vunpack.c.l.b16 %v3808
    %v4379 = vunpack.c.h.b16 %v3808
    %v4380 = vunpack.c.l.b16 %v3809
    %v4381 = vunpack.c.h.b16 %v3809
    %v4382 = vunpack.c.l.b16 %v3810
    %v4383 = vunpack.c.h.b16 %v3810
    %v4384 = vunpack.c.l.b16 %v3811
    %v4385 = vunpack.c.h.b16 %v3811
    %v4386 = vunpack.c.l.b16 %v3812
    %v4387 = vunpack.c.h.b16 %v3812
    %v4388 = vunpack.c.l.b16 %v3813
    %v4389 = vunpack.c.h.b16 %v3813
    %v4390 = vunpack.c.l.b16 %v3814
    %v4391 = vunpack.c.h.b16 %v3814
    %v4392 = vunpack.c.l.b16 %v3815
    %v4393 = vunpack.c.h.b16 %v3815
    %v4394 = vunpack.c.l.b16 %v3816
    %v4395 = vunpack.c.h.b16 %v3816
    %v4396 = vunpack.c.l.b16 %v3817
    %v4397 = vunpack.c.h.b16 %v3817
    %v4398 = vunpack.c.l.b16 %v3818
    %v4399 = vunpack.c.h.b16 %v3818
    %v4400 = vunpack.c.l.b16 %v3819
    %v4401 = vunpack.c.h.b16 %v3819
    %v4402 = vunpack.c.l.b16 %v3820
    %v4403 = vunpack.c.h.b16 %v3820
    %v4404 = vunpack.c.l.b16 %v3821
    %v4405 = vunpack.c.h.b16 %v3821
    %v4406 = vunpack.c.l.b16 %v3822
    %v4407 = vunpack.c.h.b16 %v3822
    %v4408 = vunpack.c.l.b16 %v3823
    %v4409 = vunpack.c.h.b16 %v3823
    %v4410 = vunpack.c.l.b16 %v3824
    %v4411 = vunpack.c.h.b16 %v3824
    %v4412 = vunpack.c.l.b16 %v3825
    %v4413 = vunpack.c.h.b16 %v3825
    %v4414 = vunpack.c.l.b16 %v3826
    %v4415 = vunpack.c.h.b16 %v3826
    %v4416 = vunpack.c.l.b16 %v3827
    %v4417 = vunpack.c.h.b16 %v3827
    %v4418 = vunpack.c.l.b16 %v3828
    %v4419 = vunpack.c.h.b16 %v3828
    %v4420 = vunpack.c.l.b16 %v3829
    %v4421 = vunpack.c.h.b16 %v3829
    %v4422 = vunpack.c.l.b16 %v3830
    %v4423 = vunpack.c.h.b16 %v3830
    %v4424 = vunpack.c.l.b16 %v3831
    %v4425 = vunpack.c.h.b16 %v3831
    %v4426 = vunpack.c.l.b16 %v3832
    %v4427 = vunpack.c.h.b16 %v3832
    %v4428 = vunpack.c.l.b16 %v3833
    %v4429 = vunpack.c.h.b16 %v3833
    %v4430 = vunpack.c.l.b16 %v3834
    %v4431 = vunpack.c.h.b16 %v3834
    %v4432 = vunpack.c.l.b16 %v3835
    %v4433 = vunpack.c.h.b16 %v3835
    %v4434 = vunpack.c.l.b16 %v3836
    %v4435 = vunpack.c.h.b16 %v3836
    %v4436 = vunpack.c.l.b16 %v3837
    %v4437 = vunpack.c.h.b16 %v3837
    %v4438 = vunpack.c.l.b16 %v3838
    %v4439 = vunpack.c.h.b16 %v3838
    %v4440 = vunpack.c.l.b16 %v3839
    %v4441 = vunpack.c.h.b16 %v3839
    %v4442 = vunpack.c.l.b16 %v3840
    %v4443 = vunpack.c.h.b16 %v3840
    %v4444 = vunpack.c.l.b16 %v3841
    %v4445 = vunpack.c.h.b16 %v3841
    %v4446 = vunpack.c.l.b16 %v3842
    %v4447 = vunpack.c.h.b16 %v3842
    %v4448 = vunpack.c.l.b16 %v3843
    %v4449 = vunpack.c.h.b16 %v3843
    %v4450 = vunpack.c.l.b16 %v3844
    %v4451 = vunpack.c.h.b16 %v3844
    %v4452 = vunpack.c.l.b16 %v3845
    %v4453 = vunpack.c.h.b16 %v3845
    %v4454 = vunpack.c.l.b16 %v3846
    %v4455 = vunpack.c.h.b16 %v3846
    %v4456 = vunpack.c.l.b16 %v3847
    %v4457 = vunpack.c.h.b16 %v3847
    %v4458 = vunpack.c.l.b16 %v3848
    %v4459 = vunpack.c.h.b16 %v3848
    %v4460 = vunpack.c.l.b16 %v3849
    %v4461 = vunpack.c.h.b16 %v3849
    %v4462 = vunpack.c.l.b16 %v3850
    %v4463 = vunpack.c.h.b16 %v3850
    %v4464 = vunpack.c.l.b16 %v3851
    %v4465 = vunpack.c.h.b16 %v3851
    %v4466 = vunpack.c.l.b16 %v3852
    %v4467 = vunpack.c.h.b16 %v3852
    %v4468 = vunpack.c.l.b16 %v3853
    %v4469 = vunpack.c.h.b16 %v3853
    %v4470 = vunpack.c.l.b16 %v3854
    %v4471 = vunpack.c.h.b16 %v3854
    %v4472 = vunpack.c.l.b16 %v3855
    %v4473 = vunpack.c.h.b16 %v3855
    %v4474 = vunpack.c.l.b16 %v3856
    %v4475 = vunpack.c.h.b16 %v3856
    %v4476 = vunpack.c.l.b16 %v3857
    %v4477 = vunpack.c.h.b16 %v3857
    %v4478 = vunpack.c.l.b16 %v3858
    %v4479 = vunpack.c.h.b16 %v3858
    %v4480 = vunpack.c.l.b16 %v3859
    %v4481 = vunpack.c.h.b16 %v3859
    %v4482 = vunpack.c.l.b16 %v3860
    %v4483 = vunpack.c.h.b16 %v3860
    %v4484 = vunpack.c.l.b16 %v3861
    %v4485 = vunpack.c.h.b16 %v3861
    %v4486 = vunpack.c.l.b16 %v3862
    %v4487 = vunpack.c.h.b16 %v3862
    %v4488 = vunpack.c.l.b16 %v3863
    %v4489 = vunpack.c.h.b16 %v3863
    %v4490 = vunpack.c.l.b16 %v3864
    %v4491 = vunpack.c.h.b16 %v3864
    %v4492 = vunpack.c.l.b16 %v3865
    %v4493 = vunpack.c.h.b16 %v3865
    %v4494 = vunpack.c.l.b16 %v3866
    %v4495 = vunpack.c.h.b16 %v3866
    %v4496 = vunpack.c.l.b16 %v3867
    %v4497 = vunpack.c.h.b16 %v3867
    %v4498 = vunpack.c.l.b16 %v3868
    %v4499 = vunpack.c.h.b16 %v3868
    %v4500 = vunpack.c.l.b16 %v3869
    %v4501 = vunpack.c.h.b16 %v3869
    %v4502 = vunpack.c.l.b16 %v3870
    %v4503 = vunpack.c.h.b16 %v3870
    %v4504 = vunpack.c.l.b16 %v3871
    %v4505 = vunpack.c.h.b16 %v3871
    %v4506 = vunpack.c.l.b16 %v3872
    %v4507 = vunpack.c.h.b16 %v3872
    %v4508 = vunpack.c.l.b16 %v3873
    %v4509 = vunpack.c.h.b16 %v3873
    %v4510 = vunpack.c.l.b16 %v3874
    %v4511 = vunpack.c.h.b16 %v3874
    %v4512 = vunpack.c.l.b16 %v3875
    %v4513 = vunpack.c.h.b16 %v3875
    %v4514 = vunpack.c.l.b16 %v3876
    %v4515 = vunpack.c.h.b16 %v3876
    %v4516 = vunpack.c.l.b16 %v3877
    %v4517 = vunpack.c.h.b16 %v3877
    %v4518 = vunpack.c.l.b16 %v3878
    %v4519 = vunpack.c.h.b16 %v3878
    %v4520 = vunpack.c.l.b16 %v3879
    %v4521 = vunpack.c.h.b16 %v3879
    %v4522 = vunpack.c.l.b16 %v3880
    %v4523 = vunpack.c.h.b16 %v3880
    %v4524 = vunpack.c.l.b16 %v3881
    %v4525 = vunpack.c.h.b16 %v3881
    %v4526 = vunpack.c.l.b16 %v3882
    %v4527 = vunpack.c.h.b16 %v3882
    %v4528 = vunpack.c.l.b16 %v3883
    %v4529 = vunpack.c.h.b16 %v3883
    %v4530 = vunpack.c.l.b16 %v3884
    %v4531 = vunpack.c.h.b16 %v3884
    %v4532 = vunpack.c.l.b16 %v3885
    %v4533 = vunpack.c.h.b16 %v3885
    %v4534 = vunpack.c.l.b16 %v3886
    %v4535 = vunpack.c.h.b16 %v3886
    %v4536 = vunpack.c.l.b16 %v3887
    %v4537 = vunpack.c.h.b16 %v3887
    %v4538 = vunpack.c.l.b16 %v3888
    %v4539 = vunpack.c.h.b16 %v3888
    %v4540 = vunpack.c.l.b16 %v3889
    %v4541 = vunpack.c.h.b16 %v3889
    %v4542 = vunpack.c.l.b16 %v3890
    %v4543 = vunpack.c.h.b16 %v3890
    %v4544 = vunpack.c.l.b16 %v3891
    %v4545 = vunpack.c.h.b16 %v3891
    %v4546 = vunpack.c.l.b16 %v3892
    %v4547 = vunpack.c.h.b16 %v3892
    %v4548 = vunpack.c.l.b16 %v3893
    %v4549 = vunpack.c.h.b16 %v3893
    %v4550 = vunpack.c.l.b16 %v3894
    %v4551 = vunpack.c.h.b16 %v3894
    %v4552 = vunpack.c.l.b16 %v3895
    %v4553 = vunpack.c.h.b16 %v3895
    %v4554 = vunpack.c.l.b16 %v3896
    %v4555 = vunpack.c.h.b16 %v3896
    %v4556 = vunpack.c.l.b16 %v3897
    %v4557 = vunpack.c.h.b16 %v3897
    %v4558 = vunpack.c.l.b16 %v3898
    %v4559 = vunpack.c.h.b16 %v3898
    %v4560 = vunpack.c.l.b16 %v3899
    %v4561 = vunpack.c.h.b16 %v3899
    %v4562 = vunpack.c.l.b16 %v3900
    %v4563 = vunpack.c.h.b16 %v3900
    %v4564 = vunpack.c.l.b16 %v3901
    %v4565 = vunpack.c.h.b16 %v3901
    %v4566 = vunpack.c.l.b16 %v3902
    %v4567 = vunpack.c.h.b16 %v3902
    %v4568 = vunpack.c.l.b16 %v3903
    %v4569 = vunpack.c.h.b16 %v3903
    %v4570 = vunpack.c.l.b16 %v3904
    %v4571 = vunpack.c.h.b16 %v3904
    %v4572 = vunpack.c.l.b16 %v3905
    %v4573 = vunpack.c.h.b16 %v3905
    %v4574 = vunpack.c.l.b16 %v3906
    %v4575 = vunpack.c.h.b16 %v3906
    %v4576 = vunpack.c.l.b16 %v3907
    %v4577 = vunpack.c.h.b16 %v3907
    %v4578 = vunpack.c.l.b16 %v3908
    %v4579 = vunpack.c.h.b16 %v3908
    %v4580 = vunpack.c.l.b16 %v3909
    %v4581 = vunpack.c.h.b16 %v3909
    %v4582 = vunpack.c.l.b16 %v3910
    %v4583 = vunpack.c.h.b16 %v3910
    %v4584 = vunpack.c.l.b16 %v3911
    %v4585 = vunpack.c.h.b16 %v3911
    %v4586 = vunpack.c.l.b16 %v3912
    %v4587 = vunpack.c.h.b16 %v3912
    %v4588 = vunpack.c.l.b16 %v3913
    %v4589 = vunpack.c.h.b16 %v3913
    %v4590 = vunpack.c.l.b16 %v3914
    %v4591 = vunpack.c.h.b16 %v3914
    %v4592 = vunpack.c.l.b16 %v3915
    %v4593 = vunpack.c.h.b16 %v3915
    %v4594 = vunpack.c.l.b16 %v3916
    %v4595 = vunpack.c.h.b16 %v3916
    %v4596 = vunpack.c.l.b16 %v3917
    %v4597 = vunpack.c.h.b16 %v3917
    %v4598 = vunpack.c.l.b16 %v3918
    %v4599 = vunpack.c.h.b16 %v3918
    %v4600 = vunpack.c.l.b16 %v3919
    %v4601 = vunpack.c.h.b16 %v3919
    %v4602 = vunpack.c.l.b16 %v3920
    %v4603 = vunpack.c.h.b16 %v3920
    %v4604 = vunpack.c.l.b16 %v3921
    %v4605 = vunpack.c.h.b16 %v3921
    %v4606 = vunpack.c.l.b16 %v3922
    %v4607 = vunpack.c.h.b16 %v3922
    %v4608 = vunpack.c.l.b16 %v3923
    %v4609 = vunpack.c.h.b16 %v3923
    %v4610 = vunpack.c.l.b16 %v3924
    %v4611 = vunpack.c.h.b16 %v3924
    %v4612 = vunpack.c.l.b16 %v3925
    %v4613 = vunpack.c.h.b16 %v3925
    %v4614 = vunpack.c.l.b16 %v3926
    %v4615 = vunpack.c.h.b16 %v3926
    %v4616 = vunpack.c.l.b16 %v3927
    %v4617 = vunpack.c.h.b16 %v3927
    %v4618 = vunpack.c.l.b16 %v3928
    %v4619 = vunpack.c.h.b16 %v3928
    %v4620 = vunpack.c.l.b16 %v3929
    %v4621 = vunpack.c.h.b16 %v3929
    %v4622 = vunpack.c.l.b16 %v3930
    %v4623 = vunpack.c.h.b16 %v3930
    %v4624 = vunpack.c.l.b16 %v3931
    %v4625 = vunpack.c.h.b16 %v3931
    %v4626 = vunpack.c.l.b16 %v3932
    %v4627 = vunpack.c.h.b16 %v3932
    %v4628 = vunpack.c.l.b16 %v3933
    %v4629 = vunpack.c.h.b16 %v3933
    %v4630 = vunpack.c.l.b16 %v3934
    %v4631 = vunpack.c.h.b16 %v3934
    %v4632 = vunpack.c.l.b16 %v3935
    %v4633 = vunpack.c.h.b16 %v3935
    %v4634 = vunpack.c.l.b16 %v3936
    %v4635 = vunpack.c.h.b16 %v3936
    %v4636 = vunpack.c.l.b16 %v3937
    %v4637 = vunpack.c.h.b16 %v3937
    %v4638 = vunpack.c.l.b16 %v3938
    %v4639 = vunpack.c.h.b16 %v3938
    %v4640 = vunpack.c.l.b16 %v3939
    %v4641 = vunpack.c.h.b16 %v3939
    %v4642 = vunpack.c.l.b16 %v3940
    %v4643 = vunpack.c.h.b16 %v3940
    %v4644 = vunpack.c.l.b16 %v3941
    %v4645 = vunpack.c.h.b16 %v3941
    %v4646 = vunpack.c.l.b16 %v3942
    %v4647 = vunpack.c.h.b16 %v3942
    %v4648 = vunpack.c.l.b16 %v3943
    %v4649 = vunpack.c.h.b16 %v3943
    %v4650 = vunpack.c.l.b16 %v3944
    %v4651 = vunpack.c.h.b16 %v3944
    %v4652 = vunpack.c.l.b16 %v3945
    %v4653 = vunpack.c.h.b16 %v3945
    %v4654 = vunpack.c.l.b16 %v3946
    %v4655 = vunpack.c.h.b16 %v3946
    %v4656 = vunpack.c.l.b16 %v3947
    %v4657 = vunpack.c.h.b16 %v3947
    %v4658 = vunpack.c.l.b16 %v3948
    %v4659 = vunpack.c.h.b16 %v3948
    %v4660 = vunpack.c.l.b16 %v3949
    %v4661 = vunpack.c.h.b16 %v3949
    %v4662 = vunpack.c.l.b16 %v3950
    %v4663 = vunpack.c.h.b16 %v3950
    %v4664 = vunpack.c.l.b16 %v3951
    %v4665 = vunpack.c.h.b16 %v3951
    %v4666 = vunpack.c.l.b16 %v3952
    %v4667 = vunpack.c.h.b16 %v3952
    %v4668 = vunpack.c.l.b16 %v3953
    %v4669 = vunpack.c.h.b16 %v3953
    %v4670 = vunpack.c.l.b16 %v3954
    %v4671 = vunpack.c.h.b16 %v3954
    %v4672 = vunpack.c.l.b16 %v3955
    %v4673 = vunpack.c.h.b16 %v3955
    %v4674 = vunpack.c.l.b16 %v3956
    %v4675 = vunpack.c.h.b16 %v3956
    %v4676 = vunpack.c.l.b16 %v3957
    %v4677 = vunpack.c.h.b16 %v3957
    %v4678 = vunpack.c.l.b16 %v3958
    %v4679 = vunpack.c.h.b16 %v3958
    %v4680 = vunpack.c.l.b16 %v3959
    %v4681 = vunpack.c.h.b16 %v3959
    %v4682 = vunpack.c.l.b16 %v3960
    %v4683 = vunpack.c.h.b16 %v3960
    %v4684 = vunpack.c.l.b16 %v3961
    %v4685 = vunpack.c.h.b16 %v3961
    %v4686 = vunpack.c.l.b16 %v3962
    %v4687 = vunpack.c.h.b16 %v3962
    %v4688 = vunpack.c.l.b16 %v3963
    %v4689 = vunpack.c.h.b16 %v3963
    %v4690 = vunpack.c.l.b16 %v3964
    %v4691 = vunpack.c.h.b16 %v3964
    %v4692 = vunpack.c.l.b16 %v3965
    %v4693 = vunpack.c.h.b16 %v3965
    %v4694 = vunpack.c.l.b16 %v3966
    %v4695 = vunpack.c.h.b16 %v3966
    %v4696 = vunpack.c.l.b16 %v3967
    %v4697 = vunpack.c.h.b16 %v3967
    %v4698 = vunpack.c.l.b16 %v3968
    %v4699 = vunpack.c.h.b16 %v3968
    %v4700 = vunpack.c.l.b16 %v3969
    %v4701 = vunpack.c.h.b16 %v3969
    %v4702 = vunpack.c.l.b16 %v3970
    %v4703 = vunpack.c.h.b16 %v3970
    %v4704 = vunpack.c.l.b16 %v3971
    %v4705 = vunpack.c.h.b16 %v3971
    %v4706 = vunpack.c.l.b16 %v3972
    %v4707 = vunpack.c.h.b16 %v3972
    %v4708 = vunpack.c.l.b16 %v3973
    %v4709 = vunpack.c.h.b16 %v3973
    %v4710 = vunpack.c.l.b16 %v3974
    %v4711 = vunpack.c.h.b16 %v3974
    %v4712 = vunpack.c.l.b16 %v3975
    %v4713 = vunpack.c.h.b16 %v3975
    %v4714 = vunpack.c.l.b16 %v3976
    %v4715 = vunpack.c.h.b16 %v3976
    %v4716 = vunpack.c.l.b16 %v3977
    %v4717 = vunpack.c.h.b16 %v3977
    %v4718 = vunpack.c.l.b16 %v3978
    %v4719 = vunpack.c.h.b16 %v3978
    %v4720 = vunpack.c.l.b16 %v3979
    %v4721 = vunpack.c.h.b16 %v3979
    %v4722 = vunpack.c.l.b16 %v3980
    %v4723 = vunpack.c.h.b16 %v3980
    %v4724 = vunpack.c.l.b16 %v3981
    %v4725 = vunpack.c.h.b16 %v3981
    %v4726 = vunpack.c.l.b16 %v3982
    %v4727 = vunpack.c.h.b16 %v3982
    %v4728 = vunpack.c.l.b16 %v3983
    %v4729 = vunpack.c.h.b16 %v3983
    %v4730 = vunpack.c.l.b16 %v3984
    %v4731 = vunpack.c.h.b16 %v3984
    %v4732 = vunpack.c.l.b16 %v3985
    %v4733 = vunpack.c.h.b16 %v3985
    %v4734 = vunpack.c.l.b16 %v3986
    %v4735 = vunpack.c.h.b16 %v3986
    %v4736 = vunpack.c.l.b16 %v3987
    %v4737 = vunpack.c.h.b16 %v3987
    %v4738 = vunpack.c.l.b16 %v3988
    %v4739 = vunpack.c.h.b16 %v3988
    %v4740 = vunpack.c.l.b16 %v3989
    %v4741 = vunpack.c.h.b16 %v3989
    %v4742 = vunpack.c.l.b16 %v3990
    %v4743 = vunpack.c.h.b16 %v3990
    %v4744 = vunpack.c.l.b16 %v3991
    %v4745 = vunpack.c.h.b16 %v3991
    %v4746 = vunpack.c.l.b16 %v3992
    %v4747 = vunpack.c.h.b16 %v3992
    %v4748 = vunpack.c.l.b16 %v3993
    %v4749 = vunpack.c.h.b16 %v3993
    %v4750 = vunpack.c.l.b16 %v3994
    %v4751 = vunpack.c.h.b16 %v3994
    %v4752 = vunpack.c.l.b16 %v3995
    %v4753 = vunpack.c.h.b16 %v3995
    %v4754 = vunpack.c.l.b16 %v3996
    %v4755 = vunpack.c.h.b16 %v3996
    %v4756 = vunpack.c.l.b16 %v3997
    %v4757 = vunpack.c.h.b16 %v3997
    %v4758 = vunpack.c.l.b16 %v3998
    %v4759 = vunpack.c.h.b16 %v3998
    %v4760 = vunpack.c.l.b16 %v3999
    %v4761 = vunpack.c.h.b16 %v3999
    %v4762 = vunpack.c.l.b16 %v4000
    %v4763 = vunpack.c.h.b16 %v4000
    %v4764 = vunpack.c.l.b16 %v4001
    %v4765 = vunpack.c.h.b16 %v4001
    %v4766 = vunpack.c.l.b16 %v4002
    %v4767 = vunpack.c.h.b16 %v4002
    %v4768 = vunpack.c.l.b16 %v4003
    %v4769 = vunpack.c.h.b16 %v4003
    %v4770 = vunpack.c.l.b16 %v4004
    %v4771 = vunpack.c.h.b16 %v4004
    %v4772 = vunpack.c.l.b16 %v4005
    %v4773 = vunpack.c.h.b16 %v4005
    %v4774 = vunpack.c.l.b16 %v4006
    %v4775 = vunpack.c.h.b16 %v4006
    %v4776 = vunpack.c.l.b16 %v4007
    %v4777 = vunpack.c.h.b16 %v4007
    %v4778 = vunpack.c.l.b16 %v4008
    %v4779 = vunpack.c.h.b16 %v4008
    %v4780 = vunpack.c.l.b16 %v4009
    %v4781 = vunpack.c.h.b16 %v4009
    %v4782 = vunpack.c.l.b16 %v4010
    %v4783 = vunpack.c.h.b16 %v4010
    %v4784 = vunpack.c.l.b16 %v4011
    %v4785 = vunpack.c.h.b16 %v4011
    %v4786 = vunpack.c.l.b16 %v4012
    %v4787 = vunpack.c.h.b16 %v4012
    %v4788 = vunpack.c.l.b16 %v4013
    %v4789 = vunpack.c.h.b16 %v4013
    %v4790 = vunpack.c.l.b16 %v4014
    %v4791 = vunpack.c.h.b16 %v4014
    %v4792 = vunpack.c.l.b16 %v4015
    %v4793 = vunpack.c.h.b16 %v4015
    %v4794 = vunpack.c.l.b16 %v4016
    %v4795 = vunpack.c.h.b16 %v4016
    %v4796 = vunpack.c.l.b16 %v4017
    %v4797 = vunpack.c.h.b16 %v4017
    %v4798 = vunpack.c.l.b16 %v4018
    %v4799 = vunpack.c.h.b16 %v4018
    %v4800 = vunpack.c.l.b16 %v4019
    %v4801 = vunpack.c.h.b16 %v4019
    %v4802 = vunpack.c.l.b16 %v4020
    %v4803 = vunpack.c.h.b16 %v4020
    %v4804 = vunpack.c.l.b16 %v4021
    %v4805 = vunpack.c.h.b16 %v4021
    %v4806 = vunpack.c.l.b16 %v4022
    %v4807 = vunpack.c.h.b16 %v4022
    %v4808 = vunpack.c.l.b16 %v4023
    %v4809 = vunpack.c.h.b16 %v4023
    %v4810 = vunpack.c.l.b16 %v4024
    %v4811 = vunpack.c.h.b16 %v4024
    %v4812 = vunpack.c.l.b16 %v4025
    %v4813 = vunpack.c.h.b16 %v4025
    %v4814 = vunpack.c.l.b16 %v4026
    %v4815 = vunpack.c.h.b16 %v4026
    %v4816 = vunpack.c.l.b16 %v4027
    %v4817 = vunpack.c.h.b16 %v4027
    %v4818 = vpack.c.b16 %v4310, %v4306
    %v4819 = vpack.c.b16 %v4311, %v4307
    %v4820 = vpack.c.b16 %v4312, %v4308
    %v4821 = vpack.c.b16 %v4313, %v4309
    %v4822 = vpack.c.b16 %v4318, %v4314
    %v4823 = vpack.c.b16 %v4319, %v4315
    %v4824 = vpack.c.b16 %v4320, %v4316
    %v4825 = vpack.c.b16 %v4321, %v4317
    %v4826 = vpack.c.b16 %v4326, %v4322
    %v4827 = vpack.c.b16 %v4327, %v4323
    %v4828 = vpack.c.b16 %v4328, %v4324
    %v4829 = vpack.c.b16 %v4329, %v4325
    %v4830 = vpack.c.b16 %v4334, %v4330
    %v4831 = vpack.c.b16 %v4335, %v4331
    %v4832 = vpack.c.b16 %v4336, %v4332
    %v4833 = vpack.c.b16 %v4337, %v4333
    %v4834 = vpack.c.b16 %v4342, %v4338
    %v4835 = vpack.c.b16 %v4343, %v4339
    %v4836 = vpack.c.b16 %v4344, %v4340
    %v4837 = vpack.c.b16 %v4345, %v4341
    %v4838 = vpack.c.b16 %v4350, %v4346
    %v4839 = vpack.c.b16 %v4351, %v4347
    %v4840 = vpack.c.b16 %v4352, %v4348
    %v4841 = vpack.c.b16 %v4353, %v4349
    %v4842 = vpack.c.b16 %v4358, %v4354
    %v4843 = vpack.c.b16 %v4359, %v4355
    %v4844 = vpack.c.b16 %v4360, %v4356
    %v4845 = vpack.c.b16 %v4361, %v4357
    %v4846 = vpack.c.b16 %v4366, %v4362
    %v4847 = vpack.c.b16 %v4367, %v4363
    %v4848 = vpack.c.b16 %v4368, %v4364
    %v4849 = vpack.c.b16 %v4369, %v4365
    %v4850 = vpack.c.b16 %v4374, %v4370
    %v4851 = vpack.c.b16 %v4375, %v4371
    %v4852 = vpack.c.b16 %v4376, %v4372
    %v4853 = vpack.c.b16 %v4377, %v4373
    %v4854 = vpack.c.b16 %v4382, %v4378
    %v4855 = vpack.c.b16 %v4383, %v4379
    %v4856 = vpack.c.b16 %v4384, %v4380
    %v4857 = vpack.c.b16 %v4385, %v4381
    %v4858 = vpack.c.b16 %v4390, %v4386
    %v4859 = vpack.c.b16 %v4391, %v4387
    %v4860 = vpack.c.b16 %v4392, %v4388
    %v4861 = vpack.c.b16 %v4393, %v4389
    %v4862 = vpack.c.b16 %v4398, %v4394
    %v4863 = vpack.c.b16 %v4399, %v4395
    %v4864 = vpack.c.b16 %v4400, %v4396
    %v4865 = vpack.c.b16 %v4401, %v4397
    %v4866 = vpack.c.b16 %v4406, %v4402
    %v4867 = vpack.c.b16 %v4407, %v4403
    %v4868 = vpack.c.b16 %v4408, %v4404
    %v4869 = vpack.c.b16 %v4409, %v4405
    %v4870 = vpack.c.b16 %v4414, %v4410
    %v4871 = vpack.c.b16 %v4415, %v4411
    %v4872 = vpack.c.b16 %v4416, %v4412
    %v4873 = vpack.c.b16 %v4417, %v4413
    %v4874 = vpack.c.b16 %v4422, %v4418
    %v4875 = vpack.c.b16 %v4423, %v4419
    %v4876 = vpack.c.b16 %v4424, %v4420
    %v4877 = vpack.c.b16 %v4425, %v4421
    %v4878 = vpack.c.b16 %v4430, %v4426
    %v4879 = vpack.c.b16 %v4431, %v4427
    %v4880 = vpack.c.b16 %v4432, %v4428
    %v4881 = vpack.c.b16 %v4433, %v4429
    %v4882 = vpack.c.b16 %v4438, %v4434
    %v4883 = vpack.c.b16 %v4439, %v4435
    %v4884 = vpack.c.b16 %v4440, %v4436
    %v4885 = vpack.c.b16 %v4441, %v4437
    %v4886 = vpack.c.b16 %v4446, %v4442
    %v4887 = vpack.c.b16 %v4447, %v4443
    %v4888 = vpack.c.b16 %v4448, %v4444
    %v4889 = vpack.c.b16 %v4449, %v4445
    %v4890 = vpack.c.b16 %v4454, %v4450
    %v4891 = vpack.c.b16 %v4455, %v4451
    %v4892 = vpack.c.b16 %v4456, %v4452
    %v4893 = vpack.c.b16 %v4457, %v4453
    %v4894 = vpack.c.b16 %v4462, %v4458
    %v4895 = vpack.c.b16 %v4463, %v4459
    %v4896 = vpack.c.b16 %v4464, %v4460
    %v4897 = vpack.c.b16 %v4465, %v4461
    %v4898 = vpack.c.b16 %v4470, %v4466
    %v4899 = vpack.c.b16 %v4471, %v4467
    %v4900 = vpack.c.b16 %v4472, %v4468
    %v4901 = vpack.c.b16 %v4473, %v4469
    %v4902 = vpack.c.b16 %v4478, %v4474
    %v4903 = vpack.c.b16 %v4479, %v4475
    %v4904 = vpack.c.b16 %v4480, %v4476
    %v4905 = vpack.c.b16 %v4481, %v4477
    %v4906 = vpack.c.b16 %v4486, %v4482
    %v4907 = vpack.c.b16 %v4487, %v4483
    %v4908 = vpack.c.b16 %v4488, %v4484
    %v4909 = vpack.c.b16 %v4489, %v4485
    %v4910 = vpack.c.b16 %v4494, %v4490
    %v4911 = vpack.c.b16 %v4495, %v4491
    %v4912 = vpack.c.b16 %v4496, %v4492
    %v4913 = vpack.c.b16 %v4497, %v4493
    %v4914 = vpack.c.b16 %v4502, %v4498
    %v4915 = vpack.c.b16 %v4503, %v4499
    %v4916 = vpack.c.b16 %v4504, %v4500
    %v4917 = vpack.c.b16 %v4505, %v4501
    %v4918 = vpack.c.b16 %v4510, %v4506
    %v4919 = vpack.c.b16 %v4511, %v4507
    %v4920 = vpack.c.b16 %v4512, %v4508
    %v4921 = vpack.c.b16 %v4513, %v4509
    %v4922 = vpack.c.b16 %v4518, %v4514
    %v4923 = vpack.c.b16 %v4519, %v4515
    %v4924 = vpack.c.b16 %v4520, %v4516
    %v4925 = vpack.c.b16 %v4521, %v4517
    %v4926 = vpack.c.b16 %v4526, %v4522
    %v4927 = vpack.c.b16 %v4527, %v4523
    %v4928 = vpack.c.b16 %v4528, %v4524
    %v4929 = vpack.c.b16 %v4529, %v4525
    %v4930 = vpack.c.b16 %v4534, %v4530
    %v4931 = vpack.c.b16 %v4535, %v4531
    %v4932 = vpack.c.b16 %v4536, %v4532
    %v4933 = vpack.c.b16 %v4537, %v4533
    %v4934 = vpack.c.b16 %v4542, %v4538
    %v4935 = vpack.c.b16 %v4543, %v4539
    %v4936 = vpack.c.b16 %v4544, %v4540
    %v4937 = vpack.c.b16 %v4545, %v4541
    %v4938 = vpack.c.b16 %v4550, %v4546
    %v4939 = vpack.c.b16 %v4551, %v4547
    %v4940 = vpack.c.b16 %v4552, %v4548
    %v4941 = vpack.c.b16 %v4553, %v4549
    %v4942 = vpack.c.b16 %v4558, %v4554
    %v4943 = vpack.c.b16 %v4559, %v4555
    %v4944 = vpack.c.b16 %v4560, %v4556
    %v4945 = vpack.c.b16 %v4561, %v4557
    %v4946 = vpack.c.b16 %v4566, %v4562
    %v4947 = vpack.c.b16 %v4567, %v4563
    %v4948 = vpack.c.b16 %v4568, %v4564
    %v4949 = vpack.c.b16 %v4569, %v4565
    %v4950 = vpack.c.b16 %v4574, %v4570
    %v4951 = vpack.c.b16 %v4575, %v4571
    %v4952 = vpack.c.b16 %v4576, %v4572
    %v4953 = vpack.c.b16 %v4577, %v4573
    %v4954 = vpack.c.b16 %v4582, %v4578
    %v4955 = vpack.c.b16 %v4583, %v4579
    %v4956 = vpack.c.b16 %v4584, %v4580
    %v4957 = vpack.c.b16 %v4585, %v4581
    %v4958 = vpack.c.b16 %v4590, %v4586
    %v4959 = vpack.c.b16 %v4591, %v4587
    %v4960 = vpack.c.b16 %v4592, %v4588
    %v4961 = vpack.c.b16 %v4593, %v4589
    %v4962 = vpack.c.b16 %v4598, %v4594
    %v4963 = vpack.c.b16 %v4599, %v4595
    %v4964 = vpack.c.b16 %v4600, %v4596
    %v4965 = vpack.c.b16 %v4601, %v4597
    %v4966 = vpack.c.b16 %v4606, %v4602
    %v4967 = vpack.c.b16 %v4607, %v4603
    %v4968 = vpack.c.b16 %v4608, %v4604
    %v4969 = vpack.c.b16 %v4609, %v4605
    %v4970 = vpack.c.b16 %v4614, %v4610
    %v4971 = vpack.c.b16 %v4615, %v4611
    %v4972 = vpack.c.b16 %v4616, %v4612
    %v4973 = vpack.c.b16 %v4617, %v4613
    %v4974 = vpack.c.b16 %v4622, %v4618
    %v4975 = vpack.c.b16 %v4623, %v4619
    %v4976 = vpack.c.b16 %v4624, %v4620
    %v4977 = vpack.c.b16 %v4625, %v4621
    %v4978 = vpack.c.b16 %v4630, %v4626
    %v4979 = vpack.c.b16 %v4631, %v4627
    %v4980 = vpack.c.b16 %v4632, %v4628
    %v4981 = vpack.c.b16 %v4633, %v4629
    %v4982 = vpack.c.b16 %v4638, %v4634
    %v4983 = vpack.c.b16 %v4639, %v4635
    %v4984 = vpack.c.b16 %v4640, %v4636
    %v4985 = vpack.c.b16 %v4641, %v4637
    %v4986 = vpack.c.b16 %v4646, %v4642
    %v4987 = vpack.c.b16 %v4647, %v4643
    %v4988 = vpack.c.b16 %v4648, %v4644
    %v4989 = vpack.c.b16 %v4649, %v4645
    %v4990 = vpack.c.b16 %v4654, %v4650
    %v4991 = vpack.c.b16 %v4655, %v4651
    %v4992 = vpack.c.b16 %v4656, %v4652
    %v4993 = vpack.c.b16 %v4657, %v4653
    %v4994 = vpack.c.b16 %v4662, %v4658
    %v4995 = vpack.c.b16 %v4663, %v4659
    %v4996 = vpack.c.b16 %v4664, %v4660
    %v4997 = vpack.c.b16 %v4665, %v4661
    %v4998 = vpack.c.b16 %v4670, %v4666
    %v4999 = vpack.c.b16 %v4671, %v4667
    %v5000 = vpack.c.b16 %v4672, %v4668
    %v5001 = vpack.c.b16 %v4673, %v4669
    %v5002 = vpack.c.b16 %v4678, %v4674
    %v5003 = vpack.c.b16 %v4679, %v4675
    %v5004 = vpack.c.b16 %v4680, %v4676
    %v5005 = vpack.c.b16 %v4681, %v4677
    %v5006 = vpack.c.b16 %v4686, %v4682
    %v5007 = vpack.c.b16 %v4687, %v4683
    %v5008 = vpack.c.b16 %v4688, %v4684
    %v5009 = vpack.c.b16 %v4689, %v4685
    %v5010 = vpack.c.b16 %v4694, %v4690
    %v5011 = vpack.c.b16 %v4695, %v4691
    %v5012 = vpack.c.b16 %v4696, %v4692
    %v5013 = vpack.c.b16 %v4697, %v4693
    %v5014 = vpack.c.b16 %v4702, %v4698
    %v5015 = vpack.c.b16 %v4703, %v4699
    %v5016 = vpack.c.b16 %v4704, %v4700
    %v5017 = vpack.c.b16 %v4705, %v4701
    %v5018 = vpack.c.b16 %v4710, %v4706
    %v5019 = vpack.c.b16 %v4711, %v4707
    %v5020 = vpack.c.b16 %v4712, %v4708
    %v5021 = vpack.c.b16 %v4713, %v4709
    %v5022 = vpack.c.b16 %v4718, %v4714
    %v5023 = vpack.c.b16 %v4719, %v4715
    %v5024 = vpack.c.b16 %v4720, %v4716
    %v5025 = vpack.c.b16 %v4721, %v4717
    %v5026 = vpack.c.b16 %v4726, %v4722
    %v5027 = vpack.c.b16 %v4727, %v4723
    %v5028 = vpack.c.b16 %v4728, %v4724
    %v5029 = vpack.c.b16 %v4729, %v4725
    %v5030 = vpack.c.b16 %v4734, %v4730
    %v5031 = vpack.c.b16 %v4735, %v4731
    %v5032 = vpack.c.b16 %v4736, %v4732
    %v5033 = vpack.c.b16 %v4737, %v4733
    %v5034 = vpack.c.b16 %v4742, %v4738
    %v5035 = vpack.c.b16 %v4743, %v4739
    %v5036 = vpack.c.b16 %v4744, %v4740
    %v5037 = vpack.c.b16 %v4745, %v4741
    %v5038 = vpack.c.b16 %v4750, %v4746
    %v5039 = vpack.c.b16 %v4751, %v4747
    %v5040 = vpack.c.b16 %v4752, %v4748
    %v5041 = vpack.c.b16 %v4753, %v4749
    %v5042 = vpack.c.b16 %v4758, %v4754
    %v5043 = vpack.c.b16 %v4759, %v4755
    %v5044 = vpack.c.b16 %v4760, %v4756
    %v5045 = vpack.c.b16 %v4761, %v4757
    %v5046 = vpack.c.b16 %v4766, %v4762
    %v5047 = vpack.c.b16 %v4767, %v4763
    %v5048 = vpack.c.b16 %v4768, %v4764
    %v5049 = vpack.c.b16 %v4769, %v4765
    %v5050 = vpack.c.b16 %v4774, %v4770
    %v5051 = vpack.c.b16 %v4775, %v4771
    %v5052 = vpack.c.b16 %v4776, %v4772
    %v5053 = vpack.c.b16 %v4777, %v4773
    %v5054 = vpack.c.b16 %v4782, %v4778
    %v5055 = vpack.c.b16 %v4783, %v4779
    %v5056 = vpack.c.b16 %v4784, %v4780
    %v5057 = vpack.c.b16 %v4785, %v4781
    %v5058 = vpack.c.b16 %v4790, %v4786
    %v5059 = vpack.c.b16 %v4791, %v4787
    %v5060 = vpack.c.b16 %v4792, %v4788
    %v5061 = vpack.c.b16 %v4793, %v4789
    %v5062 = vpack.c.b16 %v4798, %v4794
    %v5063 = vpack.c.b16 %v4799, %v4795
    %v5064 = vpack.c.b16 %v4800, %v4796
    %v5065 = vpack.c.b16 %v4801, %v4797
    %v5066 = vpack.c.b16 %v4806, %v4802
    %v5067 = vpack.c.b16 %v4807, %v4803
    %v5068 = vpack.c.b16 %v4808, %v4804
    %v5069 = vpack.c.b16 %v4809, %v4805
    %v5070 = vpack.c.b16 %v4814, %v4810
    %v5071 = vpack.c.b16 %v4815, %v4811
    %v5072 = vpack.c.b16 %v4816, %v4812
    %v5073 = vpack.c.b16 %v4817, %v4813
    %5330 = vmatprep.subr.bf16.mxu0 %v4819
    %5331 = vmatpush1.bf16.msra.mxu0 %v4818
    %5332 = vmatprep.subr.bf16.mxu0 %v4823
    %5333 = vmatpush1.bf16.msra.mxu0 %v4822
    %5334 = vmatprep.subr.bf16.mxu0 %v4827
    %5335 = vmatpush1.bf16.msra.mxu0 %v4826
    %5336 = vmatprep.subr.bf16.mxu0 %v4831
    %5337 = vmatpush1.bf16.msra.mxu0 %v4830
    %5338 = vmatprep.subr.bf16.mxu0 %v4835
    %5339 = vmatpush1.bf16.msra.mxu0 %v4834
    %5340 = vmatprep.subr.bf16.mxu0 %v4839
    %5341 = vmatpush1.bf16.msra.mxu0 %v4838
    %5342 = vmatprep.subr.bf16.mxu0 %v4843
    %5343 = vmatpush1.bf16.msra.mxu0 %v4842
    %5344 = vmatprep.subr.bf16.mxu0 %v4847
    %5345 = vmatpush1.bf16.msra.mxu0 %v4846
    %5346 = vmatprep.subr.bf16.mxu0 %v4851
    %5347 = vmatpush1.bf16.msra.mxu0 %v4850
    %5348 = vmatprep.subr.bf16.mxu0 %v4855
    %5349 = vmatpush1.bf16.msra.mxu0 %v4854
    %5350 = vmatprep.subr.bf16.mxu0 %v4859
    %5351 = vmatpush1.bf16.msra.mxu0 %v4858
    %5352 = vmatprep.subr.bf16.mxu0 %v4863
    %5353 = vmatpush1.bf16.msra.mxu0 %v4862
    %5354 = vmatprep.subr.bf16.mxu0 %v4867
    %5355 = vmatpush1.bf16.msra.mxu0 %v4866
    %5356 = vmatprep.subr.bf16.mxu0 %v4871
    %5357 = vmatpush1.bf16.msra.mxu0 %v4870
    %5358 = vmatprep.subr.bf16.mxu0 %v4875
    %5359 = vmatpush1.bf16.msra.mxu0 %v4874
    %5360 = vmatprep.subr.bf16.mxu0 %v4879
    %5361 = vmatpush1.bf16.msra.mxu0 %v4878
    %5362 = vmatprep.mubr.bf16.mxu0 %v3765
    %5363 = vmatmul.mubr.bf16.gmra.mrb[0].mxu0 %v3764
    %v5364 = vpop.f32.mrb[0].mxu0
    %v5365 = vadd.f32 %v4033, %v5364
    %v5366 = vpop.f32.mrb[0].mxu0
    %v5367 = vadd.f32 %v4037, %v5366
    %v5368 = vpop.f32.mrb[0].mxu0
    %v5369 = vpop.f32.mrb[0].mxu0
    %5370 = vdwg.mxu0
    %5371 = vmatprep.subr.bf16.mxu0 %v4883
    %5372 = vmatpush1.bf16.msra.mxu0 %v4882
    %5373 = vmatprep.subr.bf16.mxu0 %v4887
    %5374 = vmatpush1.bf16.msra.mxu0 %v4886
    %5375 = vmatprep.subr.bf16.mxu0 %v4891
    %5376 = vmatpush1.bf16.msra.mxu0 %v4890
    %5377 = vmatprep.subr.bf16.mxu0 %v4895
    %5378 = vmatpush1.bf16.msra.mxu0 %v4894
    %5379 = vmatprep.subr.bf16.mxu0 %v4899
    %5380 = vmatpush1.bf16.msra.mxu0 %v4898
    %5381 = vmatprep.subr.bf16.mxu0 %v4903
    %5382 = vmatpush1.bf16.msra.mxu0 %v4902
    %5383 = vmatprep.subr.bf16.mxu0 %v4907
    %5384 = vmatpush1.bf16.msra.mxu0 %v4906
    %5385 = vmatprep.subr.bf16.mxu0 %v4911
    %5386 = vmatpush1.bf16.msra.mxu0 %v4910
    %5387 = vmatprep.subr.bf16.mxu0 %v4915
    %5388 = vmatpush1.bf16.msra.mxu0 %v4914
    %5389 = vmatprep.subr.bf16.mxu0 %v4919
    %5390 = vmatpush1.bf16.msra.mxu0 %v4918
    %5391 = vmatprep.subr.bf16.mxu0 %v4923
    %5392 = vmatpush1.bf16.msra.mxu0 %v4922
    %5393 = vmatprep.subr.bf16.mxu0 %v4927
    %5394 = vmatpush1.bf16.msra.mxu0 %v4926
    %5395 = vmatprep.subr.bf16.mxu0 %v4931
    %5396 = vmatpush1.bf16.msra.mxu0 %v4930
    %5397 = vmatprep.subr.bf16.mxu0 %v4935
    %5398 = vmatpush1.bf16.msra.mxu0 %v4934
    %5399 = vmatprep.subr.bf16.mxu0 %v4939
    %5400 = vmatpush1.bf16.msra.mxu0 %v4938
    %5401 = vmatprep.subr.bf16.mxu0 %v4943
    %5402 = vmatpush1.bf16.msra.mxu0 %v4942
    %5403 = vmatprep.mubr.bf16.mxu0 %v3767
    %5404 = vmatmul.mubr.bf16.gmra.mrb[0].mxu0 %v3766
    %v5405 = vpop.f32.mrb[0].mxu0
    %v5406 = vadd.f32 %v5365, %v5405
    %v5407 = vpop.f32.mrb[0].mxu0
    %v5408 = vadd.f32 %v5367, %v5407
    %v5409 = vpop.f32.mrb[0].mxu0
    %v5410 = vpop.f32.mrb[0].mxu0
    %5411 = vdwg.mxu0
    %5412 = vmatprep.subr.bf16.mxu0 %v4947
    %5413 = vmatpush1.bf16.msra.mxu0 %v4946
    %5414 = vmatprep.subr.bf16.mxu0 %v4951
    %5415 = vmatpush1.bf16.msra.mxu0 %v4950
    %5416 = vmatprep.subr.bf16.mxu0 %v4955
    %5417 = vmatpush1.bf16.msra.mxu0 %v4954
    %5418 = vmatprep.subr.bf16.mxu0 %v4959
    %5419 = vmatpush1.bf16.msra.mxu0 %v4958
    %5420 = vmatprep.subr.bf16.mxu0 %v4963
    %5421 = vmatpush1.bf16.msra.mxu0 %v4962
    %5422 = vmatprep.subr.bf16.mxu0 %v4967
    %5423 = vmatpush1.bf16.msra.mxu0 %v4966
    %5424 = vmatprep.subr.bf16.mxu0 %v4971
    %5425 = vmatpush1.bf16.msra.mxu0 %v4970
    %5426 = vmatprep.subr.bf16.mxu0 %v4975
    %5427 = vmatpush1.bf16.msra.mxu0 %v4974
    %5428 = vmatprep.subr.bf16.mxu0 %v4979
    %5429 = vmatpush1.bf16.msra.mxu0 %v4978
    %5430 = vmatprep.subr.bf16.mxu0 %v4983
    %5431 = vmatpush1.bf16.msra.mxu0 %v4982
    %5432 = vmatprep.subr.bf16.mxu0 %v4987
    %5433 = vmatpush1.bf16.msra.mxu0 %v4986
    %5434 = vmatprep.subr.bf16.mxu0 %v4991
    %5435 = vmatpush1.bf16.msra.mxu0 %v4990
    %5436 = vmatprep.subr.bf16.mxu0 %v4995
    %5437 = vmatpush1.bf16.msra.mxu0 %v4994
    %5438 = vmatprep.subr.bf16.mxu0 %v4999
    %5439 = vmatpush1.bf16.msra.mxu0 %v4998
    %5440 = vmatprep.subr.bf16.mxu0 %v5003
    %5441 = vmatpush1.bf16.msra.mxu0 %v5002
    %5442 = vmatprep.subr.bf16.mxu0 %v5007
    %5443 = vmatpush1.bf16.msra.mxu0 %v5006
    %5444 = vmatprep.mubr.bf16.mxu0 %v3769
    %5445 = vmatmul.mubr.bf16.gmra.mrb[0].mxu0 %v3768
    %v5446 = vpop.f32.mrb[0].mxu0
    %v5447 = vadd.f32 %v5406, %v5446
    %v5448 = vpop.f32.mrb[0].mxu0
    %v5449 = vadd.f32 %v5408, %v5448
    %v5450 = vpop.f32.mrb[0].mxu0
    %v5451 = vpop.f32.mrb[0].mxu0
    %5452 = vdwg.mxu0
    %5453 = vmatprep.subr.bf16.mxu0 %v5011
    %5454 = vmatpush1.bf16.msra.mxu0 %v5010
    %5455 = vmatprep.subr.bf16.mxu0 %v5015
    %5456 = vmatpush1.bf16.msra.mxu0 %v5014
    %5457 = vmatprep.subr.bf16.mxu0 %v5019
    %5458 = vmatpush1.bf16.msra.mxu0 %v5018
    %5459 = vmatprep.subr.bf16.mxu0 %v5023
    %5460 = vmatpush1.bf16.msra.mxu0 %v5022
    %5461 = vmatprep.subr.bf16.mxu0 %v5027
    %5462 = vmatpush1.bf16.msra.mxu0 %v5026
    %5463 = vmatprep.subr.bf16.mxu0 %v5031
    %5464 = vmatpush1.bf16.msra.mxu0 %v5030
    %5465 = vmatprep.subr.bf16.mxu0 %v5035
    %5466 = vmatpush1.bf16.msra.mxu0 %v5034
    %5467 = vmatprep.subr.bf16.mxu0 %v5039
    %5468 = vmatpush1.bf16.msra.mxu0 %v5038
    %5469 = vmatprep.subr.bf16.mxu0 %v5043
    %5470 = vmatpush1.bf16.msra.mxu0 %v5042
    %5471 = vmatprep.subr.bf16.mxu0 %v5047
    %5472 = vmatpush1.bf16.msra.mxu0 %v5046
    %5473 = vmatprep.subr.bf16.mxu0 %v5051
    %5474 = vmatpush1.bf16.msra.mxu0 %v5050
    %5475 = vmatprep.subr.bf16.mxu0 %v5055
    %5476 = vmatpush1.bf16.msra.mxu0 %v5054
    %5477 = vmatprep.subr.bf16.mxu0 %v5059
    %5478 = vmatpush1.bf16.msra.mxu0 %v5058
    %5479 = vmatprep.subr.bf16.mxu0 %v5063
    %5480 = vmatpush1.bf16.msra.mxu0 %v5062
    %5481 = vmatprep.subr.bf16.mxu0 %v5067
    %5482 = vmatpush1.bf16.msra.mxu0 %v5066
    %5483 = vmatprep.subr.bf16.mxu0 %v5071
    %5484 = vmatpush1.bf16.msra.mxu0 %v5070
    %5485 = vmatprep.mubr.bf16.mxu0 %v3771
    %5486 = vmatmul.mubr.bf16.gmra.mrb[0].mxu0 %v3770
    %v5487 = vpop.f32.mrb[0].mxu0
    %v5488 = vadd.f32 %v5447, %v5487
    %v5489 = vpop.f32.mrb[0].mxu0
    %v5490 = vadd.f32 %v5449, %v5489
    %v5491 = vpop.f32.mrb[0].mxu0
    %v5492 = vpop.f32.mrb[0].mxu0
    %5493 = vdwg.mxu0
    %5494 = vmatprep.subr.bf16.mxu0 %v4821
    %5495 = vmatpush1.bf16.msra.mxu0 %v4820
    %5496 = vmatprep.subr.bf16.mxu0 %v4825
    %5497 = vmatpush1.bf16.msra.mxu0 %v4824
    %5498 = vmatprep.subr.bf16.mxu0 %v4829
    %5499 = vmatpush1.bf16.msra.mxu0 %v4828
    %5500 = vmatprep.subr.bf16.mxu0 %v4833
    %5501 = vmatpush1.bf16.msra.mxu0 %v4832
    %5502 = vmatprep.subr.bf16.mxu0 %v4837
    %5503 = vmatpush1.bf16.msra.mxu0 %v4836
    %5504 = vmatprep.subr.bf16.mxu0 %v4841
    %5505 = vmatpush1.bf16.msra.mxu0 %v4840
    %5506 = vmatprep.subr.bf16.mxu0 %v4845
    %5507 = vmatpush1.bf16.msra.mxu0 %v4844
    %5508 = vmatprep.subr.bf16.mxu0 %v4849
    %5509 = vmatpush1.bf16.msra.mxu0 %v4848
    %5510 = vmatprep.subr.bf16.mxu0 %v4853
    %5511 = vmatpush1.bf16.msra.mxu0 %v4852
    %5512 = vmatprep.subr.bf16.mxu0 %v4857
    %5513 = vmatpush1.bf16.msra.mxu0 %v4856
    %5514 = vmatprep.subr.bf16.mxu0 %v4861
    %5515 = vmatpush1.bf16.msra.mxu0 %v4860
    %5516 = vmatprep.subr.bf16.mxu0 %v4865
    %5517 = vmatpush1.bf16.msra.mxu0 %v4864
    %5518 = vmatprep.subr.bf16.mxu0 %v4869
    %5519 = vmatpush1.bf16.msra.mxu0 %v4868
    %5520 = vmatprep.subr.bf16.mxu0 %v4873
    %5521 = vmatpush1.bf16.msra.mxu0 %v4872
    %5522 = vmatprep.subr.bf16.mxu0 %v4877
    %5523 = vmatpush1.bf16.msra.mxu0 %v4876
    %5524 = vmatprep.subr.bf16.mxu0 %v4881
    %5525 = vmatpush1.bf16.msra.mxu0 %v4880
    %5526 = vmatprep.mubr.bf16.mxu0 %v3765
    %5527 = vmatmul.mubr.bf16.gmra.mrb[0].mxu0 %v3764
    %v5528 = vpop.f32.mrb[0].mxu0
    %v5529 = vadd.f32 %v4041, %v5528
    %v5530 = vpop.f32.mrb[0].mxu0
    %v5531 = vadd.f32 %v4045, %v5530
    %v5532 = vpop.f32.mrb[0].mxu0
    %v5533 = vpop.f32.mrb[0].mxu0
    %5534 = vdwg.mxu0
    %5535 = vmatprep.subr.bf16.mxu0 %v4885
    %5536 = vmatpush1.bf16.msra.mxu0 %v4884
    %5537 = vmatprep.subr.bf16.mxu0 %v4889
    %5538 = vmatpush1.bf16.msra.mxu0 %v4888
    %5539 = vmatprep.subr.bf16.mxu0 %v4893
    %5540 = vmatpush1.bf16.msra.mxu0 %v4892
    %5541 = vmatprep.subr.bf16.mxu0 %v4897
    %5542 = vmatpush1.bf16.msra.mxu0 %v4896
    %5543 = vmatprep.subr.bf16.mxu0 %v4901
    %5544 = vmatpush1.bf16.msra.mxu0 %v4900
    %5545 = vmatprep.subr.bf16.mxu0 %v4905
    %5546 = vmatpush1.bf16.msra.mxu0 %v4904
    %5547 = vmatprep.subr.bf16.mxu0 %v4909
    %5548 = vmatpush1.bf16.msra.mxu0 %v4908
    %5549 = vmatprep.subr.bf16.mxu0 %v4913
    %5550 = vmatpush1.bf16.msra.mxu0 %v4912
    %5551 = vmatprep.subr.bf16.mxu0 %v4917
    %5552 = vmatpush1.bf16.msra.mxu0 %v4916
    %5553 = vmatprep.subr.bf16.mxu0 %v4921
    %5554 = vmatpush1.bf16.msra.mxu0 %v4920
    %5555 = vmatprep.subr.bf16.mxu0 %v4925
    %5556 = vmatpush1.bf16.msra.mxu0 %v4924
    %5557 = vmatprep.subr.bf16.mxu0 %v4929
    %5558 = vmatpush1.bf16.msra.mxu0 %v4928
    %5559 = vmatprep.subr.bf16.mxu0 %v4933
    %5560 = vmatpush1.bf16.msra.mxu0 %v4932
    %5561 = vmatprep.subr.bf16.mxu0 %v4937
    %5562 = vmatpush1.bf16.msra.mxu0 %v4936
    %5563 = vmatprep.subr.bf16.mxu0 %v4941
    %5564 = vmatpush1.bf16.msra.mxu0 %v4940
    %5565 = vmatprep.subr.bf16.mxu0 %v4945
    %5566 = vmatpush1.bf16.msra.mxu0 %v4944
    %5567 = vmatprep.mubr.bf16.mxu0 %v3767
    %5568 = vmatmul.mubr.bf16.gmra.mrb[0].mxu0 %v3766
    %v5569 = vpop.f32.mrb[0].mxu0
    %v5570 = vadd.f32 %v5529, %v5569
    %v5571 = vpop.f32.mrb[0].mxu0
    %v5572 = vadd.f32 %v5531, %v5571
    %v5573 = vpop.f32.mrb[0].mxu0
    %v5574 = vpop.f32.mrb[0].mxu0
    %5575 = vdwg.mxu0
    %5576 = vmatprep.subr.bf16.mxu0 %v4949
    %5577 = vmatpush1.bf16.msra.mxu0 %v4948
    %5578 = vmatprep.subr.bf16.mxu0 %v4953
    %5579 = vmatpush1.bf16.msra.mxu0 %v4952
    %5580 = vmatprep.subr.bf16.mxu0 %v4957
    %5581 = vmatpush1.bf16.msra.mxu0 %v4956
    %5582 = vmatprep.subr.bf16.mxu0 %v4961
    %5583 = vmatpush1.bf16.msra.mxu0 %v4960
    %5584 = vmatprep.subr.bf16.mxu0 %v4965
    %5585 = vmatpush1.bf16.msra.mxu0 %v4964
    %5586 = vmatprep.subr.bf16.mxu0 %v4969
    %5587 = vmatpush1.bf16.msra.mxu0 %v4968
    %5588 = vmatprep.subr.bf16.mxu0 %v4973
    %5589 = vmatpush1.bf16.msra.mxu0 %v4972
    %5590 = vmatprep.subr.bf16.mxu0 %v4977
    %5591 = vmatpush1.bf16.msra.mxu0 %v4976
    %5592 = vmatprep.subr.bf16.mxu0 %v4981
    %5593 = vmatpush1.bf16.msra.mxu0 %v4980
    %5594 = vmatprep.subr.bf16.mxu0 %v4985
    %5595 = vmatpush1.bf16.msra.mxu0 %v4984
    %5596 = vmatprep.subr.bf16.mxu0 %v4989
    %5597 = vmatpush1.bf16.msra.mxu0 %v4988
    %5598 = vmatprep.subr.bf16.mxu0 %v4993
    %5599 = vmatpush1.bf16.msra.mxu0 %v4992
    %5600 = vmatprep.subr.bf16.mxu0 %v4997
    %5601 = vmatpush1.bf16.msra.mxu0 %v4996
    %5602 = vmatprep.subr.bf16.mxu0 %v5001
    %5603 = vmatpush1.bf16.msra.mxu0 %v5000
    %5604 = vmatprep.subr.bf16.mxu0 %v5005
    %5605 = vmatpush1.bf16.msra.mxu0 %v5004
    %5606 = vmatprep.subr.bf16.mxu0 %v5009
    %5607 = vmatpush1.bf16.msra.mxu0 %v5008
    %5608 = vmatprep.mubr.bf16.mxu0 %v3769
    %5609 = vmatmul.mubr.bf16.gmra.mrb[0].mxu0 %v3768
    %v5610 = vpop.f32.mrb[0].mxu0
    %v5611 = vadd.f32 %v5570, %v5610
    %v5612 = vpop.f32.mrb[0].mxu0
    %v5613 = vadd.f32 %v5572, %v5612
    %v5614 = vpop.f32.mrb[0].mxu0
    %v5615 = vpop.f32.mrb[0].mxu0
    %5616 = vdwg.mxu0
    %5617 = vmatprep.subr.bf16.mxu0 %v5013
    %5618 = vmatpush1.bf16.msra.mxu0 %v5012
    %5619 = vmatprep.subr.bf16.mxu0 %v5017
    %5620 = vmatpush1.bf16.msra.mxu0 %v5016
    %5621 = vmatprep.subr.bf16.mxu0 %v5021
    %5622 = vmatpush1.bf16.msra.mxu0 %v5020
    %5623 = vmatprep.subr.bf16.mxu0 %v5025
    %5624 = vmatpush1.bf16.msra.mxu0 %v5024
    %5625 = vmatprep.subr.bf16.mxu0 %v5029
    %5626 = vmatpush1.bf16.msra.mxu0 %v5028
    %5627 = vmatprep.subr.bf16.mxu0 %v5033
    %5628 = vmatpush1.bf16.msra.mxu0 %v5032
    %5629 = vmatprep.subr.bf16.mxu0 %v5037
    %5630 = vmatpush1.bf16.msra.mxu0 %v5036
    %5631 = vmatprep.subr.bf16.mxu0 %v5041
    %5632 = vmatpush1.bf16.msra.mxu0 %v5040
    %5633 = vmatprep.subr.bf16.mxu0 %v5045
    %5634 = vmatpush1.bf16.msra.mxu0 %v5044
    %5635 = vmatprep.subr.bf16.mxu0 %v5049
    %5636 = vmatpush1.bf16.msra.mxu0 %v5048
    %5637 = vmatprep.subr.bf16.mxu0 %v5053
    %5638 = vmatpush1.bf16.msra.mxu0 %v5052
    %5639 = vmatprep.subr.bf16.mxu0 %v5057
    %5640 = vmatpush1.bf16.msra.mxu0 %v5056
    %5641 = vmatprep.subr.bf16.mxu0 %v5061
    %5642 = vmatpush1.bf16.msra.mxu0 %v5060
    %5643 = vmatprep.subr.bf16.mxu0 %v5065
    %5644 = vmatpush1.bf16.msra.mxu0 %v5064
    %5645 = vmatprep.subr.bf16.mxu0 %v5069
    %5646 = vmatpush1.bf16.msra.mxu0 %v5068
    %5647 = vmatprep.subr.bf16.mxu0 %v5073
    %5648 = vmatpush1.bf16.msra.mxu0 %v5072
    %5649 = vmatprep.mubr.bf16.mxu0 %v3771
    %5650 = vmatmul.mubr.bf16.gmra.mrb[0].mxu0 %v3770
    %v5651 = vpop.f32.mrb[0].mxu0
    %v5652 = vadd.f32 %v5611, %v5651
    %v5653 = vpop.f32.mrb[0].mxu0
    %v5654 = vadd.f32 %v5613, %v5653
    %v5655 = vpop.f32.mrb[0].mxu0
    %v5656 = vpop.f32.mrb[0].mxu0
    %5657 = vdwg.mxu0
    %v5658 = vmax.f32 %v5488, 0.0
    %v5659 = vmax.f32 %v5490, 0.0
    %v5660 = vmax.f32 %v5652, 0.0
    %v5661 = vmax.f32 %v5654, 0.0
    %v5662 = vpack.c.bf16 %v5658, %v5658
    %v5663 = vpack.c.bf16 %v5659, %v5659
    %v5664 = vpack.c.bf16 %v5660, %v5660
    %v5665 = vpack.c.bf16 %v5661, %v5661
    %v5666 = vld [vmem:[#allocation7] sm:$0xff]
    %v5667 = vld [vmem:[#allocation7 + $0x8] sm:$0xff]
    %v5668 = vld [vmem:[#allocation7 + $0x10] sm:$0xff]
    %v5669 = vld [vmem:[#allocation7 + $0x18] sm:$0xff]
    %v5670 = vld [vmem:[#allocation7 + $0x20] sm:$0xff]
    %v5671 = vld [vmem:[#allocation7 + $0x28] sm:$0xff]
    %v5672 = vld [vmem:[#allocation7 + $0x30] sm:$0xff]
    %v5673 = vld [vmem:[#allocation7 + $0x38] sm:$0xff]
    %v5674 = vld [vmem:[#allocation7 + $0x40] sm:$0xff]
    %v5675 = vld [vmem:[#allocation7 + $0x48] sm:$0xff]
    %v5676 = vld [vmem:[#allocation7 + $0x50] sm:$0xff]
    %v5677 = vld [vmem:[#allocation7 + $0x58] sm:$0xff]
    %v5678 = vld [vmem:[#allocation7 + $0x60] sm:$0xff]
    %v5679 = vld [vmem:[#allocation7 + $0x68] sm:$0xff]
    %v5680 = vld [vmem:[#allocation7 + $0x70] sm:$0xff]
    %v5681 = vld [vmem:[#allocation7 + $0x78] sm:$0xff]
    %v5682 = vld [vmem:[#allocation7 + $0x80] sm:$0xff]
    %v5683 = vld [vmem:[#allocation7 + $0x88] sm:$0xff]
    %v5684 = vld [vmem:[#allocation7 + $0x90] sm:$0xff]
    %v5685 = vld [vmem:[#allocation7 + $0x98] sm:$0xff]
    %v5686 = vld [vmem:[#allocation7 + $0xa0] sm:$0xff]
    %v5687 = vld [vmem:[#allocation7 + $0xa8] sm:$0xff]
    %v5688 = vld [vmem:[#allocation7 + $0xb0] sm:$0xff]
    %v5689 = vld [vmem:[#allocation7 + $0xb8] sm:$0xff]
    %v5690 = vld [vmem:[#allocation7 + $0xc0] sm:$0xff]
    %v5691 = vld [vmem:[#allocation7 + $0xc8] sm:$0xff]
    %v5692 = vld [vmem:[#allocation7 + $0xd0] sm:$0xff]
    %v5693 = vld [vmem:[#allocation7 + $0xd8] sm:$0xff]
    %v5694 = vld [vmem:[#allocation7 + $0xe0] sm:$0xff]
    %v5695 = vld [vmem:[#allocation7 + $0xe8] sm:$0xff]
    %v5696 = vld [vmem:[#allocation7 + $0xf0] sm:$0xff]
    %v5697 = vld [vmem:[#allocation7 + $0xf8] sm:$0xff]
    %v5698 = vld [vmem:[#allocation7 + $0x100] sm:$0xff]
    %v5699 = vld [vmem:[#allocation7 + $0x108] sm:$0xff]
    %v5700 = vld [vmem:[#allocation7 + $0x110] sm:$0xff]
    %v5701 = vld [vmem:[#allocation7 + $0x118] sm:$0xff]
    %v5702 = vld [vmem:[#allocation7 + $0x120] sm:$0xff]
    %v5703 = vld [vmem:[#allocation7 + $0x128] sm:$0xff]
    %v5704 = vld [vmem:[#allocation7 + $0x130] sm:$0xff]
    %v5705 = vld [vmem:[#allocation7 + $0x138] sm:$0xff]
    %v5706 = vld [vmem:[#allocation7 + $0x140] sm:$0xff]
    %v5707 = vld [vmem:[#allocation7 + $0x148] sm:$0xff]
    %v5708 = vld [vmem:[#allocation7 + $0x150] sm:$0xff]
    %v5709 = vld [vmem:[#allocation7 + $0x158] sm:$0xff]
    %v5710 = vld [vmem:[#allocation7 + $0x160] sm:$0xff]
    %v5711 = vld [vmem:[#allocation7 + $0x168] sm:$0xff]
    %v5712 = vld [vmem:[#allocation7 + $0x170] sm:$0xff]
    %v5713 = vld [vmem:[#allocation7 + $0x178] sm:$0xff]
    %v5714 = vld [vmem:[#allocation7 + $0x180] sm:$0xff]
    %v5715 = vld [vmem:[#allocation7 + $0x188] sm:$0xff]
    %v5716 = vld [vmem:[#allocation7 + $0x190] sm:$0xff]
    %v5717 = vld [vmem:[#allocation7 + $0x198] sm:$0xff]
    %v5718 = vld [vmem:[#allocation7 + $0x1a0] sm:$0xff]
    %v5719 = vld [vmem:[#allocation7 + $0x1a8] sm:$0xff]
    %v5720 = vld [vmem:[#allocation7 + $0x1b0] sm:$0xff]
    %v5721 = vld [vmem:[#allocation7 + $0x1b8] sm:$0xff]
    %v5722 = vld [vmem:[#allocation7 + $0x1c0] sm:$0xff]
    %v5723 = vld [vmem:[#allocation7 + $0x1c8] sm:$0xff]
    %v5724 = vld [vmem:[#allocation7 + $0x1d0] sm:$0xff]
    %v5725 = vld [vmem:[#allocation7 + $0x1d8] sm:$0xff]
    %v5726 = vld [vmem:[#allocation7 + $0x1e0] sm:$0xff]
    %v5727 = vld [vmem:[#allocation7 + $0x1e8] sm:$0xff]
    %v5728 = vld [vmem:[#allocation7 + $0x1f0] sm:$0xff]
    %v5729 = vld [vmem:[#allocation7 + $0x1f8] sm:$0xff]
    %v5730 = vld [vmem:[#allocation7 + $0x200] sm:$0xff]
    %v5731 = vld [vmem:[#allocation7 + $0x208] sm:$0xff]
    %v5732 = vld [vmem:[#allocation7 + $0x210] sm:$0xff]
    %v5733 = vld [vmem:[#allocation7 + $0x218] sm:$0xff]
    %v5734 = vld [vmem:[#allocation7 + $0x220] sm:$0xff]
    %v5735 = vld [vmem:[#allocation7 + $0x228] sm:$0xff]
    %v5736 = vld [vmem:[#allocation7 + $0x230] sm:$0xff]
    %v5737 = vld [vmem:[#allocation7 + $0x238] sm:$0xff]
    %v5738 = vld [vmem:[#allocation7 + $0x240] sm:$0xff]
    %v5739 = vld [vmem:[#allocation7 + $0x248] sm:$0xff]
    %v5740 = vld [vmem:[#allocation7 + $0x250] sm:$0xff]
    %v5741 = vld [vmem:[#allocation7 + $0x258] sm:$0xff]
    %v5742 = vld [vmem:[#allocation7 + $0x260] sm:$0xff]
    %v5743 = vld [vmem:[#allocation7 + $0x268] sm:$0xff]
    %v5744 = vld [vmem:[#allocation7 + $0x270] sm:$0xff]
    %v5745 = vld [vmem:[#allocation7 + $0x278] sm:$0xff]
    %v5746 = vld [vmem:[#allocation7 + $0x280] sm:$0xff]
    %v5747 = vld [vmem:[#allocation7 + $0x288] sm:$0xff]
    %v5748 = vld [vmem:[#allocation7 + $0x290] sm:$0xff]
    %v5749 = vld [vmem:[#allocation7 + $0x298] sm:$0xff]
    %v5750 = vld [vmem:[#allocation7 + $0x2a0] sm:$0xff]
    %v5751 = vld [vmem:[#allocation7 + $0x2a8] sm:$0xff]
    %v5752 = vld [vmem:[#allocation7 + $0x2b0] sm:$0xff]
    %v5753 = vld [vmem:[#allocation7 + $0x2b8] sm:$0xff]
    %v5754 = vld [vmem:[#allocation7 + $0x2c0] sm:$0xff]
    %v5755 = vld [vmem:[#allocation7 + $0x2c8] sm:$0xff]
    %v5756 = vld [vmem:[#allocation7 + $0x2d0] sm:$0xff]
    %v5757 = vld [vmem:[#allocation7 + $0x2d8] sm:$0xff]
    %v5758 = vld [vmem:[#allocation7 + $0x2e0] sm:$0xff]
    %v5759 = vld [vmem:[#allocation7 + $0x2e8] sm:$0xff]
    %v5760 = vld [vmem:[#allocation7 + $0x2f0] sm:$0xff]
    %v5761 = vld [vmem:[#allocation7 + $0x2f8] sm:$0xff]
    %v5762 = vld [vmem:[#allocation7 + $0x300] sm:$0xff]
    %v5763 = vld [vmem:[#allocation7 + $0x308] sm:$0xff]
    %v5764 = vld [vmem:[#allocation7 + $0x310] sm:$0xff]
    %v5765 = vld [vmem:[#allocation7 + $0x318] sm:$0xff]
    %v5766 = vld [vmem:[#allocation7 + $0x320] sm:$0xff]
    %v5767 = vld [vmem:[#allocation7 + $0x328] sm:$0xff]
    %v5768 = vld [vmem:[#allocation7 + $0x330] sm:$0xff]
    %v5769 = vld [vmem:[#allocation7 + $0x338] sm:$0xff]
    %v5770 = vld [vmem:[#allocation7 + $0x340] sm:$0xff]
    %v5771 = vld [vmem:[#allocation7 + $0x348] sm:$0xff]
    %v5772 = vld [vmem:[#allocation7 + $0x350] sm:$0xff]
    %v5773 = vld [vmem:[#allocation7 + $0x358] sm:$0xff]
    %v5774 = vld [vmem:[#allocation7 + $0x360] sm:$0xff]
    %v5775 = vld [vmem:[#allocation7 + $0x368] sm:$0xff]
    %v5776 = vld [vmem:[#allocation7 + $0x370] sm:$0xff]
    %v5777 = vld [vmem:[#allocation7 + $0x378] sm:$0xff]
    %v5778 = vld [vmem:[#allocation7 + $0x380] sm:$0xff]
    %v5779 = vld [vmem:[#allocation7 + $0x388] sm:$0xff]
    %v5780 = vld [vmem:[#allocation7 + $0x390] sm:$0xff]
    %v5781 = vld [vmem:[#allocation7 + $0x398] sm:$0xff]
    %v5782 = vld [vmem:[#allocation7 + $0x3a0] sm:$0xff]
    %v5783 = vld [vmem:[#allocation7 + $0x3a8] sm:$0xff]
    %v5784 = vld [vmem:[#allocation7 + $0x3b0] sm:$0xff]
    %v5785 = vld [vmem:[#allocation7 + $0x3b8] sm:$0xff]
    %v5786 = vld [vmem:[#allocation7 + $0x3c0] sm:$0xff]
    %v5787 = vld [vmem:[#allocation7 + $0x3c8] sm:$0xff]
    %v5788 = vld [vmem:[#allocation7 + $0x3d0] sm:$0xff]
    %v5789 = vld [vmem:[#allocation7 + $0x3d8] sm:$0xff]
    %v5790 = vld [vmem:[#allocation7 + $0x3e0] sm:$0xff]
    %v5791 = vld [vmem:[#allocation7 + $0x3e8] sm:$0xff]
    %v5792 = vld [vmem:[#allocation7 + $0x3f0] sm:$0xff]
    %v5793 = vld [vmem:[#allocation7 + $0x3f8] sm:$0xff]
    %v5794 = vld [vmem:[#allocation7 + $0x400] sm:$0xff]
    %v5795 = vld [vmem:[#allocation7 + $0x408] sm:$0xff]
    %v5796 = vld [vmem:[#allocation7 + $0x410] sm:$0xff]
    %v5797 = vld [vmem:[#allocation7 + $0x418] sm:$0xff]
    %v5798 = vld [vmem:[#allocation7 + $0x420] sm:$0xff]
    %v5799 = vld [vmem:[#allocation7 + $0x428] sm:$0xff]
    %v5800 = vld [vmem:[#allocation7 + $0x430] sm:$0xff]
    %v5801 = vld [vmem:[#allocation7 + $0x438] sm:$0xff]
    %v5802 = vld [vmem:[#allocation7 + $0x440] sm:$0xff]
    %v5803 = vld [vmem:[#allocation7 + $0x448] sm:$0xff]
    %v5804 = vld [vmem:[#allocation7 + $0x450] sm:$0xff]
    %v5805 = vld [vmem:[#allocation7 + $0x458] sm:$0xff]
    %v5806 = vld [vmem:[#allocation7 + $0x460] sm:$0xff]
    %v5807 = vld [vmem:[#allocation7 + $0x468] sm:$0xff]
    %v5808 = vld [vmem:[#allocation7 + $0x470] sm:$0xff]
    %v5809 = vld [vmem:[#allocation7 + $0x478] sm:$0xff]
    %v5810 = vld [vmem:[#allocation7 + $0x480] sm:$0xff]
    %v5811 = vld [vmem:[#allocation7 + $0x488] sm:$0xff]
    %v5812 = vld [vmem:[#allocation7 + $0x490] sm:$0xff]
    %v5813 = vld [vmem:[#allocation7 + $0x498] sm:$0xff]
    %v5814 = vld [vmem:[#allocation7 + $0x4a0] sm:$0xff]
    %v5815 = vld [vmem:[#allocation7 + $0x4a8] sm:$0xff]
    %v5816 = vld [vmem:[#allocation7 + $0x4b0] sm:$0xff]
    %v5817 = vld [vmem:[#allocation7 + $0x4b8] sm:$0xff]
    %v5818 = vld [vmem:[#allocation7 + $0x4c0] sm:$0xff]
    %v5819 = vld [vmem:[#allocation7 + $0x4c8] sm:$0xff]
    %v5820 = vld [vmem:[#allocation7 + $0x4d0] sm:$0xff]
    %v5821 = vld [vmem:[#allocation7 + $0x4d8] sm:$0xff]
    %v5822 = vld [vmem:[#allocation7 + $0x4e0] sm:$0xff]
    %v5823 = vld [vmem:[#allocation7 + $0x4e8] sm:$0xff]
    %v5824 = vld [vmem:[#allocation7 + $0x4f0] sm:$0xff]
    %v5825 = vld [vmem:[#allocation7 + $0x4f8] sm:$0xff]
    %v5826 = vld [vmem:[#allocation7 + $0x500] sm:$0xff]
    %v5827 = vld [vmem:[#allocation7 + $0x508] sm:$0xff]
    %v5828 = vld [vmem:[#allocation7 + $0x510] sm:$0xff]
    %v5829 = vld [vmem:[#allocation7 + $0x518] sm:$0xff]
    %v5830 = vld [vmem:[#allocation7 + $0x520] sm:$0xff]
    %v5831 = vld [vmem:[#allocation7 + $0x528] sm:$0xff]
    %v5832 = vld [vmem:[#allocation7 + $0x530] sm:$0xff]
    %v5833 = vld [vmem:[#allocation7 + $0x538] sm:$0xff]
    %v5834 = vld [vmem:[#allocation7 + $0x540] sm:$0xff]
    %v5835 = vld [vmem:[#allocation7 + $0x548] sm:$0xff]
    %v5836 = vld [vmem:[#allocation7 + $0x550] sm:$0xff]
    %v5837 = vld [vmem:[#allocation7 + $0x558] sm:$0xff]
    %v5838 = vld [vmem:[#allocation7 + $0x560] sm:$0xff]
    %v5839 = vld [vmem:[#allocation7 + $0x568] sm:$0xff]
    %v5840 = vld [vmem:[#allocation7 + $0x570] sm:$0xff]
    %v5841 = vld [vmem:[#allocation7 + $0x578] sm:$0xff]
    %v5842 = vld [vmem:[#allocation7 + $0x580] sm:$0xff]
    %v5843 = vld [vmem:[#allocation7 + $0x588] sm:$0xff]
    %v5844 = vld [vmem:[#allocation7 + $0x590] sm:$0xff]
    %v5845 = vld [vmem:[#allocation7 + $0x598] sm:$0xff]
    %v5846 = vld [vmem:[#allocation7 + $0x5a0] sm:$0xff]
    %v5847 = vld [vmem:[#allocation7 + $0x5a8] sm:$0xff]
    %v5848 = vld [vmem:[#allocation7 + $0x5b0] sm:$0xff]
    %v5849 = vld [vmem:[#allocation7 + $0x5b8] sm:$0xff]
    %v5850 = vld [vmem:[#allocation7 + $0x5c0] sm:$0xff]
    %v5851 = vld [vmem:[#allocation7 + $0x5c8] sm:$0xff]
    %v5852 = vld [vmem:[#allocation7 + $0x5d0] sm:$0xff]
    %v5853 = vld [vmem:[#allocation7 + $0x5d8] sm:$0xff]
    %v5854 = vld [vmem:[#allocation7 + $0x5e0] sm:$0xff]
    %v5855 = vld [vmem:[#allocation7 + $0x5e8] sm:$0xff]
    %v5856 = vld [vmem:[#allocation7 + $0x5f0] sm:$0xff]
    %v5857 = vld [vmem:[#allocation7 + $0x5f8] sm:$0xff]
    %v5858 = vld [vmem:[#allocation7 + $0x600] sm:$0xff]
    %v5859 = vld [vmem:[#allocation7 + $0x608] sm:$0xff]
    %v5860 = vld [vmem:[#allocation7 + $0x610] sm:$0xff]
    %v5861 = vld [vmem:[#allocation7 + $0x618] sm:$0xff]
    %v5862 = vld [vmem:[#allocation7 + $0x620] sm:$0xff]
    %v5863 = vld [vmem:[#allocation7 + $0x628] sm:$0xff]
    %v5864 = vld [vmem:[#allocation7 + $0x630] sm:$0xff]
    %v5865 = vld [vmem:[#allocation7 + $0x638] sm:$0xff]
    %v5866 = vld [vmem:[#allocation7 + $0x640] sm:$0xff]
    %v5867 = vld [vmem:[#allocation7 + $0x648] sm:$0xff]
    %v5868 = vld [vmem:[#allocation7 + $0x650] sm:$0xff]
    %v5869 = vld [vmem:[#allocation7 + $0x658] sm:$0xff]
    %v5870 = vld [vmem:[#allocation7 + $0x660] sm:$0xff]
    %v5871 = vld [vmem:[#allocation7 + $0x668] sm:$0xff]
    %v5872 = vld [vmem:[#allocation7 + $0x670] sm:$0xff]
    %v5873 = vld [vmem:[#allocation7 + $0x678] sm:$0xff]
    %v5874 = vld [vmem:[#allocation7 + $0x680] sm:$0xff]
    %v5875 = vld [vmem:[#allocation7 + $0x688] sm:$0xff]
    %v5876 = vld [vmem:[#allocation7 + $0x690] sm:$0xff]
    %v5877 = vld [vmem:[#allocation7 + $0x698] sm:$0xff]
    %v5878 = vld [vmem:[#allocation7 + $0x6a0] sm:$0xff]
    %v5879 = vld [vmem:[#allocation7 + $0x6a8] sm:$0xff]
    %v5880 = vld [vmem:[#allocation7 + $0x6b0] sm:$0xff]
    %v5881 = vld [vmem:[#allocation7 + $0x6b8] sm:$0xff]
    %v5882 = vld [vmem:[#allocation7 + $0x6c0] sm:$0xff]
    %v5883 = vld [vmem:[#allocation7 + $0x6c8] sm:$0xff]
    %v5884 = vld [vmem:[#allocation7 + $0x6d0] sm:$0xff]
    %v5885 = vld [vmem:[#allocation7 + $0x6d8] sm:$0xff]
    %v5886 = vld [vmem:[#allocation7 + $0x6e0] sm:$0xff]
    %v5887 = vld [vmem:[#allocation7 + $0x6e8] sm:$0xff]
    %v5888 = vld [vmem:[#allocation7 + $0x6f0] sm:$0xff]
    %v5889 = vld [vmem:[#allocation7 + $0x6f8] sm:$0xff]
    %v5890 = vld [vmem:[#allocation7 + $0x700] sm:$0xff]
    %v5891 = vld [vmem:[#allocation7 + $0x708] sm:$0xff]
    %v5892 = vld [vmem:[#allocation7 + $0x710] sm:$0xff]
    %v5893 = vld [vmem:[#allocation7 + $0x718] sm:$0xff]
    %v5894 = vld [vmem:[#allocation7 + $0x720] sm:$0xff]
    %v5895 = vld [vmem:[#allocation7 + $0x728] sm:$0xff]
    %v5896 = vld [vmem:[#allocation7 + $0x730] sm:$0xff]
    %v5897 = vld [vmem:[#allocation7 + $0x738] sm:$0xff]
    %v5898 = vld [vmem:[#allocation7 + $0x740] sm:$0xff]
    %v5899 = vld [vmem:[#allocation7 + $0x748] sm:$0xff]
    %v5900 = vld [vmem:[#allocation7 + $0x750] sm:$0xff]
    %v5901 = vld [vmem:[#allocation7 + $0x758] sm:$0xff]
    %v5902 = vld [vmem:[#allocation7 + $0x760] sm:$0xff]
    %v5903 = vld [vmem:[#allocation7 + $0x768] sm:$0xff]
    %v5904 = vld [vmem:[#allocation7 + $0x770] sm:$0xff]
    %v5905 = vld [vmem:[#allocation7 + $0x778] sm:$0xff]
    %v5906 = vld [vmem:[#allocation7 + $0x780] sm:$0xff]
    %v5907 = vld [vmem:[#allocation7 + $0x788] sm:$0xff]
    %v5908 = vld [vmem:[#allocation7 + $0x790] sm:$0xff]
    %v5909 = vld [vmem:[#allocation7 + $0x798] sm:$0xff]
    %v5910 = vld [vmem:[#allocation7 + $0x7a0] sm:$0xff]
    %v5911 = vld [vmem:[#allocation7 + $0x7a8] sm:$0xff]
    %v5912 = vld [vmem:[#allocation7 + $0x7b0] sm:$0xff]
    %v5913 = vld [vmem:[#allocation7 + $0x7b8] sm:$0xff]
    %v5914 = vld [vmem:[#allocation7 + $0x7c0] sm:$0xff]
    %v5915 = vld [vmem:[#allocation7 + $0x7c8] sm:$0xff]
    %v5916 = vld [vmem:[#allocation7 + $0x7d0] sm:$0xff]
    %v5917 = vld [vmem:[#allocation7 + $0x7d8] sm:$0xff]
    %v5918 = vld [vmem:[#allocation7 + $0x7e0] sm:$0xff]
    %v5919 = vld [vmem:[#allocation7 + $0x7e8] sm:$0xff]
    %v5920 = vld [vmem:[#allocation7 + $0x7f0] sm:$0xff]
    %v5921 = vld [vmem:[#allocation7 + $0x7f8] sm:$0xff]
    %v5922 = vld [vmem:[%s17] sm:$0xff]
    %v5924 = vlaneseq
    %v5925 = vshrl.u32 %v5924, 7
    %v5926 = vsub.s32 0, %v5925
    %v5927 = vrot.slane %v5922, %v5926
    %v5928 = vlaneseq
    %v5929 = vshrl.u32 %v5928, 7
    %v5930 = vsub.s32 1, %v5929
    %v5931 = vrot.slane %v5922, %v5930
    %v5932 = vlaneseq
    %v5933 = vshrl.u32 %v5932, 7
    %v5934 = vsub.s32 2, %v5933
    %v5935 = vrot.slane %v5922, %v5934
    %v5936 = vlaneseq
    %v5937 = vshrl.u32 %v5936, 7
    %v5938 = vsub.s32 3, %v5937
    %v5939 = vrot.slane %v5922, %v5938
    %v5940 = vlaneseq
    %v5941 = vshrl.u32 %v5940, 7
    %v5942 = vsub.s32 4, %v5941
    %v5943 = vrot.slane %v5922, %v5942
    %v5944 = vlaneseq
    %v5945 = vshrl.u32 %v5944, 7
    %v5946 = vsub.s32 5, %v5945
    %v5947 = vrot.slane %v5922, %v5946
    %v5948 = vlaneseq
    %v5949 = vshrl.u32 %v5948, 7
    %v5950 = vsub.s32 6, %v5949
    %v5951 = vrot.slane %v5922, %v5950
    %v5952 = vlaneseq
    %v5953 = vshrl.u32 %v5952, 7
    %v5954 = vsub.s32 7, %v5953
    %v5955 = vrot.slane %v5922, %v5954
    %v6220 = vunpack.c.l.b16 %v5666
    %v6221 = vunpack.c.h.b16 %v5666
    %v6222 = vunpack.c.l.b16 %v5667
    %v6223 = vunpack.c.h.b16 %v5667
    %v6224 = vunpack.c.l.b16 %v5668
    %v6225 = vunpack.c.h.b16 %v5668
    %v6226 = vunpack.c.l.b16 %v5669
    %v6227 = vunpack.c.h.b16 %v5669
    %v6228 = vunpack.c.l.b16 %v5670
    %v6229 = vunpack.c.h.b16 %v5670
    %v6230 = vunpack.c.l.b16 %v5671
    %v6231 = vunpack.c.h.b16 %v5671
    %v6232 = vunpack.c.l.b16 %v5672
    %v6233 = vunpack.c.h.b16 %v5672
    %v6234 = vunpack.c.l.b16 %v5673
    %v6235 = vunpack.c.h.b16 %v5673
    %v6236 = vunpack.c.l.b16 %v5674
    %v6237 = vunpack.c.h.b16 %v5674
    %v6238 = vunpack.c.l.b16 %v5675
    %v6239 = vunpack.c.h.b16 %v5675
    %v6240 = vunpack.c.l.b16 %v5676
    %v6241 = vunpack.c.h.b16 %v5676
    %v6242 = vunpack.c.l.b16 %v5677
    %v6243 = vunpack.c.h.b16 %v5677
    %v6244 = vunpack.c.l.b16 %v5678
    %v6245 = vunpack.c.h.b16 %v5678
    %v6246 = vunpack.c.l.b16 %v5679
    %v6247 = vunpack.c.h.b16 %v5679
    %v6248 = vunpack.c.l.b16 %v5680
    %v6249 = vunpack.c.h.b16 %v5680
    %v6250 = vunpack.c.l.b16 %v5681
    %v6251 = vunpack.c.h.b16 %v5681
    %v6252 = vunpack.c.l.b16 %v5682
    %v6253 = vunpack.c.h.b16 %v5682
    %v6254 = vunpack.c.l.b16 %v5683
    %v6255 = vunpack.c.h.b16 %v5683
    %v6256 = vunpack.c.l.b16 %v5684
    %v6257 = vunpack.c.h.b16 %v5684
    %v6258 = vunpack.c.l.b16 %v5685
    %v6259 = vunpack.c.h.b16 %v5685
    %v6260 = vunpack.c.l.b16 %v5686
    %v6261 = vunpack.c.h.b16 %v5686
    %v6262 = vunpack.c.l.b16 %v5687
    %v6263 = vunpack.c.h.b16 %v5687
    %v6264 = vunpack.c.l.b16 %v5688
    %v6265 = vunpack.c.h.b16 %v5688
    %v6266 = vunpack.c.l.b16 %v5689
    %v6267 = vunpack.c.h.b16 %v5689
    %v6268 = vunpack.c.l.b16 %v5690
    %v6269 = vunpack.c.h.b16 %v5690
    %v6270 = vunpack.c.l.b16 %v5691
    %v6271 = vunpack.c.h.b16 %v5691
    %v6272 = vunpack.c.l.b16 %v5692
    %v6273 = vunpack.c.h.b16 %v5692
    %v6274 = vunpack.c.l.b16 %v5693
    %v6275 = vunpack.c.h.b16 %v5693
    %v6276 = vunpack.c.l.b16 %v5694
    %v6277 = vunpack.c.h.b16 %v5694
    %v6278 = vunpack.c.l.b16 %v5695
    %v6279 = vunpack.c.h.b16 %v5695
    %v6280 = vunpack.c.l.b16 %v5696
    %v6281 = vunpack.c.h.b16 %v5696
    %v6282 = vunpack.c.l.b16 %v5697
    %v6283 = vunpack.c.h.b16 %v5697
    %v6284 = vunpack.c.l.b16 %v5698
    %v6285 = vunpack.c.h.b16 %v5698
    %v6286 = vunpack.c.l.b16 %v5699
    %v6287 = vunpack.c.h.b16 %v5699
    %v6288 = vunpack.c.l.b16 %v5700
    %v6289 = vunpack.c.h.b16 %v5700
    %v6290 = vunpack.c.l.b16 %v5701
    %v6291 = vunpack.c.h.b16 %v5701
    %v6292 = vunpack.c.l.b16 %v5702
    %v6293 = vunpack.c.h.b16 %v5702
    %v6294 = vunpack.c.l.b16 %v5703
    %v6295 = vunpack.c.h.b16 %v5703
    %v6296 = vunpack.c.l.b16 %v5704
    %v6297 = vunpack.c.h.b16 %v5704
    %v6298 = vunpack.c.l.b16 %v5705
    %v6299 = vunpack.c.h.b16 %v5705
    %v6300 = vunpack.c.l.b16 %v5706
    %v6301 = vunpack.c.h.b16 %v5706
    %v6302 = vunpack.c.l.b16 %v5707
    %v6303 = vunpack.c.h.b16 %v5707
    %v6304 = vunpack.c.l.b16 %v5708
    %v6305 = vunpack.c.h.b16 %v5708
    %v6306 = vunpack.c.l.b16 %v5709
    %v6307 = vunpack.c.h.b16 %v5709
    %v6308 = vunpack.c.l.b16 %v5710
    %v6309 = vunpack.c.h.b16 %v5710
    %v6310 = vunpack.c.l.b16 %v5711
    %v6311 = vunpack.c.h.b16 %v5711
    %v6312 = vunpack.c.l.b16 %v5712
    %v6313 = vunpack.c.h.b16 %v5712
    %v6314 = vunpack.c.l.b16 %v5713
    %v6315 = vunpack.c.h.b16 %v5713
    %v6316 = vunpack.c.l.b16 %v5714
    %v6317 = vunpack.c.h.b16 %v5714
    %v6318 = vunpack.c.l.b16 %v5715
    %v6319 = vunpack.c.h.b16 %v5715
    %v6320 = vunpack.c.l.b16 %v5716
    %v6321 = vunpack.c.h.b16 %v5716
    %v6322 = vunpack.c.l.b16 %v5717
    %v6323 = vunpack.c.h.b16 %v5717
    %v6324 = vunpack.c.l.b16 %v5718
    %v6325 = vunpack.c.h.b16 %v5718
    %v6326 = vunpack.c.l.b16 %v5719
    %v6327 = vunpack.c.h.b16 %v5719
    %v6328 = vunpack.c.l.b16 %v5720
    %v6329 = vunpack.c.h.b16 %v5720
    %v6330 = vunpack.c.l.b16 %v5721
    %v6331 = vunpack.c.h.b16 %v5721
    %v6332 = vunpack.c.l.b16 %v5722
    %v6333 = vunpack.c.h.b16 %v5722
    %v6334 = vunpack.c.l.b16 %v5723
    %v6335 = vunpack.c.h.b16 %v5723
    %v6336 = vunpack.c.l.b16 %v5724
    %v6337 = vunpack.c.h.b16 %v5724
    %v6338 = vunpack.c.l.b16 %v5725
    %v6339 = vunpack.c.h.b16 %v5725
    %v6340 = vunpack.c.l.b16 %v5726
    %v6341 = vunpack.c.h.b16 %v5726
    %v6342 = vunpack.c.l.b16 %v5727
    %v6343 = vunpack.c.h.b16 %v5727
    %v6344 = vunpack.c.l.b16 %v5728
    %v6345 = vunpack.c.h.b16 %v5728
    %v6346 = vunpack.c.l.b16 %v5729
    %v6347 = vunpack.c.h.b16 %v5729
    %v6348 = vunpack.c.l.b16 %v5730
    %v6349 = vunpack.c.h.b16 %v5730
    %v6350 = vunpack.c.l.b16 %v5731
    %v6351 = vunpack.c.h.b16 %v5731
    %v6352 = vunpack.c.l.b16 %v5732
    %v6353 = vunpack.c.h.b16 %v5732
    %v6354 = vunpack.c.l.b16 %v5733
    %v6355 = vunpack.c.h.b16 %v5733
    %v6356 = vunpack.c.l.b16 %v5734
    %v6357 = vunpack.c.h.b16 %v5734
    %v6358 = vunpack.c.l.b16 %v5735
    %v6359 = vunpack.c.h.b16 %v5735
    %v6360 = vunpack.c.l.b16 %v5736
    %v6361 = vunpack.c.h.b16 %v5736
    %v6362 = vunpack.c.l.b16 %v5737
    %v6363 = vunpack.c.h.b16 %v5737
    %v6364 = vunpack.c.l.b16 %v5738
    %v6365 = vunpack.c.h.b16 %v5738
    %v6366 = vunpack.c.l.b16 %v5739
    %v6367 = vunpack.c.h.b16 %v5739
    %v6368 = vunpack.c.l.b16 %v5740
    %v6369 = vunpack.c.h.b16 %v5740
    %v6370 = vunpack.c.l.b16 %v5741
    %v6371 = vunpack.c.h.b16 %v5741
    %v6372 = vunpack.c.l.b16 %v5742
    %v6373 = vunpack.c.h.b16 %v5742
    %v6374 = vunpack.c.l.b16 %v5743
    %v6375 = vunpack.c.h.b16 %v5743
    %v6376 = vunpack.c.l.b16 %v5744
    %v6377 = vunpack.c.h.b16 %v5744
    %v6378 = vunpack.c.l.b16 %v5745
    %v6379 = vunpack.c.h.b16 %v5745
    %v6380 = vunpack.c.l.b16 %v5746
    %v6381 = vunpack.c.h.b16 %v5746
    %v6382 = vunpack.c.l.b16 %v5747
    %v6383 = vunpack.c.h.b16 %v5747
    %v6384 = vunpack.c.l.b16 %v5748
    %v6385 = vunpack.c.h.b16 %v5748
    %v6386 = vunpack.c.l.b16 %v5749
    %v6387 = vunpack.c.h.b16 %v5749
    %v6388 = vunpack.c.l.b16 %v5750
    %v6389 = vunpack.c.h.b16 %v5750
    %v6390 = vunpack.c.l.b16 %v5751
    %v6391 = vunpack.c.h.b16 %v5751
    %v6392 = vunpack.c.l.b16 %v5752
    %v6393 = vunpack.c.h.b16 %v5752
    %v6394 = vunpack.c.l.b16 %v5753
    %v6395 = vunpack.c.h.b16 %v5753
    %v6396 = vunpack.c.l.b16 %v5754
    %v6397 = vunpack.c.h.b16 %v5754
    %v6398 = vunpack.c.l.b16 %v5755
    %v6399 = vunpack.c.h.b16 %v5755
    %v6400 = vunpack.c.l.b16 %v5756
    %v6401 = vunpack.c.h.b16 %v5756
    %v6402 = vunpack.c.l.b16 %v5757
    %v6403 = vunpack.c.h.b16 %v5757
    %v6404 = vunpack.c.l.b16 %v5758
    %v6405 = vunpack.c.h.b16 %v5758
    %v6406 = vunpack.c.l.b16 %v5759
    %v6407 = vunpack.c.h.b16 %v5759
    %v6408 = vunpack.c.l.b16 %v5760
    %v6409 = vunpack.c.h.b16 %v5760
    %v6410 = vunpack.c.l.b16 %v5761
    %v6411 = vunpack.c.h.b16 %v5761
    %v6412 = vunpack.c.l.b16 %v5762
    %v6413 = vunpack.c.h.b16 %v5762
    %v6414 = vunpack.c.l.b16 %v5763
    %v6415 = vunpack.c.h.b16 %v5763
    %v6416 = vunpack.c.l.b16 %v5764
    %v6417 = vunpack.c.h.b16 %v5764
    %v6418 = vunpack.c.l.b16 %v5765
    %v6419 = vunpack.c.h.b16 %v5765
    %v6420 = vunpack.c.l.b16 %v5766
    %v6421 = vunpack.c.h.b16 %v5766
    %v6422 = vunpack.c.l.b16 %v5767
    %v6423 = vunpack.c.h.b16 %v5767
    %v6424 = vunpack.c.l.b16 %v5768
    %v6425 = vunpack.c.h.b16 %v5768
    %v6426 = vunpack.c.l.b16 %v5769
    %v6427 = vunpack.c.h.b16 %v5769
    %v6428 = vunpack.c.l.b16 %v5770
    %v6429 = vunpack.c.h.b16 %v5770
    %v6430 = vunpack.c.l.b16 %v5771
    %v6431 = vunpack.c.h.b16 %v5771
    %v6432 = vunpack.c.l.b16 %v5772
    %v6433 = vunpack.c.h.b16 %v5772
    %v6434 = vunpack.c.l.b16 %v5773
    %v6435 = vunpack.c.h.b16 %v5773
    %v6436 = vunpack.c.l.b16 %v5774
    %v6437 = vunpack.c.h.b16 %v5774
    %v6438 = vunpack.c.l.b16 %v5775
    %v6439 = vunpack.c.h.b16 %v5775
    %v6440 = vunpack.c.l.b16 %v5776
    %v6441 = vunpack.c.h.b16 %v5776
    %v6442 = vunpack.c.l.b16 %v5777
    %v6443 = vunpack.c.h.b16 %v5777
    %v6444 = vunpack.c.l.b16 %v5778
    %v6445 = vunpack.c.h.b16 %v5778
    %v6446 = vunpack.c.l.b16 %v5779
    %v6447 = vunpack.c.h.b16 %v5779
    %v6448 = vunpack.c.l.b16 %v5780
    %v6449 = vunpack.c.h.b16 %v5780
    %v6450 = vunpack.c.l.b16 %v5781
    %v6451 = vunpack.c.h.b16 %v5781
    %v6452 = vunpack.c.l.b16 %v5782
    %v6453 = vunpack.c.h.b16 %v5782
    %v6454 = vunpack.c.l.b16 %v5783
    %v6455 = vunpack.c.h.b16 %v5783
    %v6456 = vunpack.c.l.b16 %v5784
    %v6457 = vunpack.c.h.b16 %v5784
    %v6458 = vunpack.c.l.b16 %v5785
    %v6459 = vunpack.c.h.b16 %v5785
    %v6460 = vunpack.c.l.b16 %v5786
    %v6461 = vunpack.c.h.b16 %v5786
    %v6462 = vunpack.c.l.b16 %v5787
    %v6463 = vunpack.c.h.b16 %v5787
    %v6464 = vunpack.c.l.b16 %v5788
    %v6465 = vunpack.c.h.b16 %v5788
    %v6466 = vunpack.c.l.b16 %v5789
    %v6467 = vunpack.c.h.b16 %v5789
    %v6468 = vunpack.c.l.b16 %v5790
    %v6469 = vunpack.c.h.b16 %v5790
    %v6470 = vunpack.c.l.b16 %v5791
    %v6471 = vunpack.c.h.b16 %v5791
    %v6472 = vunpack.c.l.b16 %v5792
    %v6473 = vunpack.c.h.b16 %v5792
    %v6474 = vunpack.c.l.b16 %v5793
    %v6475 = vunpack.c.h.b16 %v5793
    %v6476 = vunpack.c.l.b16 %v5794
    %v6477 = vunpack.c.h.b16 %v5794
    %v6478 = vunpack.c.l.b16 %v5795
    %v6479 = vunpack.c.h.b16 %v5795
    %v6480 = vunpack.c.l.b16 %v5796
    %v6481 = vunpack.c.h.b16 %v5796
    %v6482 = vunpack.c.l.b16 %v5797
    %v6483 = vunpack.c.h.b16 %v5797
    %v6484 = vunpack.c.l.b16 %v5798
    %v6485 = vunpack.c.h.b16 %v5798
    %v6486 = vunpack.c.l.b16 %v5799
    %v6487 = vunpack.c.h.b16 %v5799
    %v6488 = vunpack.c.l.b16 %v5800
    %v6489 = vunpack.c.h.b16 %v5800
    %v6490 = vunpack.c.l.b16 %v5801
    %v6491 = vunpack.c.h.b16 %v5801
    %v6492 = vunpack.c.l.b16 %v5802
    %v6493 = vunpack.c.h.b16 %v5802
    %v6494 = vunpack.c.l.b16 %v5803
    %v6495 = vunpack.c.h.b16 %v5803
    %v6496 = vunpack.c.l.b16 %v5804
    %v6497 = vunpack.c.h.b16 %v5804
    %v6498 = vunpack.c.l.b16 %v5805
    %v6499 = vunpack.c.h.b16 %v5805
    %v6500 = vunpack.c.l.b16 %v5806
    %v6501 = vunpack.c.h.b16 %v5806
    %v6502 = vunpack.c.l.b16 %v5807
    %v6503 = vunpack.c.h.b16 %v5807
    %v6504 = vunpack.c.l.b16 %v5808
    %v6505 = vunpack.c.h.b16 %v5808
    %v6506 = vunpack.c.l.b16 %v5809
    %v6507 = vunpack.c.h.b16 %v5809
    %v6508 = vunpack.c.l.b16 %v5810
    %v6509 = vunpack.c.h.b16 %v5810
    %v6510 = vunpack.c.l.b16 %v5811
    %v6511 = vunpack.c.h.b16 %v5811
    %v6512 = vunpack.c.l.b16 %v5812
    %v6513 = vunpack.c.h.b16 %v5812
    %v6514 = vunpack.c.l.b16 %v5813
    %v6515 = vunpack.c.h.b16 %v5813
    %v6516 = vunpack.c.l.b16 %v5814
    %v6517 = vunpack.c.h.b16 %v5814
    %v6518 = vunpack.c.l.b16 %v5815
    %v6519 = vunpack.c.h.b16 %v5815
    %v6520 = vunpack.c.l.b16 %v5816
    %v6521 = vunpack.c.h.b16 %v5816
    %v6522 = vunpack.c.l.b16 %v5817
    %v6523 = vunpack.c.h.b16 %v5817
    %v6524 = vunpack.c.l.b16 %v5818
    %v6525 = vunpack.c.h.b16 %v5818
    %v6526 = vunpack.c.l.b16 %v5819
    %v6527 = vunpack.c.h.b16 %v5819
    %v6528 = vunpack.c.l.b16 %v5820
    %v6529 = vunpack.c.h.b16 %v5820
    %v6530 = vunpack.c.l.b16 %v5821
    %v6531 = vunpack.c.h.b16 %v5821
    %v6532 = vunpack.c.l.b16 %v5822
    %v6533 = vunpack.c.h.b16 %v5822
    %v6534 = vunpack.c.l.b16 %v5823
    %v6535 = vunpack.c.h.b16 %v5823
    %v6536 = vunpack.c.l.b16 %v5824
    %v6537 = vunpack.c.h.b16 %v5824
    %v6538 = vunpack.c.l.b16 %v5825
    %v6539 = vunpack.c.h.b16 %v5825
    %v6540 = vunpack.c.l.b16 %v5826
    %v6541 = vunpack.c.h.b16 %v5826
    %v6542 = vunpack.c.l.b16 %v5827
    %v6543 = vunpack.c.h.b16 %v5827
    %v6544 = vunpack.c.l.b16 %v5828
    %v6545 = vunpack.c.h.b16 %v5828
    %v6546 = vunpack.c.l.b16 %v5829
    %v6547 = vunpack.c.h.b16 %v5829
    %v6548 = vunpack.c.l.b16 %v5830
    %v6549 = vunpack.c.h.b16 %v5830
    %v6550 = vunpack.c.l.b16 %v5831
    %v6551 = vunpack.c.h.b16 %v5831
    %v6552 = vunpack.c.l.b16 %v5832
    %v6553 = vunpack.c.h.b16 %v5832
    %v6554 = vunpack.c.l.b16 %v5833
    %v6555 = vunpack.c.h.b16 %v5833
    %v6556 = vunpack.c.l.b16 %v5834
    %v6557 = vunpack.c.h.b16 %v5834
    %v6558 = vunpack.c.l.b16 %v5835
    %v6559 = vunpack.c.h.b16 %v5835
    %v6560 = vunpack.c.l.b16 %v5836
    %v6561 = vunpack.c.h.b16 %v5836
    %v6562 = vunpack.c.l.b16 %v5837
    %v6563 = vunpack.c.h.b16 %v5837
    %v6564 = vunpack.c.l.b16 %v5838
    %v6565 = vunpack.c.h.b16 %v5838
    %v6566 = vunpack.c.l.b16 %v5839
    %v6567 = vunpack.c.h.b16 %v5839
    %v6568 = vunpack.c.l.b16 %v5840
    %v6569 = vunpack.c.h.b16 %v5840
    %v6570 = vunpack.c.l.b16 %v5841
    %v6571 = vunpack.c.h.b16 %v5841
    %v6572 = vunpack.c.l.b16 %v5842
    %v6573 = vunpack.c.h.b16 %v5842
    %v6574 = vunpack.c.l.b16 %v5843
    %v6575 = vunpack.c.h.b16 %v5843
    %v6576 = vunpack.c.l.b16 %v5844
    %v6577 = vunpack.c.h.b16 %v5844
    %v6578 = vunpack.c.l.b16 %v5845
    %v6579 = vunpack.c.h.b16 %v5845
    %v6580 = vunpack.c.l.b16 %v5846
    %v6581 = vunpack.c.h.b16 %v5846
    %v6582 = vunpack.c.l.b16 %v5847
    %v6583 = vunpack.c.h.b16 %v5847
    %v6584 = vunpack.c.l.b16 %v5848
    %v6585 = vunpack.c.h.b16 %v5848
    %v6586 = vunpack.c.l.b16 %v5849
    %v6587 = vunpack.c.h.b16 %v5849
    %v6588 = vunpack.c.l.b16 %v5850
    %v6589 = vunpack.c.h.b16 %v5850
    %v6590 = vunpack.c.l.b16 %v5851
    %v6591 = vunpack.c.h.b16 %v5851
    %v6592 = vunpack.c.l.b16 %v5852
    %v6593 = vunpack.c.h.b16 %v5852
    %v6594 = vunpack.c.l.b16 %v5853
    %v6595 = vunpack.c.h.b16 %v5853
    %v6596 = vunpack.c.l.b16 %v5854
    %v6597 = vunpack.c.h.b16 %v5854
    %v6598 = vunpack.c.l.b16 %v5855
    %v6599 = vunpack.c.h.b16 %v5855
    %v6600 = vunpack.c.l.b16 %v5856
    %v6601 = vunpack.c.h.b16 %v5856
    %v6602 = vunpack.c.l.b16 %v5857
    %v6603 = vunpack.c.h.b16 %v5857
    %v6604 = vunpack.c.l.b16 %v5858
    %v6605 = vunpack.c.h.b16 %v5858
    %v6606 = vunpack.c.l.b16 %v5859
    %v6607 = vunpack.c.h.b16 %v5859
    %v6608 = vunpack.c.l.b16 %v5860
    %v6609 = vunpack.c.h.b16 %v5860
    %v6610 = vunpack.c.l.b16 %v5861
    %v6611 = vunpack.c.h.b16 %v5861
    %v6612 = vunpack.c.l.b16 %v5862
    %v6613 = vunpack.c.h.b16 %v5862
    %v6614 = vunpack.c.l.b16 %v5863
    %v6615 = vunpack.c.h.b16 %v5863
    %v6616 = vunpack.c.l.b16 %v5864
    %v6617 = vunpack.c.h.b16 %v5864
    %v6618 = vunpack.c.l.b16 %v5865
    %v6619 = vunpack.c.h.b16 %v5865
    %v6620 = vunpack.c.l.b16 %v5866
    %v6621 = vunpack.c.h.b16 %v5866
    %v6622 = vunpack.c.l.b16 %v5867
    %v6623 = vunpack.c.h.b16 %v5867
    %v6624 = vunpack.c.l.b16 %v5868
    %v6625 = vunpack.c.h.b16 %v5868
    %v6626 = vunpack.c.l.b16 %v5869
    %v6627 = vunpack.c.h.b16 %v5869
    %v6628 = vunpack.c.l.b16 %v5870
    %v6629 = vunpack.c.h.b16 %v5870
    %v6630 = vunpack.c.l.b16 %v5871
    %v6631 = vunpack.c.h.b16 %v5871
    %v6632 = vunpack.c.l.b16 %v5872
    %v6633 = vunpack.c.h.b16 %v5872
    %v6634 = vunpack.c.l.b16 %v5873
    %v6635 = vunpack.c.h.b16 %v5873
    %v6636 = vunpack.c.l.b16 %v5874
    %v6637 = vunpack.c.h.b16 %v5874
    %v6638 = vunpack.c.l.b16 %v5875
    %v6639 = vunpack.c.h.b16 %v5875
    %v6640 = vunpack.c.l.b16 %v5876
    %v6641 = vunpack.c.h.b16 %v5876
    %v6642 = vunpack.c.l.b16 %v5877
    %v6643 = vunpack.c.h.b16 %v5877
    %v6644 = vunpack.c.l.b16 %v5878
    %v6645 = vunpack.c.h.b16 %v5878
    %v6646 = vunpack.c.l.b16 %v5879
    %v6647 = vunpack.c.h.b16 %v5879
    %v6648 = vunpack.c.l.b16 %v5880
    %v6649 = vunpack.c.h.b16 %v5880
    %v6650 = vunpack.c.l.b16 %v5881
    %v6651 = vunpack.c.h.b16 %v5881
    %v6652 = vunpack.c.l.b16 %v5882
    %v6653 = vunpack.c.h.b16 %v5882
    %v6654 = vunpack.c.l.b16 %v5883
    %v6655 = vunpack.c.h.b16 %v5883
    %v6656 = vunpack.c.l.b16 %v5884
    %v6657 = vunpack.c.h.b16 %v5884
    %v6658 = vunpack.c.l.b16 %v5885
    %v6659 = vunpack.c.h.b16 %v5885
    %v6660 = vunpack.c.l.b16 %v5886
    %v6661 = vunpack.c.h.b16 %v5886
    %v6662 = vunpack.c.l.b16 %v5887
    %v6663 = vunpack.c.h.b16 %v5887
    %v6664 = vunpack.c.l.b16 %v5888
    %v6665 = vunpack.c.h.b16 %v5888
    %v6666 = vunpack.c.l.b16 %v5889
    %v6667 = vunpack.c.h.b16 %v5889
    %v6668 = vunpack.c.l.b16 %v5890
    %v6669 = vunpack.c.h.b16 %v5890
    %v6670 = vunpack.c.l.b16 %v5891
    %v6671 = vunpack.c.h.b16 %v5891
    %v6672 = vunpack.c.l.b16 %v5892
    %v6673 = vunpack.c.h.b16 %v5892
    %v6674 = vunpack.c.l.b16 %v5893
    %v6675 = vunpack.c.h.b16 %v5893
    %v6676 = vunpack.c.l.b16 %v5894
    %v6677 = vunpack.c.h.b16 %v5894
    %v6678 = vunpack.c.l.b16 %v5895
    %v6679 = vunpack.c.h.b16 %v5895
    %v6680 = vunpack.c.l.b16 %v5896
    %v6681 = vunpack.c.h.b16 %v5896
    %v6682 = vunpack.c.l.b16 %v5897
    %v6683 = vunpack.c.h.b16 %v5897
    %v6684 = vunpack.c.l.b16 %v5898
    %v6685 = vunpack.c.h.b16 %v5898
    %v6686 = vunpack.c.l.b16 %v5899
    %v6687 = vunpack.c.h.b16 %v5899
    %v6688 = vunpack.c.l.b16 %v5900
    %v6689 = vunpack.c.h.b16 %v5900
    %v6690 = vunpack.c.l.b16 %v5901
    %v6691 = vunpack.c.h.b16 %v5901
    %v6692 = vunpack.c.l.b16 %v5902
    %v6693 = vunpack.c.h.b16 %v5902
    %v6694 = vunpack.c.l.b16 %v5903
    %v6695 = vunpack.c.h.b16 %v5903
    %v6696 = vunpack.c.l.b16 %v5904
    %v6697 = vunpack.c.h.b16 %v5904
    %v6698 = vunpack.c.l.b16 %v5905
    %v6699 = vunpack.c.h.b16 %v5905
    %v6700 = vunpack.c.l.b16 %v5906
    %v6701 = vunpack.c.h.b16 %v5906
    %v6702 = vunpack.c.l.b16 %v5907
    %v6703 = vunpack.c.h.b16 %v5907
    %v6704 = vunpack.c.l.b16 %v5908
    %v6705 = vunpack.c.h.b16 %v5908
    %v6706 = vunpack.c.l.b16 %v5909
    %v6707 = vunpack.c.h.b16 %v5909
    %v6708 = vunpack.c.l.b16 %v5910
    %v6709 = vunpack.c.h.b16 %v5910
    %v6710 = vunpack.c.l.b16 %v5911
    %v6711 = vunpack.c.h.b16 %v5911
    %v6712 = vunpack.c.l.b16 %v5912
    %v6713 = vunpack.c.h.b16 %v5912
    %v6714 = vunpack.c.l.b16 %v5913
    %v6715 = vunpack.c.h.b16 %v5913
    %v6716 = vunpack.c.l.b16 %v5914
    %v6717 = vunpack.c.h.b16 %v5914
    %v6718 = vunpack.c.l.b16 %v5915
    %v6719 = vunpack.c.h.b16 %v5915
    %v6720 = vunpack.c.l.b16 %v5916
    %v6721 = vunpack.c.h.b16 %v5916
    %v6722 = vunpack.c.l.b16 %v5917
    %v6723 = vunpack.c.h.b16 %v5917
    %v6724 = vunpack.c.l.b16 %v5918
    %v6725 = vunpack.c.h.b16 %v5918
    %v6726 = vunpack.c.l.b16 %v5919
    %v6727 = vunpack.c.h.b16 %v5919
    %v6728 = vunpack.c.l.b16 %v5920
    %v6729 = vunpack.c.h.b16 %v5920
    %v6730 = vunpack.c.l.b16 %v5921
    %v6731 = vunpack.c.h.b16 %v5921
    %v6732 = vpack.c.b16 %v6228, %v6220
    %v6733 = vpack.c.b16 %v6229, %v6221
    %v6734 = vpack.c.b16 %v6230, %v6222
    %v6735 = vpack.c.b16 %v6231, %v6223
    %v6736 = vpack.c.b16 %v6232, %v6224
    %v6737 = vpack.c.b16 %v6233, %v6225
    %v6738 = vpack.c.b16 %v6234, %v6226
    %v6739 = vpack.c.b16 %v6235, %v6227
    %v6740 = vpack.c.b16 %v6244, %v6236
    %v6741 = vpack.c.b16 %v6245, %v6237
    %v6742 = vpack.c.b16 %v6246, %v6238
    %v6743 = vpack.c.b16 %v6247, %v6239
    %v6744 = vpack.c.b16 %v6248, %v6240
    %v6745 = vpack.c.b16 %v6249, %v6241
    %v6746 = vpack.c.b16 %v6250, %v6242
    %v6747 = vpack.c.b16 %v6251, %v6243
    %v6748 = vpack.c.b16 %v6260, %v6252
    %v6749 = vpack.c.b16 %v6261, %v6253
    %v6750 = vpack.c.b16 %v6262, %v6254
    %v6751 = vpack.c.b16 %v6263, %v6255
    %v6752 = vpack.c.b16 %v6264, %v6256
    %v6753 = vpack.c.b16 %v6265, %v6257
    %v6754 = vpack.c.b16 %v6266, %v6258
    %v6755 = vpack.c.b16 %v6267, %v6259
    %v6756 = vpack.c.b16 %v6276, %v6268
    %v6757 = vpack.c.b16 %v6277, %v6269
    %v6758 = vpack.c.b16 %v6278, %v6270
    %v6759 = vpack.c.b16 %v6279, %v6271
    %v6760 = vpack.c.b16 %v6280, %v6272
    %v6761 = vpack.c.b16 %v6281, %v6273
    %v6762 = vpack.c.b16 %v6282, %v6274
    %v6763 = vpack.c.b16 %v6283, %v6275
    %v6764 = vpack.c.b16 %v6292, %v6284
    %v6765 = vpack.c.b16 %v6293, %v6285
    %v6766 = vpack.c.b16 %v6294, %v6286
    %v6767 = vpack.c.b16 %v6295, %v6287
    %v6768 = vpack.c.b16 %v6296, %v6288
    %v6769 = vpack.c.b16 %v6297, %v6289
    %v6770 = vpack.c.b16 %v6298, %v6290
    %v6771 = vpack.c.b16 %v6299, %v6291
    %v6772 = vpack.c.b16 %v6308, %v6300
    %v6773 = vpack.c.b16 %v6309, %v6301
    %v6774 = vpack.c.b16 %v6310, %v6302
    %v6775 = vpack.c.b16 %v6311, %v6303
    %v6776 = vpack.c.b16 %v6312, %v6304
    %v6777 = vpack.c.b16 %v6313, %v6305
    %v6778 = vpack.c.b16 %v6314, %v6306
    %v6779 = vpack.c.b16 %v6315, %v6307
    %v6780 = vpack.c.b16 %v6324, %v6316
    %v6781 = vpack.c.b16 %v6325, %v6317
    %v6782 = vpack.c.b16 %v6326, %v6318
    %v6783 = vpack.c.b16 %v6327, %v6319
    %v6784 = vpack.c.b16 %v6328, %v6320
    %v6785 = vpack.c.b16 %v6329, %v6321
    %v6786 = vpack.c.b16 %v6330, %v6322
    %v6787 = vpack.c.b16 %v6331, %v6323
    %v6788 = vpack.c.b16 %v6340, %v6332
    %v6789 = vpack.c.b16 %v6341, %v6333
    %v6790 = vpack.c.b16 %v6342, %v6334
    %v6791 = vpack.c.b16 %v6343, %v6335
    %v6792 = vpack.c.b16 %v6344, %v6336
    %v6793 = vpack.c.b16 %v6345, %v6337
    %v6794 = vpack.c.b16 %v6346, %v6338
    %v6795 = vpack.c.b16 %v6347, %v6339
    %v6796 = vpack.c.b16 %v6356, %v6348
    %v6797 = vpack.c.b16 %v6357, %v6349
    %v6798 = vpack.c.b16 %v6358, %v6350
    %v6799 = vpack.c.b16 %v6359, %v6351
    %v6800 = vpack.c.b16 %v6360, %v6352
    %v6801 = vpack.c.b16 %v6361, %v6353
    %v6802 = vpack.c.b16 %v6362, %v6354
    %v6803 = vpack.c.b16 %v6363, %v6355
    %v6804 = vpack.c.b16 %v6372, %v6364
    %v6805 = vpack.c.b16 %v6373, %v6365
    %v6806 = vpack.c.b16 %v6374, %v6366
    %v6807 = vpack.c.b16 %v6375, %v6367
    %v6808 = vpack.c.b16 %v6376, %v6368
    %v6809 = vpack.c.b16 %v6377, %v6369
    %v6810 = vpack.c.b16 %v6378, %v6370
    %v6811 = vpack.c.b16 %v6379, %v6371
    %v6812 = vpack.c.b16 %v6388, %v6380
    %v6813 = vpack.c.b16 %v6389, %v6381
    %v6814 = vpack.c.b16 %v6390, %v6382
    %v6815 = vpack.c.b16 %v6391, %v6383
    %v6816 = vpack.c.b16 %v6392, %v6384
    %v6817 = vpack.c.b16 %v6393, %v6385
    %v6818 = vpack.c.b16 %v6394, %v6386
    %v6819 = vpack.c.b16 %v6395, %v6387
    %v6820 = vpack.c.b16 %v6404, %v6396
    %v6821 = vpack.c.b16 %v6405, %v6397
    %v6822 = vpack.c.b16 %v6406, %v6398
    %v6823 = vpack.c.b16 %v6407, %v6399
    %v6824 = vpack.c.b16 %v6408, %v6400
    %v6825 = vpack.c.b16 %v6409, %v6401
    %v6826 = vpack.c.b16 %v6410, %v6402
    %v6827 = vpack.c.b16 %v6411, %v6403
    %v6828 = vpack.c.b16 %v6420, %v6412
    %v6829 = vpack.c.b16 %v6421, %v6413
    %v6830 = vpack.c.b16 %v6422, %v6414
    %v6831 = vpack.c.b16 %v6423, %v6415
    %v6832 = vpack.c.b16 %v6424, %v6416
    %v6833 = vpack.c.b16 %v6425, %v6417
    %v6834 = vpack.c.b16 %v6426, %v6418
    %v6835 = vpack.c.b16 %v6427, %v6419
    %v6836 = vpack.c.b16 %v6436, %v6428
    %v6837 = vpack.c.b16 %v6437, %v6429
    %v6838 = vpack.c.b16 %v6438, %v6430
    %v6839 = vpack.c.b16 %v6439, %v6431
    %v6840 = vpack.c.b16 %v6440, %v6432
    %v6841 = vpack.c.b16 %v6441, %v6433
    %v6842 = vpack.c.b16 %v6442, %v6434
    %v6843 = vpack.c.b16 %v6443, %v6435
    %v6844 = vpack.c.b16 %v6452, %v6444
    %v6845 = vpack.c.b16 %v6453, %v6445
    %v6846 = vpack.c.b16 %v6454, %v6446
    %v6847 = vpack.c.b16 %v6455, %v6447
    %v6848 = vpack.c.b16 %v6456, %v6448
    %v6849 = vpack.c.b16 %v6457, %v6449
    %v6850 = vpack.c.b16 %v6458, %v6450
    %v6851 = vpack.c.b16 %v6459, %v6451
    %v6852 = vpack.c.b16 %v6468, %v6460
    %v6853 = vpack.c.b16 %v6469, %v6461
    %v6854 = vpack.c.b16 %v6470, %v6462
    %v6855 = vpack.c.b16 %v6471, %v6463
    %v6856 = vpack.c.b16 %v6472, %v6464
    %v6857 = vpack.c.b16 %v6473, %v6465
    %v6858 = vpack.c.b16 %v6474, %v6466
    %v6859 = vpack.c.b16 %v6475, %v6467
    %v6860 = vpack.c.b16 %v6484, %v6476
    %v6861 = vpack.c.b16 %v6485, %v6477
    %v6862 = vpack.c.b16 %v6486, %v6478
    %v6863 = vpack.c.b16 %v6487, %v6479
    %v6864 = vpack.c.b16 %v6488, %v6480
    %v6865 = vpack.c.b16 %v6489, %v6481
    %v6866 = vpack.c.b16 %v6490, %v6482
    %v6867 = vpack.c.b16 %v6491, %v6483
    %v6868 = vpack.c.b16 %v6500, %v6492
    %v6869 = vpack.c.b16 %v6501, %v6493
    %v6870 = vpack.c.b16 %v6502, %v6494
    %v6871 = vpack.c.b16 %v6503, %v6495
    %v6872 = vpack.c.b16 %v6504, %v6496
    %v6873 = vpack.c.b16 %v6505, %v6497
    %v6874 = vpack.c.b16 %v6506, %v6498
    %v6875 = vpack.c.b16 %v6507, %v6499
    %v6876 = vpack.c.b16 %v6516, %v6508
    %v6877 = vpack.c.b16 %v6517, %v6509
    %v6878 = vpack.c.b16 %v6518, %v6510
    %v6879 = vpack.c.b16 %v6519, %v6511
    %v6880 = vpack.c.b16 %v6520, %v6512
    %v6881 = vpack.c.b16 %v6521, %v6513
    %v6882 = vpack.c.b16 %v6522, %v6514
    %v6883 = vpack.c.b16 %v6523, %v6515
    %v6884 = vpack.c.b16 %v6532, %v6524
    %v6885 = vpack.c.b16 %v6533, %v6525
    %v6886 = vpack.c.b16 %v6534, %v6526
    %v6887 = vpack.c.b16 %v6535, %v6527
    %v6888 = vpack.c.b16 %v6536, %v6528
    %v6889 = vpack.c.b16 %v6537, %v6529
    %v6890 = vpack.c.b16 %v6538, %v6530
    %v6891 = vpack.c.b16 %v6539, %v6531
    %v6892 = vpack.c.b16 %v6548, %v6540
    %v6893 = vpack.c.b16 %v6549, %v6541
    %v6894 = vpack.c.b16 %v6550, %v6542
    %v6895 = vpack.c.b16 %v6551, %v6543
    %v6896 = vpack.c.b16 %v6552, %v6544
    %v6897 = vpack.c.b16 %v6553, %v6545
    %v6898 = vpack.c.b16 %v6554, %v6546
    %v6899 = vpack.c.b16 %v6555, %v6547
    %v6900 = vpack.c.b16 %v6564, %v6556
    %v6901 = vpack.c.b16 %v6565, %v6557
    %v6902 = vpack.c.b16 %v6566, %v6558
    %v6903 = vpack.c.b16 %v6567, %v6559
    %v6904 = vpack.c.b16 %v6568, %v6560
    %v6905 = vpack.c.b16 %v6569, %v6561
    %v6906 = vpack.c.b16 %v6570, %v6562
    %v6907 = vpack.c.b16 %v6571, %v6563
    %v6908 = vpack.c.b16 %v6580, %v6572
    %v6909 = vpack.c.b16 %v6581, %v6573
    %v6910 = vpack.c.b16 %v6582, %v6574
    %v6911 = vpack.c.b16 %v6583, %v6575
    %v6912 = vpack.c.b16 %v6584, %v6576
    %v6913 = vpack.c.b16 %v6585, %v6577
    %v6914 = vpack.c.b16 %v6586, %v6578
    %v6915 = vpack.c.b16 %v6587, %v6579
    %v6916 = vpack.c.b16 %v6596, %v6588
    %v6917 = vpack.c.b16 %v6597, %v6589
    %v6918 = vpack.c.b16 %v6598, %v6590
    %v6919 = vpack.c.b16 %v6599, %v6591
    %v6920 = vpack.c.b16 %v6600, %v6592
    %v6921 = vpack.c.b16 %v6601, %v6593
    %v6922 = vpack.c.b16 %v6602, %v6594
    %v6923 = vpack.c.b16 %v6603, %v6595
    %v6924 = vpack.c.b16 %v6612, %v6604
    %v6925 = vpack.c.b16 %v6613, %v6605
    %v6926 = vpack.c.b16 %v6614, %v6606
    %v6927 = vpack.c.b16 %v6615, %v6607
    %v6928 = vpack.c.b16 %v6616, %v6608
    %v6929 = vpack.c.b16 %v6617, %v6609
    %v6930 = vpack.c.b16 %v6618, %v6610
    %v6931 = vpack.c.b16 %v6619, %v6611
    %v6932 = vpack.c.b16 %v6628, %v6620
    %v6933 = vpack.c.b16 %v6629, %v6621
    %v6934 = vpack.c.b16 %v6630, %v6622
    %v6935 = vpack.c.b16 %v6631, %v6623
    %v6936 = vpack.c.b16 %v6632, %v6624
    %v6937 = vpack.c.b16 %v6633, %v6625
    %v6938 = vpack.c.b16 %v6634, %v6626
    %v6939 = vpack.c.b16 %v6635, %v6627
    %v6940 = vpack.c.b16 %v6644, %v6636
    %v6941 = vpack.c.b16 %v6645, %v6637
    %v6942 = vpack.c.b16 %v6646, %v6638
    %v6943 = vpack.c.b16 %v6647, %v6639
    %v6944 = vpack.c.b16 %v6648, %v6640
    %v6945 = vpack.c.b16 %v6649, %v6641
    %v6946 = vpack.c.b16 %v6650, %v6642
    %v6947 = vpack.c.b16 %v6651, %v6643
    %v6948 = vpack.c.b16 %v6660, %v6652
    %v6949 = vpack.c.b16 %v6661, %v6653
    %v6950 = vpack.c.b16 %v6662, %v6654
    %v6951 = vpack.c.b16 %v6663, %v6655
    %v6952 = vpack.c.b16 %v6664, %v6656
    %v6953 = vpack.c.b16 %v6665, %v6657
    %v6954 = vpack.c.b16 %v6666, %v6658
    %v6955 = vpack.c.b16 %v6667, %v6659
    %v6956 = vpack.c.b16 %v6676, %v6668
    %v6957 = vpack.c.b16 %v6677, %v6669
    %v6958 = vpack.c.b16 %v6678, %v6670
    %v6959 = vpack.c.b16 %v6679, %v6671
    %v6960 = vpack.c.b16 %v6680, %v6672
    %v6961 = vpack.c.b16 %v6681, %v6673
    %v6962 = vpack.c.b16 %v6682, %v6674
    %v6963 = vpack.c.b16 %v6683, %v6675
    %v6964 = vpack.c.b16 %v6692, %v6684
    %v6965 = vpack.c.b16 %v6693, %v6685
    %v6966 = vpack.c.b16 %v6694, %v6686
    %v6967 = vpack.c.b16 %v6695, %v6687
    %v6968 = vpack.c.b16 %v6696, %v6688
    %v6969 = vpack.c.b16 %v6697, %v6689
    %v6970 = vpack.c.b16 %v6698, %v6690
    %v6971 = vpack.c.b16 %v6699, %v6691
    %v6972 = vpack.c.b16 %v6708, %v6700
    %v6973 = vpack.c.b16 %v6709, %v6701
    %v6974 = vpack.c.b16 %v6710, %v6702
    %v6975 = vpack.c.b16 %v6711, %v6703
    %v6976 = vpack.c.b16 %v6712, %v6704
    %v6977 = vpack.c.b16 %v6713, %v6705
    %v6978 = vpack.c.b16 %v6714, %v6706
    %v6979 = vpack.c.b16 %v6715, %v6707
    %v6980 = vpack.c.b16 %v6724, %v6716
    %v6981 = vpack.c.b16 %v6725, %v6717
    %v6982 = vpack.c.b16 %v6726, %v6718
    %v6983 = vpack.c.b16 %v6727, %v6719
    %v6984 = vpack.c.b16 %v6728, %v6720
    %v6985 = vpack.c.b16 %v6729, %v6721
    %v6986 = vpack.c.b16 %v6730, %v6722
    %v6987 = vpack.c.b16 %v6731, %v6723
    %7244 = vmatprep.subr.bf16.mxu0 %v6733
    %7245 = vmatpush1.bf16.msra.mxu0 %v6732
    %7246 = vmatprep.subr.bf16.mxu0 %v6741
    %7247 = vmatpush1.bf16.msra.mxu0 %v6740
    %7248 = vmatprep.subr.bf16.mxu0 %v6749
    %7249 = vmatpush1.bf16.msra.mxu0 %v6748
    %7250 = vmatprep.subr.bf16.mxu0 %v6757
    %7251 = vmatpush1.bf16.msra.mxu0 %v6756
    %7252 = vmatprep.subr.bf16.mxu0 %v6765
    %7253 = vmatpush1.bf16.msra.mxu0 %v6764
    %7254 = vmatprep.subr.bf16.mxu0 %v6773
    %7255 = vmatpush1.bf16.msra.mxu0 %v6772
    %7256 = vmatprep.subr.bf16.mxu0 %v6781
    %7257 = vmatpush1.bf16.msra.mxu0 %v6780
    %7258 = vmatprep.subr.bf16.mxu0 %v6789
    %7259 = vmatpush1.bf16.msra.mxu0 %v6788
    %7260 = vmatprep.subr.bf16.mxu0 %v6797
    %7261 = vmatpush1.bf16.msra.mxu0 %v6796
    %7262 = vmatprep.subr.bf16.mxu0 %v6805
    %7263 = vmatpush1.bf16.msra.mxu0 %v6804
    %7264 = vmatprep.subr.bf16.mxu0 %v6813
    %7265 = vmatpush1.bf16.msra.mxu0 %v6812
    %7266 = vmatprep.subr.bf16.mxu0 %v6821
    %7267 = vmatpush1.bf16.msra.mxu0 %v6820
    %7268 = vmatprep.subr.bf16.mxu0 %v6829
    %7269 = vmatpush1.bf16.msra.mxu0 %v6828
    %7270 = vmatprep.subr.bf16.mxu0 %v6837
    %7271 = vmatpush1.bf16.msra.mxu0 %v6836
    %7272 = vmatprep.subr.bf16.mxu0 %v6845
    %7273 = vmatpush1.bf16.msra.mxu0 %v6844
    %7274 = vmatprep.subr.bf16.mxu0 %v6853
    %7275 = vmatpush1.bf16.msra.mxu0 %v6852
    %7276 = vmatprep.mubr.bf16.mxu0 %v5663
    %7277 = vmatmul.mubr.bf16.gmra.mrb[0].mxu0 %v5662
    %v7278 = vpop.f32.mrb[0].mxu0
    %v7279 = vadd.f32 %v5927, %v7278
    %v7280 = vpop.f32.mrb[0].mxu0
    %v7281 = vadd.f32 %v5931, %v7280
    %v7282 = vpop.f32.mrb[0].mxu0
    %v7283 = vpop.f32.mrb[0].mxu0
    %7284 = vdwg.mxu0
    %7285 = vmatprep.subr.bf16.mxu0 %v6861
    %7286 = vmatpush1.bf16.msra.mxu0 %v6860
    %7287 = vmatprep.subr.bf16.mxu0 %v6869
    %7288 = vmatpush1.bf16.msra.mxu0 %v6868
    %7289 = vmatprep.subr.bf16.mxu0 %v6877
    %7290 = vmatpush1.bf16.msra.mxu0 %v6876
    %7291 = vmatprep.subr.bf16.mxu0 %v6885
    %7292 = vmatpush1.bf16.msra.mxu0 %v6884
    %7293 = vmatprep.subr.bf16.mxu0 %v6893
    %7294 = vmatpush1.bf16.msra.mxu0 %v6892
    %7295 = vmatprep.subr.bf16.mxu0 %v6901
    %7296 = vmatpush1.bf16.msra.mxu0 %v6900
    %7297 = vmatprep.subr.bf16.mxu0 %v6909
    %7298 = vmatpush1.bf16.msra.mxu0 %v6908
    %7299 = vmatprep.subr.bf16.mxu0 %v6917
    %7300 = vmatpush1.bf16.msra.mxu0 %v6916
    %7301 = vmatprep.subr.bf16.mxu0 %v6925
    %7302 = vmatpush1.bf16.msra.mxu0 %v6924
    %7303 = vmatprep.subr.bf16.mxu0 %v6933
    %7304 = vmatpush1.bf16.msra.mxu0 %v6932
    %7305 = vmatprep.subr.bf16.mxu0 %v6941
    %7306 = vmatpush1.bf16.msra.mxu0 %v6940
    %7307 = vmatprep.subr.bf16.mxu0 %v6949
    %7308 = vmatpush1.bf16.msra.mxu0 %v6948
    %7309 = vmatprep.subr.bf16.mxu0 %v6957
    %7310 = vmatpush1.bf16.msra.mxu0 %v6956
    %7311 = vmatprep.subr.bf16.mxu0 %v6965
    %7312 = vmatpush1.bf16.msra.mxu0 %v6964
    %7313 = vmatprep.subr.bf16.mxu0 %v6973
    %7314 = vmatpush1.bf16.msra.mxu0 %v6972
    %7315 = vmatprep.subr.bf16.mxu0 %v6981
    %7316 = vmatpush1.bf16.msra.mxu0 %v6980
    %7317 = vmatprep.mubr.bf16.mxu0 %v5665
    %7318 = vmatmul.mubr.bf16.gmra.mrb[0].mxu0 %v5664
    %v7319 = vpop.f32.mrb[0].mxu0
    %v7320 = vadd.f32 %v7279, %v7319
    %v7321 = vpop.f32.mrb[0].mxu0
    %v7322 = vadd.f32 %v7281, %v7321
    %v7323 = vpop.f32.mrb[0].mxu0
    %v7324 = vpop.f32.mrb[0].mxu0
    %7325 = vdwg.mxu0
    %7326 = vmatprep.subr.bf16.mxu0 %v6735
    %7327 = vmatpush1.bf16.msra.mxu0 %v6734
    %7328 = vmatprep.subr.bf16.mxu0 %v6743
    %7329 = vmatpush1.bf16.msra.mxu0 %v6742
    %7330 = vmatprep.subr.bf16.mxu0 %v6751
    %7331 = vmatpush1.bf16.msra.mxu0 %v6750
    %7332 = vmatprep.subr.bf16.mxu0 %v6759
    %7333 = vmatpush1.bf16.msra.mxu0 %v6758
    %7334 = vmatprep.subr.bf16.mxu0 %v6767
    %7335 = vmatpush1.bf16.msra.mxu0 %v6766
    %7336 = vmatprep.subr.bf16.mxu0 %v6775
    %7337 = vmatpush1.bf16.msra.mxu0 %v6774
    %7338 = vmatprep.subr.bf16.mxu0 %v6783
    %7339 = vmatpush1.bf16.msra.mxu0 %v6782
    %7340 = vmatprep.subr.bf16.mxu0 %v6791
    %7341 = vmatpush1.bf16.msra.mxu0 %v6790
    %7342 = vmatprep.subr.bf16.mxu0 %v6799
    %7343 = vmatpush1.bf16.msra.mxu0 %v6798
    %7344 = vmatprep.subr.bf16.mxu0 %v6807
    %7345 = vmatpush1.bf16.msra.mxu0 %v6806
    %7346 = vmatprep.subr.bf16.mxu0 %v6815
    %7347 = vmatpush1.bf16.msra.mxu0 %v6814
    %7348 = vmatprep.subr.bf16.mxu0 %v6823
    %7349 = vmatpush1.bf16.msra.mxu0 %v6822
    %7350 = vmatprep.subr.bf16.mxu0 %v6831
    %7351 = vmatpush1.bf16.msra.mxu0 %v6830
    %7352 = vmatprep.subr.bf16.mxu0 %v6839
    %7353 = vmatpush1.bf16.msra.mxu0 %v6838
    %7354 = vmatprep.subr.bf16.mxu0 %v6847
    %7355 = vmatpush1.bf16.msra.mxu0 %v6846
    %7356 = vmatprep.subr.bf16.mxu0 %v6855
    %7357 = vmatpush1.bf16.msra.mxu0 %v6854
    %7358 = vmatprep.mubr.bf16.mxu0 %v5663
    %7359 = vmatmul.mubr.bf16.gmra.mrb[0].mxu0 %v5662
    %v7360 = vpop.f32.mrb[0].mxu0
    %v7361 = vadd.f32 %v5935, %v7360
    %v7362 = vpop.f32.mrb[0].mxu0
    %v7363 = vadd.f32 %v5939, %v7362
    %v7364 = vpop.f32.mrb[0].mxu0
    %v7365 = vpop.f32.mrb[0].mxu0
    %7366 = vdwg.mxu0
    %7367 = vmatprep.subr.bf16.mxu0 %v6863
    %7368 = vmatpush1.bf16.msra.mxu0 %v6862
    %7369 = vmatprep.subr.bf16.mxu0 %v6871
    %7370 = vmatpush1.bf16.msra.mxu0 %v6870
    %7371 = vmatprep.subr.bf16.mxu0 %v6879
    %7372 = vmatpush1.bf16.msra.mxu0 %v6878
    %7373 = vmatprep.subr.bf16.mxu0 %v6887
    %7374 = vmatpush1.bf16.msra.mxu0 %v6886
    %7375 = vmatprep.subr.bf16.mxu0 %v6895
    %7376 = vmatpush1.bf16.msra.mxu0 %v6894
    %7377 = vmatprep.subr.bf16.mxu0 %v6903
    %7378 = vmatpush1.bf16.msra.mxu0 %v6902
    %7379 = vmatprep.subr.bf16.mxu0 %v6911
    %7380 = vmatpush1.bf16.msra.mxu0 %v6910
    %7381 = vmatprep.subr.bf16.mxu0 %v6919
    %7382 = vmatpush1.bf16.msra.mxu0 %v6918
    %7383 = vmatprep.subr.bf16.mxu0 %v6927
    %7384 = vmatpush1.bf16.msra.mxu0 %v6926
    %7385 = vmatprep.subr.bf16.mxu0 %v6935
    %7386 = vmatpush1.bf16.msra.mxu0 %v6934
    %7387 = vmatprep.subr.bf16.mxu0 %v6943
    %7388 = vmatpush1.bf16.msra.mxu0 %v6942
    %7389 = vmatprep.subr.bf16.mxu0 %v6951
    %7390 = vmatpush1.bf16.msra.mxu0 %v6950
    %7391 = vmatprep.subr.bf16.mxu0 %v6959
    %7392 = vmatpush1.bf16.msra.mxu0 %v6958
    %7393 = vmatprep.subr.bf16.mxu0 %v6967
    %7394 = vmatpush1.bf16.msra.mxu0 %v6966
    %7395 = vmatprep.subr.bf16.mxu0 %v6975
    %7396 = vmatpush1.bf16.msra.mxu0 %v6974
    %7397 = vmatprep.subr.bf16.mxu0 %v6983
    %7398 = vmatpush1.bf16.msra.mxu0 %v6982
    %7399 = vmatprep.mubr.bf16.mxu0 %v5665
    %7400 = vmatmul.mubr.bf16.gmra.mrb[0].mxu0 %v5664
    %v7401 = vpop.f32.mrb[0].mxu0
    %v7402 = vadd.f32 %v7361, %v7401
    %v7403 = vpop.f32.mrb[0].mxu0
    %v7404 = vadd.f32 %v7363, %v7403
    %v7405 = vpop.f32.mrb[0].mxu0
    %v7406 = vpop.f32.mrb[0].mxu0
    %7407 = vdwg.mxu0
    %7408 = vmatprep.subr.bf16.mxu0 %v6737
    %7409 = vmatpush1.bf16.msra.mxu0 %v6736
    %7410 = vmatprep.subr.bf16.mxu0 %v6745
    %7411 = vmatpush1.bf16.msra.mxu0 %v6744
    %7412 = vmatprep.subr.bf16.mxu0 %v6753
    %7413 = vmatpush1.bf16.msra.mxu0 %v6752
    %7414 = vmatprep.subr.bf16.mxu0 %v6761
    %7415 = vmatpush1.bf16.msra.mxu0 %v6760
    %7416 = vmatprep.subr.bf16.mxu0 %v6769
    %7417 = vmatpush1.bf16.msra.mxu0 %v6768
    %7418 = vmatprep.subr.bf16.mxu0 %v6777
    %7419 = vmatpush1.bf16.msra.mxu0 %v6776
    %7420 = vmatprep.subr.bf16.mxu0 %v6785
    %7421 = vmatpush1.bf16.msra.mxu0 %v6784
    %7422 = vmatprep.subr.bf16.mxu0 %v6793
    %7423 = vmatpush1.bf16.msra.mxu0 %v6792
    %7424 = vmatprep.subr.bf16.mxu0 %v6801
    %7425 = vmatpush1.bf16.msra.mxu0 %v6800
    %7426 = vmatprep.subr.bf16.mxu0 %v6809
    %7427 = vmatpush1.bf16.msra.mxu0 %v6808
    %7428 = vmatprep.subr.bf16.mxu0 %v6817
    %7429 = vmatpush1.bf16.msra.mxu0 %v6816
    %7430 = vmatprep.subr.bf16.mxu0 %v6825
    %7431 = vmatpush1.bf16.msra.mxu0 %v6824
    %7432 = vmatprep.subr.bf16.mxu0 %v6833
    %7433 = vmatpush1.bf16.msra.mxu0 %v6832
    %7434 = vmatprep.subr.bf16.mxu0 %v6841
    %7435 = vmatpush1.bf16.msra.mxu0 %v6840
    %7436 = vmatprep.subr.bf16.mxu0 %v6849
    %7437 = vmatpush1.bf16.msra.mxu0 %v6848
    %7438 = vmatprep.subr.bf16.mxu0 %v6857
    %7439 = vmatpush1.bf16.msra.mxu0 %v6856
    %7440 = vmatprep.mubr.bf16.mxu0 %v5663
    %7441 = vmatmul.mubr.bf16.gmra.mrb[0].mxu0 %v5662
    %v7442 = vpop.f32.mrb[0].mxu0
    %v7443 = vadd.f32 %v5943, %v7442
    %v7444 = vpop.f32.mrb[0].mxu0
    %v7445 = vadd.f32 %v5947, %v7444
    %v7446 = vpop.f32.mrb[0].mxu0
    %v7447 = vpop.f32.mrb[0].mxu0
    %7448 = vdwg.mxu0
    %7449 = vmatprep.subr.bf16.mxu0 %v6865
    %7450 = vmatpush1.bf16.msra.mxu0 %v6864
    %7451 = vmatprep.subr.bf16.mxu0 %v6873
    %7452 = vmatpush1.bf16.msra.mxu0 %v6872
    %7453 = vmatprep.subr.bf16.mxu0 %v6881
    %7454 = vmatpush1.bf16.msra.mxu0 %v6880
    %7455 = vmatprep.subr.bf16.mxu0 %v6889
    %7456 = vmatpush1.bf16.msra.mxu0 %v6888
    %7457 = vmatprep.subr.bf16.mxu0 %v6897
    %7458 = vmatpush1.bf16.msra.mxu0 %v6896
    %7459 = vmatprep.subr.bf16.mxu0 %v6905
    %7460 = vmatpush1.bf16.msra.mxu0 %v6904
    %7461 = vmatprep.subr.bf16.mxu0 %v6913
    %7462 = vmatpush1.bf16.msra.mxu0 %v6912
    %7463 = vmatprep.subr.bf16.mxu0 %v6921
    %7464 = vmatpush1.bf16.msra.mxu0 %v6920
    %7465 = vmatprep.subr.bf16.mxu0 %v6929
    %7466 = vmatpush1.bf16.msra.mxu0 %v6928
    %7467 = vmatprep.subr.bf16.mxu0 %v6937
    %7468 = vmatpush1.bf16.msra.mxu0 %v6936
    %7469 = vmatprep.subr.bf16.mxu0 %v6945
    %7470 = vmatpush1.bf16.msra.mxu0 %v6944
    %7471 = vmatprep.subr.bf16.mxu0 %v6953
    %7472 = vmatpush1.bf16.msra.mxu0 %v6952
    %7473 = vmatprep.subr.bf16.mxu0 %v6961
    %7474 = vmatpush1.bf16.msra.mxu0 %v6960
    %7475 = vmatprep.subr.bf16.mxu0 %v6969
    %7476 = vmatpush1.bf16.msra.mxu0 %v6968
    %7477 = vmatprep.subr.bf16.mxu0 %v6977
    %7478 = vmatpush1.bf16.msra.mxu0 %v6976
    %7479 = vmatprep.subr.bf16.mxu0 %v6985
    %7480 = vmatpush1.bf16.msra.mxu0 %v6984
    %7481 = vmatprep.mubr.bf16.mxu0 %v5665
    %7482 = vmatmul.mubr.bf16.gmra.mrb[0].mxu0 %v5664
    %v7483 = vpop.f32.mrb[0].mxu0
    %v7484 = vadd.f32 %v7443, %v7483
    %v7485 = vpop.f32.mrb[0].mxu0
    %v7486 = vadd.f32 %v7445, %v7485
    %v7487 = vpop.f32.mrb[0].mxu0
    %v7488 = vpop.f32.mrb[0].mxu0
    %7489 = vdwg.mxu0
    %7490 = vmatprep.subr.bf16.mxu0 %v6739
    %7491 = vmatpush1.bf16.msra.mxu0 %v6738
    %7492 = vmatprep.subr.bf16.mxu0 %v6747
    %7493 = vmatpush1.bf16.msra.mxu0 %v6746
    %7494 = vmatprep.subr.bf16.mxu0 %v6755
    %7495 = vmatpush1.bf16.msra.mxu0 %v6754
    %7496 = vmatprep.subr.bf16.mxu0 %v6763
    %7497 = vmatpush1.bf16.msra.mxu0 %v6762
    %7498 = vmatprep.subr.bf16.mxu0 %v6771
    %7499 = vmatpush1.bf16.msra.mxu0 %v6770
    %7500 = vmatprep.subr.bf16.mxu0 %v6779
    %7501 = vmatpush1.bf16.msra.mxu0 %v6778
    %7502 = vmatprep.subr.bf16.mxu0 %v6787
    %7503 = vmatpush1.bf16.msra.mxu0 %v6786
    %7504 = vmatprep.subr.bf16.mxu0 %v6795
    %7505 = vmatpush1.bf16.msra.mxu0 %v6794
    %7506 = vmatprep.subr.bf16.mxu0 %v6803
    %7507 = vmatpush1.bf16.msra.mxu0 %v6802
    %7508 = vmatprep.subr.bf16.mxu0 %v6811
    %7509 = vmatpush1.bf16.msra.mxu0 %v6810
    %7510 = vmatprep.subr.bf16.mxu0 %v6819
    %7511 = vmatpush1.bf16.msra.mxu0 %v6818
    %7512 = vmatprep.subr.bf16.mxu0 %v6827
    %7513 = vmatpush1.bf16.msra.mxu0 %v6826
    %7514 = vmatprep.subr.bf16.mxu0 %v6835
    %7515 = vmatpush1.bf16.msra.mxu0 %v6834
    %7516 = vmatprep.subr.bf16.mxu0 %v6843
    %7517 = vmatpush1.bf16.msra.mxu0 %v6842
    %7518 = vmatprep.subr.bf16.mxu0 %v6851
    %7519 = vmatpush1.bf16.msra.mxu0 %v6850
    %7520 = vmatprep.subr.bf16.mxu0 %v6859
    %7521 = vmatpush1.bf16.msra.mxu0 %v6858
    %7522 = vmatprep.mubr.bf16.mxu0 %v5663
    %7523 = vmatmul.mubr.bf16.gmra.mrb[0].mxu0 %v5662
    %v7524 = vpop.f32.mrb[0].mxu0
    %v7525 = vadd.f32 %v5951, %v7524
    %v7526 = vpop.f32.mrb[0].mxu0
    %v7527 = vadd.f32 %v5955, %v7526
    %v7528 = vpop.f32.mrb[0].mxu0
    %v7529 = vpop.f32.mrb[0].mxu0
    %7530 = vdwg.mxu0
    %7531 = vmatprep.subr.bf16.mxu0 %v6867
    %7532 = vmatpush1.bf16.msra.mxu0 %v6866
    %7533 = vmatprep.subr.bf16.mxu0 %v6875
    %7534 = vmatpush1.bf16.msra.mxu0 %v6874
    %7535 = vmatprep.subr.bf16.mxu0 %v6883
    %7536 = vmatpush1.bf16.msra.mxu0 %v6882
    %7537 = vmatprep.subr.bf16.mxu0 %v6891
    %7538 = vmatpush1.bf16.msra.mxu0 %v6890
    %7539 = vmatprep.subr.bf16.mxu0 %v6899
    %7540 = vmatpush1.bf16.msra.mxu0 %v6898
    %7541 = vmatprep.subr.bf16.mxu0 %v6907
    %7542 = vmatpush1.bf16.msra.mxu0 %v6906
    %7543 = vmatprep.subr.bf16.mxu0 %v6915
    %7544 = vmatpush1.bf16.msra.mxu0 %v6914
    %7545 = vmatprep.subr.bf16.mxu0 %v6923
    %7546 = vmatpush1.bf16.msra.mxu0 %v6922
    %7547 = vmatprep.subr.bf16.mxu0 %v6931
    %7548 = vmatpush1.bf16.msra.mxu0 %v6930
    %7549 = vmatprep.subr.bf16.mxu0 %v6939
    %7550 = vmatpush1.bf16.msra.mxu0 %v6938
    %7551 = vmatprep.subr.bf16.mxu0 %v6947
    %7552 = vmatpush1.bf16.msra.mxu0 %v6946
    %7553 = vmatprep.subr.bf16.mxu0 %v6955
    %7554 = vmatpush1.bf16.msra.mxu0 %v6954
    %7555 = vmatprep.subr.bf16.mxu0 %v6963
    %7556 = vmatpush1.bf16.msra.mxu0 %v6962
    %7557 = vmatprep.subr.bf16.mxu0 %v6971
    %7558 = vmatpush1.bf16.msra.mxu0 %v6970
    %7559 = vmatprep.subr.bf16.mxu0 %v6979
    %7560 = vmatpush1.bf16.msra.mxu0 %v6978
    %7561 = vmatprep.subr.bf16.mxu0 %v6987
    %7562 = vmatpush1.bf16.msra.mxu0 %v6986
    %7563 = vmatprep.mubr.bf16.mxu0 %v5665
    %7564 = vmatmul.mubr.bf16.gmra.mrb[0].mxu0 %v5664
    %v7565 = vpop.f32.mrb[0].mxu0
    %v7566 = vadd.f32 %v7525, %v7565
    %v7567 = vpop.f32.mrb[0].mxu0
    %v7568 = vadd.f32 %v7527, %v7567
    %v7569 = vpop.f32.mrb[0].mxu0
    %v7570 = vpop.f32.mrb[0].mxu0
    %7571 = vdwg.mxu0
    %v7572 = vmax.f32 %v7320, 0.0
    %v7573 = vmax.f32 %v7322, 0.0
    %v7574 = vmax.f32 %v7402, 0.0
    %v7575 = vmax.f32 %v7404, 0.0
    %v7576 = vmax.f32 %v7484, 0.0
    %v7577 = vmax.f32 %v7486, 0.0
    %v7578 = vmax.f32 %v7566, 0.0
    %v7579 = vmax.f32 %v7568, 0.0
    %v7580 = vpack.c.bf16 %v7572, %v7572
    %v7581 = vpack.c.bf16 %v7573, %v7573
    %v7582 = vpack.c.bf16 %v7574, %v7574
    %v7583 = vpack.c.bf16 %v7575, %v7575
    %v7584 = vpack.c.bf16 %v7576, %v7576
    %v7585 = vpack.c.bf16 %v7577, %v7577
    %v7586 = vpack.c.bf16 %v7578, %v7578
    %v7587 = vpack.c.bf16 %v7579, %v7579
    %v7588 = vld [vmem:[%s18] sm:$0xff]
    %v7589 = vld [vmem:[%s18 + $0x8] sm:$0xff]
    %v7590 = vld [vmem:[%s18 + $0x10] sm:$0xff]
    %v7591 = vld [vmem:[%s18 + $0x18] sm:$0xff]
    %v7592 = vld [vmem:[%s18 + $0x20] sm:$0xf]
    %v7593 = vld [vmem:[%s18 + $0x24] sm:$0xff]
    %v7594 = vld [vmem:[%s18 + $0x2c] sm:$0xff]
    %v7595 = vld [vmem:[%s18 + $0x34] sm:$0xff]
    %v7596 = vld [vmem:[%s18 + $0x3c] sm:$0xff]
    %v7597 = vld [vmem:[%s18 + $0x44] sm:$0xf]
    %v7598 = vld [vmem:[%s18 + $0x48] sm:$0xff]
    %v7599 = vld [vmem:[%s18 + $0x50] sm:$0xff]
    %v7600 = vld [vmem:[%s18 + $0x58] sm:$0xff]
    %v7601 = vld [vmem:[%s18 + $0x60] sm:$0xff]
    %v7602 = vld [vmem:[%s18 + $0x68] sm:$0xf]
    %v7603 = vld [vmem:[%s18 + $0x6c] sm:$0xff]
    %v7604 = vld [vmem:[%s18 + $0x74] sm:$0xff]
    %v7605 = vld [vmem:[%s18 + $0x7c] sm:$0xff]
    %v7606 = vld [vmem:[%s18 + $0x84] sm:$0xff]
    %v7607 = vld [vmem:[%s18 + $0x8c] sm:$0xf]
    %v7608 = vld [vmem:[%s18 + $0x90] sm:$0xff]
    %v7609 = vld [vmem:[%s18 + $0x98] sm:$0xff]
    %v7610 = vld [vmem:[%s18 + $0xa0] sm:$0xff]
    %v7611 = vld [vmem:[%s18 + $0xa8] sm:$0xff]
    %v7612 = vld [vmem:[%s18 + $0xb0] sm:$0xf]
    %v7613 = vld [vmem:[%s18 + $0xb4] sm:$0xff]
    %v7614 = vld [vmem:[%s18 + $0xbc] sm:$0xff]
    %v7615 = vld [vmem:[%s18 + $0xc4] sm:$0xff]
    %v7616 = vld [vmem:[%s18 + $0xcc] sm:$0xff]
    %v7617 = vld [vmem:[%s18 + $0xd4] sm:$0xf]
    %v7618 = vld [vmem:[%s18 + $0xd8] sm:$0xff]
    %v7619 = vld [vmem:[%s18 + $0xe0] sm:$0xff]
    %v7620 = vld [vmem:[%s18 + $0xe8] sm:$0xff]
    %v7621 = vld [vmem:[%s18 + $0xf0] sm:$0xff]
    %v7622 = vld [vmem:[%s18 + $0xf8] sm:$0xf]
    %v7623 = vld [vmem:[%s18 + $0xfc] sm:$0xff]
    %v7624 = vld [vmem:[%s18 + $0x104] sm:$0xff]
    %v7625 = vld [vmem:[%s18 + $0x10c] sm:$0xff]
    %v7626 = vld [vmem:[%s18 + $0x114] sm:$0xff]
    %v7627 = vld [vmem:[%s18 + $0x11c] sm:$0xf]
    %v7628 = vld [vmem:[%s18 + $0x120] sm:$0xff]
    %v7629 = vld [vmem:[%s18 + $0x128] sm:$0xff]
    %v7630 = vld [vmem:[%s18 + $0x130] sm:$0xff]
    %v7631 = vld [vmem:[%s18 + $0x138] sm:$0xff]
    %v7632 = vld [vmem:[%s18 + $0x140] sm:$0xf]
    %v7633 = vld [vmem:[%s18 + $0x144] sm:$0xff]
    %v7634 = vld [vmem:[%s18 + $0x14c] sm:$0xff]
    %v7635 = vld [vmem:[%s18 + $0x154] sm:$0xff]
    %v7636 = vld [vmem:[%s18 + $0x15c] sm:$0xff]
    %v7637 = vld [vmem:[%s18 + $0x164] sm:$0xf]
    %v7638 = vld [vmem:[%s18 + $0x168] sm:$0xff]
    %v7639 = vld [vmem:[%s18 + $0x170] sm:$0xff]
    %v7640 = vld [vmem:[%s18 + $0x178] sm:$0xff]
    %v7641 = vld [vmem:[%s18 + $0x180] sm:$0xff]
    %v7642 = vld [vmem:[%s18 + $0x188] sm:$0xf]
    %v7643 = vld [vmem:[%s18 + $0x18c] sm:$0xff]
    %v7644 = vld [vmem:[%s18 + $0x194] sm:$0xff]
    %v7645 = vld [vmem:[%s18 + $0x19c] sm:$0xff]
    %v7646 = vld [vmem:[%s18 + $0x1a4] sm:$0xff]
    %v7647 = vld [vmem:[%s18 + $0x1ac] sm:$0xf]
    %v7648 = vld [vmem:[%s18 + $0x1b0] sm:$0xff]
    %v7649 = vld [vmem:[%s18 + $0x1b8] sm:$0xff]
    %v7650 = vld [vmem:[%s18 + $0x1c0] sm:$0xff]
    %v7651 = vld [vmem:[%s18 + $0x1c8] sm:$0xff]
    %v7652 = vld [vmem:[%s18 + $0x1d0] sm:$0xf]
    %v7653 = vld [vmem:[%s18 + $0x1d4] sm:$0xff]
    %v7654 = vld [vmem:[%s18 + $0x1dc] sm:$0xff]
    %v7655 = vld [vmem:[%s18 + $0x1e4] sm:$0xff]
    %v7656 = vld [vmem:[%s18 + $0x1ec] sm:$0xff]
    %v7657 = vld [vmem:[%s18 + $0x1f4] sm:$0xf]
    %v7658 = vld [vmem:[%s18 + $0x1f8] sm:$0xff]
    %v7659 = vld [vmem:[%s18 + $0x200] sm:$0xff]
    %v7660 = vld [vmem:[%s18 + $0x208] sm:$0xff]
    %v7661 = vld [vmem:[%s18 + $0x210] sm:$0xff]
    %v7662 = vld [vmem:[%s18 + $0x218] sm:$0xf]
    %v7663 = vld [vmem:[%s18 + $0x21c] sm:$0xff]
    %v7664 = vld [vmem:[%s18 + $0x224] sm:$0xff]
    %v7665 = vld [vmem:[%s18 + $0x22c] sm:$0xff]
    %v7666 = vld [vmem:[%s18 + $0x234] sm:$0xff]
    %v7667 = vld [vmem:[%s18 + $0x23c] sm:$0xf]
    %v7668 = vld [vmem:[%s18 + $0x240] sm:$0xff]
    %v7669 = vld [vmem:[%s18 + $0x248] sm:$0xff]
    %v7670 = vld [vmem:[%s18 + $0x250] sm:$0xff]
    %v7671 = vld [vmem:[%s18 + $0x258] sm:$0xff]
    %v7672 = vld [vmem:[%s18 + $0x260] sm:$0xf]
    %v7673 = vld [vmem:[%s18 + $0x264] sm:$0xff]
    %v7674 = vld [vmem:[%s18 + $0x26c] sm:$0xff]
    %v7675 = vld [vmem:[%s18 + $0x274] sm:$0xff]
    %v7676 = vld [vmem:[%s18 + $0x27c] sm:$0xff]
    %v7677 = vld [vmem:[%s18 + $0x284] sm:$0xf]
    %v7678 = vld [vmem:[%s18 + $0x288] sm:$0xff]
    %v7679 = vld [vmem:[%s18 + $0x290] sm:$0xff]
    %v7680 = vld [vmem:[%s18 + $0x298] sm:$0xff]
    %v7681 = vld [vmem:[%s18 + $0x2a0] sm:$0xff]
    %v7682 = vld [vmem:[%s18 + $0x2a8] sm:$0xf]
    %v7683 = vld [vmem:[%s18 + $0x2ac] sm:$0xff]
    %v7684 = vld [vmem:[%s18 + $0x2b4] sm:$0xff]
    %v7685 = vld [vmem:[%s18 + $0x2bc] sm:$0xff]
    %v7686 = vld [vmem:[%s18 + $0x2c4] sm:$0xff]
    %v7687 = vld [vmem:[%s18 + $0x2cc] sm:$0xf]
    %v7688 = vld [vmem:[%s18 + $0x2d0] sm:$0xff]
    %v7689 = vld [vmem:[%s18 + $0x2d8] sm:$0xff]
    %v7690 = vld [vmem:[%s18 + $0x2e0] sm:$0xff]
    %v7691 = vld [vmem:[%s18 + $0x2e8] sm:$0xff]
    %v7692 = vld [vmem:[%s18 + $0x2f0] sm:$0xf]
    %v7693 = vld [vmem:[%s18 + $0x2f4] sm:$0xff]
    %v7694 = vld [vmem:[%s18 + $0x2fc] sm:$0xff]
    %v7695 = vld [vmem:[%s18 + $0x304] sm:$0xff]
    %v7696 = vld [vmem:[%s18 + $0x30c] sm:$0xff]
    %v7697 = vld [vmem:[%s18 + $0x314] sm:$0xf]
    %v7698 = vld [vmem:[%s18 + $0x318] sm:$0xff]
    %v7699 = vld [vmem:[%s18 + $0x320] sm:$0xff]
    %v7700 = vld [vmem:[%s18 + $0x328] sm:$0xff]
    %v7701 = vld [vmem:[%s18 + $0x330] sm:$0xff]
    %v7702 = vld [vmem:[%s18 + $0x338] sm:$0xf]
    %v7703 = vld [vmem:[%s18 + $0x33c] sm:$0xff]
    %v7704 = vld [vmem:[%s18 + $0x344] sm:$0xff]
    %v7705 = vld [vmem:[%s18 + $0x34c] sm:$0xff]
    %v7706 = vld [vmem:[%s18 + $0x354] sm:$0xff]
    %v7707 = vld [vmem:[%s18 + $0x35c] sm:$0xf]
    %v7708 = vld [vmem:[%s18 + $0x360] sm:$0xff]
    %v7709 = vld [vmem:[%s18 + $0x368] sm:$0xff]
    %v7710 = vld [vmem:[%s18 + $0x370] sm:$0xff]
    %v7711 = vld [vmem:[%s18 + $0x378] sm:$0xff]
    %v7712 = vld [vmem:[%s18 + $0x380] sm:$0xf]
    %v7713 = vld [vmem:[%s18 + $0x384] sm:$0xff]
    %v7714 = vld [vmem:[%s18 + $0x38c] sm:$0xff]
    %v7715 = vld [vmem:[%s18 + $0x394] sm:$0xff]
    %v7716 = vld [vmem:[%s18 + $0x39c] sm:$0xff]
    %v7717 = vld [vmem:[%s18 + $0x3a4] sm:$0xf]
    %v7718 = vld [vmem:[%s18 + $0x3a8] sm:$0xff]
    %v7719 = vld [vmem:[%s18 + $0x3b0] sm:$0xff]
    %v7720 = vld [vmem:[%s18 + $0x3b8] sm:$0xff]
    %v7721 = vld [vmem:[%s18 + $0x3c0] sm:$0xff]
    %v7722 = vld [vmem:[%s18 + $0x3c8] sm:$0xf]
    %v7723 = vld [vmem:[%s18 + $0x3cc] sm:$0xff]
    %v7724 = vld [vmem:[%s18 + $0x3d4] sm:$0xff]
    %v7725 = vld [vmem:[%s18 + $0x3dc] sm:$0xff]
    %v7726 = vld [vmem:[%s18 + $0x3e4] sm:$0xff]
    %v7727 = vld [vmem:[%s18 + $0x3ec] sm:$0xf]
    %v7728 = vld [vmem:[%s18 + $0x3f0] sm:$0xff]
    %v7729 = vld [vmem:[%s18 + $0x3f8] sm:$0xff]
    %v7730 = vld [vmem:[%s18 + $0x400] sm:$0xff]
    %v7731 = vld [vmem:[%s18 + $0x408] sm:$0xff]
    %v7732 = vld [vmem:[%s18 + $0x410] sm:$0xf]
    %v7733 = vld [vmem:[%s18 + $0x414] sm:$0xff]
    %v7734 = vld [vmem:[%s18 + $0x41c] sm:$0xff]
    %v7735 = vld [vmem:[%s18 + $0x424] sm:$0xff]
    %v7736 = vld [vmem:[%s18 + $0x42c] sm:$0xff]
    %v7737 = vld [vmem:[%s18 + $0x434] sm:$0xf]
    %v7738 = vld [vmem:[%s18 + $0x438] sm:$0xff]
    %v7739 = vld [vmem:[%s18 + $0x440] sm:$0xff]
    %v7740 = vld [vmem:[%s18 + $0x448] sm:$0xff]
    %v7741 = vld [vmem:[%s18 + $0x450] sm:$0xff]
    %v7742 = vld [vmem:[%s18 + $0x458] sm:$0xf]
    %v7743 = vld [vmem:[%s18 + $0x45c] sm:$0xff]
    %v7744 = vld [vmem:[%s18 + $0x464] sm:$0xff]
    %v7745 = vld [vmem:[%s18 + $0x46c] sm:$0xff]
    %v7746 = vld [vmem:[%s18 + $0x474] sm:$0xff]
    %v7747 = vld [vmem:[%s18 + $0x47c] sm:$0xf]
    %v7748 = vld [vmem:[%s18 + $0x480] sm:$0xff]
    %v7749 = vld [vmem:[%s18 + $0x488] sm:$0xff]
    %v7750 = vld [vmem:[%s18 + $0x490] sm:$0xff]
    %v7751 = vld [vmem:[%s18 + $0x498] sm:$0xff]
    %v7752 = vld [vmem:[%s18 + $0x4a0] sm:$0xf]
    %v7753 = vld [vmem:[%s18 + $0x4a4] sm:$0xff]
    %v7754 = vld [vmem:[%s18 + $0x4ac] sm:$0xff]
    %v7755 = vld [vmem:[%s18 + $0x4b4] sm:$0xff]
    %v7756 = vld [vmem:[%s18 + $0x4bc] sm:$0xff]
    %v7757 = vld [vmem:[%s18 + $0x4c4] sm:$0xf]
    %v7758 = vld [vmem:[%s18 + $0x4c8] sm:$0xff]
    %v7759 = vld [vmem:[%s18 + $0x4d0] sm:$0xff]
    %v7760 = vld [vmem:[%s18 + $0x4d8] sm:$0xff]
    %v7761 = vld [vmem:[%s18 + $0x4e0] sm:$0xff]
    %v7762 = vld [vmem:[%s18 + $0x4e8] sm:$0xf]
    %v7763 = vld [vmem:[%s18 + $0x4ec] sm:$0xff]
    %v7764 = vld [vmem:[%s18 + $0x4f4] sm:$0xff]
    %v7765 = vld [vmem:[%s18 + $0x4fc] sm:$0xff]
    %v7766 = vld [vmem:[%s18 + $0x504] sm:$0xff]
    %v7767 = vld [vmem:[%s18 + $0x50c] sm:$0xf]
    %v7768 = vld [vmem:[%s18 + $0x510] sm:$0xff]
    %v7769 = vld [vmem:[%s18 + $0x518] sm:$0xff]
    %v7770 = vld [vmem:[%s18 + $0x520] sm:$0xff]
    %v7771 = vld [vmem:[%s18 + $0x528] sm:$0xff]
    %v7772 = vld [vmem:[%s18 + $0x530] sm:$0xf]
    %v7773 = vld [vmem:[%s18 + $0x534] sm:$0xff]
    %v7774 = vld [vmem:[%s18 + $0x53c] sm:$0xff]
    %v7775 = vld [vmem:[%s18 + $0x544] sm:$0xff]
    %v7776 = vld [vmem:[%s18 + $0x54c] sm:$0xff]
    %v7777 = vld [vmem:[%s18 + $0x554] sm:$0xf]
    %v7778 = vld [vmem:[%s18 + $0x558] sm:$0xff]
    %v7779 = vld [vmem:[%s18 + $0x560] sm:$0xff]
    %v7780 = vld [vmem:[%s18 + $0x568] sm:$0xff]
    %v7781 = vld [vmem:[%s18 + $0x570] sm:$0xff]
    %v7782 = vld [vmem:[%s18 + $0x578] sm:$0xf]
    %v7783 = vld [vmem:[%s18 + $0x57c] sm:$0xff]
    %v7784 = vld [vmem:[%s18 + $0x584] sm:$0xff]
    %v7785 = vld [vmem:[%s18 + $0x58c] sm:$0xff]
    %v7786 = vld [vmem:[%s18 + $0x594] sm:$0xff]
    %v7787 = vld [vmem:[%s18 + $0x59c] sm:$0xf]
    %v7788 = vld [vmem:[%s18 + $0x5a0] sm:$0xff]
    %v7789 = vld [vmem:[%s18 + $0x5a8] sm:$0xff]
    %v7790 = vld [vmem:[%s18 + $0x5b0] sm:$0xff]
    %v7791 = vld [vmem:[%s18 + $0x5b8] sm:$0xff]
    %v7792 = vld [vmem:[%s18 + $0x5c0] sm:$0xf]
    %v7793 = vld [vmem:[%s18 + $0x5c4] sm:$0xff]
    %v7794 = vld [vmem:[%s18 + $0x5cc] sm:$0xff]
    %v7795 = vld [vmem:[%s18 + $0x5d4] sm:$0xff]
    %v7796 = vld [vmem:[%s18 + $0x5dc] sm:$0xff]
    %v7797 = vld [vmem:[%s18 + $0x5e4] sm:$0xf]
    %v7798 = vld [vmem:[%s18 + $0x5e8] sm:$0xff]
    %v7799 = vld [vmem:[%s18 + $0x5f0] sm:$0xff]
    %v7800 = vld [vmem:[%s18 + $0x5f8] sm:$0xff]
    %v7801 = vld [vmem:[%s18 + $0x600] sm:$0xff]
    %v7802 = vld [vmem:[%s18 + $0x608] sm:$0xf]
    %v7803 = vld [vmem:[%s18 + $0x60c] sm:$0xff]
    %v7804 = vld [vmem:[%s18 + $0x614] sm:$0xff]
    %v7805 = vld [vmem:[%s18 + $0x61c] sm:$0xff]
    %v7806 = vld [vmem:[%s18 + $0x624] sm:$0xff]
    %v7807 = vld [vmem:[%s18 + $0x62c] sm:$0xf]
    %v7808 = vld [vmem:[%s18 + $0x630] sm:$0xff]
    %v7809 = vld [vmem:[%s18 + $0x638] sm:$0xff]
    %v7810 = vld [vmem:[%s18 + $0x640] sm:$0xff]
    %v7811 = vld [vmem:[%s18 + $0x648] sm:$0xff]
    %v7812 = vld [vmem:[%s18 + $0x650] sm:$0xf]
    %v7813 = vld [vmem:[%s18 + $0x654] sm:$0xff]
    %v7814 = vld [vmem:[%s18 + $0x65c] sm:$0xff]
    %v7815 = vld [vmem:[%s18 + $0x664] sm:$0xff]
    %v7816 = vld [vmem:[%s18 + $0x66c] sm:$0xff]
    %v7817 = vld [vmem:[%s18 + $0x674] sm:$0xf]
    %v7818 = vld [vmem:[%s18 + $0x678] sm:$0xff]
    %v7819 = vld [vmem:[%s18 + $0x680] sm:$0xff]
    %v7820 = vld [vmem:[%s18 + $0x688] sm:$0xff]
    %v7821 = vld [vmem:[%s18 + $0x690] sm:$0xff]
    %v7822 = vld [vmem:[%s18 + $0x698] sm:$0xf]
    %v7823 = vld [vmem:[%s18 + $0x69c] sm:$0xff]
    %v7824 = vld [vmem:[%s18 + $0x6a4] sm:$0xff]
    %v7825 = vld [vmem:[%s18 + $0x6ac] sm:$0xff]
    %v7826 = vld [vmem:[%s18 + $0x6b4] sm:$0xff]
    %v7827 = vld [vmem:[%s18 + $0x6bc] sm:$0xf]
    %v7828 = vld [vmem:[%s18 + $0x6c0] sm:$0xff]
    %v7829 = vld [vmem:[%s18 + $0x6c8] sm:$0xff]
    %v7830 = vld [vmem:[%s18 + $0x6d0] sm:$0xff]
    %v7831 = vld [vmem:[%s18 + $0x6d8] sm:$0xff]
    %v7832 = vld [vmem:[%s18 + $0x6e0] sm:$0xf]
    %v7833 = vld [vmem:[%s18 + $0x6e4] sm:$0xff]
    %v7834 = vld [vmem:[%s18 + $0x6ec] sm:$0xff]
    %v7835 = vld [vmem:[%s18 + $0x6f4] sm:$0xff]
    %v7836 = vld [vmem:[%s18 + $0x6fc] sm:$0xff]
    %v7837 = vld [vmem:[%s18 + $0x704] sm:$0xf]
    %v7838 = vld [vmem:[%s18 + $0x708] sm:$0xff]
    %v7839 = vld [vmem:[%s18 + $0x710] sm:$0xff]
    %v7840 = vld [vmem:[%s18 + $0x718] sm:$0xff]
    %v7841 = vld [vmem:[%s18 + $0x720] sm:$0xff]
    %v7842 = vld [vmem:[%s18 + $0x728] sm:$0xf]
    %v7843 = vld [vmem:[%s18 + $0x72c] sm:$0xff]
    %v7844 = vld [vmem:[%s18 + $0x734] sm:$0xff]
    %v7845 = vld [vmem:[%s18 + $0x73c] sm:$0xff]
    %v7846 = vld [vmem:[%s18 + $0x744] sm:$0xff]
    %v7847 = vld [vmem:[%s18 + $0x74c] sm:$0xf]
    %v7848 = vld [vmem:[%s18 + $0x750] sm:$0xff]
    %v7849 = vld [vmem:[%s18 + $0x758] sm:$0xff]
    %v7850 = vld [vmem:[%s18 + $0x760] sm:$0xff]
    %v7851 = vld [vmem:[%s18 + $0x768] sm:$0xff]
    %v7852 = vld [vmem:[%s18 + $0x770] sm:$0xf]
    %v7853 = vld [vmem:[%s18 + $0x774] sm:$0xff]
    %v7854 = vld [vmem:[%s18 + $0x77c] sm:$0xff]
    %v7855 = vld [vmem:[%s18 + $0x784] sm:$0xff]
    %v7856 = vld [vmem:[%s18 + $0x78c] sm:$0xff]
    %v7857 = vld [vmem:[%s18 + $0x794] sm:$0xf]
    %v7858 = vld [vmem:[%s18 + $0x798] sm:$0xff]
    %v7859 = vld [vmem:[%s18 + $0x7a0] sm:$0xff]
    %v7860 = vld [vmem:[%s18 + $0x7a8] sm:$0xff]
    %v7861 = vld [vmem:[%s18 + $0x7b0] sm:$0xff]
    %v7862 = vld [vmem:[%s18 + $0x7b8] sm:$0xf]
    %v7863 = vld [vmem:[%s18 + $0x7bc] sm:$0xff]
    %v7864 = vld [vmem:[%s18 + $0x7c4] sm:$0xff]
    %v7865 = vld [vmem:[%s18 + $0x7cc] sm:$0xff]
    %v7866 = vld [vmem:[%s18 + $0x7d4] sm:$0xff]
    %v7867 = vld [vmem:[%s18 + $0x7dc] sm:$0xf]
    %v7868 = vld [vmem:[%s18 + $0x7e0] sm:$0xff]
    %v7869 = vld [vmem:[%s18 + $0x7e8] sm:$0xff]
    %v7870 = vld [vmem:[%s18 + $0x7f0] sm:$0xff]
    %v7871 = vld [vmem:[%s18 + $0x7f8] sm:$0xff]
    %v7872 = vld [vmem:[%s18 + $0x800] sm:$0xf]
    %v7873 = vld [vmem:[%s18 + $0x804] sm:$0xff]
    %v7874 = vld [vmem:[%s18 + $0x80c] sm:$0xff]
    %v7875 = vld [vmem:[%s18 + $0x814] sm:$0xff]
    %v7876 = vld [vmem:[%s18 + $0x81c] sm:$0xff]
    %v7877 = vld [vmem:[%s18 + $0x824] sm:$0xf]
    %v7878 = vld [vmem:[%s18 + $0x828] sm:$0xff]
    %v7879 = vld [vmem:[%s18 + $0x830] sm:$0xff]
    %v7880 = vld [vmem:[%s18 + $0x838] sm:$0xff]
    %v7881 = vld [vmem:[%s18 + $0x840] sm:$0xff]
    %v7882 = vld [vmem:[%s18 + $0x848] sm:$0xf]
    %v7883 = vld [vmem:[%s18 + $0x84c] sm:$0xff]
    %v7884 = vld [vmem:[%s18 + $0x854] sm:$0xff]
    %v7885 = vld [vmem:[%s18 + $0x85c] sm:$0xff]
    %v7886 = vld [vmem:[%s18 + $0x864] sm:$0xff]
    %v7887 = vld [vmem:[%s18 + $0x86c] sm:$0xf]
    %v7888 = vld [vmem:[%s18 + $0x870] sm:$0xff]
    %v7889 = vld [vmem:[%s18 + $0x878] sm:$0xff]
    %v7890 = vld [vmem:[%s18 + $0x880] sm:$0xff]
    %v7891 = vld [vmem:[%s18 + $0x888] sm:$0xff]
    %v7892 = vld [vmem:[%s18 + $0x890] sm:$0xf]
    %v7893 = vld [vmem:[%s18 + $0x894] sm:$0xff]
    %v7894 = vld [vmem:[%s18 + $0x89c] sm:$0xff]
    %v7895 = vld [vmem:[%s18 + $0x8a4] sm:$0xff]
    %v7896 = vld [vmem:[%s18 + $0x8ac] sm:$0xff]
    %v7897 = vld [vmem:[%s18 + $0x8b4] sm:$0xf]
    %v7898 = vld [vmem:[%s18 + $0x8b8] sm:$0xff]
    %v7899 = vld [vmem:[%s18 + $0x8c0] sm:$0xff]
    %v7900 = vld [vmem:[%s18 + $0x8c8] sm:$0xff]
    %v7901 = vld [vmem:[%s18 + $0x8d0] sm:$0xff]
    %v7902 = vld [vmem:[%s18 + $0x8d8] sm:$0xf]
    %v7903 = vld [vmem:[%s18 + $0x8dc] sm:$0xff]
    %v7904 = vld [vmem:[%s18 + $0x8e4] sm:$0xff]
    %v7905 = vld [vmem:[%s18 + $0x8ec] sm:$0xff]
    %v7906 = vld [vmem:[%s18 + $0x8f4] sm:$0xff]
    %v7907 = vld [vmem:[%s18 + $0x8fc] sm:$0xf]
    %v7908 = vld [vmem:[%s18 + $0x900] sm:$0xff]
    %v7909 = vld [vmem:[%s18 + $0x908] sm:$0xff]
    %v7910 = vld [vmem:[%s18 + $0x910] sm:$0xff]
    %v7911 = vld [vmem:[%s18 + $0x918] sm:$0xff]
    %v7912 = vld [vmem:[%s18 + $0x920] sm:$0xf]
    %v7913 = vld [vmem:[%s18 + $0x924] sm:$0xff]
    %v7914 = vld [vmem:[%s18 + $0x92c] sm:$0xff]
    %v7915 = vld [vmem:[%s18 + $0x934] sm:$0xff]
    %v7916 = vld [vmem:[%s18 + $0x93c] sm:$0xff]
    %v7917 = vld [vmem:[%s18 + $0x944] sm:$0xf]
    %v7918 = vld [vmem:[%s18 + $0x948] sm:$0xff]
    %v7919 = vld [vmem:[%s18 + $0x950] sm:$0xff]
    %v7920 = vld [vmem:[%s18 + $0x958] sm:$0xff]
    %v7921 = vld [vmem:[%s18 + $0x960] sm:$0xff]
    %v7922 = vld [vmem:[%s18 + $0x968] sm:$0xf]
    %v7923 = vld [vmem:[%s18 + $0x96c] sm:$0xff]
    %v7924 = vld [vmem:[%s18 + $0x974] sm:$0xff]
    %v7925 = vld [vmem:[%s18 + $0x97c] sm:$0xff]
    %v7926 = vld [vmem:[%s18 + $0x984] sm:$0xff]
    %v7927 = vld [vmem:[%s18 + $0x98c] sm:$0xf]
    %v7928 = vld [vmem:[%s18 + $0x990] sm:$0xff]
    %v7929 = vld [vmem:[%s18 + $0x998] sm:$0xff]
    %v7930 = vld [vmem:[%s18 + $0x9a0] sm:$0xff]
    %v7931 = vld [vmem:[%s18 + $0x9a8] sm:$0xff]
    %v7932 = vld [vmem:[%s18 + $0x9b0] sm:$0xf]
    %v7933 = vld [vmem:[%s18 + $0x9b4] sm:$0xff]
    %v7934 = vld [vmem:[%s18 + $0x9bc] sm:$0xff]
    %v7935 = vld [vmem:[%s18 + $0x9c4] sm:$0xff]
    %v7936 = vld [vmem:[%s18 + $0x9cc] sm:$0xff]
    %v7937 = vld [vmem:[%s18 + $0x9d4] sm:$0xf]
    %v7938 = vld [vmem:[%s18 + $0x9d8] sm:$0xff]
    %v7939 = vld [vmem:[%s18 + $0x9e0] sm:$0xff]
    %v7940 = vld [vmem:[%s18 + $0x9e8] sm:$0xff]
    %v7941 = vld [vmem:[%s18 + $0x9f0] sm:$0xff]
    %v7942 = vld [vmem:[%s18 + $0x9f8] sm:$0xf]
    %v7943 = vld [vmem:[%s18 + $0x9fc] sm:$0xff]
    %v7944 = vld [vmem:[%s18 + $0xa04] sm:$0xff]
    %v7945 = vld [vmem:[%s18 + $0xa0c] sm:$0xff]
    %v7946 = vld [vmem:[%s18 + $0xa14] sm:$0xff]
    %v7947 = vld [vmem:[%s18 + $0xa1c] sm:$0xf]
    %v7948 = vld [vmem:[%s18 + $0xa20] sm:$0xff]
    %v7949 = vld [vmem:[%s18 + $0xa28] sm:$0xff]
    %v7950 = vld [vmem:[%s18 + $0xa30] sm:$0xff]
    %v7951 = vld [vmem:[%s18 + $0xa38] sm:$0xff]
    %v7952 = vld [vmem:[%s18 + $0xa40] sm:$0xf]
    %v7953 = vld [vmem:[%s18 + $0xa44] sm:$0xff]
    %v7954 = vld [vmem:[%s18 + $0xa4c] sm:$0xff]
    %v7955 = vld [vmem:[%s18 + $0xa54] sm:$0xff]
    %v7956 = vld [vmem:[%s18 + $0xa5c] sm:$0xff]
    %v7957 = vld [vmem:[%s18 + $0xa64] sm:$0xf]
    %v7958 = vld [vmem:[%s18 + $0xa68] sm:$0xff]
    %v7959 = vld [vmem:[%s18 + $0xa70] sm:$0xff]
    %v7960 = vld [vmem:[%s18 + $0xa78] sm:$0xff]
    %v7961 = vld [vmem:[%s18 + $0xa80] sm:$0xff]
    %v7962 = vld [vmem:[%s18 + $0xa88] sm:$0xf]
    %v7963 = vld [vmem:[%s18 + $0xa8c] sm:$0xff]
    %v7964 = vld [vmem:[%s18 + $0xa94] sm:$0xff]
    %v7965 = vld [vmem:[%s18 + $0xa9c] sm:$0xff]
    %v7966 = vld [vmem:[%s18 + $0xaa4] sm:$0xff]
    %v7967 = vld [vmem:[%s18 + $0xaac] sm:$0xf]
    %v7968 = vld [vmem:[%s18 + $0xab0] sm:$0xff]
    %v7969 = vld [vmem:[%s18 + $0xab8] sm:$0xff]
    %v7970 = vld [vmem:[%s18 + $0xac0] sm:$0xff]
    %v7971 = vld [vmem:[%s18 + $0xac8] sm:$0xff]
    %v7972 = vld [vmem:[%s18 + $0xad0] sm:$0xf]
    %v7973 = vld [vmem:[%s18 + $0xad4] sm:$0xff]
    %v7974 = vld [vmem:[%s18 + $0xadc] sm:$0xff]
    %v7975 = vld [vmem:[%s18 + $0xae4] sm:$0xff]
    %v7976 = vld [vmem:[%s18 + $0xaec] sm:$0xff]
    %v7977 = vld [vmem:[%s18 + $0xaf4] sm:$0xf]
    %v7978 = vld [vmem:[%s18 + $0xaf8] sm:$0xff]
    %v7979 = vld [vmem:[%s18 + $0xb00] sm:$0xff]
    %v7980 = vld [vmem:[%s18 + $0xb08] sm:$0xff]
    %v7981 = vld [vmem:[%s18 + $0xb10] sm:$0xff]
    %v7982 = vld [vmem:[%s18 + $0xb18] sm:$0xf]
    %v7983 = vld [vmem:[%s18 + $0xb1c] sm:$0xff]
    %v7984 = vld [vmem:[%s18 + $0xb24] sm:$0xff]
    %v7985 = vld [vmem:[%s18 + $0xb2c] sm:$0xff]
    %v7986 = vld [vmem:[%s18 + $0xb34] sm:$0xff]
    %v7987 = vld [vmem:[%s18 + $0xb3c] sm:$0xf]
    %v7988 = vld [vmem:[%s18 + $0xb40] sm:$0xff]
    %v7989 = vld [vmem:[%s18 + $0xb48] sm:$0xff]
    %v7990 = vld [vmem:[%s18 + $0xb50] sm:$0xff]
    %v7991 = vld [vmem:[%s18 + $0xb58] sm:$0xff]
    %v7992 = vld [vmem:[%s18 + $0xb60] sm:$0xf]
    %v7993 = vld [vmem:[%s18 + $0xb64] sm:$0xff]
    %v7994 = vld [vmem:[%s18 + $0xb6c] sm:$0xff]
    %v7995 = vld [vmem:[%s18 + $0xb74] sm:$0xff]
    %v7996 = vld [vmem:[%s18 + $0xb7c] sm:$0xff]
    %v7997 = vld [vmem:[%s18 + $0xb84] sm:$0xf]
    %v7998 = vld [vmem:[%s18 + $0xb88] sm:$0xff]
    %v7999 = vld [vmem:[%s18 + $0xb90] sm:$0xff]
    %v8000 = vld [vmem:[%s18 + $0xb98] sm:$0xff]
    %v8001 = vld [vmem:[%s18 + $0xba0] sm:$0xff]
    %v8002 = vld [vmem:[%s18 + $0xba8] sm:$0xf]
    %v8003 = vld [vmem:[%s18 + $0xbac] sm:$0xff]
    %v8004 = vld [vmem:[%s18 + $0xbb4] sm:$0xff]
    %v8005 = vld [vmem:[%s18 + $0xbbc] sm:$0xff]
    %v8006 = vld [vmem:[%s18 + $0xbc4] sm:$0xff]
    %v8007 = vld [vmem:[%s18 + $0xbcc] sm:$0xf]
    %v8008 = vld [vmem:[%s18 + $0xbd0] sm:$0xff]
    %v8009 = vld [vmem:[%s18 + $0xbd8] sm:$0xff]
    %v8010 = vld [vmem:[%s18 + $0xbe0] sm:$0xff]
    %v8011 = vld [vmem:[%s18 + $0xbe8] sm:$0xff]
    %v8012 = vld [vmem:[%s18 + $0xbf0] sm:$0xf]
    %v8013 = vld [vmem:[%s18 + $0xbf4] sm:$0xff]
    %v8014 = vld [vmem:[%s18 + $0xbfc] sm:$0xff]
    %v8015 = vld [vmem:[%s18 + $0xc04] sm:$0xff]
    %v8016 = vld [vmem:[%s18 + $0xc0c] sm:$0xff]
    %v8017 = vld [vmem:[%s18 + $0xc14] sm:$0xf]
    %v8018 = vld [vmem:[%s18 + $0xc18] sm:$0xff]
    %v8019 = vld [vmem:[%s18 + $0xc20] sm:$0xff]
    %v8020 = vld [vmem:[%s18 + $0xc28] sm:$0xff]
    %v8021 = vld [vmem:[%s18 + $0xc30] sm:$0xff]
    %v8022 = vld [vmem:[%s18 + $0xc38] sm:$0xf]
    %v8023 = vld [vmem:[%s18 + $0xc3c] sm:$0xff]
    %v8024 = vld [vmem:[%s18 + $0xc44] sm:$0xff]
    %v8025 = vld [vmem:[%s18 + $0xc4c] sm:$0xff]
    %v8026 = vld [vmem:[%s18 + $0xc54] sm:$0xff]
    %v8027 = vld [vmem:[%s18 + $0xc5c] sm:$0xf]
    %v8028 = vld [vmem:[%s18 + $0xc60] sm:$0xff]
    %v8029 = vld [vmem:[%s18 + $0xc68] sm:$0xff]
    %v8030 = vld [vmem:[%s18 + $0xc70] sm:$0xff]
    %v8031 = vld [vmem:[%s18 + $0xc78] sm:$0xff]
    %v8032 = vld [vmem:[%s18 + $0xc80] sm:$0xf]
    %v8033 = vld [vmem:[%s18 + $0xc84] sm:$0xff]
    %v8034 = vld [vmem:[%s18 + $0xc8c] sm:$0xff]
    %v8035 = vld [vmem:[%s18 + $0xc94] sm:$0xff]
    %v8036 = vld [vmem:[%s18 + $0xc9c] sm:$0xff]
    %v8037 = vld [vmem:[%s18 + $0xca4] sm:$0xf]
    %v8038 = vld [vmem:[%s18 + $0xca8] sm:$0xff]
    %v8039 = vld [vmem:[%s18 + $0xcb0] sm:$0xff]
    %v8040 = vld [vmem:[%s18 + $0xcb8] sm:$0xff]
    %v8041 = vld [vmem:[%s18 + $0xcc0] sm:$0xff]
    %v8042 = vld [vmem:[%s18 + $0xcc8] sm:$0xf]
    %v8043 = vld [vmem:[%s18 + $0xccc] sm:$0xff]
    %v8044 = vld [vmem:[%s18 + $0xcd4] sm:$0xff]
    %v8045 = vld [vmem:[%s18 + $0xcdc] sm:$0xff]
    %v8046 = vld [vmem:[%s18 + $0xce4] sm:$0xff]
    %v8047 = vld [vmem:[%s18 + $0xcec] sm:$0xf]
    %v8048 = vld [vmem:[%s18 + $0xcf0] sm:$0xff]
    %v8049 = vld [vmem:[%s18 + $0xcf8] sm:$0xff]
    %v8050 = vld [vmem:[%s18 + $0xd00] sm:$0xff]
    %v8051 = vld [vmem:[%s18 + $0xd08] sm:$0xff]
    %v8052 = vld [vmem:[%s18 + $0xd10] sm:$0xf]
    %v8053 = vld [vmem:[%s18 + $0xd14] sm:$0xff]
    %v8054 = vld [vmem:[%s18 + $0xd1c] sm:$0xff]
    %v8055 = vld [vmem:[%s18 + $0xd24] sm:$0xff]
    %v8056 = vld [vmem:[%s18 + $0xd2c] sm:$0xff]
    %v8057 = vld [vmem:[%s18 + $0xd34] sm:$0xf]
    %v8058 = vld [vmem:[%s18 + $0xd38] sm:$0xff]
    %v8059 = vld [vmem:[%s18 + $0xd40] sm:$0xff]
    %v8060 = vld [vmem:[%s18 + $0xd48] sm:$0xff]
    %v8061 = vld [vmem:[%s18 + $0xd50] sm:$0xff]
    %v8062 = vld [vmem:[%s18 + $0xd58] sm:$0xf]
    %v8063 = vld [vmem:[%s18 + $0xd5c] sm:$0xff]
    %v8064 = vld [vmem:[%s18 + $0xd64] sm:$0xff]
    %v8065 = vld [vmem:[%s18 + $0xd6c] sm:$0xff]
    %v8066 = vld [vmem:[%s18 + $0xd74] sm:$0xff]
    %v8067 = vld [vmem:[%s18 + $0xd7c] sm:$0xf]
    %v8068 = vld [vmem:[%s18 + $0xd80] sm:$0xff]
    %v8069 = vld [vmem:[%s18 + $0xd88] sm:$0xff]
    %v8070 = vld [vmem:[%s18 + $0xd90] sm:$0xff]
    %v8071 = vld [vmem:[%s18 + $0xd98] sm:$0xff]
    %v8072 = vld [vmem:[%s18 + $0xda0] sm:$0xf]
    %v8073 = vld [vmem:[%s18 + $0xda4] sm:$0xff]
    %v8074 = vld [vmem:[%s18 + $0xdac] sm:$0xff]
    %v8075 = vld [vmem:[%s18 + $0xdb4] sm:$0xff]
    %v8076 = vld [vmem:[%s18 + $0xdbc] sm:$0xff]
    %v8077 = vld [vmem:[%s18 + $0xdc4] sm:$0xf]
    %v8078 = vld [vmem:[%s18 + $0xdc8] sm:$0xff]
    %v8079 = vld [vmem:[%s18 + $0xdd0] sm:$0xff]
    %v8080 = vld [vmem:[%s18 + $0xdd8] sm:$0xff]
    %v8081 = vld [vmem:[%s18 + $0xde0] sm:$0xff]
    %v8082 = vld [vmem:[%s18 + $0xde8] sm:$0xf]
    %v8083 = vld [vmem:[%s18 + $0xdec] sm:$0xff]
    %v8084 = vld [vmem:[%s18 + $0xdf4] sm:$0xff]
    %v8085 = vld [vmem:[%s18 + $0xdfc] sm:$0xff]
    %v8086 = vld [vmem:[%s18 + $0xe04] sm:$0xff]
    %v8087 = vld [vmem:[%s18 + $0xe0c] sm:$0xf]
    %v8088 = vld [vmem:[%s18 + $0xe10] sm:$0xff]
    %v8089 = vld [vmem:[%s18 + $0xe18] sm:$0xff]
    %v8090 = vld [vmem:[%s18 + $0xe20] sm:$0xff]
    %v8091 = vld [vmem:[%s18 + $0xe28] sm:$0xff]
    %v8092 = vld [vmem:[%s18 + $0xe30] sm:$0xf]
    %v8093 = vld [vmem:[%s18 + $0xe34] sm:$0xff]
    %v8094 = vld [vmem:[%s18 + $0xe3c] sm:$0xff]
    %v8095 = vld [vmem:[%s18 + $0xe44] sm:$0xff]
    %v8096 = vld [vmem:[%s18 + $0xe4c] sm:$0xff]
    %v8097 = vld [vmem:[%s18 + $0xe54] sm:$0xf]
    %v8098 = vld [vmem:[%s18 + $0xe58] sm:$0xff]
    %v8099 = vld [vmem:[%s18 + $0xe60] sm:$0xff]
    %v8100 = vld [vmem:[%s18 + $0xe68] sm:$0xff]
    %v8101 = vld [vmem:[%s18 + $0xe70] sm:$0xff]
    %v8102 = vld [vmem:[%s18 + $0xe78] sm:$0xf]
    %v8103 = vld [vmem:[%s18 + $0xe7c] sm:$0xff]
    %v8104 = vld [vmem:[%s18 + $0xe84] sm:$0xff]
    %v8105 = vld [vmem:[%s18 + $0xe8c] sm:$0xff]
    %v8106 = vld [vmem:[%s18 + $0xe94] sm:$0xff]
    %v8107 = vld [vmem:[%s18 + $0xe9c] sm:$0xf]
    %v8108 = vld [vmem:[%s18 + $0xea0] sm:$0xff]
    %v8109 = vld [vmem:[%s18 + $0xea8] sm:$0xff]
    %v8110 = vld [vmem:[%s18 + $0xeb0] sm:$0xff]
    %v8111 = vld [vmem:[%s18 + $0xeb8] sm:$0xff]
    %v8112 = vld [vmem:[%s18 + $0xec0] sm:$0xf]
    %v8113 = vld [vmem:[%s18 + $0xec4] sm:$0xff]
    %v8114 = vld [vmem:[%s18 + $0xecc] sm:$0xff]
    %v8115 = vld [vmem:[%s18 + $0xed4] sm:$0xff]
    %v8116 = vld [vmem:[%s18 + $0xedc] sm:$0xff]
    %v8117 = vld [vmem:[%s18 + $0xee4] sm:$0xf]
    %v8118 = vld [vmem:[%s18 + $0xee8] sm:$0xff]
    %v8119 = vld [vmem:[%s18 + $0xef0] sm:$0xff]
    %v8120 = vld [vmem:[%s18 + $0xef8] sm:$0xff]
    %v8121 = vld [vmem:[%s18 + $0xf00] sm:$0xff]
    %v8122 = vld [vmem:[%s18 + $0xf08] sm:$0xf]
    %v8123 = vld [vmem:[%s18 + $0xf0c] sm:$0xff]
    %v8124 = vld [vmem:[%s18 + $0xf14] sm:$0xff]
    %v8125 = vld [vmem:[%s18 + $0xf1c] sm:$0xff]
    %v8126 = vld [vmem:[%s18 + $0xf24] sm:$0xff]
    %v8127 = vld [vmem:[%s18 + $0xf2c] sm:$0xf]
    %v8128 = vld [vmem:[%s18 + $0xf30] sm:$0xff]
    %v8129 = vld [vmem:[%s18 + $0xf38] sm:$0xff]
    %v8130 = vld [vmem:[%s18 + $0xf40] sm:$0xff]
    %v8131 = vld [vmem:[%s18 + $0xf48] sm:$0xff]
    %v8132 = vld [vmem:[%s18 + $0xf50] sm:$0xf]
    %v8133 = vld [vmem:[%s18 + $0xf54] sm:$0xff]
    %v8134 = vld [vmem:[%s18 + $0xf5c] sm:$0xff]
    %v8135 = vld [vmem:[%s18 + $0xf64] sm:$0xff]
    %v8136 = vld [vmem:[%s18 + $0xf6c] sm:$0xff]
    %v8137 = vld [vmem:[%s18 + $0xf74] sm:$0xf]
    %v8138 = vld [vmem:[%s18 + $0xf78] sm:$0xff]
    %v8139 = vld [vmem:[%s18 + $0xf80] sm:$0xff]
    %v8140 = vld [vmem:[%s18 + $0xf88] sm:$0xff]
    %v8141 = vld [vmem:[%s18 + $0xf90] sm:$0xff]
    %v8142 = vld [vmem:[%s18 + $0xf98] sm:$0xf]
    %v8143 = vld [vmem:[%s18 + $0xf9c] sm:$0xff]
    %v8144 = vld [vmem:[%s18 + $0xfa4] sm:$0xff]
    %v8145 = vld [vmem:[%s18 + $0xfac] sm:$0xff]
    %v8146 = vld [vmem:[%s18 + $0xfb4] sm:$0xff]
    %v8147 = vld [vmem:[%s18 + $0xfbc] sm:$0xf]
    %v8148 = vld [vmem:[%s18 + $0xfc0] sm:$0xff]
    %v8149 = vld [vmem:[%s18 + $0xfc8] sm:$0xff]
    %v8150 = vld [vmem:[%s18 + $0xfd0] sm:$0xff]
    %v8151 = vld [vmem:[%s18 + $0xfd8] sm:$0xff]
    %v8152 = vld [vmem:[%s18 + $0xfe0] sm:$0xf]
    %v8153 = vld [vmem:[%s18 + $0xfe4] sm:$0xff]
    %v8154 = vld [vmem:[%s18 + $0xfec] sm:$0xff]
    %v8155 = vld [vmem:[%s18 + $0xff4] sm:$0xff]
    %v8156 = vld [vmem:[%s18 + $0xffc] sm:$0xff]
    %v8157 = vld [vmem:[%s18 + $0x1004] sm:$0xf]
    %v8158 = vld [vmem:[%s18 + $0x1008] sm:$0xff]
    %v8159 = vld [vmem:[%s18 + $0x1010] sm:$0xff]
    %v8160 = vld [vmem:[%s18 + $0x1018] sm:$0xff]
    %v8161 = vld [vmem:[%s18 + $0x1020] sm:$0xff]
    %v8162 = vld [vmem:[%s18 + $0x1028] sm:$0xf]
    %v8163 = vld [vmem:[%s18 + $0x102c] sm:$0xff]
    %v8164 = vld [vmem:[%s18 + $0x1034] sm:$0xff]
    %v8165 = vld [vmem:[%s18 + $0x103c] sm:$0xff]
    %v8166 = vld [vmem:[%s18 + $0x1044] sm:$0xff]
    %v8167 = vld [vmem:[%s18 + $0x104c] sm:$0xf]
    %v8168 = vld [vmem:[%s18 + $0x1050] sm:$0xff]
    %v8169 = vld [vmem:[%s18 + $0x1058] sm:$0xff]
    %v8170 = vld [vmem:[%s18 + $0x1060] sm:$0xff]
    %v8171 = vld [vmem:[%s18 + $0x1068] sm:$0xff]
    %v8172 = vld [vmem:[%s18 + $0x1070] sm:$0xf]
    %v8173 = vld [vmem:[%s18 + $0x1074] sm:$0xff]
    %v8174 = vld [vmem:[%s18 + $0x107c] sm:$0xff]
    %v8175 = vld [vmem:[%s18 + $0x1084] sm:$0xff]
    %v8176 = vld [vmem:[%s18 + $0x108c] sm:$0xff]
    %v8177 = vld [vmem:[%s18 + $0x1094] sm:$0xf]
    %v8178 = vld [vmem:[%s18 + $0x1098] sm:$0xff]
    %v8179 = vld [vmem:[%s18 + $0x10a0] sm:$0xff]
    %v8180 = vld [vmem:[%s18 + $0x10a8] sm:$0xff]
    %v8181 = vld [vmem:[%s18 + $0x10b0] sm:$0xff]
    %v8182 = vld [vmem:[%s18 + $0x10b8] sm:$0xf]
    %v8183 = vld [vmem:[%s18 + $0x10bc] sm:$0xff]
    %v8184 = vld [vmem:[%s18 + $0x10c4] sm:$0xff]
    %v8185 = vld [vmem:[%s18 + $0x10cc] sm:$0xff]
    %v8186 = vld [vmem:[%s18 + $0x10d4] sm:$0xff]
    %v8187 = vld [vmem:[%s18 + $0x10dc] sm:$0xf]
    %v8188 = vld [vmem:[%s18 + $0x10e0] sm:$0xff]
    %v8189 = vld [vmem:[%s18 + $0x10e8] sm:$0xff]
    %v8190 = vld [vmem:[%s18 + $0x10f0] sm:$0xff]
    %v8191 = vld [vmem:[%s18 + $0x10f8] sm:$0xff]
    %v8192 = vld [vmem:[%s18 + $0x1100] sm:$0xf]
    %v8193 = vld [vmem:[%s18 + $0x1104] sm:$0xff]
    %v8194 = vld [vmem:[%s18 + $0x110c] sm:$0xff]
    %v8195 = vld [vmem:[%s18 + $0x1114] sm:$0xff]
    %v8196 = vld [vmem:[%s18 + $0x111c] sm:$0xff]
    %v8197 = vld [vmem:[%s18 + $0x1124] sm:$0xf]
    %v8198 = vld [vmem:[%s18 + $0x1128] sm:$0xff]
    %v8199 = vld [vmem:[%s18 + $0x1130] sm:$0xff]
    %v8200 = vld [vmem:[%s18 + $0x1138] sm:$0xff]
    %v8201 = vld [vmem:[%s18 + $0x1140] sm:$0xff]
    %v8202 = vld [vmem:[%s18 + $0x1148] sm:$0xf]
    %v8203 = vld [vmem:[%s18 + $0x114c] sm:$0xff]
    %v8204 = vld [vmem:[%s18 + $0x1154] sm:$0xff]
    %v8205 = vld [vmem:[%s18 + $0x115c] sm:$0xff]
    %v8206 = vld [vmem:[%s18 + $0x1164] sm:$0xff]
    %v8207 = vld [vmem:[%s18 + $0x116c] sm:$0xf]
    %v8208 = vld [vmem:[%s18 + $0x1170] sm:$0xff]
    %v8209 = vld [vmem:[%s18 + $0x1178] sm:$0xff]
    %v8210 = vld [vmem:[%s18 + $0x1180] sm:$0xff]
    %v8211 = vld [vmem:[%s18 + $0x1188] sm:$0xff]
    %v8212 = vld [vmem:[%s18 + $0x1190] sm:$0xf]
    %v8213 = vld [vmem:[%s18 + $0x1194] sm:$0xff]
    %v8214 = vld [vmem:[%s18 + $0x119c] sm:$0xff]
    %v8215 = vld [vmem:[%s18 + $0x11a4] sm:$0xff]
    %v8216 = vld [vmem:[%s18 + $0x11ac] sm:$0xff]
    %v8217 = vld [vmem:[%s18 + $0x11b4] sm:$0xf]
    %v8218 = vld [vmem:[%s18 + $0x11b8] sm:$0xff]
    %v8219 = vld [vmem:[%s18 + $0x11c0] sm:$0xff]
    %v8220 = vld [vmem:[%s18 + $0x11c8] sm:$0xff]
    %v8221 = vld [vmem:[%s18 + $0x11d0] sm:$0xff]
    %v8222 = vld [vmem:[%s18 + $0x11d8] sm:$0xf]
    %v8223 = vld [vmem:[%s18 + $0x11dc] sm:$0xff]
    %v8224 = vld [vmem:[%s18 + $0x11e4] sm:$0xff]
    %v8225 = vld [vmem:[%s18 + $0x11ec] sm:$0xff]
    %v8226 = vld [vmem:[%s18 + $0x11f4] sm:$0xff]
    %v8227 = vld [vmem:[%s18 + $0x11fc] sm:$0xf]
    %v8228 = vld [vmem:[%s19] sm:$0xff]
    %v8229 = vld [vmem:[%s19 + $0x8] sm:$0x1]
    %v8232 = vlaneseq
    %v8233 = vshrl.u32 %v8232, 7
    %v8234 = vsub.s32 0, %v8233
    %v8235 = vrot.slane %v8228, %v8234
    %v8236 = vlaneseq
    %v8237 = vshrl.u32 %v8236, 7
    %v8238 = vsub.s32 1, %v8237
    %v8239 = vrot.slane %v8228, %v8238
    %v8240 = vlaneseq
    %v8241 = vshrl.u32 %v8240, 7
    %v8242 = vsub.s32 2, %v8241
    %v8243 = vrot.slane %v8228, %v8242
    %v8244 = vlaneseq
    %v8245 = vshrl.u32 %v8244, 7
    %v8246 = vsub.s32 3, %v8245
    %v8247 = vrot.slane %v8228, %v8246
    %v8248 = vlaneseq
    %v8249 = vshrl.u32 %v8248, 7
    %v8250 = vsub.s32 4, %v8249
    %v8251 = vrot.slane %v8228, %v8250
    %v8252 = vlaneseq
    %v8253 = vshrl.u32 %v8252, 7
    %v8254 = vsub.s32 5, %v8253
    %v8255 = vrot.slane %v8228, %v8254
    %v8256 = vlaneseq
    %v8257 = vshrl.u32 %v8256, 7
    %v8258 = vsub.s32 6, %v8257
    %v8259 = vrot.slane %v8228, %v8258
    %v8260 = vlaneseq
    %v8261 = vshrl.u32 %v8260, 7
    %v8262 = vsub.s32 7, %v8261
    %v8263 = vrot.slane %v8228, %v8262
    %v8264 = vlaneseq
    %v8265 = vshrl.u32 %v8264, 7
    %v8266 = vsub.s32 0, %v8265
    %v8267 = vrot.slane %v8229, %v8266
    %v8917 = vunpack.c.l.b16 %v7588
    %v8918 = vunpack.c.h.b16 %v7588
    %v8919 = vunpack.c.l.b16 %v7589
    %v8920 = vunpack.c.h.b16 %v7589
    %v8921 = vunpack.c.l.b16 %v7590
    %v8922 = vunpack.c.h.b16 %v7590
    %v8923 = vunpack.c.l.b16 %v7591
    %v8924 = vunpack.c.h.b16 %v7591
    %v8925 = vunpack.c.l.b16 %v7592
    %v8926 = vunpack.c.l.b16 %v7593
    %v8927 = vunpack.c.h.b16 %v7593
    %v8928 = vunpack.c.l.b16 %v7594
    %v8929 = vunpack.c.h.b16 %v7594
    %v8930 = vunpack.c.l.b16 %v7595
    %v8931 = vunpack.c.h.b16 %v7595
    %v8932 = vunpack.c.l.b16 %v7596
    %v8933 = vunpack.c.h.b16 %v7596
    %v8934 = vunpack.c.l.b16 %v7597
    %v8935 = vunpack.c.l.b16 %v7598
    %v8936 = vunpack.c.h.b16 %v7598
    %v8937 = vunpack.c.l.b16 %v7599
    %v8938 = vunpack.c.h.b16 %v7599
    %v8939 = vunpack.c.l.b16 %v7600
    %v8940 = vunpack.c.h.b16 %v7600
    %v8941 = vunpack.c.l.b16 %v7601
    %v8942 = vunpack.c.h.b16 %v7601
    %v8943 = vunpack.c.l.b16 %v7602
    %v8944 = vunpack.c.l.b16 %v7603
    %v8945 = vunpack.c.h.b16 %v7603
    %v8946 = vunpack.c.l.b16 %v7604
    %v8947 = vunpack.c.h.b16 %v7604
    %v8948 = vunpack.c.l.b16 %v7605
    %v8949 = vunpack.c.h.b16 %v7605
    %v8950 = vunpack.c.l.b16 %v7606
    %v8951 = vunpack.c.h.b16 %v7606
    %v8952 = vunpack.c.l.b16 %v7607
    %v8953 = vunpack.c.l.b16 %v7608
    %v8954 = vunpack.c.h.b16 %v7608
    %v8955 = vunpack.c.l.b16 %v7609
    %v8956 = vunpack.c.h.b16 %v7609
    %v8957 = vunpack.c.l.b16 %v7610
    %v8958 = vunpack.c.h.b16 %v7610
    %v8959 = vunpack.c.l.b16 %v7611
    %v8960 = vunpack.c.h.b16 %v7611
    %v8961 = vunpack.c.l.b16 %v7612
    %v8962 = vunpack.c.l.b16 %v7613
    %v8963 = vunpack.c.h.b16 %v7613
    %v8964 = vunpack.c.l.b16 %v7614
    %v8965 = vunpack.c.h.b16 %v7614
    %v8966 = vunpack.c.l.b16 %v7615
    %v8967 = vunpack.c.h.b16 %v7615
    %v8968 = vunpack.c.l.b16 %v7616
    %v8969 = vunpack.c.h.b16 %v7616
    %v8970 = vunpack.c.l.b16 %v7617
    %v8971 = vunpack.c.l.b16 %v7618
    %v8972 = vunpack.c.h.b16 %v7618
    %v8973 = vunpack.c.l.b16 %v7619
    %v8974 = vunpack.c.h.b16 %v7619
    %v8975 = vunpack.c.l.b16 %v7620
    %v8976 = vunpack.c.h.b16 %v7620
    %v8977 = vunpack.c.l.b16 %v7621
    %v8978 = vunpack.c.h.b16 %v7621
    %v8979 = vunpack.c.l.b16 %v7622
    %v8980 = vunpack.c.l.b16 %v7623
    %v8981 = vunpack.c.h.b16 %v7623
    %v8982 = vunpack.c.l.b16 %v7624
    %v8983 = vunpack.c.h.b16 %v7624
    %v8984 = vunpack.c.l.b16 %v7625
    %v8985 = vunpack.c.h.b16 %v7625
    %v8986 = vunpack.c.l.b16 %v7626
    %v8987 = vunpack.c.h.b16 %v7626
    %v8988 = vunpack.c.l.b16 %v7627
    %v8989 = vunpack.c.l.b16 %v7628
    %v8990 = vunpack.c.h.b16 %v7628
    %v8991 = vunpack.c.l.b16 %v7629
    %v8992 = vunpack.c.h.b16 %v7629
    %v8993 = vunpack.c.l.b16 %v7630
    %v8994 = vunpack.c.h.b16 %v7630
    %v8995 = vunpack.c.l.b16 %v7631
    %v8996 = vunpack.c.h.b16 %v7631
    %v8997 = vunpack.c.l.b16 %v7632
    %v8998 = vunpack.c.l.b16 %v7633
    %v8999 = vunpack.c.h.b16 %v7633
    %v9000 = vunpack.c.l.b16 %v7634
    %v9001 = vunpack.c.h.b16 %v7634
    %v9002 = vunpack.c.l.b16 %v7635
    %v9003 = vunpack.c.h.b16 %v7635
    %v9004 = vunpack.c.l.b16 %v7636
    %v9005 = vunpack.c.h.b16 %v7636
    %v9006 = vunpack.c.l.b16 %v7637
    %v9007 = vunpack.c.l.b16 %v7638
    %v9008 = vunpack.c.h.b16 %v7638
    %v9009 = vunpack.c.l.b16 %v7639
    %v9010 = vunpack.c.h.b16 %v7639
    %v9011 = vunpack.c.l.b16 %v7640
    %v9012 = vunpack.c.h.b16 %v7640
    %v9013 = vunpack.c.l.b16 %v7641
    %v9014 = vunpack.c.h.b16 %v7641
    %v9015 = vunpack.c.l.b16 %v7642
    %v9016 = vunpack.c.l.b16 %v7643
    %v9017 = vunpack.c.h.b16 %v7643
    %v9018 = vunpack.c.l.b16 %v7644
    %v9019 = vunpack.c.h.b16 %v7644
    %v9020 = vunpack.c.l.b16 %v7645
    %v9021 = vunpack.c.h.b16 %v7645
    %v9022 = vunpack.c.l.b16 %v7646
    %v9023 = vunpack.c.h.b16 %v7646
    %v9024 = vunpack.c.l.b16 %v7647
    %v9025 = vunpack.c.l.b16 %v7648
    %v9026 = vunpack.c.h.b16 %v7648
    %v9027 = vunpack.c.l.b16 %v7649
    %v9028 = vunpack.c.h.b16 %v7649
    %v9029 = vunpack.c.l.b16 %v7650
    %v9030 = vunpack.c.h.b16 %v7650
    %v9031 = vunpack.c.l.b16 %v7651
    %v9032 = vunpack.c.h.b16 %v7651
    %v9033 = vunpack.c.l.b16 %v7652
    %v9034 = vunpack.c.l.b16 %v7653
    %v9035 = vunpack.c.h.b16 %v7653
    %v9036 = vunpack.c.l.b16 %v7654
    %v9037 = vunpack.c.h.b16 %v7654
    %v9038 = vunpack.c.l.b16 %v7655
    %v9039 = vunpack.c.h.b16 %v7655
    %v9040 = vunpack.c.l.b16 %v7656
    %v9041 = vunpack.c.h.b16 %v7656
    %v9042 = vunpack.c.l.b16 %v7657
    %v9043 = vunpack.c.l.b16 %v7658
    %v9044 = vunpack.c.h.b16 %v7658
    %v9045 = vunpack.c.l.b16 %v7659
    %v9046 = vunpack.c.h.b16 %v7659
    %v9047 = vunpack.c.l.b16 %v7660
    %v9048 = vunpack.c.h.b16 %v7660
    %v9049 = vunpack.c.l.b16 %v7661
    %v9050 = vunpack.c.h.b16 %v7661
    %v9051 = vunpack.c.l.b16 %v7662
    %v9052 = vunpack.c.l.b16 %v7663
    %v9053 = vunpack.c.h.b16 %v7663
    %v9054 = vunpack.c.l.b16 %v7664
    %v9055 = vunpack.c.h.b16 %v7664
    %v9056 = vunpack.c.l.b16 %v7665
    %v9057 = vunpack.c.h.b16 %v7665
    %v9058 = vunpack.c.l.b16 %v7666
    %v9059 = vunpack.c.h.b16 %v7666
    %v9060 = vunpack.c.l.b16 %v7667
    %v9061 = vunpack.c.l.b16 %v7668
    %v9062 = vunpack.c.h.b16 %v7668
    %v9063 = vunpack.c.l.b16 %v7669
    %v9064 = vunpack.c.h.b16 %v7669
    %v9065 = vunpack.c.l.b16 %v7670
    %v9066 = vunpack.c.h.b16 %v7670
    %v9067 = vunpack.c.l.b16 %v7671
    %v9068 = vunpack.c.h.b16 %v7671
    %v9069 = vunpack.c.l.b16 %v7672
    %v9070 = vunpack.c.l.b16 %v7673
    %v9071 = vunpack.c.h.b16 %v7673
    %v9072 = vunpack.c.l.b16 %v7674
    %v9073 = vunpack.c.h.b16 %v7674
    %v9074 = vunpack.c.l.b16 %v7675
    %v9075 = vunpack.c.h.b16 %v7675
    %v9076 = vunpack.c.l.b16 %v7676
    %v9077 = vunpack.c.h.b16 %v7676
    %v9078 = vunpack.c.l.b16 %v7677
    %v9079 = vunpack.c.l.b16 %v7678
    %v9080 = vunpack.c.h.b16 %v7678
    %v9081 = vunpack.c.l.b16 %v7679
    %v9082 = vunpack.c.h.b16 %v7679
    %v9083 = vunpack.c.l.b16 %v7680
    %v9084 = vunpack.c.h.b16 %v7680
    %v9085 = vunpack.c.l.b16 %v7681
    %v9086 = vunpack.c.h.b16 %v7681
    %v9087 = vunpack.c.l.b16 %v7682
    %v9088 = vunpack.c.l.b16 %v7683
    %v9089 = vunpack.c.h.b16 %v7683
    %v9090 = vunpack.c.l.b16 %v7684
    %v9091 = vunpack.c.h.b16 %v7684
    %v9092 = vunpack.c.l.b16 %v7685
    %v9093 = vunpack.c.h.b16 %v7685
    %v9094 = vunpack.c.l.b16 %v7686
    %v9095 = vunpack.c.h.b16 %v7686
    %v9096 = vunpack.c.l.b16 %v7687
    %v9097 = vunpack.c.l.b16 %v7688
    %v9098 = vunpack.c.h.b16 %v7688
    %v9099 = vunpack.c.l.b16 %v7689
    %v9100 = vunpack.c.h.b16 %v7689
    %v9101 = vunpack.c.l.b16 %v7690
    %v9102 = vunpack.c.h.b16 %v7690
    %v9103 = vunpack.c.l.b16 %v7691
    %v9104 = vunpack.c.h.b16 %v7691
    %v9105 = vunpack.c.l.b16 %v7692
    %v9106 = vunpack.c.l.b16 %v7693
    %v9107 = vunpack.c.h.b16 %v7693
    %v9108 = vunpack.c.l.b16 %v7694
    %v9109 = vunpack.c.h.b16 %v7694
    %v9110 = vunpack.c.l.b16 %v7695
    %v9111 = vunpack.c.h.b16 %v7695
    %v9112 = vunpack.c.l.b16 %v7696
    %v9113 = vunpack.c.h.b16 %v7696
    %v9114 = vunpack.c.l.b16 %v7697
    %v9115 = vunpack.c.l.b16 %v7698
    %v9116 = vunpack.c.h.b16 %v7698
    %v9117 = vunpack.c.l.b16 %v7699
    %v9118 = vunpack.c.h.b16 %v7699
    %v9119 = vunpack.c.l.b16 %v7700
    %v9120 = vunpack.c.h.b16 %v7700
    %v9121 = vunpack.c.l.b16 %v7701
    %v9122 = vunpack.c.h.b16 %v7701
    %v9123 = vunpack.c.l.b16 %v7702
    %v9124 = vunpack.c.l.b16 %v7703
    %v9125 = vunpack.c.h.b16 %v7703
    %v9126 = vunpack.c.l.b16 %v7704
    %v9127 = vunpack.c.h.b16 %v7704
    %v9128 = vunpack.c.l.b16 %v7705
    %v9129 = vunpack.c.h.b16 %v7705
    %v9130 = vunpack.c.l.b16 %v7706
    %v9131 = vunpack.c.h.b16 %v7706
    %v9132 = vunpack.c.l.b16 %v7707
    %v9133 = vunpack.c.l.b16 %v7708
    %v9134 = vunpack.c.h.b16 %v7708
    %v9135 = vunpack.c.l.b16 %v7709
    %v9136 = vunpack.c.h.b16 %v7709
    %v9137 = vunpack.c.l.b16 %v7710
    %v9138 = vunpack.c.h.b16 %v7710
    %v9139 = vunpack.c.l.b16 %v7711
    %v9140 = vunpack.c.h.b16 %v7711
    %v9141 = vunpack.c.l.b16 %v7712
    %v9142 = vunpack.c.l.b16 %v7713
    %v9143 = vunpack.c.h.b16 %v7713
    %v9144 = vunpack.c.l.b16 %v7714
    %v9145 = vunpack.c.h.b16 %v7714
    %v9146 = vunpack.c.l.b16 %v7715
    %v9147 = vunpack.c.h.b16 %v7715
    %v9148 = vunpack.c.l.b16 %v7716
    %v9149 = vunpack.c.h.b16 %v7716
    %v9150 = vunpack.c.l.b16 %v7717
    %v9151 = vunpack.c.l.b16 %v7718
    %v9152 = vunpack.c.h.b16 %v7718
    %v9153 = vunpack.c.l.b16 %v7719
    %v9154 = vunpack.c.h.b16 %v7719
    %v9155 = vunpack.c.l.b16 %v7720
    %v9156 = vunpack.c.h.b16 %v7720
    %v9157 = vunpack.c.l.b16 %v7721
    %v9158 = vunpack.c.h.b16 %v7721
    %v9159 = vunpack.c.l.b16 %v7722
    %v9160 = vunpack.c.l.b16 %v7723
    %v9161 = vunpack.c.h.b16 %v7723
    %v9162 = vunpack.c.l.b16 %v7724
    %v9163 = vunpack.c.h.b16 %v7724
    %v9164 = vunpack.c.l.b16 %v7725
    %v9165 = vunpack.c.h.b16 %v7725
    %v9166 = vunpack.c.l.b16 %v7726
    %v9167 = vunpack.c.h.b16 %v7726
    %v9168 = vunpack.c.l.b16 %v7727
    %v9169 = vunpack.c.l.b16 %v7728
    %v9170 = vunpack.c.h.b16 %v7728
    %v9171 = vunpack.c.l.b16 %v7729
    %v9172 = vunpack.c.h.b16 %v7729
    %v9173 = vunpack.c.l.b16 %v7730
    %v9174 = vunpack.c.h.b16 %v7730
    %v9175 = vunpack.c.l.b16 %v7731
    %v9176 = vunpack.c.h.b16 %v7731
    %v9177 = vunpack.c.l.b16 %v7732
    %v9178 = vunpack.c.l.b16 %v7733
    %v9179 = vunpack.c.h.b16 %v7733
    %v9180 = vunpack.c.l.b16 %v7734
    %v9181 = vunpack.c.h.b16 %v7734
    %v9182 = vunpack.c.l.b16 %v7735
    %v9183 = vunpack.c.h.b16 %v7735
    %v9184 = vunpack.c.l.b16 %v7736
    %v9185 = vunpack.c.h.b16 %v7736
    %v9186 = vunpack.c.l.b16 %v7737
    %v9187 = vunpack.c.l.b16 %v7738
    %v9188 = vunpack.c.h.b16 %v7738
    %v9189 = vunpack.c.l.b16 %v7739
    %v9190 = vunpack.c.h.b16 %v7739
    %v9191 = vunpack.c.l.b16 %v7740
    %v9192 = vunpack.c.h.b16 %v7740
    %v9193 = vunpack.c.l.b16 %v7741
    %v9194 = vunpack.c.h.b16 %v7741
    %v9195 = vunpack.c.l.b16 %v7742
    %v9196 = vunpack.c.l.b16 %v7743
    %v9197 = vunpack.c.h.b16 %v7743
    %v9198 = vunpack.c.l.b16 %v7744
    %v9199 = vunpack.c.h.b16 %v7744
    %v9200 = vunpack.c.l.b16 %v7745
    %v9201 = vunpack.c.h.b16 %v7745
    %v9202 = vunpack.c.l.b16 %v7746
    %v9203 = vunpack.c.h.b16 %v7746
    %v9204 = vunpack.c.l.b16 %v7747
    %v9205 = vunpack.c.l.b16 %v7748
    %v9206 = vunpack.c.h.b16 %v7748
    %v9207 = vunpack.c.l.b16 %v7749
    %v9208 = vunpack.c.h.b16 %v7749
    %v9209 = vunpack.c.l.b16 %v7750
    %v9210 = vunpack.c.h.b16 %v7750
    %v9211 = vunpack.c.l.b16 %v7751
    %v9212 = vunpack.c.h.b16 %v7751
    %v9213 = vunpack.c.l.b16 %v7752
    %v9214 = vunpack.c.l.b16 %v7753
    %v9215 = vunpack.c.h.b16 %v7753
    %v9216 = vunpack.c.l.b16 %v7754
    %v9217 = vunpack.c.h.b16 %v7754
    %v9218 = vunpack.c.l.b16 %v7755
    %v9219 = vunpack.c.h.b16 %v7755
    %v9220 = vunpack.c.l.b16 %v7756
    %v9221 = vunpack.c.h.b16 %v7756
    %v9222 = vunpack.c.l.b16 %v7757
    %v9223 = vunpack.c.l.b16 %v7758
    %v9224 = vunpack.c.h.b16 %v7758
    %v9225 = vunpack.c.l.b16 %v7759
    %v9226 = vunpack.c.h.b16 %v7759
    %v9227 = vunpack.c.l.b16 %v7760
    %v9228 = vunpack.c.h.b16 %v7760
    %v9229 = vunpack.c.l.b16 %v7761
    %v9230 = vunpack.c.h.b16 %v7761
    %v9231 = vunpack.c.l.b16 %v7762
    %v9232 = vunpack.c.l.b16 %v7763
    %v9233 = vunpack.c.h.b16 %v7763
    %v9234 = vunpack.c.l.b16 %v7764
    %v9235 = vunpack.c.h.b16 %v7764
    %v9236 = vunpack.c.l.b16 %v7765
    %v9237 = vunpack.c.h.b16 %v7765
    %v9238 = vunpack.c.l.b16 %v7766
    %v9239 = vunpack.c.h.b16 %v7766
    %v9240 = vunpack.c.l.b16 %v7767
    %v9241 = vunpack.c.l.b16 %v7768
    %v9242 = vunpack.c.h.b16 %v7768
    %v9243 = vunpack.c.l.b16 %v7769
    %v9244 = vunpack.c.h.b16 %v7769
    %v9245 = vunpack.c.l.b16 %v7770
    %v9246 = vunpack.c.h.b16 %v7770
    %v9247 = vunpack.c.l.b16 %v7771
    %v9248 = vunpack.c.h.b16 %v7771
    %v9249 = vunpack.c.l.b16 %v7772
    %v9250 = vunpack.c.l.b16 %v7773
    %v9251 = vunpack.c.h.b16 %v7773
    %v9252 = vunpack.c.l.b16 %v7774
    %v9253 = vunpack.c.h.b16 %v7774
    %v9254 = vunpack.c.l.b16 %v7775
    %v9255 = vunpack.c.h.b16 %v7775
    %v9256 = vunpack.c.l.b16 %v7776
    %v9257 = vunpack.c.h.b16 %v7776
    %v9258 = vunpack.c.l.b16 %v7777
    %v9259 = vunpack.c.l.b16 %v7778
    %v9260 = vunpack.c.h.b16 %v7778
    %v9261 = vunpack.c.l.b16 %v7779
    %v9262 = vunpack.c.h.b16 %v7779
    %v9263 = vunpack.c.l.b16 %v7780
    %v9264 = vunpack.c.h.b16 %v7780
    %v9265 = vunpack.c.l.b16 %v7781
    %v9266 = vunpack.c.h.b16 %v7781
    %v9267 = vunpack.c.l.b16 %v7782
    %v9268 = vunpack.c.l.b16 %v7783
    %v9269 = vunpack.c.h.b16 %v7783
    %v9270 = vunpack.c.l.b16 %v7784
    %v9271 = vunpack.c.h.b16 %v7784
    %v9272 = vunpack.c.l.b16 %v7785
    %v9273 = vunpack.c.h.b16 %v7785
    %v9274 = vunpack.c.l.b16 %v7786
    %v9275 = vunpack.c.h.b16 %v7786
    %v9276 = vunpack.c.l.b16 %v7787
    %v9277 = vunpack.c.l.b16 %v7788
    %v9278 = vunpack.c.h.b16 %v7788
    %v9279 = vunpack.c.l.b16 %v7789
    %v9280 = vunpack.c.h.b16 %v7789
    %v9281 = vunpack.c.l.b16 %v7790
    %v9282 = vunpack.c.h.b16 %v7790
    %v9283 = vunpack.c.l.b16 %v7791
    %v9284 = vunpack.c.h.b16 %v7791
    %v9285 = vunpack.c.l.b16 %v7792
    %v9286 = vunpack.c.l.b16 %v7793
    %v9287 = vunpack.c.h.b16 %v7793
    %v9288 = vunpack.c.l.b16 %v7794
    %v9289 = vunpack.c.h.b16 %v7794
    %v9290 = vunpack.c.l.b16 %v7795
    %v9291 = vunpack.c.h.b16 %v7795
    %v9292 = vunpack.c.l.b16 %v7796
    %v9293 = vunpack.c.h.b16 %v7796
    %v9294 = vunpack.c.l.b16 %v7797
    %v9295 = vunpack.c.l.b16 %v7798
    %v9296 = vunpack.c.h.b16 %v7798
    %v9297 = vunpack.c.l.b16 %v7799
    %v9298 = vunpack.c.h.b16 %v7799
    %v9299 = vunpack.c.l.b16 %v7800
    %v9300 = vunpack.c.h.b16 %v7800
    %v9301 = vunpack.c.l.b16 %v7801
    %v9302 = vunpack.c.h.b16 %v7801
    %v9303 = vunpack.c.l.b16 %v7802
    %v9304 = vunpack.c.l.b16 %v7803
    %v9305 = vunpack.c.h.b16 %v7803
    %v9306 = vunpack.c.l.b16 %v7804
    %v9307 = vunpack.c.h.b16 %v7804
    %v9308 = vunpack.c.l.b16 %v7805
    %v9309 = vunpack.c.h.b16 %v7805
    %v9310 = vunpack.c.l.b16 %v7806
    %v9311 = vunpack.c.h.b16 %v7806
    %v9312 = vunpack.c.l.b16 %v7807
    %v9313 = vunpack.c.l.b16 %v7808
    %v9314 = vunpack.c.h.b16 %v7808
    %v9315 = vunpack.c.l.b16 %v7809
    %v9316 = vunpack.c.h.b16 %v7809
    %v9317 = vunpack.c.l.b16 %v7810
    %v9318 = vunpack.c.h.b16 %v7810
    %v9319 = vunpack.c.l.b16 %v7811
    %v9320 = vunpack.c.h.b16 %v7811
    %v9321 = vunpack.c.l.b16 %v7812
    %v9322 = vunpack.c.l.b16 %v7813
    %v9323 = vunpack.c.h.b16 %v7813
    %v9324 = vunpack.c.l.b16 %v7814
    %v9325 = vunpack.c.h.b16 %v7814
    %v9326 = vunpack.c.l.b16 %v7815
    %v9327 = vunpack.c.h.b16 %v7815
    %v9328 = vunpack.c.l.b16 %v7816
    %v9329 = vunpack.c.h.b16 %v7816
    %v9330 = vunpack.c.l.b16 %v7817
    %v9331 = vunpack.c.l.b16 %v7818
    %v9332 = vunpack.c.h.b16 %v7818
    %v9333 = vunpack.c.l.b16 %v7819
    %v9334 = vunpack.c.h.b16 %v7819
    %v9335 = vunpack.c.l.b16 %v7820
    %v9336 = vunpack.c.h.b16 %v7820
    %v9337 = vunpack.c.l.b16 %v7821
    %v9338 = vunpack.c.h.b16 %v7821
    %v9339 = vunpack.c.l.b16 %v7822
    %v9340 = vunpack.c.l.b16 %v7823
    %v9341 = vunpack.c.h.b16 %v7823
    %v9342 = vunpack.c.l.b16 %v7824
    %v9343 = vunpack.c.h.b16 %v7824
    %v9344 = vunpack.c.l.b16 %v7825
    %v9345 = vunpack.c.h.b16 %v7825
    %v9346 = vunpack.c.l.b16 %v7826
    %v9347 = vunpack.c.h.b16 %v7826
    %v9348 = vunpack.c.l.b16 %v7827
    %v9349 = vunpack.c.l.b16 %v7828
    %v9350 = vunpack.c.h.b16 %v7828
    %v9351 = vunpack.c.l.b16 %v7829
    %v9352 = vunpack.c.h.b16 %v7829
    %v9353 = vunpack.c.l.b16 %v7830
    %v9354 = vunpack.c.h.b16 %v7830
    %v9355 = vunpack.c.l.b16 %v7831
    %v9356 = vunpack.c.h.b16 %v7831
    %v9357 = vunpack.c.l.b16 %v7832
    %v9358 = vunpack.c.l.b16 %v7833
    %v9359 = vunpack.c.h.b16 %v7833
    %v9360 = vunpack.c.l.b16 %v7834
    %v9361 = vunpack.c.h.b16 %v7834
    %v9362 = vunpack.c.l.b16 %v7835
    %v9363 = vunpack.c.h.b16 %v7835
    %v9364 = vunpack.c.l.b16 %v7836
    %v9365 = vunpack.c.h.b16 %v7836
    %v9366 = vunpack.c.l.b16 %v7837
    %v9367 = vunpack.c.l.b16 %v7838
    %v9368 = vunpack.c.h.b16 %v7838
    %v9369 = vunpack.c.l.b16 %v7839
    %v9370 = vunpack.c.h.b16 %v7839
    %v9371 = vunpack.c.l.b16 %v7840
    %v9372 = vunpack.c.h.b16 %v7840
    %v9373 = vunpack.c.l.b16 %v7841
    %v9374 = vunpack.c.h.b16 %v7841
    %v9375 = vunpack.c.l.b16 %v7842
    %v9376 = vunpack.c.l.b16 %v7843
    %v9377 = vunpack.c.h.b16 %v7843
    %v9378 = vunpack.c.l.b16 %v7844
    %v9379 = vunpack.c.h.b16 %v7844
    %v9380 = vunpack.c.l.b16 %v7845
    %v9381 = vunpack.c.h.b16 %v7845
    %v9382 = vunpack.c.l.b16 %v7846
    %v9383 = vunpack.c.h.b16 %v7846
    %v9384 = vunpack.c.l.b16 %v7847
    %v9385 = vunpack.c.l.b16 %v7848
    %v9386 = vunpack.c.h.b16 %v7848
    %v9387 = vunpack.c.l.b16 %v7849
    %v9388 = vunpack.c.h.b16 %v7849
    %v9389 = vunpack.c.l.b16 %v7850
    %v9390 = vunpack.c.h.b16 %v7850
    %v9391 = vunpack.c.l.b16 %v7851
    %v9392 = vunpack.c.h.b16 %v7851
    %v9393 = vunpack.c.l.b16 %v7852
    %v9394 = vunpack.c.l.b16 %v7853
    %v9395 = vunpack.c.h.b16 %v7853
    %v9396 = vunpack.c.l.b16 %v7854
    %v9397 = vunpack.c.h.b16 %v7854
    %v9398 = vunpack.c.l.b16 %v7855
    %v9399 = vunpack.c.h.b16 %v7855
    %v9400 = vunpack.c.l.b16 %v7856
    %v9401 = vunpack.c.h.b16 %v7856
    %v9402 = vunpack.c.l.b16 %v7857
    %v9403 = vunpack.c.l.b16 %v7858
    %v9404 = vunpack.c.h.b16 %v7858
    %v9405 = vunpack.c.l.b16 %v7859
    %v9406 = vunpack.c.h.b16 %v7859
    %v9407 = vunpack.c.l.b16 %v7860
    %v9408 = vunpack.c.h.b16 %v7860
    %v9409 = vunpack.c.l.b16 %v7861
    %v9410 = vunpack.c.h.b16 %v7861
    %v9411 = vunpack.c.l.b16 %v7862
    %v9412 = vunpack.c.l.b16 %v7863
    %v9413 = vunpack.c.h.b16 %v7863
    %v9414 = vunpack.c.l.b16 %v7864
    %v9415 = vunpack.c.h.b16 %v7864
    %v9416 = vunpack.c.l.b16 %v7865
    %v9417 = vunpack.c.h.b16 %v7865
    %v9418 = vunpack.c.l.b16 %v7866
    %v9419 = vunpack.c.h.b16 %v7866
    %v9420 = vunpack.c.l.b16 %v7867
    %v9421 = vunpack.c.l.b16 %v7868
    %v9422 = vunpack.c.h.b16 %v7868
    %v9423 = vunpack.c.l.b16 %v7869
    %v9424 = vunpack.c.h.b16 %v7869
    %v9425 = vunpack.c.l.b16 %v7870
    %v9426 = vunpack.c.h.b16 %v7870
    %v9427 = vunpack.c.l.b16 %v7871
    %v9428 = vunpack.c.h.b16 %v7871
    %v9429 = vunpack.c.l.b16 %v7872
    %v9430 = vunpack.c.l.b16 %v7873
    %v9431 = vunpack.c.h.b16 %v7873
    %v9432 = vunpack.c.l.b16 %v7874
    %v9433 = vunpack.c.h.b16 %v7874
    %v9434 = vunpack.c.l.b16 %v7875
    %v9435 = vunpack.c.h.b16 %v7875
    %v9436 = vunpack.c.l.b16 %v7876
    %v9437 = vunpack.c.h.b16 %v7876
    %v9438 = vunpack.c.l.b16 %v7877
    %v9439 = vunpack.c.l.b16 %v7878
    %v9440 = vunpack.c.h.b16 %v7878
    %v9441 = vunpack.c.l.b16 %v7879
    %v9442 = vunpack.c.h.b16 %v7879
    %v9443 = vunpack.c.l.b16 %v7880
    %v9444 = vunpack.c.h.b16 %v7880
    %v9445 = vunpack.c.l.b16 %v7881
    %v9446 = vunpack.c.h.b16 %v7881
    %v9447 = vunpack.c.l.b16 %v7882
    %v9448 = vunpack.c.l.b16 %v7883
    %v9449 = vunpack.c.h.b16 %v7883
    %v9450 = vunpack.c.l.b16 %v7884
    %v9451 = vunpack.c.h.b16 %v7884
    %v9452 = vunpack.c.l.b16 %v7885
    %v9453 = vunpack.c.h.b16 %v7885
    %v9454 = vunpack.c.l.b16 %v7886
    %v9455 = vunpack.c.h.b16 %v7886
    %v9456 = vunpack.c.l.b16 %v7887
    %v9457 = vunpack.c.l.b16 %v7888
    %v9458 = vunpack.c.h.b16 %v7888
    %v9459 = vunpack.c.l.b16 %v7889
    %v9460 = vunpack.c.h.b16 %v7889
    %v9461 = vunpack.c.l.b16 %v7890
    %v9462 = vunpack.c.h.b16 %v7890
    %v9463 = vunpack.c.l.b16 %v7891
    %v9464 = vunpack.c.h.b16 %v7891
    %v9465 = vunpack.c.l.b16 %v7892
    %v9466 = vunpack.c.l.b16 %v7893
    %v9467 = vunpack.c.h.b16 %v7893
    %v9468 = vunpack.c.l.b16 %v7894
    %v9469 = vunpack.c.h.b16 %v7894
    %v9470 = vunpack.c.l.b16 %v7895
    %v9471 = vunpack.c.h.b16 %v7895
    %v9472 = vunpack.c.l.b16 %v7896
    %v9473 = vunpack.c.h.b16 %v7896
    %v9474 = vunpack.c.l.b16 %v7897
    %v9475 = vunpack.c.l.b16 %v7898
    %v9476 = vunpack.c.h.b16 %v7898
    %v9477 = vunpack.c.l.b16 %v7899
    %v9478 = vunpack.c.h.b16 %v7899
    %v9479 = vunpack.c.l.b16 %v7900
    %v9480 = vunpack.c.h.b16 %v7900
    %v9481 = vunpack.c.l.b16 %v7901
    %v9482 = vunpack.c.h.b16 %v7901
    %v9483 = vunpack.c.l.b16 %v7902
    %v9484 = vunpack.c.l.b16 %v7903
    %v9485 = vunpack.c.h.b16 %v7903
    %v9486 = vunpack.c.l.b16 %v7904
    %v9487 = vunpack.c.h.b16 %v7904
    %v9488 = vunpack.c.l.b16 %v7905
    %v9489 = vunpack.c.h.b16 %v7905
    %v9490 = vunpack.c.l.b16 %v7906
    %v9491 = vunpack.c.h.b16 %v7906
    %v9492 = vunpack.c.l.b16 %v7907
    %v9493 = vunpack.c.l.b16 %v7908
    %v9494 = vunpack.c.h.b16 %v7908
    %v9495 = vunpack.c.l.b16 %v7909
    %v9496 = vunpack.c.h.b16 %v7909
    %v9497 = vunpack.c.l.b16 %v7910
    %v9498 = vunpack.c.h.b16 %v7910
    %v9499 = vunpack.c.l.b16 %v7911
    %v9500 = vunpack.c.h.b16 %v7911
    %v9501 = vunpack.c.l.b16 %v7912
    %v9502 = vunpack.c.l.b16 %v7913
    %v9503 = vunpack.c.h.b16 %v7913
    %v9504 = vunpack.c.l.b16 %v7914
    %v9505 = vunpack.c.h.b16 %v7914
    %v9506 = vunpack.c.l.b16 %v7915
    %v9507 = vunpack.c.h.b16 %v7915
    %v9508 = vunpack.c.l.b16 %v7916
    %v9509 = vunpack.c.h.b16 %v7916
    %v9510 = vunpack.c.l.b16 %v7917
    %v9511 = vunpack.c.l.b16 %v7918
    %v9512 = vunpack.c.h.b16 %v7918
    %v9513 = vunpack.c.l.b16 %v7919
    %v9514 = vunpack.c.h.b16 %v7919
    %v9515 = vunpack.c.l.b16 %v7920
    %v9516 = vunpack.c.h.b16 %v7920
    %v9517 = vunpack.c.l.b16 %v7921
    %v9518 = vunpack.c.h.b16 %v7921
    %v9519 = vunpack.c.l.b16 %v7922
    %v9520 = vunpack.c.l.b16 %v7923
    %v9521 = vunpack.c.h.b16 %v7923
    %v9522 = vunpack.c.l.b16 %v7924
    %v9523 = vunpack.c.h.b16 %v7924
    %v9524 = vunpack.c.l.b16 %v7925
    %v9525 = vunpack.c.h.b16 %v7925
    %v9526 = vunpack.c.l.b16 %v7926
    %v9527 = vunpack.c.h.b16 %v7926
    %v9528 = vunpack.c.l.b16 %v7927
    %v9529 = vunpack.c.l.b16 %v7928
    %v9530 = vunpack.c.h.b16 %v7928
    %v9531 = vunpack.c.l.b16 %v7929
    %v9532 = vunpack.c.h.b16 %v7929
    %v9533 = vunpack.c.l.b16 %v7930
    %v9534 = vunpack.c.h.b16 %v7930
    %v9535 = vunpack.c.l.b16 %v7931
    %v9536 = vunpack.c.h.b16 %v7931
    %v9537 = vunpack.c.l.b16 %v7932
    %v9538 = vunpack.c.l.b16 %v7933
    %v9539 = vunpack.c.h.b16 %v7933
    %v9540 = vunpack.c.l.b16 %v7934
    %v9541 = vunpack.c.h.b16 %v7934
    %v9542 = vunpack.c.l.b16 %v7935
    %v9543 = vunpack.c.h.b16 %v7935
    %v9544 = vunpack.c.l.b16 %v7936
    %v9545 = vunpack.c.h.b16 %v7936
    %v9546 = vunpack.c.l.b16 %v7937
    %v9547 = vunpack.c.l.b16 %v7938
    %v9548 = vunpack.c.h.b16 %v7938
    %v9549 = vunpack.c.l.b16 %v7939
    %v9550 = vunpack.c.h.b16 %v7939
    %v9551 = vunpack.c.l.b16 %v7940
    %v9552 = vunpack.c.h.b16 %v7940
    %v9553 = vunpack.c.l.b16 %v7941
    %v9554 = vunpack.c.h.b16 %v7941
    %v9555 = vunpack.c.l.b16 %v7942
    %v9556 = vunpack.c.l.b16 %v7943
    %v9557 = vunpack.c.h.b16 %v7943
    %v9558 = vunpack.c.l.b16 %v7944
    %v9559 = vunpack.c.h.b16 %v7944
    %v9560 = vunpack.c.l.b16 %v7945
    %v9561 = vunpack.c.h.b16 %v7945
    %v9562 = vunpack.c.l.b16 %v7946
    %v9563 = vunpack.c.h.b16 %v7946
    %v9564 = vunpack.c.l.b16 %v7947
    %v9565 = vunpack.c.l.b16 %v7948
    %v9566 = vunpack.c.h.b16 %v7948
    %v9567 = vunpack.c.l.b16 %v7949
    %v9568 = vunpack.c.h.b16 %v7949
    %v9569 = vunpack.c.l.b16 %v7950
    %v9570 = vunpack.c.h.b16 %v7950
    %v9571 = vunpack.c.l.b16 %v7951
    %v9572 = vunpack.c.h.b16 %v7951
    %v9573 = vunpack.c.l.b16 %v7952
    %v9574 = vunpack.c.l.b16 %v7953
    %v9575 = vunpack.c.h.b16 %v7953
    %v9576 = vunpack.c.l.b16 %v7954
    %v9577 = vunpack.c.h.b16 %v7954
    %v9578 = vunpack.c.l.b16 %v7955
    %v9579 = vunpack.c.h.b16 %v7955
    %v9580 = vunpack.c.l.b16 %v7956
    %v9581 = vunpack.c.h.b16 %v7956
    %v9582 = vunpack.c.l.b16 %v7957
    %v9583 = vunpack.c.l.b16 %v7958
    %v9584 = vunpack.c.h.b16 %v7958
    %v9585 = vunpack.c.l.b16 %v7959
    %v9586 = vunpack.c.h.b16 %v7959
    %v9587 = vunpack.c.l.b16 %v7960
    %v9588 = vunpack.c.h.b16 %v7960
    %v9589 = vunpack.c.l.b16 %v7961
    %v9590 = vunpack.c.h.b16 %v7961
    %v9591 = vunpack.c.l.b16 %v7962
    %v9592 = vunpack.c.l.b16 %v7963
    %v9593 = vunpack.c.h.b16 %v7963
    %v9594 = vunpack.c.l.b16 %v7964
    %v9595 = vunpack.c.h.b16 %v7964
    %v9596 = vunpack.c.l.b16 %v7965
    %v9597 = vunpack.c.h.b16 %v7965
    %v9598 = vunpack.c.l.b16 %v7966
    %v9599 = vunpack.c.h.b16 %v7966
    %v9600 = vunpack.c.l.b16 %v7967
    %v9601 = vunpack.c.l.b16 %v7968
    %v9602 = vunpack.c.h.b16 %v7968
    %v9603 = vunpack.c.l.b16 %v7969
    %v9604 = vunpack.c.h.b16 %v7969
    %v9605 = vunpack.c.l.b16 %v7970
    %v9606 = vunpack.c.h.b16 %v7970
    %v9607 = vunpack.c.l.b16 %v7971
    %v9608 = vunpack.c.h.b16 %v7971
    %v9609 = vunpack.c.l.b16 %v7972
    %v9610 = vunpack.c.l.b16 %v7973
    %v9611 = vunpack.c.h.b16 %v7973
    %v9612 = vunpack.c.l.b16 %v7974
    %v9613 = vunpack.c.h.b16 %v7974
    %v9614 = vunpack.c.l.b16 %v7975
    %v9615 = vunpack.c.h.b16 %v7975
    %v9616 = vunpack.c.l.b16 %v7976
    %v9617 = vunpack.c.h.b16 %v7976
    %v9618 = vunpack.c.l.b16 %v7977
    %v9619 = vunpack.c.l.b16 %v7978
    %v9620 = vunpack.c.h.b16 %v7978
    %v9621 = vunpack.c.l.b16 %v7979
    %v9622 = vunpack.c.h.b16 %v7979
    %v9623 = vunpack.c.l.b16 %v7980
    %v9624 = vunpack.c.h.b16 %v7980
    %v9625 = vunpack.c.l.b16 %v7981
    %v9626 = vunpack.c.h.b16 %v7981
    %v9627 = vunpack.c.l.b16 %v7982
    %v9628 = vunpack.c.l.b16 %v7983
    %v9629 = vunpack.c.h.b16 %v7983
    %v9630 = vunpack.c.l.b16 %v7984
    %v9631 = vunpack.c.h.b16 %v7984
    %v9632 = vunpack.c.l.b16 %v7985
    %v9633 = vunpack.c.h.b16 %v7985
    %v9634 = vunpack.c.l.b16 %v7986
    %v9635 = vunpack.c.h.b16 %v7986
    %v9636 = vunpack.c.l.b16 %v7987
    %v9637 = vunpack.c.l.b16 %v7988
    %v9638 = vunpack.c.h.b16 %v7988
    %v9639 = vunpack.c.l.b16 %v7989
    %v9640 = vunpack.c.h.b16 %v7989
    %v9641 = vunpack.c.l.b16 %v7990
    %v9642 = vunpack.c.h.b16 %v7990
    %v9643 = vunpack.c.l.b16 %v7991
    %v9644 = vunpack.c.h.b16 %v7991
    %v9645 = vunpack.c.l.b16 %v7992
    %v9646 = vunpack.c.l.b16 %v7993
    %v9647 = vunpack.c.h.b16 %v7993
    %v9648 = vunpack.c.l.b16 %v7994
    %v9649 = vunpack.c.h.b16 %v7994
    %v9650 = vunpack.c.l.b16 %v7995
    %v9651 = vunpack.c.h.b16 %v7995
    %v9652 = vunpack.c.l.b16 %v7996
    %v9653 = vunpack.c.h.b16 %v7996
    %v9654 = vunpack.c.l.b16 %v7997
    %v9655 = vunpack.c.l.b16 %v7998
    %v9656 = vunpack.c.h.b16 %v7998
    %v9657 = vunpack.c.l.b16 %v7999
    %v9658 = vunpack.c.h.b16 %v7999
    %v9659 = vunpack.c.l.b16 %v8000
    %v9660 = vunpack.c.h.b16 %v8000
    %v9661 = vunpack.c.l.b16 %v8001
    %v9662 = vunpack.c.h.b16 %v8001
    %v9663 = vunpack.c.l.b16 %v8002
    %v9664 = vunpack.c.l.b16 %v8003
    %v9665 = vunpack.c.h.b16 %v8003
    %v9666 = vunpack.c.l.b16 %v8004
    %v9667 = vunpack.c.h.b16 %v8004
    %v9668 = vunpack.c.l.b16 %v8005
    %v9669 = vunpack.c.h.b16 %v8005
    %v9670 = vunpack.c.l.b16 %v8006
    %v9671 = vunpack.c.h.b16 %v8006
    %v9672 = vunpack.c.l.b16 %v8007
    %v9673 = vunpack.c.l.b16 %v8008
    %v9674 = vunpack.c.h.b16 %v8008
    %v9675 = vunpack.c.l.b16 %v8009
    %v9676 = vunpack.c.h.b16 %v8009
    %v9677 = vunpack.c.l.b16 %v8010
    %v9678 = vunpack.c.h.b16 %v8010
    %v9679 = vunpack.c.l.b16 %v8011
    %v9680 = vunpack.c.h.b16 %v8011
    %v9681 = vunpack.c.l.b16 %v8012
    %v9682 = vunpack.c.l.b16 %v8013
    %v9683 = vunpack.c.h.b16 %v8013
    %v9684 = vunpack.c.l.b16 %v8014
    %v9685 = vunpack.c.h.b16 %v8014
    %v9686 = vunpack.c.l.b16 %v8015
    %v9687 = vunpack.c.h.b16 %v8015
    %v9688 = vunpack.c.l.b16 %v8016
    %v9689 = vunpack.c.h.b16 %v8016
    %v9690 = vunpack.c.l.b16 %v8017
    %v9691 = vunpack.c.l.b16 %v8018
    %v9692 = vunpack.c.h.b16 %v8018
    %v9693 = vunpack.c.l.b16 %v8019
    %v9694 = vunpack.c.h.b16 %v8019
    %v9695 = vunpack.c.l.b16 %v8020
    %v9696 = vunpack.c.h.b16 %v8020
    %v9697 = vunpack.c.l.b16 %v8021
    %v9698 = vunpack.c.h.b16 %v8021
    %v9699 = vunpack.c.l.b16 %v8022
    %v9700 = vunpack.c.l.b16 %v8023
    %v9701 = vunpack.c.h.b16 %v8023
    %v9702 = vunpack.c.l.b16 %v8024
    %v9703 = vunpack.c.h.b16 %v8024
    %v9704 = vunpack.c.l.b16 %v8025
    %v9705 = vunpack.c.h.b16 %v8025
    %v9706 = vunpack.c.l.b16 %v8026
    %v9707 = vunpack.c.h.b16 %v8026
    %v9708 = vunpack.c.l.b16 %v8027
    %v9709 = vunpack.c.l.b16 %v8028
    %v9710 = vunpack.c.h.b16 %v8028
    %v9711 = vunpack.c.l.b16 %v8029
    %v9712 = vunpack.c.h.b16 %v8029
    %v9713 = vunpack.c.l.b16 %v8030
    %v9714 = vunpack.c.h.b16 %v8030
    %v9715 = vunpack.c.l.b16 %v8031
    %v9716 = vunpack.c.h.b16 %v8031
    %v9717 = vunpack.c.l.b16 %v8032
    %v9718 = vunpack.c.l.b16 %v8033
    %v9719 = vunpack.c.h.b16 %v8033
    %v9720 = vunpack.c.l.b16 %v8034
    %v9721 = vunpack.c.h.b16 %v8034
    %v9722 = vunpack.c.l.b16 %v8035
    %v9723 = vunpack.c.h.b16 %v8035
    %v9724 = vunpack.c.l.b16 %v8036
    %v9725 = vunpack.c.h.b16 %v8036
    %v9726 = vunpack.c.l.b16 %v8037
    %v9727 = vunpack.c.l.b16 %v8038
    %v9728 = vunpack.c.h.b16 %v8038
    %v9729 = vunpack.c.l.b16 %v8039
    %v9730 = vunpack.c.h.b16 %v8039
    %v9731 = vunpack.c.l.b16 %v8040
    %v9732 = vunpack.c.h.b16 %v8040
    %v9733 = vunpack.c.l.b16 %v8041
    %v9734 = vunpack.c.h.b16 %v8041
    %v9735 = vunpack.c.l.b16 %v8042
    %v9736 = vunpack.c.l.b16 %v8043
    %v9737 = vunpack.c.h.b16 %v8043
    %v9738 = vunpack.c.l.b16 %v8044
    %v9739 = vunpack.c.h.b16 %v8044
    %v9740 = vunpack.c.l.b16 %v8045
    %v9741 = vunpack.c.h.b16 %v8045
    %v9742 = vunpack.c.l.b16 %v8046
    %v9743 = vunpack.c.h.b16 %v8046
    %v9744 = vunpack.c.l.b16 %v8047
    %v9745 = vunpack.c.l.b16 %v8048
    %v9746 = vunpack.c.h.b16 %v8048
    %v9747 = vunpack.c.l.b16 %v8049
    %v9748 = vunpack.c.h.b16 %v8049
    %v9749 = vunpack.c.l.b16 %v8050
    %v9750 = vunpack.c.h.b16 %v8050
    %v9751 = vunpack.c.l.b16 %v8051
    %v9752 = vunpack.c.h.b16 %v8051
    %v9753 = vunpack.c.l.b16 %v8052
    %v9754 = vunpack.c.l.b16 %v8053
    %v9755 = vunpack.c.h.b16 %v8053
    %v9756 = vunpack.c.l.b16 %v8054
    %v9757 = vunpack.c.h.b16 %v8054
    %v9758 = vunpack.c.l.b16 %v8055
    %v9759 = vunpack.c.h.b16 %v8055
    %v9760 = vunpack.c.l.b16 %v8056
    %v9761 = vunpack.c.h.b16 %v8056
    %v9762 = vunpack.c.l.b16 %v8057
    %v9763 = vunpack.c.l.b16 %v8058
    %v9764 = vunpack.c.h.b16 %v8058
    %v9765 = vunpack.c.l.b16 %v8059
    %v9766 = vunpack.c.h.b16 %v8059
    %v9767 = vunpack.c.l.b16 %v8060
    %v9768 = vunpack.c.h.b16 %v8060
    %v9769 = vunpack.c.l.b16 %v8061
    %v9770 = vunpack.c.h.b16 %v8061
    %v9771 = vunpack.c.l.b16 %v8062
    %v9772 = vunpack.c.l.b16 %v8063
    %v9773 = vunpack.c.h.b16 %v8063
    %v9774 = vunpack.c.l.b16 %v8064
    %v9775 = vunpack.c.h.b16 %v8064
    %v9776 = vunpack.c.l.b16 %v8065
    %v9777 = vunpack.c.h.b16 %v8065
    %v9778 = vunpack.c.l.b16 %v8066
    %v9779 = vunpack.c.h.b16 %v8066
    %v9780 = vunpack.c.l.b16 %v8067
    %v9781 = vunpack.c.l.b16 %v8068
    %v9782 = vunpack.c.h.b16 %v8068
    %v9783 = vunpack.c.l.b16 %v8069
    %v9784 = vunpack.c.h.b16 %v8069
    %v9785 = vunpack.c.l.b16 %v8070
    %v9786 = vunpack.c.h.b16 %v8070
    %v9787 = vunpack.c.l.b16 %v8071
    %v9788 = vunpack.c.h.b16 %v8071
    %v9789 = vunpack.c.l.b16 %v8072
    %v9790 = vunpack.c.l.b16 %v8073
    %v9791 = vunpack.c.h.b16 %v8073
    %v9792 = vunpack.c.l.b16 %v8074
    %v9793 = vunpack.c.h.b16 %v8074
    %v9794 = vunpack.c.l.b16 %v8075
    %v9795 = vunpack.c.h.b16 %v8075
    %v9796 = vunpack.c.l.b16 %v8076
    %v9797 = vunpack.c.h.b16 %v8076
    %v9798 = vunpack.c.l.b16 %v8077
    %v9799 = vunpack.c.l.b16 %v8078
    %v9800 = vunpack.c.h.b16 %v8078
    %v9801 = vunpack.c.l.b16 %v8079
    %v9802 = vunpack.c.h.b16 %v8079
    %v9803 = vunpack.c.l.b16 %v8080
    %v9804 = vunpack.c.h.b16 %v8080
    %v9805 = vunpack.c.l.b16 %v8081
    %v9806 = vunpack.c.h.b16 %v8081
    %v9807 = vunpack.c.l.b16 %v8082
    %v9808 = vunpack.c.l.b16 %v8083
    %v9809 = vunpack.c.h.b16 %v8083
    %v9810 = vunpack.c.l.b16 %v8084
    %v9811 = vunpack.c.h.b16 %v8084
    %v9812 = vunpack.c.l.b16 %v8085
    %v9813 = vunpack.c.h.b16 %v8085
    %v9814 = vunpack.c.l.b16 %v8086
    %v9815 = vunpack.c.h.b16 %v8086
    %v9816 = vunpack.c.l.b16 %v8087
    %v9817 = vunpack.c.l.b16 %v8088
    %v9818 = vunpack.c.h.b16 %v8088
    %v9819 = vunpack.c.l.b16 %v8089
    %v9820 = vunpack.c.h.b16 %v8089
    %v9821 = vunpack.c.l.b16 %v8090
    %v9822 = vunpack.c.h.b16 %v8090
    %v9823 = vunpack.c.l.b16 %v8091
    %v9824 = vunpack.c.h.b16 %v8091
    %v9825 = vunpack.c.l.b16 %v8092
    %v9826 = vunpack.c.l.b16 %v8093
    %v9827 = vunpack.c.h.b16 %v8093
    %v9828 = vunpack.c.l.b16 %v8094
    %v9829 = vunpack.c.h.b16 %v8094
    %v9830 = vunpack.c.l.b16 %v8095
    %v9831 = vunpack.c.h.b16 %v8095
    %v9832 = vunpack.c.l.b16 %v8096
    %v9833 = vunpack.c.h.b16 %v8096
    %v9834 = vunpack.c.l.b16 %v8097
    %v9835 = vunpack.c.l.b16 %v8098
    %v9836 = vunpack.c.h.b16 %v8098
    %v9837 = vunpack.c.l.b16 %v8099
    %v9838 = vunpack.c.h.b16 %v8099
    %v9839 = vunpack.c.l.b16 %v8100
    %v9840 = vunpack.c.h.b16 %v8100
    %v9841 = vunpack.c.l.b16 %v8101
    %v9842 = vunpack.c.h.b16 %v8101
    %v9843 = vunpack.c.l.b16 %v8102
    %v9844 = vunpack.c.l.b16 %v8103
    %v9845 = vunpack.c.h.b16 %v8103
    %v9846 = vunpack.c.l.b16 %v8104
    %v9847 = vunpack.c.h.b16 %v8104
    %v9848 = vunpack.c.l.b16 %v8105
    %v9849 = vunpack.c.h.b16 %v8105
    %v9850 = vunpack.c.l.b16 %v8106
    %v9851 = vunpack.c.h.b16 %v8106
    %v9852 = vunpack.c.l.b16 %v8107
    %v9853 = vunpack.c.l.b16 %v8108
    %v9854 = vunpack.c.h.b16 %v8108
    %v9855 = vunpack.c.l.b16 %v8109
    %v9856 = vunpack.c.h.b16 %v8109
    %v9857 = vunpack.c.l.b16 %v8110
    %v9858 = vunpack.c.h.b16 %v8110
    %v9859 = vunpack.c.l.b16 %v8111
    %v9860 = vunpack.c.h.b16 %v8111
    %v9861 = vunpack.c.l.b16 %v8112
    %v9862 = vunpack.c.l.b16 %v8113
    %v9863 = vunpack.c.h.b16 %v8113
    %v9864 = vunpack.c.l.b16 %v8114
    %v9865 = vunpack.c.h.b16 %v8114
    %v9866 = vunpack.c.l.b16 %v8115
    %v9867 = vunpack.c.h.b16 %v8115
    %v9868 = vunpack.c.l.b16 %v8116
    %v9869 = vunpack.c.h.b16 %v8116
    %v9870 = vunpack.c.l.b16 %v8117
    %v9871 = vunpack.c.l.b16 %v8118
    %v9872 = vunpack.c.h.b16 %v8118
    %v9873 = vunpack.c.l.b16 %v8119
    %v9874 = vunpack.c.h.b16 %v8119
    %v9875 = vunpack.c.l.b16 %v8120
    %v9876 = vunpack.c.h.b16 %v8120
    %v9877 = vunpack.c.l.b16 %v8121
    %v9878 = vunpack.c.h.b16 %v8121
    %v9879 = vunpack.c.l.b16 %v8122
    %v9880 = vunpack.c.l.b16 %v8123
    %v9881 = vunpack.c.h.b16 %v8123
    %v9882 = vunpack.c.l.b16 %v8124
    %v9883 = vunpack.c.h.b16 %v8124
    %v9884 = vunpack.c.l.b16 %v8125
    %v9885 = vunpack.c.h.b16 %v8125
    %v9886 = vunpack.c.l.b16 %v8126
    %v9887 = vunpack.c.h.b16 %v8126
    %v9888 = vunpack.c.l.b16 %v8127
    %v9889 = vunpack.c.l.b16 %v8128
    %v9890 = vunpack.c.h.b16 %v8128
    %v9891 = vunpack.c.l.b16 %v8129
    %v9892 = vunpack.c.h.b16 %v8129
    %v9893 = vunpack.c.l.b16 %v8130
    %v9894 = vunpack.c.h.b16 %v8130
    %v9895 = vunpack.c.l.b16 %v8131
    %v9896 = vunpack.c.h.b16 %v8131
    %v9897 = vunpack.c.l.b16 %v8132
    %v9898 = vunpack.c.l.b16 %v8133
    %v9899 = vunpack.c.h.b16 %v8133
    %v9900 = vunpack.c.l.b16 %v8134
    %v9901 = vunpack.c.h.b16 %v8134
    %v9902 = vunpack.c.l.b16 %v8135
    %v9903 = vunpack.c.h.b16 %v8135
    %v9904 = vunpack.c.l.b16 %v8136
    %v9905 = vunpack.c.h.b16 %v8136
    %v9906 = vunpack.c.l.b16 %v8137
    %v9907 = vunpack.c.l.b16 %v8138
    %v9908 = vunpack.c.h.b16 %v8138
    %v9909 = vunpack.c.l.b16 %v8139
    %v9910 = vunpack.c.h.b16 %v8139
    %v9911 = vunpack.c.l.b16 %v8140
    %v9912 = vunpack.c.h.b16 %v8140
    %v9913 = vunpack.c.l.b16 %v8141
    %v9914 = vunpack.c.h.b16 %v8141
    %v9915 = vunpack.c.l.b16 %v8142
    %v9916 = vunpack.c.l.b16 %v8143
    %v9917 = vunpack.c.h.b16 %v8143
    %v9918 = vunpack.c.l.b16 %v8144
    %v9919 = vunpack.c.h.b16 %v8144
    %v9920 = vunpack.c.l.b16 %v8145
    %v9921 = vunpack.c.h.b16 %v8145
    %v9922 = vunpack.c.l.b16 %v8146
    %v9923 = vunpack.c.h.b16 %v8146
    %v9924 = vunpack.c.l.b16 %v8147
    %v9925 = vunpack.c.l.b16 %v8148
    %v9926 = vunpack.c.h.b16 %v8148
    %v9927 = vunpack.c.l.b16 %v8149
    %v9928 = vunpack.c.h.b16 %v8149
    %v9929 = vunpack.c.l.b16 %v8150
    %v9930 = vunpack.c.h.b16 %v8150
    %v9931 = vunpack.c.l.b16 %v8151
    %v9932 = vunpack.c.h.b16 %v8151
    %v9933 = vunpack.c.l.b16 %v8152
    %v9934 = vunpack.c.l.b16 %v8153
    %v9935 = vunpack.c.h.b16 %v8153
    %v9936 = vunpack.c.l.b16 %v8154
    %v9937 = vunpack.c.h.b16 %v8154
    %v9938 = vunpack.c.l.b16 %v8155
    %v9939 = vunpack.c.h.b16 %v8155
    %v9940 = vunpack.c.l.b16 %v8156
    %v9941 = vunpack.c.h.b16 %v8156
    %v9942 = vunpack.c.l.b16 %v8157
    %v9943 = vunpack.c.l.b16 %v8158
    %v9944 = vunpack.c.h.b16 %v8158
    %v9945 = vunpack.c.l.b16 %v8159
    %v9946 = vunpack.c.h.b16 %v8159
    %v9947 = vunpack.c.l.b16 %v8160
    %v9948 = vunpack.c.h.b16 %v8160
    %v9949 = vunpack.c.l.b16 %v8161
    %v9950 = vunpack.c.h.b16 %v8161
    %v9951 = vunpack.c.l.b16 %v8162
    %v9952 = vunpack.c.l.b16 %v8163
    %v9953 = vunpack.c.h.b16 %v8163
    %v9954 = vunpack.c.l.b16 %v8164
    %v9955 = vunpack.c.h.b16 %v8164
    %v9956 = vunpack.c.l.b16 %v8165
    %v9957 = vunpack.c.h.b16 %v8165
    %v9958 = vunpack.c.l.b16 %v8166
    %v9959 = vunpack.c.h.b16 %v8166
    %v9960 = vunpack.c.l.b16 %v8167
    %v9961 = vunpack.c.l.b16 %v8168
    %v9962 = vunpack.c.h.b16 %v8168
    %v9963 = vunpack.c.l.b16 %v8169
    %v9964 = vunpack.c.h.b16 %v8169
    %v9965 = vunpack.c.l.b16 %v8170
    %v9966 = vunpack.c.h.b16 %v8170
    %v9967 = vunpack.c.l.b16 %v8171
    %v9968 = vunpack.c.h.b16 %v8171
    %v9969 = vunpack.c.l.b16 %v8172
    %v9970 = vunpack.c.l.b16 %v8173
    %v9971 = vunpack.c.h.b16 %v8173
    %v9972 = vunpack.c.l.b16 %v8174
    %v9973 = vunpack.c.h.b16 %v8174
    %v9974 = vunpack.c.l.b16 %v8175
    %v9975 = vunpack.c.h.b16 %v8175
    %v9976 = vunpack.c.l.b16 %v8176
    %v9977 = vunpack.c.h.b16 %v8176
    %v9978 = vunpack.c.l.b16 %v8177
    %v9979 = vunpack.c.l.b16 %v8178
    %v9980 = vunpack.c.h.b16 %v8178
    %v9981 = vunpack.c.l.b16 %v8179
    %v9982 = vunpack.c.h.b16 %v8179
    %v9983 = vunpack.c.l.b16 %v8180
    %v9984 = vunpack.c.h.b16 %v8180
    %v9985 = vunpack.c.l.b16 %v8181
    %v9986 = vunpack.c.h.b16 %v8181
    %v9987 = vunpack.c.l.b16 %v8182
    %v9988 = vunpack.c.l.b16 %v8183
    %v9989 = vunpack.c.h.b16 %v8183
    %v9990 = vunpack.c.l.b16 %v8184
    %v9991 = vunpack.c.h.b16 %v8184
    %v9992 = vunpack.c.l.b16 %v8185
    %v9993 = vunpack.c.h.b16 %v8185
    %v9994 = vunpack.c.l.b16 %v8186
    %v9995 = vunpack.c.h.b16 %v8186
    %v9996 = vunpack.c.l.b16 %v8187
    %v9997 = vunpack.c.l.b16 %v8188
    %v9998 = vunpack.c.h.b16 %v8188
    %v9999 = vunpack.c.l.b16 %v8189
    %v10000 = vunpack.c.h.b16 %v8189
    %v10001 = vunpack.c.l.b16 %v8190
    %v10002 = vunpack.c.h.b16 %v8190
    %v10003 = vunpack.c.l.b16 %v8191
    %v10004 = vunpack.c.h.b16 %v8191
    %v10005 = vunpack.c.l.b16 %v8192
    %v10006 = vunpack.c.l.b16 %v8193
    %v10007 = vunpack.c.h.b16 %v8193
    %v10008 = vunpack.c.l.b16 %v8194
    %v10009 = vunpack.c.h.b16 %v8194
    %v10010 = vunpack.c.l.b16 %v8195
    %v10011 = vunpack.c.h.b16 %v8195
    %v10012 = vunpack.c.l.b16 %v8196
    %v10013 = vunpack.c.h.b16 %v8196
    %v10014 = vunpack.c.l.b16 %v8197
    %v10015 = vunpack.c.l.b16 %v8198
    %v10016 = vunpack.c.h.b16 %v8198
    %v10017 = vunpack.c.l.b16 %v8199
    %v10018 = vunpack.c.h.b16 %v8199
    %v10019 = vunpack.c.l.b16 %v8200
    %v10020 = vunpack.c.h.b16 %v8200
    %v10021 = vunpack.c.l.b16 %v8201
    %v10022 = vunpack.c.h.b16 %v8201
    %v10023 = vunpack.c.l.b16 %v8202
    %v10024 = vunpack.c.l.b16 %v8203
    %v10025 = vunpack.c.h.b16 %v8203
    %v10026 = vunpack.c.l.b16 %v8204
    %v10027 = vunpack.c.h.b16 %v8204
    %v10028 = vunpack.c.l.b16 %v8205
    %v10029 = vunpack.c.h.b16 %v8205
    %v10030 = vunpack.c.l.b16 %v8206
    %v10031 = vunpack.c.h.b16 %v8206
    %v10032 = vunpack.c.l.b16 %v8207
    %v10033 = vunpack.c.l.b16 %v8208
    %v10034 = vunpack.c.h.b16 %v8208
    %v10035 = vunpack.c.l.b16 %v8209
    %v10036 = vunpack.c.h.b16 %v8209
    %v10037 = vunpack.c.l.b16 %v8210
    %v10038 = vunpack.c.h.b16 %v8210
    %v10039 = vunpack.c.l.b16 %v8211
    %v10040 = vunpack.c.h.b16 %v8211
    %v10041 = vunpack.c.l.b16 %v8212
    %v10042 = vunpack.c.l.b16 %v8213
    %v10043 = vunpack.c.h.b16 %v8213
    %v10044 = vunpack.c.l.b16 %v8214
    %v10045 = vunpack.c.h.b16 %v8214
    %v10046 = vunpack.c.l.b16 %v8215
    %v10047 = vunpack.c.h.b16 %v8215
    %v10048 = vunpack.c.l.b16 %v8216
    %v10049 = vunpack.c.h.b16 %v8216
    %v10050 = vunpack.c.l.b16 %v8217
    %v10051 = vunpack.c.l.b16 %v8218
    %v10052 = vunpack.c.h.b16 %v8218
    %v10053 = vunpack.c.l.b16 %v8219
    %v10054 = vunpack.c.h.b16 %v8219
    %v10055 = vunpack.c.l.b16 %v8220
    %v10056 = vunpack.c.h.b16 %v8220
    %v10057 = vunpack.c.l.b16 %v8221
    %v10058 = vunpack.c.h.b16 %v8221
    %v10059 = vunpack.c.l.b16 %v8222
    %v10060 = vunpack.c.l.b16 %v8223
    %v10061 = vunpack.c.h.b16 %v8223
    %v10062 = vunpack.c.l.b16 %v8224
    %v10063 = vunpack.c.h.b16 %v8224
    %v10064 = vunpack.c.l.b16 %v8225
    %v10065 = vunpack.c.h.b16 %v8225
    %v10066 = vunpack.c.l.b16 %v8226
    %v10067 = vunpack.c.h.b16 %v8226
    %v10068 = vunpack.c.l.b16 %v8227
    %v10069 = vpack.c.b16 %v8926, %v8917
    %v10070 = vpack.c.b16 %v8927, %v8918
    %v10071 = vpack.c.b16 %v8928, %v8919
    %v10072 = vpack.c.b16 %v8929, %v8920
    %v10073 = vpack.c.b16 %v8930, %v8921
    %v10074 = vpack.c.b16 %v8931, %v8922
    %v10075 = vpack.c.b16 %v8932, %v8923
    %v10076 = vpack.c.b16 %v8933, %v8924
    %v10077 = vpack.c.b16 %v8934, %v8925
    %v10078 = vpack.c.b16 %v8944, %v8935
    %v10079 = vpack.c.b16 %v8945, %v8936
    %v10080 = vpack.c.b16 %v8946, %v8937
    %v10081 = vpack.c.b16 %v8947, %v8938
    %v10082 = vpack.c.b16 %v8948, %v8939
    %v10083 = vpack.c.b16 %v8949, %v8940
    %v10084 = vpack.c.b16 %v8950, %v8941
    %v10085 = vpack.c.b16 %v8951, %v8942
    %v10086 = vpack.c.b16 %v8952, %v8943
    %v10087 = vpack.c.b16 %v8962, %v8953
    %v10088 = vpack.c.b16 %v8963, %v8954
    %v10089 = vpack.c.b16 %v8964, %v8955
    %v10090 = vpack.c.b16 %v8965, %v8956
    %v10091 = vpack.c.b16 %v8966, %v8957
    %v10092 = vpack.c.b16 %v8967, %v8958
    %v10093 = vpack.c.b16 %v8968, %v8959
    %v10094 = vpack.c.b16 %v8969, %v8960
    %v10095 = vpack.c.b16 %v8970, %v8961
    %v10096 = vpack.c.b16 %v8980, %v8971
    %v10097 = vpack.c.b16 %v8981, %v8972
    %v10098 = vpack.c.b16 %v8982, %v8973
    %v10099 = vpack.c.b16 %v8983, %v8974
    %v10100 = vpack.c.b16 %v8984, %v8975
    %v10101 = vpack.c.b16 %v8985, %v8976
    %v10102 = vpack.c.b16 %v8986, %v8977
    %v10103 = vpack.c.b16 %v8987, %v8978
    %v10104 = vpack.c.b16 %v8988, %v8979
    %v10105 = vpack.c.b16 %v8998, %v8989
    %v10106 = vpack.c.b16 %v8999, %v8990
    %v10107 = vpack.c.b16 %v9000, %v8991
    %v10108 = vpack.c.b16 %v9001, %v8992
    %v10109 = vpack.c.b16 %v9002, %v8993
    %v10110 = vpack.c.b16 %v9003, %v8994
    %v10111 = vpack.c.b16 %v9004, %v8995
    %v10112 = vpack.c.b16 %v9005, %v8996
    %v10113 = vpack.c.b16 %v9006, %v8997
    %v10114 = vpack.c.b16 %v9016, %v9007
    %v10115 = vpack.c.b16 %v9017, %v9008
    %v10116 = vpack.c.b16 %v9018, %v9009
    %v10117 = vpack.c.b16 %v9019, %v9010
    %v10118 = vpack.c.b16 %v9020, %v9011
    %v10119 = vpack.c.b16 %v9021, %v9012
    %v10120 = vpack.c.b16 %v9022, %v9013
    %v10121 = vpack.c.b16 %v9023, %v9014
    %v10122 = vpack.c.b16 %v9024, %v9015
    %v10123 = vpack.c.b16 %v9034, %v9025
    %v10124 = vpack.c.b16 %v9035, %v9026
    %v10125 = vpack.c.b16 %v9036, %v9027
    %v10126 = vpack.c.b16 %v9037, %v9028
    %v10127 = vpack.c.b16 %v9038, %v9029
    %v10128 = vpack.c.b16 %v9039, %v9030
    %v10129 = vpack.c.b16 %v9040, %v9031
    %v10130 = vpack.c.b16 %v9041, %v9032
    %v10131 = vpack.c.b16 %v9042, %v9033
    %v10132 = vpack.c.b16 %v9052, %v9043
    %v10133 = vpack.c.b16 %v9053, %v9044
    %v10134 = vpack.c.b16 %v9054, %v9045
    %v10135 = vpack.c.b16 %v9055, %v9046
    %v10136 = vpack.c.b16 %v9056, %v9047
    %v10137 = vpack.c.b16 %v9057, %v9048
    %v10138 = vpack.c.b16 %v9058, %v9049
    %v10139 = vpack.c.b16 %v9059, %v9050
    %v10140 = vpack.c.b16 %v9060, %v9051
    %v10141 = vpack.c.b16 %v9070, %v9061
    %v10142 = vpack.c.b16 %v9071, %v9062
    %v10143 = vpack.c.b16 %v9072, %v9063
    %v10144 = vpack.c.b16 %v9073, %v9064
    %v10145 = vpack.c.b16 %v9074, %v9065
    %v10146 = vpack.c.b16 %v9075, %v9066
    %v10147 = vpack.c.b16 %v9076, %v9067
    %v10148 = vpack.c.b16 %v9077, %v9068
    %v10149 = vpack.c.b16 %v9078, %v9069
    %v10150 = vpack.c.b16 %v9088, %v9079
    %v10151 = vpack.c.b16 %v9089, %v9080
    %v10152 = vpack.c.b16 %v9090, %v9081
    %v10153 = vpack.c.b16 %v9091, %v9082
    %v10154 = vpack.c.b16 %v9092, %v9083
    %v10155 = vpack.c.b16 %v9093, %v9084
    %v10156 = vpack.c.b16 %v9094, %v9085
    %v10157 = vpack.c.b16 %v9095, %v9086
    %v10158 = vpack.c.b16 %v9096, %v9087
    %v10159 = vpack.c.b16 %v9106, %v9097
    %v10160 = vpack.c.b16 %v9107, %v9098
    %v10161 = vpack.c.b16 %v9108, %v9099
    %v10162 = vpack.c.b16 %v9109, %v9100
    %v10163 = vpack.c.b16 %v9110, %v9101
    %v10164 = vpack.c.b16 %v9111, %v9102
    %v10165 = vpack.c.b16 %v9112, %v9103
    %v10166 = vpack.c.b16 %v9113, %v9104
    %v10167 = vpack.c.b16 %v9114, %v9105
    %v10168 = vpack.c.b16 %v9124, %v9115
    %v10169 = vpack.c.b16 %v9125, %v9116
    %v10170 = vpack.c.b16 %v9126, %v9117
    %v10171 = vpack.c.b16 %v9127, %v9118
    %v10172 = vpack.c.b16 %v9128, %v9119
    %v10173 = vpack.c.b16 %v9129, %v9120
    %v10174 = vpack.c.b16 %v9130, %v9121
    %v10175 = vpack.c.b16 %v9131, %v9122
    %v10176 = vpack.c.b16 %v9132, %v9123
    %v10177 = vpack.c.b16 %v9142, %v9133
    %v10178 = vpack.c.b16 %v9143, %v9134
    %v10179 = vpack.c.b16 %v9144, %v9135
    %v10180 = vpack.c.b16 %v9145, %v9136
    %v10181 = vpack.c.b16 %v9146, %v9137
    %v10182 = vpack.c.b16 %v9147, %v9138
    %v10183 = vpack.c.b16 %v9148, %v9139
    %v10184 = vpack.c.b16 %v9149, %v9140
    %v10185 = vpack.c.b16 %v9150, %v9141
    %v10186 = vpack.c.b16 %v9160, %v9151
    %v10187 = vpack.c.b16 %v9161, %v9152
    %v10188 = vpack.c.b16 %v9162, %v9153
    %v10189 = vpack.c.b16 %v9163, %v9154
    %v10190 = vpack.c.b16 %v9164, %v9155
    %v10191 = vpack.c.b16 %v9165, %v9156
    %v10192 = vpack.c.b16 %v9166, %v9157
    %v10193 = vpack.c.b16 %v9167, %v9158
    %v10194 = vpack.c.b16 %v9168, %v9159
    %v10195 = vpack.c.b16 %v9178, %v9169
    %v10196 = vpack.c.b16 %v9179, %v9170
    %v10197 = vpack.c.b16 %v9180, %v9171
    %v10198 = vpack.c.b16 %v9181, %v9172
    %v10199 = vpack.c.b16 %v9182, %v9173
    %v10200 = vpack.c.b16 %v9183, %v9174
    %v10201 = vpack.c.b16 %v9184, %v9175
    %v10202 = vpack.c.b16 %v9185, %v9176
    %v10203 = vpack.c.b16 %v9186, %v9177
    %v10204 = vpack.c.b16 %v9196, %v9187
    %v10205 = vpack.c.b16 %v9197, %v9188
    %v10206 = vpack.c.b16 %v9198, %v9189
    %v10207 = vpack.c.b16 %v9199, %v9190
    %v10208 = vpack.c.b16 %v9200, %v9191
    %v10209 = vpack.c.b16 %v9201, %v9192
    %v10210 = vpack.c.b16 %v9202, %v9193
    %v10211 = vpack.c.b16 %v9203, %v9194
    %v10212 = vpack.c.b16 %v9204, %v9195
    %v10213 = vpack.c.b16 %v9214, %v9205
    %v10214 = vpack.c.b16 %v9215, %v9206
    %v10215 = vpack.c.b16 %v9216, %v9207
    %v10216 = vpack.c.b16 %v9217, %v9208
    %v10217 = vpack.c.b16 %v9218, %v9209
    %v10218 = vpack.c.b16 %v9219, %v9210
    %v10219 = vpack.c.b16 %v9220, %v9211
    %v10220 = vpack.c.b16 %v9221, %v9212
    %v10221 = vpack.c.b16 %v9222, %v9213
    %v10222 = vpack.c.b16 %v9232, %v9223
    %v10223 = vpack.c.b16 %v9233, %v9224
    %v10224 = vpack.c.b16 %v9234, %v9225
    %v10225 = vpack.c.b16 %v9235, %v9226
    %v10226 = vpack.c.b16 %v9236, %v9227
    %v10227 = vpack.c.b16 %v9237, %v9228
    %v10228 = vpack.c.b16 %v9238, %v9229
    %v10229 = vpack.c.b16 %v9239, %v9230
    %v10230 = vpack.c.b16 %v9240, %v9231
    %v10231 = vpack.c.b16 %v9250, %v9241
    %v10232 = vpack.c.b16 %v9251, %v9242
    %v10233 = vpack.c.b16 %v9252, %v9243
    %v10234 = vpack.c.b16 %v9253, %v9244
    %v10235 = vpack.c.b16 %v9254, %v9245
    %v10236 = vpack.c.b16 %v9255, %v9246
    %v10237 = vpack.c.b16 %v9256, %v9247
    %v10238 = vpack.c.b16 %v9257, %v9248
    %v10239 = vpack.c.b16 %v9258, %v9249
    %v10240 = vpack.c.b16 %v9268, %v9259
    %v10241 = vpack.c.b16 %v9269, %v9260
    %v10242 = vpack.c.b16 %v9270, %v9261
    %v10243 = vpack.c.b16 %v9271, %v9262
    %v10244 = vpack.c.b16 %v9272, %v9263
    %v10245 = vpack.c.b16 %v9273, %v9264
    %v10246 = vpack.c.b16 %v9274, %v9265
    %v10247 = vpack.c.b16 %v9275, %v9266
    %v10248 = vpack.c.b16 %v9276, %v9267
    %v10249 = vpack.c.b16 %v9286, %v9277
    %v10250 = vpack.c.b16 %v9287, %v9278
    %v10251 = vpack.c.b16 %v9288, %v9279
    %v10252 = vpack.c.b16 %v9289, %v9280
    %v10253 = vpack.c.b16 %v9290, %v9281
    %v10254 = vpack.c.b16 %v9291, %v9282
    %v10255 = vpack.c.b16 %v9292, %v9283
    %v10256 = vpack.c.b16 %v9293, %v9284
    %v10257 = vpack.c.b16 %v9294, %v9285
    %v10258 = vpack.c.b16 %v9304, %v9295
    %v10259 = vpack.c.b16 %v9305, %v9296
    %v10260 = vpack.c.b16 %v9306, %v9297
    %v10261 = vpack.c.b16 %v9307, %v9298
    %v10262 = vpack.c.b16 %v9308, %v9299
    %v10263 = vpack.c.b16 %v9309, %v9300
    %v10264 = vpack.c.b16 %v9310, %v9301
    %v10265 = vpack.c.b16 %v9311, %v9302
    %v10266 = vpack.c.b16 %v9312, %v9303
    %v10267 = vpack.c.b16 %v9322, %v9313
    %v10268 = vpack.c.b16 %v9323, %v9314
    %v10269 = vpack.c.b16 %v9324, %v9315
    %v10270 = vpack.c.b16 %v9325, %v9316
    %v10271 = vpack.c.b16 %v9326, %v9317
    %v10272 = vpack.c.b16 %v9327, %v9318
    %v10273 = vpack.c.b16 %v9328, %v9319
    %v10274 = vpack.c.b16 %v9329, %v9320
    %v10275 = vpack.c.b16 %v9330, %v9321
    %v10276 = vpack.c.b16 %v9340, %v9331
    %v10277 = vpack.c.b16 %v9341, %v9332
    %v10278 = vpack.c.b16 %v9342, %v9333
    %v10279 = vpack.c.b16 %v9343, %v9334
    %v10280 = vpack.c.b16 %v9344, %v9335
    %v10281 = vpack.c.b16 %v9345, %v9336
    %v10282 = vpack.c.b16 %v9346, %v9337
    %v10283 = vpack.c.b16 %v9347, %v9338
    %v10284 = vpack.c.b16 %v9348, %v9339
    %v10285 = vpack.c.b16 %v9358, %v9349
    %v10286 = vpack.c.b16 %v9359, %v9350
    %v10287 = vpack.c.b16 %v9360, %v9351
    %v10288 = vpack.c.b16 %v9361, %v9352
    %v10289 = vpack.c.b16 %v9362, %v9353
    %v10290 = vpack.c.b16 %v9363, %v9354
    %v10291 = vpack.c.b16 %v9364, %v9355
    %v10292 = vpack.c.b16 %v9365, %v9356
    %v10293 = vpack.c.b16 %v9366, %v9357
    %v10294 = vpack.c.b16 %v9376, %v9367
    %v10295 = vpack.c.b16 %v9377, %v9368
    %v10296 = vpack.c.b16 %v9378, %v9369
    %v10297 = vpack.c.b16 %v9379, %v9370
    %v10298 = vpack.c.b16 %v9380, %v9371
    %v10299 = vpack.c.b16 %v9381, %v9372
    %v10300 = vpack.c.b16 %v9382, %v9373
    %v10301 = vpack.c.b16 %v9383, %v9374
    %v10302 = vpack.c.b16 %v9384, %v9375
    %v10303 = vpack.c.b16 %v9394, %v9385
    %v10304 = vpack.c.b16 %v9395, %v9386
    %v10305 = vpack.c.b16 %v9396, %v9387
    %v10306 = vpack.c.b16 %v9397, %v9388
    %v10307 = vpack.c.b16 %v9398, %v9389
    %v10308 = vpack.c.b16 %v9399, %v9390
    %v10309 = vpack.c.b16 %v9400, %v9391
    %v10310 = vpack.c.b16 %v9401, %v9392
    %v10311 = vpack.c.b16 %v9402, %v9393
    %v10312 = vpack.c.b16 %v9412, %v9403
    %v10313 = vpack.c.b16 %v9413, %v9404
    %v10314 = vpack.c.b16 %v9414, %v9405
    %v10315 = vpack.c.b16 %v9415, %v9406
    %v10316 = vpack.c.b16 %v9416, %v9407
    %v10317 = vpack.c.b16 %v9417, %v9408
    %v10318 = vpack.c.b16 %v9418, %v9409
    %v10319 = vpack.c.b16 %v9419, %v9410
    %v10320 = vpack.c.b16 %v9420, %v9411
    %v10321 = vpack.c.b16 %v9430, %v9421
    %v10322 = vpack.c.b16 %v9431, %v9422
    %v10323 = vpack.c.b16 %v9432, %v9423
    %v10324 = vpack.c.b16 %v9433, %v9424
    %v10325 = vpack.c.b16 %v9434, %v9425
    %v10326 = vpack.c.b16 %v9435, %v9426
    %v10327 = vpack.c.b16 %v9436, %v9427
    %v10328 = vpack.c.b16 %v9437, %v9428
    %v10329 = vpack.c.b16 %v9438, %v9429
    %v10330 = vpack.c.b16 %v9448, %v9439
    %v10331 = vpack.c.b16 %v9449, %v9440
    %v10332 = vpack.c.b16 %v9450, %v9441
    %v10333 = vpack.c.b16 %v9451, %v9442
    %v10334 = vpack.c.b16 %v9452, %v9443
    %v10335 = vpack.c.b16 %v9453, %v9444
    %v10336 = vpack.c.b16 %v9454, %v9445
    %v10337 = vpack.c.b16 %v9455, %v9446
    %v10338 = vpack.c.b16 %v9456, %v9447
    %v10339 = vpack.c.b16 %v9466, %v9457
    %v10340 = vpack.c.b16 %v9467, %v9458
    %v10341 = vpack.c.b16 %v9468, %v9459
    %v10342 = vpack.c.b16 %v9469, %v9460
    %v10343 = vpack.c.b16 %v9470, %v9461
    %v10344 = vpack.c.b16 %v9471, %v9462
    %v10345 = vpack.c.b16 %v9472, %v9463
    %v10346 = vpack.c.b16 %v9473, %v9464
    %v10347 = vpack.c.b16 %v9474, %v9465
    %v10348 = vpack.c.b16 %v9484, %v9475
    %v10349 = vpack.c.b16 %v9485, %v9476
    %v10350 = vpack.c.b16 %v9486, %v9477
    %v10351 = vpack.c.b16 %v9487, %v9478
    %v10352 = vpack.c.b16 %v9488, %v9479
    %v10353 = vpack.c.b16 %v9489, %v9480
    %v10354 = vpack.c.b16 %v9490, %v9481
    %v10355 = vpack.c.b16 %v9491, %v9482
    %v10356 = vpack.c.b16 %v9492, %v9483
    %v10357 = vpack.c.b16 %v9502, %v9493
    %v10358 = vpack.c.b16 %v9503, %v9494
    %v10359 = vpack.c.b16 %v9504, %v9495
    %v10360 = vpack.c.b16 %v9505, %v9496
    %v10361 = vpack.c.b16 %v9506, %v9497
    %v10362 = vpack.c.b16 %v9507, %v9498
    %v10363 = vpack.c.b16 %v9508, %v9499
    %v10364 = vpack.c.b16 %v9509, %v9500
    %v10365 = vpack.c.b16 %v9510, %v9501
    %v10366 = vpack.c.b16 %v9520, %v9511
    %v10367 = vpack.c.b16 %v9521, %v9512
    %v10368 = vpack.c.b16 %v9522, %v9513
    %v10369 = vpack.c.b16 %v9523, %v9514
    %v10370 = vpack.c.b16 %v9524, %v9515
    %v10371 = vpack.c.b16 %v9525, %v9516
    %v10372 = vpack.c.b16 %v9526, %v9517
    %v10373 = vpack.c.b16 %v9527, %v9518
    %v10374 = vpack.c.b16 %v9528, %v9519
    %v10375 = vpack.c.b16 %v9538, %v9529
    %v10376 = vpack.c.b16 %v9539, %v9530
    %v10377 = vpack.c.b16 %v9540, %v9531
    %v10378 = vpack.c.b16 %v9541, %v9532
    %v10379 = vpack.c.b16 %v9542, %v9533
    %v10380 = vpack.c.b16 %v9543, %v9534
    %v10381 = vpack.c.b16 %v9544, %v9535
    %v10382 = vpack.c.b16 %v9545, %v9536
    %v10383 = vpack.c.b16 %v9546, %v9537
    %v10384 = vpack.c.b16 %v9556, %v9547
    %v10385 = vpack.c.b16 %v9557, %v9548
    %v10386 = vpack.c.b16 %v9558, %v9549
    %v10387 = vpack.c.b16 %v9559, %v9550
    %v10388 = vpack.c.b16 %v9560, %v9551
    %v10389 = vpack.c.b16 %v9561, %v9552
    %v10390 = vpack.c.b16 %v9562, %v9553
    %v10391 = vpack.c.b16 %v9563, %v9554
    %v10392 = vpack.c.b16 %v9564, %v9555
    %v10393 = vpack.c.b16 %v9574, %v9565
    %v10394 = vpack.c.b16 %v9575, %v9566
    %v10395 = vpack.c.b16 %v9576, %v9567
    %v10396 = vpack.c.b16 %v9577, %v9568
    %v10397 = vpack.c.b16 %v9578, %v9569
    %v10398 = vpack.c.b16 %v9579, %v9570
    %v10399 = vpack.c.b16 %v9580, %v9571
    %v10400 = vpack.c.b16 %v9581, %v9572
    %v10401 = vpack.c.b16 %v9582, %v9573
    %v10402 = vpack.c.b16 %v9592, %v9583
    %v10403 = vpack.c.b16 %v9593, %v9584
    %v10404 = vpack.c.b16 %v9594, %v9585
    %v10405 = vpack.c.b16 %v9595, %v9586
    %v10406 = vpack.c.b16 %v9596, %v9587
    %v10407 = vpack.c.b16 %v9597, %v9588
    %v10408 = vpack.c.b16 %v9598, %v9589
    %v10409 = vpack.c.b16 %v9599, %v9590
    %v10410 = vpack.c.b16 %v9600, %v9591
    %v10411 = vpack.c.b16 %v9610, %v9601
    %v10412 = vpack.c.b16 %v9611, %v9602
    %v10413 = vpack.c.b16 %v9612, %v9603
    %v10414 = vpack.c.b16 %v9613, %v9604
    %v10415 = vpack.c.b16 %v9614, %v9605
    %v10416 = vpack.c.b16 %v9615, %v9606
    %v10417 = vpack.c.b16 %v9616, %v9607
    %v10418 = vpack.c.b16 %v9617, %v9608
    %v10419 = vpack.c.b16 %v9618, %v9609
    %v10420 = vpack.c.b16 %v9628, %v9619
    %v10421 = vpack.c.b16 %v9629, %v9620
    %v10422 = vpack.c.b16 %v9630, %v9621
    %v10423 = vpack.c.b16 %v9631, %v9622
    %v10424 = vpack.c.b16 %v9632, %v9623
    %v10425 = vpack.c.b16 %v9633, %v9624
    %v10426 = vpack.c.b16 %v9634, %v9625
    %v10427 = vpack.c.b16 %v9635, %v9626
    %v10428 = vpack.c.b16 %v9636, %v9627
    %v10429 = vpack.c.b16 %v9646, %v9637
    %v10430 = vpack.c.b16 %v9647, %v9638
    %v10431 = vpack.c.b16 %v9648, %v9639
    %v10432 = vpack.c.b16 %v9649, %v9640
    %v10433 = vpack.c.b16 %v9650, %v9641
    %v10434 = vpack.c.b16 %v9651, %v9642
    %v10435 = vpack.c.b16 %v9652, %v9643
    %v10436 = vpack.c.b16 %v9653, %v9644
    %v10437 = vpack.c.b16 %v9654, %v9645
    %v10438 = vpack.c.b16 %v9664, %v9655
    %v10439 = vpack.c.b16 %v9665, %v9656
    %v10440 = vpack.c.b16 %v9666, %v9657
    %v10441 = vpack.c.b16 %v9667, %v9658
    %v10442 = vpack.c.b16 %v9668, %v9659
    %v10443 = vpack.c.b16 %v9669, %v9660
    %v10444 = vpack.c.b16 %v9670, %v9661
    %v10445 = vpack.c.b16 %v9671, %v9662
    %v10446 = vpack.c.b16 %v9672, %v9663
    %v10447 = vpack.c.b16 %v9682, %v9673
    %v10448 = vpack.c.b16 %v9683, %v9674
    %v10449 = vpack.c.b16 %v9684, %v9675
    %v10450 = vpack.c.b16 %v9685, %v9676
    %v10451 = vpack.c.b16 %v9686, %v9677
    %v10452 = vpack.c.b16 %v9687, %v9678
    %v10453 = vpack.c.b16 %v9688, %v9679
    %v10454 = vpack.c.b16 %v9689, %v9680
    %v10455 = vpack.c.b16 %v9690, %v9681
    %v10456 = vpack.c.b16 %v9700, %v9691
    %v10457 = vpack.c.b16 %v9701, %v9692
    %v10458 = vpack.c.b16 %v9702, %v9693
    %v10459 = vpack.c.b16 %v9703, %v9694
    %v10460 = vpack.c.b16 %v9704, %v9695
    %v10461 = vpack.c.b16 %v9705, %v9696
    %v10462 = vpack.c.b16 %v9706, %v9697
    %v10463 = vpack.c.b16 %v9707, %v9698
    %v10464 = vpack.c.b16 %v9708, %v9699
    %v10465 = vpack.c.b16 %v9718, %v9709
    %v10466 = vpack.c.b16 %v9719, %v9710
    %v10467 = vpack.c.b16 %v9720, %v9711
    %v10468 = vpack.c.b16 %v9721, %v9712
    %v10469 = vpack.c.b16 %v9722, %v9713
    %v10470 = vpack.c.b16 %v9723, %v9714
    %v10471 = vpack.c.b16 %v9724, %v9715
    %v10472 = vpack.c.b16 %v9725, %v9716
    %v10473 = vpack.c.b16 %v9726, %v9717
    %v10474 = vpack.c.b16 %v9736, %v9727
    %v10475 = vpack.c.b16 %v9737, %v9728
    %v10476 = vpack.c.b16 %v9738, %v9729
    %v10477 = vpack.c.b16 %v9739, %v9730
    %v10478 = vpack.c.b16 %v9740, %v9731
    %v10479 = vpack.c.b16 %v9741, %v9732
    %v10480 = vpack.c.b16 %v9742, %v9733
    %v10481 = vpack.c.b16 %v9743, %v9734
    %v10482 = vpack.c.b16 %v9744, %v9735
    %v10483 = vpack.c.b16 %v9754, %v9745
    %v10484 = vpack.c.b16 %v9755, %v9746
    %v10485 = vpack.c.b16 %v9756, %v9747
    %v10486 = vpack.c.b16 %v9757, %v9748
    %v10487 = vpack.c.b16 %v9758, %v9749
    %v10488 = vpack.c.b16 %v9759, %v9750
    %v10489 = vpack.c.b16 %v9760, %v9751
    %v10490 = vpack.c.b16 %v9761, %v9752
    %v10491 = vpack.c.b16 %v9762, %v9753
    %v10492 = vpack.c.b16 %v9772, %v9763
    %v10493 = vpack.c.b16 %v9773, %v9764
    %v10494 = vpack.c.b16 %v9774, %v9765
    %v10495 = vpack.c.b16 %v9775, %v9766
    %v10496 = vpack.c.b16 %v9776, %v9767
    %v10497 = vpack.c.b16 %v9777, %v9768
    %v10498 = vpack.c.b16 %v9778, %v9769
    %v10499 = vpack.c.b16 %v9779, %v9770
    %v10500 = vpack.c.b16 %v9780, %v9771
    %v10501 = vpack.c.b16 %v9790, %v9781
    %v10502 = vpack.c.b16 %v9791, %v9782
    %v10503 = vpack.c.b16 %v9792, %v9783
    %v10504 = vpack.c.b16 %v9793, %v9784
    %v10505 = vpack.c.b16 %v9794, %v9785
    %v10506 = vpack.c.b16 %v9795, %v9786
    %v10507 = vpack.c.b16 %v9796, %v9787
    %v10508 = vpack.c.b16 %v9797, %v9788
    %v10509 = vpack.c.b16 %v9798, %v9789
    %v10510 = vpack.c.b16 %v9808, %v9799
    %v10511 = vpack.c.b16 %v9809, %v9800
    %v10512 = vpack.c.b16 %v9810, %v9801
    %v10513 = vpack.c.b16 %v9811, %v9802
    %v10514 = vpack.c.b16 %v9812, %v9803
    %v10515 = vpack.c.b16 %v9813, %v9804
    %v10516 = vpack.c.b16 %v9814, %v9805
    %v10517 = vpack.c.b16 %v9815, %v9806
    %v10518 = vpack.c.b16 %v9816, %v9807
    %v10519 = vpack.c.b16 %v9826, %v9817
    %v10520 = vpack.c.b16 %v9827, %v9818
    %v10521 = vpack.c.b16 %v9828, %v9819
    %v10522 = vpack.c.b16 %v9829, %v9820
    %v10523 = vpack.c.b16 %v9830, %v9821
    %v10524 = vpack.c.b16 %v9831, %v9822
    %v10525 = vpack.c.b16 %v9832, %v9823
    %v10526 = vpack.c.b16 %v9833, %v9824
    %v10527 = vpack.c.b16 %v9834, %v9825
    %v10528 = vpack.c.b16 %v9844, %v9835
    %v10529 = vpack.c.b16 %v9845, %v9836
    %v10530 = vpack.c.b16 %v9846, %v9837
    %v10531 = vpack.c.b16 %v9847, %v9838
    %v10532 = vpack.c.b16 %v9848, %v9839
    %v10533 = vpack.c.b16 %v9849, %v9840
    %v10534 = vpack.c.b16 %v9850, %v9841
    %v10535 = vpack.c.b16 %v9851, %v9842
    %v10536 = vpack.c.b16 %v9852, %v9843
    %v10537 = vpack.c.b16 %v9862, %v9853
    %v10538 = vpack.c.b16 %v9863, %v9854
    %v10539 = vpack.c.b16 %v9864, %v9855
    %v10540 = vpack.c.b16 %v9865, %v9856
    %v10541 = vpack.c.b16 %v9866, %v9857
    %v10542 = vpack.c.b16 %v9867, %v9858
    %v10543 = vpack.c.b16 %v9868, %v9859
    %v10544 = vpack.c.b16 %v9869, %v9860
    %v10545 = vpack.c.b16 %v9870, %v9861
    %v10546 = vpack.c.b16 %v9880, %v9871
    %v10547 = vpack.c.b16 %v9881, %v9872
    %v10548 = vpack.c.b16 %v9882, %v9873
    %v10549 = vpack.c.b16 %v9883, %v9874
    %v10550 = vpack.c.b16 %v9884, %v9875
    %v10551 = vpack.c.b16 %v9885, %v9876
    %v10552 = vpack.c.b16 %v9886, %v9877
    %v10553 = vpack.c.b16 %v9887, %v9878
    %v10554 = vpack.c.b16 %v9888, %v9879
    %v10555 = vpack.c.b16 %v9898, %v9889
    %v10556 = vpack.c.b16 %v9899, %v9890
    %v10557 = vpack.c.b16 %v9900, %v9891
    %v10558 = vpack.c.b16 %v9901, %v9892
    %v10559 = vpack.c.b16 %v9902, %v9893
    %v10560 = vpack.c.b16 %v9903, %v9894
    %v10561 = vpack.c.b16 %v9904, %v9895
    %v10562 = vpack.c.b16 %v9905, %v9896
    %v10563 = vpack.c.b16 %v9906, %v9897
    %v10564 = vpack.c.b16 %v9916, %v9907
    %v10565 = vpack.c.b16 %v9917, %v9908
    %v10566 = vpack.c.b16 %v9918, %v9909
    %v10567 = vpack.c.b16 %v9919, %v9910
    %v10568 = vpack.c.b16 %v9920, %v9911
    %v10569 = vpack.c.b16 %v9921, %v9912
    %v10570 = vpack.c.b16 %v9922, %v9913
    %v10571 = vpack.c.b16 %v9923, %v9914
    %v10572 = vpack.c.b16 %v9924, %v9915
    %v10573 = vpack.c.b16 %v9934, %v9925
    %v10574 = vpack.c.b16 %v9935, %v9926
    %v10575 = vpack.c.b16 %v9936, %v9927
    %v10576 = vpack.c.b16 %v9937, %v9928
    %v10577 = vpack.c.b16 %v9938, %v9929
    %v10578 = vpack.c.b16 %v9939, %v9930
    %v10579 = vpack.c.b16 %v9940, %v9931
    %v10580 = vpack.c.b16 %v9941, %v9932
    %v10581 = vpack.c.b16 %v9942, %v9933
    %v10582 = vpack.c.b16 %v9952, %v9943
    %v10583 = vpack.c.b16 %v9953, %v9944
    %v10584 = vpack.c.b16 %v9954, %v9945
    %v10585 = vpack.c.b16 %v9955, %v9946
    %v10586 = vpack.c.b16 %v9956, %v9947
    %v10587 = vpack.c.b16 %v9957, %v9948
    %v10588 = vpack.c.b16 %v9958, %v9949
    %v10589 = vpack.c.b16 %v9959, %v9950
    %v10590 = vpack.c.b16 %v9960, %v9951
    %v10591 = vpack.c.b16 %v9970, %v9961
    %v10592 = vpack.c.b16 %v9971, %v9962
    %v10593 = vpack.c.b16 %v9972, %v9963
    %v10594 = vpack.c.b16 %v9973, %v9964
    %v10595 = vpack.c.b16 %v9974, %v9965
    %v10596 = vpack.c.b16 %v9975, %v9966
    %v10597 = vpack.c.b16 %v9976, %v9967
    %v10598 = vpack.c.b16 %v9977, %v9968
    %v10599 = vpack.c.b16 %v9978, %v9969
    %v10600 = vpack.c.b16 %v9988, %v9979
    %v10601 = vpack.c.b16 %v9989, %v9980
    %v10602 = vpack.c.b16 %v9990, %v9981
    %v10603 = vpack.c.b16 %v9991, %v9982
    %v10604 = vpack.c.b16 %v9992, %v9983
    %v10605 = vpack.c.b16 %v9993, %v9984
    %v10606 = vpack.c.b16 %v9994, %v9985
    %v10607 = vpack.c.b16 %v9995, %v9986
    %v10608 = vpack.c.b16 %v9996, %v9987
    %v10609 = vpack.c.b16 %v10006, %v9997
    %v10610 = vpack.c.b16 %v10007, %v9998
    %v10611 = vpack.c.b16 %v10008, %v9999
    %v10612 = vpack.c.b16 %v10009, %v10000
    %v10613 = vpack.c.b16 %v10010, %v10001
    %v10614 = vpack.c.b16 %v10011, %v10002
    %v10615 = vpack.c.b16 %v10012, %v10003
    %v10616 = vpack.c.b16 %v10013, %v10004
    %v10617 = vpack.c.b16 %v10014, %v10005
    %v10618 = vpack.c.b16 %v10024, %v10015
    %v10619 = vpack.c.b16 %v10025, %v10016
    %v10620 = vpack.c.b16 %v10026, %v10017
    %v10621 = vpack.c.b16 %v10027, %v10018
    %v10622 = vpack.c.b16 %v10028, %v10019
    %v10623 = vpack.c.b16 %v10029, %v10020
    %v10624 = vpack.c.b16 %v10030, %v10021
    %v10625 = vpack.c.b16 %v10031, %v10022
    %v10626 = vpack.c.b16 %v10032, %v10023
    %v10627 = vpack.c.b16 %v10042, %v10033
    %v10628 = vpack.c.b16 %v10043, %v10034
    %v10629 = vpack.c.b16 %v10044, %v10035
    %v10630 = vpack.c.b16 %v10045, %v10036
    %v10631 = vpack.c.b16 %v10046, %v10037
    %v10632 = vpack.c.b16 %v10047, %v10038
    %v10633 = vpack.c.b16 %v10048, %v10039
    %v10634 = vpack.c.b16 %v10049, %v10040
    %v10635 = vpack.c.b16 %v10050, %v10041
    %v10636 = vpack.c.b16 %v10060, %v10051
    %v10637 = vpack.c.b16 %v10061, %v10052
    %v10638 = vpack.c.b16 %v10062, %v10053
    %v10639 = vpack.c.b16 %v10063, %v10054
    %v10640 = vpack.c.b16 %v10064, %v10055
    %v10641 = vpack.c.b16 %v10065, %v10056
    %v10642 = vpack.c.b16 %v10066, %v10057
    %v10643 = vpack.c.b16 %v10067, %v10058
    %v10644 = vpack.c.b16 %v10068, %v10059
    %11221 = vmatprep.subr.bf16.mxu0 %v10070
    %11222 = vmatpush1.bf16.msra.mxu0 %v10069
    %11223 = vmatprep.subr.bf16.mxu0 %v10079
    %11224 = vmatpush1.bf16.msra.mxu0 %v10078
    %11225 = vmatprep.subr.bf16.mxu0 %v10088
    %11226 = vmatpush1.bf16.msra.mxu0 %v10087
    %11227 = vmatprep.subr.bf16.mxu0 %v10097
    %11228 = vmatpush1.bf16.msra.mxu0 %v10096
    %11229 = vmatprep.subr.bf16.mxu0 %v10106
    %11230 = vmatpush1.bf16.msra.mxu0 %v10105
    %11231 = vmatprep.subr.bf16.mxu0 %v10115
    %11232 = vmatpush1.bf16.msra.mxu0 %v10114
    %11233 = vmatprep.subr.bf16.mxu0 %v10124
    %11234 = vmatpush1.bf16.msra.mxu0 %v10123
    %11235 = vmatprep.subr.bf16.mxu0 %v10133
    %11236 = vmatpush1.bf16.msra.mxu0 %v10132
    %11237 = vmatprep.subr.bf16.mxu0 %v10142
    %11238 = vmatpush1.bf16.msra.mxu0 %v10141
    %11239 = vmatprep.subr.bf16.mxu0 %v10151
    %11240 = vmatpush1.bf16.msra.mxu0 %v10150
    %11241 = vmatprep.subr.bf16.mxu0 %v10160
    %11242 = vmatpush1.bf16.msra.mxu0 %v10159
    %11243 = vmatprep.subr.bf16.mxu0 %v10169
    %11244 = vmatpush1.bf16.msra.mxu0 %v10168
    %11245 = vmatprep.subr.bf16.mxu0 %v10178
    %11246 = vmatpush1.bf16.msra.mxu0 %v10177
    %11247 = vmatprep.subr.bf16.mxu0 %v10187
    %11248 = vmatpush1.bf16.msra.mxu0 %v10186
    %11249 = vmatprep.subr.bf16.mxu0 %v10196
    %11250 = vmatpush1.bf16.msra.mxu0 %v10195
    %11251 = vmatprep.subr.bf16.mxu0 %v10205
    %11252 = vmatpush1.bf16.msra.mxu0 %v10204
    %11253 = vmatprep.mubr.bf16.mxu0 %v7581
    %11254 = vmatmul.mubr.bf16.gmra.mrb[0].mxu0 %v7580
    %v11255 = vpop.f32.mrb[0].mxu0
    %v11256 = vadd.f32 %v8235, %v11255
    %v11257 = vpop.f32.mrb[0].mxu0
    %v11258 = vadd.f32 %v8239, %v11257
    %v11259 = vpop.f32.mrb[0].mxu0
    %v11260 = vpop.f32.mrb[0].mxu0
    %11261 = vdwg.mxu0
    %11262 = vmatprep.subr.bf16.mxu0 %v10214
    %11263 = vmatpush1.bf16.msra.mxu0 %v10213
    %11264 = vmatprep.subr.bf16.mxu0 %v10223
    %11265 = vmatpush1.bf16.msra.mxu0 %v10222
    %11266 = vmatprep.subr.bf16.mxu0 %v10232
    %11267 = vmatpush1.bf16.msra.mxu0 %v10231
    %11268 = vmatprep.subr.bf16.mxu0 %v10241
    %11269 = vmatpush1.bf16.msra.mxu0 %v10240
    %11270 = vmatprep.subr.bf16.mxu0 %v10250
    %11271 = vmatpush1.bf16.msra.mxu0 %v10249
    %11272 = vmatprep.subr.bf16.mxu0 %v10259
    %11273 = vmatpush1.bf16.msra.mxu0 %v10258
    %11274 = vmatprep.subr.bf16.mxu0 %v10268
    %11275 = vmatpush1.bf16.msra.mxu0 %v10267
    %11276 = vmatprep.subr.bf16.mxu0 %v10277
    %11277 = vmatpush1.bf16.msra.mxu0 %v10276
    %11278 = vmatprep.subr.bf16.mxu0 %v10286
    %11279 = vmatpush1.bf16.msra.mxu0 %v10285
    %11280 = vmatprep.subr.bf16.mxu0 %v10295
    %11281 = vmatpush1.bf16.msra.mxu0 %v10294
    %11282 = vmatprep.subr.bf16.mxu0 %v10304
    %11283 = vmatpush1.bf16.msra.mxu0 %v10303
    %11284 = vmatprep.subr.bf16.mxu0 %v10313
    %11285 = vmatpush1.bf16.msra.mxu0 %v10312
    %11286 = vmatprep.subr.bf16.mxu0 %v10322
    %11287 = vmatpush1.bf16.msra.mxu0 %v10321
    %11288 = vmatprep.subr.bf16.mxu0 %v10331
    %11289 = vmatpush1.bf16.msra.mxu0 %v10330
    %11290 = vmatprep.subr.bf16.mxu0 %v10340
    %11291 = vmatpush1.bf16.msra.mxu0 %v10339
    %11292 = vmatprep.subr.bf16.mxu0 %v10349
    %11293 = vmatpush1.bf16.msra.mxu0 %v10348
    %11294 = vmatprep.mubr.bf16.mxu0 %v7583
    %11295 = vmatmul.mubr.bf16.gmra.mrb[0].mxu0 %v7582
    %v11296 = vpop.f32.mrb[0].mxu0
    %v11297 = vadd.f32 %v11256, %v11296
    %v11298 = vpop.f32.mrb[0].mxu0
    %v11299 = vadd.f32 %v11258, %v11298
    %v11300 = vpop.f32.mrb[0].mxu0
    %v11301 = vpop.f32.mrb[0].mxu0
    %11302 = vdwg.mxu0
    %11303 = vmatprep.subr.bf16.mxu0 %v10358
    %11304 = vmatpush1.bf16.msra.mxu0 %v10357
    %11305 = vmatprep.subr.bf16.mxu0 %v10367
    %11306 = vmatpush1.bf16.msra.mxu0 %v10366
    %11307 = vmatprep.subr.bf16.mxu0 %v10376
    %11308 = vmatpush1.bf16.msra.mxu0 %v10375
    %11309 = vmatprep.subr.bf16.mxu0 %v10385
    %11310 = vmatpush1.bf16.msra.mxu0 %v10384
    %11311 = vmatprep.subr.bf16.mxu0 %v10394
    %11312 = vmatpush1.bf16.msra.mxu0 %v10393
    %11313 = vmatprep.subr.bf16.mxu0 %v10403
    %11314 = vmatpush1.bf16.msra.mxu0 %v10402
    %11315 = vmatprep.subr.bf16.mxu0 %v10412
    %11316 = vmatpush1.bf16.msra.mxu0 %v10411
    %11317 = vmatprep.subr.bf16.mxu0 %v10421
    %11318 = vmatpush1.bf16.msra.mxu0 %v10420
    %11319 = vmatprep.subr.bf16.mxu0 %v10430
    %11320 = vmatpush1.bf16.msra.mxu0 %v10429
    %11321 = vmatprep.subr.bf16.mxu0 %v10439
    %11322 = vmatpush1.bf16.msra.mxu0 %v10438
    %11323 = vmatprep.subr.bf16.mxu0 %v10448
    %11324 = vmatpush1.bf16.msra.mxu0 %v10447
    %11325 = vmatprep.subr.bf16.mxu0 %v10457
    %11326 = vmatpush1.bf16.msra.mxu0 %v10456
    %11327 = vmatprep.subr.bf16.mxu0 %v10466
    %11328 = vmatpush1.bf16.msra.mxu0 %v10465
    %11329 = vmatprep.subr.bf16.mxu0 %v10475
    %11330 = vmatpush1.bf16.msra.mxu0 %v10474
    %11331 = vmatprep.subr.bf16.mxu0 %v10484
    %11332 = vmatpush1.bf16.msra.mxu0 %v10483
    %11333 = vmatprep.subr.bf16.mxu0 %v10493
    %11334 = vmatpush1.bf16.msra.mxu0 %v10492
    %11335 = vmatprep.mubr.bf16.mxu0 %v7585
    %11336 = vmatmul.mubr.bf16.gmra.mrb[0].mxu0 %v7584
    %v11337 = vpop.f32.mrb[0].mxu0
    %v11338 = vadd.f32 %v11297, %v11337
    %v11339 = vpop.f32.mrb[0].mxu0
    %v11340 = vadd.f32 %v11299, %v11339
    %v11341 = vpop.f32.mrb[0].mxu0
    %v11342 = vpop.f32.mrb[0].mxu0
    %11343 = vdwg.mxu0
    %11344 = vmatprep.subr.bf16.mxu0 %v10502
    %11345 = vmatpush1.bf16.msra.mxu0 %v10501
    %11346 = vmatprep.subr.bf16.mxu0 %v10511
    %11347 = vmatpush1.bf16.msra.mxu0 %v10510
    %11348 = vmatprep.subr.bf16.mxu0 %v10520
    %11349 = vmatpush1.bf16.msra.mxu0 %v10519
    %11350 = vmatprep.subr.bf16.mxu0 %v10529
    %11351 = vmatpush1.bf16.msra.mxu0 %v10528
    %11352 = vmatprep.subr.bf16.mxu0 %v10538
    %11353 = vmatpush1.bf16.msra.mxu0 %v10537
    %11354 = vmatprep.subr.bf16.mxu0 %v10547
    %11355 = vmatpush1.bf16.msra.mxu0 %v10546
    %11356 = vmatprep.subr.bf16.mxu0 %v10556
    %11357 = vmatpush1.bf16.msra.mxu0 %v10555
    %11358 = vmatprep.subr.bf16.mxu0 %v10565
    %11359 = vmatpush1.bf16.msra.mxu0 %v10564
    %11360 = vmatprep.subr.bf16.mxu0 %v10574
    %11361 = vmatpush1.bf16.msra.mxu0 %v10573
    %11362 = vmatprep.subr.bf16.mxu0 %v10583
    %11363 = vmatpush1.bf16.msra.mxu0 %v10582
    %11364 = vmatprep.subr.bf16.mxu0 %v10592
    %11365 = vmatpush1.bf16.msra.mxu0 %v10591
    %11366 = vmatprep.subr.bf16.mxu0 %v10601
    %11367 = vmatpush1.bf16.msra.mxu0 %v10600
    %11368 = vmatprep.subr.bf16.mxu0 %v10610
    %11369 = vmatpush1.bf16.msra.mxu0 %v10609
    %11370 = vmatprep.subr.bf16.mxu0 %v10619
    %11371 = vmatpush1.bf16.msra.mxu0 %v10618
    %11372 = vmatprep.subr.bf16.mxu0 %v10628
    %11373 = vmatpush1.bf16.msra.mxu0 %v10627
    %11374 = vmatprep.subr.bf16.mxu0 %v10637
    %11375 = vmatpush1.bf16.msra.mxu0 %v10636
    %11376 = vmatprep.mubr.bf16.mxu0 %v7587
    %11377 = vmatmul.mubr.bf16.gmra.mrb[0].mxu0 %v7586
    %v11378 = vpop.f32.mrb[0].mxu0
    %v11379 = vadd.f32 %v11338, %v11378
    %v11380 = vpop.f32.mrb[0].mxu0
    %v11381 = vadd.f32 %v11340, %v11380
    %v11382 = vpop.f32.mrb[0].mxu0
    %v11383 = vpop.f32.mrb[0].mxu0
    %11384 = vdwg.mxu0
    %11385 = vmatprep.subr.bf16.mxu0 %v10072
    %11386 = vmatpush1.bf16.msra.mxu0 %v10071
    %11387 = vmatprep.subr.bf16.mxu0 %v10081
    %11388 = vmatpush1.bf16.msra.mxu0 %v10080
    %11389 = vmatprep.subr.bf16.mxu0 %v10090
    %11390 = vmatpush1.bf16.msra.mxu0 %v10089
    %11391 = vmatprep.subr.bf16.mxu0 %v10099
    %11392 = vmatpush1.bf16.msra.mxu0 %v10098
    %11393 = vmatprep.subr.bf16.mxu0 %v10108
    %11394 = vmatpush1.bf16.msra.mxu0 %v10107
    %11395 = vmatprep.subr.bf16.mxu0 %v10117
    %11396 = vmatpush1.bf16.msra.mxu0 %v10116
    %11397 = vmatprep.subr.bf16.mxu0 %v10126
    %11398 = vmatpush1.bf16.msra.mxu0 %v10125
    %11399 = vmatprep.subr.bf16.mxu0 %v10135
    %11400 = vmatpush1.bf16.msra.mxu0 %v10134
    %11401 = vmatprep.subr.bf16.mxu0 %v10144
    %11402 = vmatpush1.bf16.msra.mxu0 %v10143
    %11403 = vmatprep.subr.bf16.mxu0 %v10153
    %11404 = vmatpush1.bf16.msra.mxu0 %v10152
    %11405 = vmatprep.subr.bf16.mxu0 %v10162
    %11406 = vmatpush1.bf16.msra.mxu0 %v10161
    %11407 = vmatprep.subr.bf16.mxu0 %v10171
    %11408 = vmatpush1.bf16.msra.mxu0 %v10170
    %11409 = vmatprep.subr.bf16.mxu0 %v10180
    %11410 = vmatpush1.bf16.msra.mxu0 %v10179
    %11411 = vmatprep.subr.bf16.mxu0 %v10189
    %11412 = vmatpush1.bf16.msra.mxu0 %v10188
    %11413 = vmatprep.subr.bf16.mxu0 %v10198
    %11414 = vmatpush1.bf16.msra.mxu0 %v10197
    %11415 = vmatprep.subr.bf16.mxu0 %v10207
    %11416 = vmatpush1.bf16.msra.mxu0 %v10206
    %11417 = vmatprep.mubr.bf16.mxu0 %v7581
    %11418 = vmatmul.mubr.bf16.gmra.mrb[0].mxu0 %v7580
    %v11419 = vpop.f32.mrb[0].mxu0
    %v11420 = vadd.f32 %v8243, %v11419
    %v11421 = vpop.f32.mrb[0].mxu0
    %v11422 = vadd.f32 %v8247, %v11421
    %v11423 = vpop.f32.mrb[0].mxu0
    %v11424 = vpop.f32.mrb[0].mxu0
    %11425 = vdwg.mxu0
    %11426 = vmatprep.subr.bf16.mxu0 %v10216
    %11427 = vmatpush1.bf16.msra.mxu0 %v10215
    %11428 = vmatprep.subr.bf16.mxu0 %v10225
    %11429 = vmatpush1.bf16.msra.mxu0 %v10224
    %11430 = vmatprep.subr.bf16.mxu0 %v10234
    %11431 = vmatpush1.bf16.msra.mxu0 %v10233
    %11432 = vmatprep.subr.bf16.mxu0 %v10243
    %11433 = vmatpush1.bf16.msra.mxu0 %v10242
    %11434 = vmatprep.subr.bf16.mxu0 %v10252
    %11435 = vmatpush1.bf16.msra.mxu0 %v10251
    %11436 = vmatprep.subr.bf16.mxu0 %v10261
    %11437 = vmatpush1.bf16.msra.mxu0 %v10260
    %11438 = vmatprep.subr.bf16.mxu0 %v10270
    %11439 = vmatpush1.bf16.msra.mxu0 %v10269
    %11440 = vmatprep.subr.bf16.mxu0 %v10279
    %11441 = vmatpush1.bf16.msra.mxu0 %v10278
    %11442 = vmatprep.subr.bf16.mxu0 %v10288
    %11443 = vmatpush1.bf16.msra.mxu0 %v10287
    %11444 = vmatprep.subr.bf16.mxu0 %v10297
    %11445 = vmatpush1.bf16.msra.mxu0 %v10296
    %11446 = vmatprep.subr.bf16.mxu0 %v10306
    %11447 = vmatpush1.bf16.msra.mxu0 %v10305
    %11448 = vmatprep.subr.bf16.mxu0 %v10315
    %11449 = vmatpush1.bf16.msra.mxu0 %v10314
    %11450 = vmatprep.subr.bf16.mxu0 %v10324
    %11451 = vmatpush1.bf16.msra.mxu0 %v10323
    %11452 = vmatprep.subr.bf16.mxu0 %v10333
    %11453 = vmatpush1.bf16.msra.mxu0 %v10332
    %11454 = vmatprep.subr.bf16.mxu0 %v10342
    %11455 = vmatpush1.bf16.msra.mxu0 %v10341
    %11456 = vmatprep.subr.bf16.mxu0 %v10351
    %11457 = vmatpush1.bf16.msra.mxu0 %v10350
    %11458 = vmatprep.mubr.bf16.mxu0 %v7583
    %11459 = vmatmul.mubr.bf16.gmra.mrb[0].mxu0 %v7582
    %v11460 = vpop.f32.mrb[0].mxu0
    %v11461 = vadd.f32 %v11420, %v11460
    %v11462 = vpop.f32.mrb[0].mxu0
    %v11463 = vadd.f32 %v11422, %v11462
    %v11464 = vpop.f32.mrb[0].mxu0
    %v11465 = vpop.f32.mrb[0].mxu0
    %11466 = vdwg.mxu0
    %11467 = vmatprep.subr.bf16.mxu0 %v10360
    %11468 = vmatpush1.bf16.msra.mxu0 %v10359
    %11469 = vmatprep.subr.bf16.mxu0 %v10369
    %11470 = vmatpush1.bf16.msra.mxu0 %v10368
    %11471 = vmatprep.subr.bf16.mxu0 %v10378
    %11472 = vmatpush1.bf16.msra.mxu0 %v10377
    %11473 = vmatprep.subr.bf16.mxu0 %v10387
    %11474 = vmatpush1.bf16.msra.mxu0 %v10386
    %11475 = vmatprep.subr.bf16.mxu0 %v10396
    %11476 = vmatpush1.bf16.msra.mxu0 %v10395
    %11477 = vmatprep.subr.bf16.mxu0 %v10405
    %11478 = vmatpush1.bf16.msra.mxu0 %v10404
    %11479 = vmatprep.subr.bf16.mxu0 %v10414
    %11480 = vmatpush1.bf16.msra.mxu0 %v10413
    %11481 = vmatprep.subr.bf16.mxu0 %v10423
    %11482 = vmatpush1.bf16.msra.mxu0 %v10422
    %11483 = vmatprep.subr.bf16.mxu0 %v10432
    %11484 = vmatpush1.bf16.msra.mxu0 %v10431
    %11485 = vmatprep.subr.bf16.mxu0 %v10441
    %11486 = vmatpush1.bf16.msra.mxu0 %v10440
    %11487 = vmatprep.subr.bf16.mxu0 %v10450
    %11488 = vmatpush1.bf16.msra.mxu0 %v10449
    %11489 = vmatprep.subr.bf16.mxu0 %v10459
    %11490 = vmatpush1.bf16.msra.mxu0 %v10458
    %11491 = vmatprep.subr.bf16.mxu0 %v10468
    %11492 = vmatpush1.bf16.msra.mxu0 %v10467
    %11493 = vmatprep.subr.bf16.mxu0 %v10477
    %11494 = vmatpush1.bf16.msra.mxu0 %v10476
    %11495 = vmatprep.subr.bf16.mxu0 %v10486
    %11496 = vmatpush1.bf16.msra.mxu0 %v10485
    %11497 = vmatprep.subr.bf16.mxu0 %v10495
    %11498 = vmatpush1.bf16.msra.mxu0 %v10494
    %11499 = vmatprep.mubr.bf16.mxu0 %v7585
    %11500 = vmatmul.mubr.bf16.gmra.mrb[0].mxu0 %v7584
    %v11501 = vpop.f32.mrb[0].mxu0
    %v11502 = vadd.f32 %v11461, %v11501
    %v11503 = vpop.f32.mrb[0].mxu0
    %v11504 = vadd.f32 %v11463, %v11503
    %v11505 = vpop.f32.mrb[0].mxu0
    %v11506 = vpop.f32.mrb[0].mxu0
    %11507 = vdwg.mxu0
    %11508 = vmatprep.subr.bf16.mxu0 %v10504
    %11509 = vmatpush1.bf16.msra.mxu0 %v10503
    %11510 = vmatprep.subr.bf16.mxu0 %v10513
    %11511 = vmatpush1.bf16.msra.mxu0 %v10512
    %11512 = vmatprep.subr.bf16.mxu0 %v10522
    %11513 = vmatpush1.bf16.msra.mxu0 %v10521
    %11514 = vmatprep.subr.bf16.mxu0 %v10531
    %11515 = vmatpush1.bf16.msra.mxu0 %v10530
    %11516 = vmatprep.subr.bf16.mxu0 %v10540
    %11517 = vmatpush1.bf16.msra.mxu0 %v10539
    %11518 = vmatprep.subr.bf16.mxu0 %v10549
    %11519 = vmatpush1.bf16.msra.mxu0 %v10548
    %11520 = vmatprep.subr.bf16.mxu0 %v10558
    %11521 = vmatpush1.bf16.msra.mxu0 %v10557
    %11522 = vmatprep.subr.bf16.mxu0 %v10567
    %11523 = vmatpush1.bf16.msra.mxu0 %v10566
    %11524 = vmatprep.subr.bf16.mxu0 %v10576
    %11525 = vmatpush1.bf16.msra.mxu0 %v10575
    %11526 = vmatprep.subr.bf16.mxu0 %v10585
    %11527 = vmatpush1.bf16.msra.mxu0 %v10584
    %11528 = vmatprep.subr.bf16.mxu0 %v10594
    %11529 = vmatpush1.bf16.msra.mxu0 %v10593
    %11530 = vmatprep.subr.bf16.mxu0 %v10603
    %11531 = vmatpush1.bf16.msra.mxu0 %v10602
    %11532 = vmatprep.subr.bf16.mxu0 %v10612
    %11533 = vmatpush1.bf16.msra.mxu0 %v10611
    %11534 = vmatprep.subr.bf16.mxu0 %v10621
    %11535 = vmatpush1.bf16.msra.mxu0 %v10620
    %11536 = vmatprep.subr.bf16.mxu0 %v10630
    %11537 = vmatpush1.bf16.msra.mxu0 %v10629
    %11538 = vmatprep.subr.bf16.mxu0 %v10639
    %11539 = vmatpush1.bf16.msra.mxu0 %v10638
    %11540 = vmatprep.mubr.bf16.mxu0 %v7587
    %11541 = vmatmul.mubr.bf16.gmra.mrb[0].mxu0 %v7586
    %v11542 = vpop.f32.mrb[0].mxu0
    %v11543 = vadd.f32 %v11502, %v11542
    %v11544 = vpop.f32.mrb[0].mxu0
    %v11545 = vadd.f32 %v11504, %v11544
    %v11546 = vpop.f32.mrb[0].mxu0
    %v11547 = vpop.f32.mrb[0].mxu0
    %11548 = vdwg.mxu0
    %11549 = vmatprep.subr.bf16.mxu0 %v10074
    %11550 = vmatpush1.bf16.msra.mxu0 %v10073
    %11551 = vmatprep.subr.bf16.mxu0 %v10083
    %11552 = vmatpush1.bf16.msra.mxu0 %v10082
    %11553 = vmatprep.subr.bf16.mxu0 %v10092
    %11554 = vmatpush1.bf16.msra.mxu0 %v10091
    %11555 = vmatprep.subr.bf16.mxu0 %v10101
    %11556 = vmatpush1.bf16.msra.mxu0 %v10100
    %11557 = vmatprep.subr.bf16.mxu0 %v10110
    %11558 = vmatpush1.bf16.msra.mxu0 %v10109
    %11559 = vmatprep.subr.bf16.mxu0 %v10119
    %11560 = vmatpush1.bf16.msra.mxu0 %v10118
    %11561 = vmatprep.subr.bf16.mxu0 %v10128
    %11562 = vmatpush1.bf16.msra.mxu0 %v10127
    %11563 = vmatprep.subr.bf16.mxu0 %v10137
    %11564 = vmatpush1.bf16.msra.mxu0 %v10136
    %11565 = vmatprep.subr.bf16.mxu0 %v10146
    %11566 = vmatpush1.bf16.msra.mxu0 %v10145
    %11567 = vmatprep.subr.bf16.mxu0 %v10155
    %11568 = vmatpush1.bf16.msra.mxu0 %v10154
    %11569 = vmatprep.subr.bf16.mxu0 %v10164
    %11570 = vmatpush1.bf16.msra.mxu0 %v10163
    %11571 = vmatprep.subr.bf16.mxu0 %v10173
    %11572 = vmatpush1.bf16.msra.mxu0 %v10172
    %11573 = vmatprep.subr.bf16.mxu0 %v10182
    %11574 = vmatpush1.bf16.msra.mxu0 %v10181
    %11575 = vmatprep.subr.bf16.mxu0 %v10191
    %11576 = vmatpush1.bf16.msra.mxu0 %v10190
    %11577 = vmatprep.subr.bf16.mxu0 %v10200
    %11578 = vmatpush1.bf16.msra.mxu0 %v10199
    %11579 = vmatprep.subr.bf16.mxu0 %v10209
    %11580 = vmatpush1.bf16.msra.mxu0 %v10208
    %11581 = vmatprep.mubr.bf16.mxu0 %v7581
    %11582 = vmatmul.mubr.bf16.gmra.mrb[0].mxu0 %v7580
    %v11583 = vpop.f32.mrb[0].mxu0
    %v11584 = vadd.f32 %v8251, %v11583
    %v11585 = vpop.f32.mrb[0].mxu0
    %v11586 = vadd.f32 %v8255, %v11585
    %v11587 = vpop.f32.mrb[0].mxu0
    %v11588 = vpop.f32.mrb[0].mxu0
    %11589 = vdwg.mxu0
    %11590 = vmatprep.subr.bf16.mxu0 %v10218
    %11591 = vmatpush1.bf16.msra.mxu0 %v10217
    %11592 = vmatprep.subr.bf16.mxu0 %v10227
    %11593 = vmatpush1.bf16.msra.mxu0 %v10226
    %11594 = vmatprep.subr.bf16.mxu0 %v10236
    %11595 = vmatpush1.bf16.msra.mxu0 %v10235
    %11596 = vmatprep.subr.bf16.mxu0 %v10245
    %11597 = vmatpush1.bf16.msra.mxu0 %v10244
    %11598 = vmatprep.subr.bf16.mxu0 %v10254
    %11599 = vmatpush1.bf16.msra.mxu0 %v10253
    %11600 = vmatprep.subr.bf16.mxu0 %v10263
    %11601 = vmatpush1.bf16.msra.mxu0 %v10262
    %11602 = vmatprep.subr.bf16.mxu0 %v10272
    %11603 = vmatpush1.bf16.msra.mxu0 %v10271
    %11604 = vmatprep.subr.bf16.mxu0 %v10281
    %11605 = vmatpush1.bf16.msra.mxu0 %v10280
    %11606 = vmatprep.subr.bf16.mxu0 %v10290
    %11607 = vmatpush1.bf16.msra.mxu0 %v10289
    %11608 = vmatprep.subr.bf16.mxu0 %v10299
    %11609 = vmatpush1.bf16.msra.mxu0 %v10298
    %11610 = vmatprep.subr.bf16.mxu0 %v10308
    %11611 = vmatpush1.bf16.msra.mxu0 %v10307
    %11612 = vmatprep.subr.bf16.mxu0 %v10317
    %11613 = vmatpush1.bf16.msra.mxu0 %v10316
    %11614 = vmatprep.subr.bf16.mxu0 %v10326
    %11615 = vmatpush1.bf16.msra.mxu0 %v10325
    %11616 = vmatprep.subr.bf16.mxu0 %v10335
    %11617 = vmatpush1.bf16.msra.mxu0 %v10334
    %11618 = vmatprep.subr.bf16.mxu0 %v10344
    %11619 = vmatpush1.bf16.msra.mxu0 %v10343
    %11620 = vmatprep.subr.bf16.mxu0 %v10353
    %11621 = vmatpush1.bf16.msra.mxu0 %v10352
    %11622 = vmatprep.mubr.bf16.mxu0 %v7583
    %11623 = vmatmul.mubr.bf16.gmra.mrb[0].mxu0 %v7582
    %v11624 = vpop.f32.mrb[0].mxu0
    %v11625 = vadd.f32 %v11584, %v11624
    %v11626 = vpop.f32.mrb[0].mxu0
    %v11627 = vadd.f32 %v11586, %v11626
    %v11628 = vpop.f32.mrb[0].mxu0
    %v11629 = vpop.f32.mrb[0].mxu0
    %11630 = vdwg.mxu0
    %11631 = vmatprep.subr.bf16.mxu0 %v10362
    %11632 = vmatpush1.bf16.msra.mxu0 %v10361
    %11633 = vmatprep.subr.bf16.mxu0 %v10371
    %11634 = vmatpush1.bf16.msra.mxu0 %v10370
    %11635 = vmatprep.subr.bf16.mxu0 %v10380
    %11636 = vmatpush1.bf16.msra.mxu0 %v10379
    %11637 = vmatprep.subr.bf16.mxu0 %v10389
    %11638 = vmatpush1.bf16.msra.mxu0 %v10388
    %11639 = vmatprep.subr.bf16.mxu0 %v10398
    %11640 = vmatpush1.bf16.msra.mxu0 %v10397
    %11641 = vmatprep.subr.bf16.mxu0 %v10407
    %11642 = vmatpush1.bf16.msra.mxu0 %v10406
    %11643 = vmatprep.subr.bf16.mxu0 %v10416
    %11644 = vmatpush1.bf16.msra.mxu0 %v10415
    %11645 = vmatprep.subr.bf16.mxu0 %v10425
    %11646 = vmatpush1.bf16.msra.mxu0 %v10424
    %11647 = vmatprep.subr.bf16.mxu0 %v10434
    %11648 = vmatpush1.bf16.msra.mxu0 %v10433
    %11649 = vmatprep.subr.bf16.mxu0 %v10443
    %11650 = vmatpush1.bf16.msra.mxu0 %v10442
    %11651 = vmatprep.subr.bf16.mxu0 %v10452
    %11652 = vmatpush1.bf16.msra.mxu0 %v10451
    %11653 = vmatprep.subr.bf16.mxu0 %v10461
    %11654 = vmatpush1.bf16.msra.mxu0 %v10460
    %11655 = vmatprep.subr.bf16.mxu0 %v10470
    %11656 = vmatpush1.bf16.msra.mxu0 %v10469
    %11657 = vmatprep.subr.bf16.mxu0 %v10479
    %11658 = vmatpush1.bf16.msra.mxu0 %v10478
    %11659 = vmatprep.subr.bf16.mxu0 %v10488
    %11660 = vmatpush1.bf16.msra.mxu0 %v10487
    %11661 = vmatprep.subr.bf16.mxu0 %v10497
    %11662 = vmatpush1.bf16.msra.mxu0 %v10496
    %11663 = vmatprep.mubr.bf16.mxu0 %v7585
    %11664 = vmatmul.mubr.bf16.gmra.mrb[0].mxu0 %v7584
    %v11665 = vpop.f32.mrb[0].mxu0
    %v11666 = vadd.f32 %v11625, %v11665
    %v11667 = vpop.f32.mrb[0].mxu0
    %v11668 = vadd.f32 %v11627, %v11667
    %v11669 = vpop.f32.mrb[0].mxu0
    %v11670 = vpop.f32.mrb[0].mxu0
    %11671 = vdwg.mxu0
    %11672 = vmatprep.subr.bf16.mxu0 %v10506
    %11673 = vmatpush1.bf16.msra.mxu0 %v10505
    %11674 = vmatprep.subr.bf16.mxu0 %v10515
    %11675 = vmatpush1.bf16.msra.mxu0 %v10514
    %11676 = vmatprep.subr.bf16.mxu0 %v10524
    %11677 = vmatpush1.bf16.msra.mxu0 %v10523
    %11678 = vmatprep.subr.bf16.mxu0 %v10533
    %11679 = vmatpush1.bf16.msra.mxu0 %v10532
    %11680 = vmatprep.subr.bf16.mxu0 %v10542
    %11681 = vmatpush1.bf16.msra.mxu0 %v10541
    %11682 = vmatprep.subr.bf16.mxu0 %v10551
    %11683 = vmatpush1.bf16.msra.mxu0 %v10550
    %11684 = vmatprep.subr.bf16.mxu0 %v10560
    %11685 = vmatpush1.bf16.msra.mxu0 %v10559
    %11686 = vmatprep.subr.bf16.mxu0 %v10569
    %11687 = vmatpush1.bf16.msra.mxu0 %v10568
    %11688 = vmatprep.subr.bf16.mxu0 %v10578
    %11689 = vmatpush1.bf16.msra.mxu0 %v10577
    %11690 = vmatprep.subr.bf16.mxu0 %v10587
    %11691 = vmatpush1.bf16.msra.mxu0 %v10586
    %11692 = vmatprep.subr.bf16.mxu0 %v10596
    %11693 = vmatpush1.bf16.msra.mxu0 %v10595
    %11694 = vmatprep.subr.bf16.mxu0 %v10605
    %11695 = vmatpush1.bf16.msra.mxu0 %v10604
    %11696 = vmatprep.subr.bf16.mxu0 %v10614
    %11697 = vmatpush1.bf16.msra.mxu0 %v10613
    %11698 = vmatprep.subr.bf16.mxu0 %v10623
    %11699 = vmatpush1.bf16.msra.mxu0 %v10622
    %11700 = vmatprep.subr.bf16.mxu0 %v10632
    %11701 = vmatpush1.bf16.msra.mxu0 %v10631
    %11702 = vmatprep.subr.bf16.mxu0 %v10641
    %11703 = vmatpush1.bf16.msra.mxu0 %v10640
    %11704 = vmatprep.mubr.bf16.mxu0 %v7587
    %11705 = vmatmul.mubr.bf16.gmra.mrb[0].mxu0 %v7586
    %v11706 = vpop.f32.mrb[0].mxu0
    %v11707 = vadd.f32 %v11666, %v11706
    %v11708 = vpop.f32.mrb[0].mxu0
    %v11709 = vadd.f32 %v11668, %v11708
    %v11710 = vpop.f32.mrb[0].mxu0
    %v11711 = vpop.f32.mrb[0].mxu0
    %11712 = vdwg.mxu0
    %11713 = vmatprep.subr.bf16.mxu0 %v10076
    %11714 = vmatpush1.bf16.msra.mxu0 %v10075
    %11715 = vmatprep.subr.bf16.mxu0 %v10085
    %11716 = vmatpush1.bf16.msra.mxu0 %v10084
    %11717 = vmatprep.subr.bf16.mxu0 %v10094
    %11718 = vmatpush1.bf16.msra.mxu0 %v10093
    %11719 = vmatprep.subr.bf16.mxu0 %v10103
    %11720 = vmatpush1.bf16.msra.mxu0 %v10102
    %11721 = vmatprep.subr.bf16.mxu0 %v10112
    %11722 = vmatpush1.bf16.msra.mxu0 %v10111
    %11723 = vmatprep.subr.bf16.mxu0 %v10121
    %11724 = vmatpush1.bf16.msra.mxu0 %v10120
    %11725 = vmatprep.subr.bf16.mxu0 %v10130
    %11726 = vmatpush1.bf16.msra.mxu0 %v10129
    %11727 = vmatprep.subr.bf16.mxu0 %v10139
    %11728 = vmatpush1.bf16.msra.mxu0 %v10138
    %11729 = vmatprep.subr.bf16.mxu0 %v10148
    %11730 = vmatpush1.bf16.msra.mxu0 %v10147
    %11731 = vmatprep.subr.bf16.mxu0 %v10157
    %11732 = vmatpush1.bf16.msra.mxu0 %v10156
    %11733 = vmatprep.subr.bf16.mxu0 %v10166
    %11734 = vmatpush1.bf16.msra.mxu0 %v10165
    %11735 = vmatprep.subr.bf16.mxu0 %v10175
    %11736 = vmatpush1.bf16.msra.mxu0 %v10174
    %11737 = vmatprep.subr.bf16.mxu0 %v10184
    %11738 = vmatpush1.bf16.msra.mxu0 %v10183
    %11739 = vmatprep.subr.bf16.mxu0 %v10193
    %11740 = vmatpush1.bf16.msra.mxu0 %v10192
    %11741 = vmatprep.subr.bf16.mxu0 %v10202
    %11742 = vmatpush1.bf16.msra.mxu0 %v10201
    %11743 = vmatprep.subr.bf16.mxu0 %v10211
    %11744 = vmatpush1.bf16.msra.mxu0 %v10210
    %11745 = vmatprep.mubr.bf16.mxu0 %v7581
    %11746 = vmatmul.mubr.bf16.gmra.mrb[0].mxu0 %v7580
    %v11747 = vpop.f32.mrb[0].mxu0
    %v11748 = vadd.f32 %v8259, %v11747
    %v11749 = vpop.f32.mrb[0].mxu0
    %v11750 = vadd.f32 %v8263, %v11749
    %v11751 = vpop.f32.mrb[0].mxu0
    %v11752 = vpop.f32.mrb[0].mxu0
    %11753 = vdwg.mxu0
    %11754 = vmatprep.subr.bf16.mxu0 %v10220
    %11755 = vmatpush1.bf16.msra.mxu0 %v10219
    %11756 = vmatprep.subr.bf16.mxu0 %v10229
    %11757 = vmatpush1.bf16.msra.mxu0 %v10228
    %11758 = vmatprep.subr.bf16.mxu0 %v10238
    %11759 = vmatpush1.bf16.msra.mxu0 %v10237
    %11760 = vmatprep.subr.bf16.mxu0 %v10247
    %11761 = vmatpush1.bf16.msra.mxu0 %v10246
    %11762 = vmatprep.subr.bf16.mxu0 %v10256
    %11763 = vmatpush1.bf16.msra.mxu0 %v10255
    %11764 = vmatprep.subr.bf16.mxu0 %v10265
    %11765 = vmatpush1.bf16.msra.mxu0 %v10264
    %11766 = vmatprep.subr.bf16.mxu0 %v10274
    %11767 = vmatpush1.bf16.msra.mxu0 %v10273
    %11768 = vmatprep.subr.bf16.mxu0 %v10283
    %11769 = vmatpush1.bf16.msra.mxu0 %v10282
    %11770 = vmatprep.subr.bf16.mxu0 %v10292
    %11771 = vmatpush1.bf16.msra.mxu0 %v10291
    %11772 = vmatprep.subr.bf16.mxu0 %v10301
    %11773 = vmatpush1.bf16.msra.mxu0 %v10300
    %11774 = vmatprep.subr.bf16.mxu0 %v10310
    %11775 = vmatpush1.bf16.msra.mxu0 %v10309
    %11776 = vmatprep.subr.bf16.mxu0 %v10319
    %11777 = vmatpush1.bf16.msra.mxu0 %v10318
    %11778 = vmatprep.subr.bf16.mxu0 %v10328
    %11779 = vmatpush1.bf16.msra.mxu0 %v10327
    %11780 = vmatprep.subr.bf16.mxu0 %v10337
    %11781 = vmatpush1.bf16.msra.mxu0 %v10336
    %11782 = vmatprep.subr.bf16.mxu0 %v10346
    %11783 = vmatpush1.bf16.msra.mxu0 %v10345
    %11784 = vmatprep.subr.bf16.mxu0 %v10355
    %11785 = vmatpush1.bf16.msra.mxu0 %v10354
    %11786 = vmatprep.mubr.bf16.mxu0 %v7583
    %11787 = vmatmul.mubr.bf16.gmra.mrb[0].mxu0 %v7582
    %v11788 = vpop.f32.mrb[0].mxu0
    %v11789 = vadd.f32 %v11748, %v11788
    %v11790 = vpop.f32.mrb[0].mxu0
    %v11791 = vadd.f32 %v11750, %v11790
    %v11792 = vpop.f32.mrb[0].mxu0
    %v11793 = vpop.f32.mrb[0].mxu0
    %11794 = vdwg.mxu0
    %11795 = vmatprep.subr.bf16.mxu0 %v10364
    %11796 = vmatpush1.bf16.msra.mxu0 %v10363
    %11797 = vmatprep.subr.bf16.mxu0 %v10373
    %11798 = vmatpush1.bf16.msra.mxu0 %v10372
    %11799 = vmatprep.subr.bf16.mxu0 %v10382
    %11800 = vmatpush1.bf16.msra.mxu0 %v10381
    %11801 = vmatprep.subr.bf16.mxu0 %v10391
    %11802 = vmatpush1.bf16.msra.mxu0 %v10390
    %11803 = vmatprep.subr.bf16.mxu0 %v10400
    %11804 = vmatpush1.bf16.msra.mxu0 %v10399
    %11805 = vmatprep.subr.bf16.mxu0 %v10409
    %11806 = vmatpush1.bf16.msra.mxu0 %v10408
    %11807 = vmatprep.subr.bf16.mxu0 %v10418
    %11808 = vmatpush1.bf16.msra.mxu0 %v10417
    %11809 = vmatprep.subr.bf16.mxu0 %v10427
    %11810 = vmatpush1.bf16.msra.mxu0 %v10426
    %11811 = vmatprep.subr.bf16.mxu0 %v10436
    %11812 = vmatpush1.bf16.msra.mxu0 %v10435
    %11813 = vmatprep.subr.bf16.mxu0 %v10445
    %11814 = vmatpush1.bf16.msra.mxu0 %v10444
    %11815 = vmatprep.subr.bf16.mxu0 %v10454
    %11816 = vmatpush1.bf16.msra.mxu0 %v10453
    %11817 = vmatprep.subr.bf16.mxu0 %v10463
    %11818 = vmatpush1.bf16.msra.mxu0 %v10462
    %11819 = vmatprep.subr.bf16.mxu0 %v10472
    %11820 = vmatpush1.bf16.msra.mxu0 %v10471
    %11821 = vmatprep.subr.bf16.mxu0 %v10481
    %11822 = vmatpush1.bf16.msra.mxu0 %v10480
    %11823 = vmatprep.subr.bf16.mxu0 %v10490
    %11824 = vmatpush1.bf16.msra.mxu0 %v10489
    %11825 = vmatprep.subr.bf16.mxu0 %v10499
    %11826 = vmatpush1.bf16.msra.mxu0 %v10498
    %11827 = vmatprep.mubr.bf16.mxu0 %v7585
    %11828 = vmatmul.mubr.bf16.gmra.mrb[0].mxu0 %v7584
    %v11829 = vpop.f32.mrb[0].mxu0
    %v11830 = vadd.f32 %v11789, %v11829
    %v11831 = vpop.f32.mrb[0].mxu0
    %v11832 = vadd.f32 %v11791, %v11831
    %v11833 = vpop.f32.mrb[0].mxu0
    %v11834 = vpop.f32.mrb[0].mxu0
    %11835 = vdwg.mxu0
    %11836 = vmatprep.subr.bf16.mxu0 %v10508
    %11837 = vmatpush1.bf16.msra.mxu0 %v10507
    %11838 = vmatprep.subr.bf16.mxu0 %v10517
    %11839 = vmatpush1.bf16.msra.mxu0 %v10516
    %11840 = vmatprep.subr.bf16.mxu0 %v10526
    %11841 = vmatpush1.bf16.msra.mxu0 %v10525
    %11842 = vmatprep.subr.bf16.mxu0 %v10535
    %11843 = vmatpush1.bf16.msra.mxu0 %v10534
    %11844 = vmatprep.subr.bf16.mxu0 %v10544
    %11845 = vmatpush1.bf16.msra.mxu0 %v10543
    %11846 = vmatprep.subr.bf16.mxu0 %v10553
    %11847 = vmatpush1.bf16.msra.mxu0 %v10552
    %11848 = vmatprep.subr.bf16.mxu0 %v10562
    %11849 = vmatpush1.bf16.msra.mxu0 %v10561
    %11850 = vmatprep.subr.bf16.mxu0 %v10571
    %11851 = vmatpush1.bf16.msra.mxu0 %v10570
    %11852 = vmatprep.subr.bf16.mxu0 %v10580
    %11853 = vmatpush1.bf16.msra.mxu0 %v10579
    %11854 = vmatprep.subr.bf16.mxu0 %v10589
    %11855 = vmatpush1.bf16.msra.mxu0 %v10588
    %11856 = vmatprep.subr.bf16.mxu0 %v10598
    %11857 = vmatpush1.bf16.msra.mxu0 %v10597
    %11858 = vmatprep.subr.bf16.mxu0 %v10607
    %11859 = vmatpush1.bf16.msra.mxu0 %v10606
    %11860 = vmatprep.subr.bf16.mxu0 %v10616
    %11861 = vmatpush1.bf16.msra.mxu0 %v10615
    %11862 = vmatprep.subr.bf16.mxu0 %v10625
    %11863 = vmatpush1.bf16.msra.mxu0 %v10624
    %11864 = vmatprep.subr.bf16.mxu0 %v10634
    %11865 = vmatpush1.bf16.msra.mxu0 %v10633
    %11866 = vmatprep.subr.bf16.mxu0 %v10643
    %11867 = vmatpush1.bf16.msra.mxu0 %v10642
    %11868 = vmatprep.mubr.bf16.mxu0 %v7587
    %11869 = vmatmul.mubr.bf16.gmra.mrb[0].mxu0 %v7586
    %v11870 = vpop.f32.mrb[0].mxu0
    %v11871 = vadd.f32 %v11830, %v11870
    %v11872 = vpop.f32.mrb[0].mxu0
    %v11873 = vadd.f32 %v11832, %v11872
    %v11874 = vpop.f32.mrb[0].mxu0
    %v11875 = vpop.f32.mrb[0].mxu0
    %11876 = vdwg.mxu0
    %11877 = vmatprep.subr.bf16.mxu0 0
    %11878 = vmatpush1.bf16.msra.mxu0 %v10077
    %11879 = vmatprep.subr.bf16.mxu0 0
    %11880 = vmatpush1.bf16.msra.mxu0 %v10086
    %11881 = vmatprep.subr.bf16.mxu0 0
    %11882 = vmatpush1.bf16.msra.mxu0 %v10095
    %11883 = vmatprep.subr.bf16.mxu0 0
    %11884 = vmatpush1.bf16.msra.mxu0 %v10104
    %11885 = vmatprep.subr.bf16.mxu0 0
    %11886 = vmatpush1.bf16.msra.mxu0 %v10113
    %11887 = vmatprep.subr.bf16.mxu0 0
    %11888 = vmatpush1.bf16.msra.mxu0 %v10122
    %11889 = vmatprep.subr.bf16.mxu0 0
    %11890 = vmatpush1.bf16.msra.mxu0 %v10131
    %11891 = vmatprep.subr.bf16.mxu0 0
    %11892 = vmatpush1.bf16.msra.mxu0 %v10140
    %11893 = vmatprep.subr.bf16.mxu0 0
    %11894 = vmatpush1.bf16.msra.mxu0 %v10149
    %11895 = vmatprep.subr.bf16.mxu0 0
    %11896 = vmatpush1.bf16.msra.mxu0 %v10158
    %11897 = vmatprep.subr.bf16.mxu0 0
    %11898 = vmatpush1.bf16.msra.mxu0 %v10167
    %11899 = vmatprep.subr.bf16.mxu0 0
    %11900 = vmatpush1.bf16.msra.mxu0 %v10176
    %11901 = vmatprep.subr.bf16.mxu0 0
    %11902 = vmatpush1.bf16.msra.mxu0 %v10185
    %11903 = vmatprep.subr.bf16.mxu0 0
    %11904 = vmatpush1.bf16.msra.mxu0 %v10194
    %11905 = vmatprep.subr.bf16.mxu0 0
    %11906 = vmatpush1.bf16.msra.mxu0 %v10203
    %11907 = vmatprep.subr.bf16.mxu0 0
    %11908 = vmatpush1.bf16.msra.mxu0 %v10212
    %11909 = vmatprep.mubr.bf16.mxu0 %v7581
    %11910 = vmatmul.mubr.bf16.gmra.mrb[0].mxu0 %v7580
    %v11911 = vpop.f32.mrb[0].mxu0
    %v11912 = vadd.f32 %v8267, %v11911
    %v11913 = vpop.f32.mrb[0].mxu0
    %v11914 = vpop.f32.mrb[0].mxu0
    %v11915 = vpop.f32.mrb[0].mxu0
    %11916 = vdwg.mxu0
    %11917 = vmatprep.subr.bf16.mxu0 0
    %11918 = vmatpush1.bf16.msra.mxu0 %v10221
    %11919 = vmatprep.subr.bf16.mxu0 0
    %11920 = vmatpush1.bf16.msra.mxu0 %v10230
    %11921 = vmatprep.subr.bf16.mxu0 0
    %11922 = vmatpush1.bf16.msra.mxu0 %v10239
    %11923 = vmatprep.subr.bf16.mxu0 0
    %11924 = vmatpush1.bf16.msra.mxu0 %v10248
    %11925 = vmatprep.subr.bf16.mxu0 0
    %11926 = vmatpush1.bf16.msra.mxu0 %v10257
    %11927 = vmatprep.subr.bf16.mxu0 0
    %11928 = vmatpush1.bf16.msra.mxu0 %v10266
    %11929 = vmatprep.subr.bf16.mxu0 0
    %11930 = vmatpush1.bf16.msra.mxu0 %v10275
    %11931 = vmatprep.subr.bf16.mxu0 0
    %11932 = vmatpush1.bf16.msra.mxu0 %v10284
    %11933 = vmatprep.subr.bf16.mxu0 0
    %11934 = vmatpush1.bf16.msra.mxu0 %v10293
    %11935 = vmatprep.subr.bf16.mxu0 0
    %11936 = vmatpush1.bf16.msra.mxu0 %v10302
    %11937 = vmatprep.subr.bf16.mxu0 0
    %11938 = vmatpush1.bf16.msra.mxu0 %v10311
    %11939 = vmatprep.subr.bf16.mxu0 0
    %11940 = vmatpush1.bf16.msra.mxu0 %v10320
    %11941 = vmatprep.subr.bf16.mxu0 0
    %11942 = vmatpush1.bf16.msra.mxu0 %v10329
    %11943 = vmatprep.subr.bf16.mxu0 0
    %11944 = vmatpush1.bf16.msra.mxu0 %v10338
    %11945 = vmatprep.subr.bf16.mxu0 0
    %11946 = vmatpush1.bf16.msra.mxu0 %v10347
    %11947 = vmatprep.subr.bf16.mxu0 0
    %11948 = vmatpush1.bf16.msra.mxu0 %v10356
    %11949 = vmatprep.mubr.bf16.mxu0 %v7583
    %11950 = vmatmul.mubr.bf16.gmra.mrb[0].mxu0 %v7582
    %v11951 = vpop.f32.mrb[0].mxu0
    %v11952 = vadd.f32 %v11912, %v11951
    %v11953 = vpop.f32.mrb[0].mxu0
    %v11954 = vpop.f32.mrb[0].mxu0
    %v11955 = vpop.f32.mrb[0].mxu0
    %11956 = vdwg.mxu0
    %11957 = vmatprep.subr.bf16.mxu0 0
    %11958 = vmatpush1.bf16.msra.mxu0 %v10365
    %11959 = vmatprep.subr.bf16.mxu0 0
    %11960 = vmatpush1.bf16.msra.mxu0 %v10374
    %11961 = vmatprep.subr.bf16.mxu0 0
    %11962 = vmatpush1.bf16.msra.mxu0 %v10383
    %11963 = vmatprep.subr.bf16.mxu0 0
    %11964 = vmatpush1.bf16.msra.mxu0 %v10392
    %11965 = vmatprep.subr.bf16.mxu0 0
    %11966 = vmatpush1.bf16.msra.mxu0 %v10401
    %11967 = vmatprep.subr.bf16.mxu0 0
    %11968 = vmatpush1.bf16.msra.mxu0 %v10410
    %11969 = vmatprep.subr.bf16.mxu0 0
    %11970 = vmatpush1.bf16.msra.mxu0 %v10419
    %11971 = vmatprep.subr.bf16.mxu0 0
    %11972 = vmatpush1.bf16.msra.mxu0 %v10428
    %11973 = vmatprep.subr.bf16.mxu0 0
    %11974 = vmatpush1.bf16.msra.mxu0 %v10437
    %11975 = vmatprep.subr.bf16.mxu0 0
    %11976 = vmatpush1.bf16.msra.mxu0 %v10446
    %11977 = vmatprep.subr.bf16.mxu0 0
    %11978 = vmatpush1.bf16.msra.mxu0 %v10455
    %11979 = vmatprep.subr.bf16.mxu0 0
    %11980 = vmatpush1.bf16.msra.mxu0 %v10464
    %11981 = vmatprep.subr.bf16.mxu0 0
    %11982 = vmatpush1.bf16.msra.mxu0 %v10473
    %11983 = vmatprep.subr.bf16.mxu0 0
    %11984 = vmatpush1.bf16.msra.mxu0 %v10482
    %11985 = vmatprep.subr.bf16.mxu0 0
    %11986 = vmatpush1.bf16.msra.mxu0 %v10491
    %11987 = vmatprep.subr.bf16.mxu0 0
    %11988 = vmatpush1.bf16.msra.mxu0 %v10500
    %11989 = vmatprep.mubr.bf16.mxu0 %v7585
    %11990 = vmatmul.mubr.bf16.gmra.mrb[0].mxu0 %v7584
    %v11991 = vpop.f32.mrb[0].mxu0
    %v11992 = vadd.f32 %v11952, %v11991
    %v11993 = vpop.f32.mrb[0].mxu0
    %v11994 = vpop.f32.mrb[0].mxu0
    %v11995 = vpop.f32.mrb[0].mxu0
    %11996 = vdwg.mxu0
    %11997 = vmatprep.subr.bf16.mxu0 0
    %11998 = vmatpush1.bf16.msra.mxu0 %v10509
    %11999 = vmatprep.subr.bf16.mxu0 0
    %12000 = vmatpush1.bf16.msra.mxu0 %v10518
    %12001 = vmatprep.subr.bf16.mxu0 0
    %12002 = vmatpush1.bf16.msra.mxu0 %v10527
    %12003 = vmatprep.subr.bf16.mxu0 0
    %12004 = vmatpush1.bf16.msra.mxu0 %v10536
    %12005 = vmatprep.subr.bf16.mxu0 0
    %12006 = vmatpush1.bf16.msra.mxu0 %v10545
    %12007 = vmatprep.subr.bf16.mxu0 0
    %12008 = vmatpush1.bf16.msra.mxu0 %v10554
    %12009 = vmatprep.subr.bf16.mxu0 0
    %12010 = vmatpush1.bf16.msra.mxu0 %v10563
    %12011 = vmatprep.subr.bf16.mxu0 0
    %12012 = vmatpush1.bf16.msra.mxu0 %v10572
    %12013 = vmatprep.subr.bf16.mxu0 0
    %12014 = vmatpush1.bf16.msra.mxu0 %v10581
    %12015 = vmatprep.subr.bf16.mxu0 0
    %12016 = vmatpush1.bf16.msra.mxu0 %v10590
    %12017 = vmatprep.subr.bf16.mxu0 0
    %12018 = vmatpush1.bf16.msra.mxu0 %v10599
    %12019 = vmatprep.subr.bf16.mxu0 0
    %12020 = vmatpush1.bf16.msra.mxu0 %v10608
    %12021 = vmatprep.subr.bf16.mxu0 0
    %12022 = vmatpush1.bf16.msra.mxu0 %v10617
    %12023 = vmatprep.subr.bf16.mxu0 0
    %12024 = vmatpush1.bf16.msra.mxu0 %v10626
    %12025 = vmatprep.subr.bf16.mxu0 0
    %12026 = vmatpush1.bf16.msra.mxu0 %v10635
    %12027 = vmatprep.subr.bf16.mxu0 0
    %12028 = vmatpush1.bf16.msra.mxu0 %v10644
    %12029 = vmatprep.mubr.bf16.mxu0 %v7587
    %12030 = vmatmul.mubr.bf16.gmra.mrb[0].mxu0 %v7586
    %v12031 = vpop.f32.mrb[0].mxu0
    %v12032 = vadd.f32 %v11992, %v12031
    %v12033 = vpop.f32.mrb[0].mxu0
    %v12034 = vpop.f32.mrb[0].mxu0
    %v12035 = vpop.f32.mrb[0].mxu0
    %12036 = vdwg.mxu0
    %v12037 = vmax.f32 %v11379, 0.0
    %v12038 = vmax.f32 %v11381, 0.0
    %v12039 = vmax.f32 %v11543, 0.0
    %v12040 = vmax.f32 %v11545, 0.0
    %v12041 = vmax.f32 %v11707, 0.0
    %v12042 = vmax.f32 %v11709, 0.0
    %v12043 = vmax.f32 %v11871, 0.0
    %v12044 = vmax.f32 %v11873, 0.0
    %v12045 = vmax.f32 %v12032, 0.0
    %v12046 = vpack.c.bf16 %v12037, %v12037
    %v12047 = vpack.c.bf16 %v12038, %v12038
    %v12048 = vpack.c.bf16 %v12039, %v12039
    %v12049 = vpack.c.bf16 %v12040, %v12040
    %v12050 = vpack.c.bf16 %v12041, %v12041
    %v12051 = vpack.c.bf16 %v12042, %v12042
    %v12052 = vpack.c.bf16 %v12043, %v12043
    %v12053 = vpack.c.bf16 %v12044, %v12044
    %v12054 = vpack.c.bf16 %v12045, %v12045
    %v12055 = vld [vmem:[%s20] sm:$0xff]
    %v12056 = vld [vmem:[%s20 + $0x8] sm:$0xff]
    %v12057 = vld [vmem:[%s20 + $0x10] sm:$0xff]
    %v12058 = vld [vmem:[%s20 + $0x18] sm:$0xff]
    %v12059 = vld [vmem:[%s20 + $0x20] sm:$0xff]
    %v12060 = vld [vmem:[%s20 + $0x28] sm:$0xff]
    %v12061 = vld [vmem:[%s20 + $0x30] sm:$0xff]
    %v12062 = vld [vmem:[%s20 + $0x38] sm:$0xff]
    %v12063 = vld [vmem:[%s20 + $0x40] sm:$0xff]
    %v12064 = vld [vmem:[%s20 + $0x48] sm:$0xff]
    %v12065 = vld [vmem:[%s20 + $0x50] sm:$0xff]
    %v12066 = vld [vmem:[%s20 + $0x58] sm:$0xff]
    %v12067 = vld [vmem:[%s20 + $0x60] sm:$0xff]
    %v12068 = vld [vmem:[%s20 + $0x68] sm:$0xff]
    %v12069 = vld [vmem:[%s20 + $0x70] sm:$0xff]
    %v12070 = vld [vmem:[%s20 + $0x78] sm:$0xff]
    %v12071 = vld [vmem:[%s20 + $0x80] sm:$0xff]
    %v12072 = vld [vmem:[%s20 + $0x88] sm:$0xff]
    %v12073 = vld [vmem:[%s20 + $0x90] sm:$0xff]
    %v12074 = vld [vmem:[%s20 + $0x98] sm:$0xff]
    %v12075 = vld [vmem:[%s20 + $0xa0] sm:$0xff]
    %v12076 = vld [vmem:[%s20 + $0xa8] sm:$0xff]
    %v12077 = vld [vmem:[%s20 + $0xb0] sm:$0xff]
    %v12078 = vld [vmem:[%s20 + $0xb8] sm:$0xff]
    %v12079 = vld [vmem:[%s20 + $0xc0] sm:$0xff]
    %v12080 = vld [vmem:[%s20 + $0xc8] sm:$0xff]
    %v12081 = vld [vmem:[%s20 + $0xd0] sm:$0xff]
    %v12082 = vld [vmem:[%s20 + $0xd8] sm:$0xff]
    %v12083 = vld [vmem:[%s20 + $0xe0] sm:$0xff]
    %v12084 = vld [vmem:[%s20 + $0xe8] sm:$0xff]
    %v12085 = vld [vmem:[%s20 + $0xf0] sm:$0xff]
    %v12086 = vld [vmem:[%s20 + $0xf8] sm:$0xff]
    %v12087 = vld [vmem:[%s20 + $0x100] sm:$0xff]
    %v12088 = vld [vmem:[%s20 + $0x108] sm:$0xff]
    %v12089 = vld [vmem:[%s20 + $0x110] sm:$0xff]
    %v12090 = vld [vmem:[%s20 + $0x118] sm:$0xff]
    %v12091 = vld [vmem:[%s20 + $0x120] sm:$0xff]
    %v12092 = vld [vmem:[%s20 + $0x128] sm:$0xff]
    %v12093 = vld [vmem:[%s20 + $0x130] sm:$0xff]
    %v12094 = vld [vmem:[%s20 + $0x138] sm:$0xff]
    %v12095 = vld [vmem:[%s20 + $0x140] sm:$0xff]
    %v12096 = vld [vmem:[%s20 + $0x148] sm:$0xff]
    %v12097 = vld [vmem:[%s20 + $0x150] sm:$0xff]
    %v12098 = vld [vmem:[%s20 + $0x158] sm:$0xff]
    %v12099 = vld [vmem:[%s20 + $0x160] sm:$0xff]
    %v12100 = vld [vmem:[%s20 + $0x168] sm:$0xff]
    %v12101 = vld [vmem:[%s20 + $0x170] sm:$0xff]
    %v12102 = vld [vmem:[%s20 + $0x178] sm:$0xff]
    %v12103 = vld [vmem:[%s20 + $0x180] sm:$0xff]
    %v12104 = vld [vmem:[%s20 + $0x188] sm:$0xff]
    %v12105 = vld [vmem:[%s20 + $0x190] sm:$0xff]
    %v12106 = vld [vmem:[%s20 + $0x198] sm:$0xff]
    %v12107 = vld [vmem:[%s20 + $0x1a0] sm:$0xff]
    %v12108 = vld [vmem:[%s20 + $0x1a8] sm:$0xff]
    %v12109 = vld [vmem:[%s20 + $0x1b0] sm:$0xff]
    %v12110 = vld [vmem:[%s20 + $0x1b8] sm:$0xff]
    %v12111 = vld [vmem:[%s20 + $0x1c0] sm:$0xff]
    %v12112 = vld [vmem:[%s20 + $0x1c8] sm:$0xff]
    %v12113 = vld [vmem:[%s20 + $0x1d0] sm:$0xff]
    %v12114 = vld [vmem:[%s20 + $0x1d8] sm:$0xff]
    %v12115 = vld [vmem:[%s20 + $0x1e0] sm:$0xff]
    %v12116 = vld [vmem:[%s20 + $0x1e8] sm:$0xff]
    %v12117 = vld [vmem:[%s20 + $0x1f0] sm:$0xff]
    %v12118 = vld [vmem:[%s20 + $0x1f8] sm:$0xff]
    %v12119 = vld [vmem:[%s20 + $0x200] sm:$0xff]
    %v12120 = vld [vmem:[%s20 + $0x208] sm:$0xff]
    %v12121 = vld [vmem:[%s20 + $0x210] sm:$0xff]
    %v12122 = vld [vmem:[%s20 + $0x218] sm:$0xff]
    %v12123 = vld [vmem:[%s20 + $0x220] sm:$0xff]
    %v12124 = vld [vmem:[%s20 + $0x228] sm:$0xff]
    %v12125 = vld [vmem:[%s20 + $0x230] sm:$0xff]
    %v12126 = vld [vmem:[%s20 + $0x238] sm:$0xff]
    %v12127 = vld [vmem:[%s20 + $0x240] sm:$0xff]
    %v12128 = vld [vmem:[%s20 + $0x248] sm:$0xff]
    %v12129 = vld [vmem:[%s20 + $0x250] sm:$0xff]
    %v12130 = vld [vmem:[%s20 + $0x258] sm:$0xff]
    %v12131 = vld [vmem:[%s20 + $0x260] sm:$0xff]
    %v12132 = vld [vmem:[%s20 + $0x268] sm:$0xff]
    %v12133 = vld [vmem:[%s20 + $0x270] sm:$0xff]
    %v12134 = vld [vmem:[%s20 + $0x278] sm:$0xff]
    %v12135 = vld [vmem:[%s20 + $0x280] sm:$0xff]
    %v12136 = vld [vmem:[%s20 + $0x288] sm:$0xff]
    %v12137 = vld [vmem:[%s20 + $0x290] sm:$0xff]
    %v12138 = vld [vmem:[%s20 + $0x298] sm:$0xff]
    %v12139 = vld [vmem:[%s20 + $0x2a0] sm:$0xff]
    %v12140 = vld [vmem:[%s20 + $0x2a8] sm:$0xff]
    %v12141 = vld [vmem:[%s20 + $0x2b0] sm:$0xff]
    %v12142 = vld [vmem:[%s20 + $0x2b8] sm:$0xff]
    %v12143 = vld [vmem:[%s20 + $0x2c0] sm:$0xff]
    %v12144 = vld [vmem:[%s20 + $0x2c8] sm:$0xff]
    %v12145 = vld [vmem:[%s20 + $0x2d0] sm:$0xff]
    %v12146 = vld [vmem:[%s20 + $0x2d8] sm:$0xff]
    %v12147 = vld [vmem:[%s20 + $0x2e0] sm:$0xff]
    %v12148 = vld [vmem:[%s20 + $0x2e8] sm:$0xff]
    %v12149 = vld [vmem:[%s20 + $0x2f0] sm:$0xff]
    %v12150 = vld [vmem:[%s20 + $0x2f8] sm:$0xff]
    %v12151 = vld [vmem:[%s20 + $0x300] sm:$0xff]
    %v12152 = vld [vmem:[%s20 + $0x308] sm:$0xff]
    %v12153 = vld [vmem:[%s20 + $0x310] sm:$0xff]
    %v12154 = vld [vmem:[%s20 + $0x318] sm:$0xff]
    %v12155 = vld [vmem:[%s20 + $0x320] sm:$0xff]
    %v12156 = vld [vmem:[%s20 + $0x328] sm:$0xff]
    %v12157 = vld [vmem:[%s20 + $0x330] sm:$0xff]
    %v12158 = vld [vmem:[%s20 + $0x338] sm:$0xff]
    %v12159 = vld [vmem:[%s20 + $0x340] sm:$0xff]
    %v12160 = vld [vmem:[%s20 + $0x348] sm:$0xff]
    %v12161 = vld [vmem:[%s20 + $0x350] sm:$0xff]
    %v12162 = vld [vmem:[%s20 + $0x358] sm:$0xff]
    %v12163 = vld [vmem:[%s20 + $0x360] sm:$0xff]
    %v12164 = vld [vmem:[%s20 + $0x368] sm:$0xff]
    %v12165 = vld [vmem:[%s20 + $0x370] sm:$0xff]
    %v12166 = vld [vmem:[%s20 + $0x378] sm:$0xff]
    %v12167 = vld [vmem:[%s20 + $0x380] sm:$0xff]
    %v12168 = vld [vmem:[%s20 + $0x388] sm:$0xff]
    %v12169 = vld [vmem:[%s20 + $0x390] sm:$0xff]
    %v12170 = vld [vmem:[%s20 + $0x398] sm:$0xff]
    %v12171 = vld [vmem:[%s20 + $0x3a0] sm:$0xff]
    %v12172 = vld [vmem:[%s20 + $0x3a8] sm:$0xff]
    %v12173 = vld [vmem:[%s20 + $0x3b0] sm:$0xff]
    %v12174 = vld [vmem:[%s20 + $0x3b8] sm:$0xff]
    %v12175 = vld [vmem:[%s20 + $0x3c0] sm:$0xff]
    %v12176 = vld [vmem:[%s20 + $0x3c8] sm:$0xff]
    %v12177 = vld [vmem:[%s20 + $0x3d0] sm:$0xff]
    %v12178 = vld [vmem:[%s20 + $0x3d8] sm:$0xff]
    %v12179 = vld [vmem:[%s20 + $0x3e0] sm:$0xff]
    %v12180 = vld [vmem:[%s20 + $0x3e8] sm:$0xff]
    %v12181 = vld [vmem:[%s20 + $0x3f0] sm:$0xff]
    %v12182 = vld [vmem:[%s20 + $0x3f8] sm:$0xff]
    %v12183 = vld [vmem:[%s20 + $0x400] sm:$0xff]
    %v12184 = vld [vmem:[%s20 + $0x408] sm:$0xff]
    %v12185 = vld [vmem:[%s20 + $0x410] sm:$0xff]
    %v12186 = vld [vmem:[%s20 + $0x418] sm:$0xff]
    %v12187 = vld [vmem:[%s20 + $0x420] sm:$0xff]
    %v12188 = vld [vmem:[%s20 + $0x428] sm:$0xff]
    %v12189 = vld [vmem:[%s20 + $0x430] sm:$0xff]
    %v12190 = vld [vmem:[%s20 + $0x438] sm:$0xff]
    %v12191 = vld [vmem:[%s20 + $0x440] sm:$0xff]
    %v12192 = vld [vmem:[%s20 + $0x448] sm:$0xff]
    %v12193 = vld [vmem:[%s20 + $0x450] sm:$0xff]
    %v12194 = vld [vmem:[%s20 + $0x458] sm:$0xff]
    %v12195 = vld [vmem:[%s20 + $0x460] sm:$0xff]
    %v12196 = vld [vmem:[%s20 + $0x468] sm:$0xff]
    %v12197 = vld [vmem:[%s20 + $0x470] sm:$0xff]
    %v12198 = vld [vmem:[%s20 + $0x478] sm:$0xff]
    %v12199 = vld [vmem:[%s20 + $0x480] sm:$0xff]
    %v12200 = vld [vmem:[%s20 + $0x488] sm:$0xff]
    %v12201 = vld [vmem:[%s20 + $0x490] sm:$0xff]
    %v12202 = vld [vmem:[%s20 + $0x498] sm:$0xff]
    %v12203 = vld [vmem:[%s20 + $0x4a0] sm:$0xff]
    %v12204 = vld [vmem:[%s20 + $0x4a8] sm:$0xff]
    %v12205 = vld [vmem:[%s20 + $0x4b0] sm:$0xff]
    %v12206 = vld [vmem:[%s20 + $0x4b8] sm:$0xff]
    %v12207 = vld [vmem:[%s20 + $0x4c0] sm:$0xff]
    %v12208 = vld [vmem:[%s20 + $0x4c8] sm:$0xff]
    %v12209 = vld [vmem:[%s20 + $0x4d0] sm:$0xff]
    %v12210 = vld [vmem:[%s20 + $0x4d8] sm:$0xff]
    %v12211 = vld [vmem:[%s20 + $0x4e0] sm:$0xff]
    %v12212 = vld [vmem:[%s20 + $0x4e8] sm:$0xff]
    %v12213 = vld [vmem:[%s20 + $0x4f0] sm:$0xff]
    %v12214 = vld [vmem:[%s20 + $0x4f8] sm:$0xff]
    %v12215 = vld [vmem:[%s20 + $0x500] sm:$0xff]
    %v12216 = vld [vmem:[%s20 + $0x508] sm:$0xff]
    %v12217 = vld [vmem:[%s20 + $0x510] sm:$0xff]
    %v12218 = vld [vmem:[%s20 + $0x518] sm:$0xff]
    %v12219 = vld [vmem:[%s20 + $0x520] sm:$0xff]
    %v12220 = vld [vmem:[%s20 + $0x528] sm:$0xff]
    %v12221 = vld [vmem:[%s20 + $0x530] sm:$0xff]
    %v12222 = vld [vmem:[%s20 + $0x538] sm:$0xff]
    %v12223 = vld [vmem:[%s20 + $0x540] sm:$0xff]
    %v12224 = vld [vmem:[%s20 + $0x548] sm:$0xff]
    %v12225 = vld [vmem:[%s20 + $0x550] sm:$0xff]
    %v12226 = vld [vmem:[%s20 + $0x558] sm:$0xff]
    %v12227 = vld [vmem:[%s20 + $0x560] sm:$0xff]
    %v12228 = vld [vmem:[%s20 + $0x568] sm:$0xff]
    %v12229 = vld [vmem:[%s20 + $0x570] sm:$0xff]
    %v12230 = vld [vmem:[%s20 + $0x578] sm:$0xff]
    %v12231 = vld [vmem:[%s20 + $0x580] sm:$0xff]
    %v12232 = vld [vmem:[%s20 + $0x588] sm:$0xff]
    %v12233 = vld [vmem:[%s20 + $0x590] sm:$0xff]
    %v12234 = vld [vmem:[%s20 + $0x598] sm:$0xff]
    %v12235 = vld [vmem:[%s20 + $0x5a0] sm:$0xff]
    %v12236 = vld [vmem:[%s20 + $0x5a8] sm:$0xff]
    %v12237 = vld [vmem:[%s20 + $0x5b0] sm:$0xff]
    %v12238 = vld [vmem:[%s20 + $0x5b8] sm:$0xff]
    %v12239 = vld [vmem:[%s20 + $0x5c0] sm:$0xff]
    %v12240 = vld [vmem:[%s20 + $0x5c8] sm:$0xff]
    %v12241 = vld [vmem:[%s20 + $0x5d0] sm:$0xff]
    %v12242 = vld [vmem:[%s20 + $0x5d8] sm:$0xff]
    %v12243 = vld [vmem:[%s20 + $0x5e0] sm:$0xff]
    %v12244 = vld [vmem:[%s20 + $0x5e8] sm:$0xff]
    %v12245 = vld [vmem:[%s20 + $0x5f0] sm:$0xff]
    %v12246 = vld [vmem:[%s20 + $0x5f8] sm:$0xff]
    %v12247 = vld [vmem:[%s20 + $0x600] sm:$0xff]
    %v12248 = vld [vmem:[%s20 + $0x608] sm:$0xff]
    %v12249 = vld [vmem:[%s20 + $0x610] sm:$0xff]
    %v12250 = vld [vmem:[%s20 + $0x618] sm:$0xff]
    %v12251 = vld [vmem:[%s20 + $0x620] sm:$0xff]
    %v12252 = vld [vmem:[%s20 + $0x628] sm:$0xff]
    %v12253 = vld [vmem:[%s20 + $0x630] sm:$0xff]
    %v12254 = vld [vmem:[%s20 + $0x638] sm:$0xff]
    %v12255 = vld [vmem:[%s20 + $0x640] sm:$0xff]
    %v12256 = vld [vmem:[%s20 + $0x648] sm:$0xff]
    %v12257 = vld [vmem:[%s20 + $0x650] sm:$0xff]
    %v12258 = vld [vmem:[%s20 + $0x658] sm:$0xff]
    %v12259 = vld [vmem:[%s20 + $0x660] sm:$0xff]
    %v12260 = vld [vmem:[%s20 + $0x668] sm:$0xff]
    %v12261 = vld [vmem:[%s20 + $0x670] sm:$0xff]
    %v12262 = vld [vmem:[%s20 + $0x678] sm:$0xff]
    %v12263 = vld [vmem:[%s20 + $0x680] sm:$0xff]
    %v12264 = vld [vmem:[%s20 + $0x688] sm:$0xff]
    %v12265 = vld [vmem:[%s20 + $0x690] sm:$0xff]
    %v12266 = vld [vmem:[%s20 + $0x698] sm:$0xff]
    %v12267 = vld [vmem:[%s20 + $0x6a0] sm:$0xff]
    %v12268 = vld [vmem:[%s20 + $0x6a8] sm:$0xff]
    %v12269 = vld [vmem:[%s20 + $0x6b0] sm:$0xff]
    %v12270 = vld [vmem:[%s20 + $0x6b8] sm:$0xff]
    %v12271 = vld [vmem:[%s20 + $0x6c0] sm:$0xff]
    %v12272 = vld [vmem:[%s20 + $0x6c8] sm:$0xff]
    %v12273 = vld [vmem:[%s20 + $0x6d0] sm:$0xff]
    %v12274 = vld [vmem:[%s20 + $0x6d8] sm:$0xff]
    %v12275 = vld [vmem:[%s20 + $0x6e0] sm:$0xff]
    %v12276 = vld [vmem:[%s20 + $0x6e8] sm:$0xff]
    %v12277 = vld [vmem:[%s20 + $0x6f0] sm:$0xff]
    %v12278 = vld [vmem:[%s20 + $0x6f8] sm:$0xff]
    %v12279 = vld [vmem:[%s20 + $0x700] sm:$0xff]
    %v12280 = vld [vmem:[%s20 + $0x708] sm:$0xff]
    %v12281 = vld [vmem:[%s20 + $0x710] sm:$0xff]
    %v12282 = vld [vmem:[%s20 + $0x718] sm:$0xff]
    %v12283 = vld [vmem:[%s20 + $0x720] sm:$0xff]
    %v12284 = vld [vmem:[%s20 + $0x728] sm:$0xff]
    %v12285 = vld [vmem:[%s20 + $0x730] sm:$0xff]
    %v12286 = vld [vmem:[%s20 + $0x738] sm:$0xff]
    %v12287 = vld [vmem:[%s20 + $0x740] sm:$0xff]
    %v12288 = vld [vmem:[%s20 + $0x748] sm:$0xff]
    %v12289 = vld [vmem:[%s20 + $0x750] sm:$0xff]
    %v12290 = vld [vmem:[%s20 + $0x758] sm:$0xff]
    %v12291 = vld [vmem:[%s20 + $0x760] sm:$0xff]
    %v12292 = vld [vmem:[%s20 + $0x768] sm:$0xff]
    %v12293 = vld [vmem:[%s20 + $0x770] sm:$0xff]
    %v12294 = vld [vmem:[%s20 + $0x778] sm:$0xff]
    %v12295 = vld [vmem:[%s20 + $0x780] sm:$0xff]
    %v12296 = vld [vmem:[%s20 + $0x788] sm:$0xff]
    %v12297 = vld [vmem:[%s20 + $0x790] sm:$0xff]
    %v12298 = vld [vmem:[%s20 + $0x798] sm:$0xff]
    %v12299 = vld [vmem:[%s20 + $0x7a0] sm:$0xff]
    %v12300 = vld [vmem:[%s20 + $0x7a8] sm:$0xff]
    %v12301 = vld [vmem:[%s20 + $0x7b0] sm:$0xff]
    %v12302 = vld [vmem:[%s20 + $0x7b8] sm:$0xff]
    %v12303 = vld [vmem:[%s20 + $0x7c0] sm:$0xff]
    %v12304 = vld [vmem:[%s20 + $0x7c8] sm:$0xff]
    %v12305 = vld [vmem:[%s20 + $0x7d0] sm:$0xff]
    %v12306 = vld [vmem:[%s20 + $0x7d8] sm:$0xff]
    %v12307 = vld [vmem:[%s20 + $0x7e0] sm:$0xff]
    %v12308 = vld [vmem:[%s20 + $0x7e8] sm:$0xff]
    %v12309 = vld [vmem:[%s20 + $0x7f0] sm:$0xff]
    %v12310 = vld [vmem:[%s20 + $0x7f8] sm:$0xff]
    %v12311 = vld [vmem:[%s20 + $0x800] sm:$0xff]
    %v12312 = vld [vmem:[%s20 + $0x808] sm:$0xff]
    %v12313 = vld [vmem:[%s20 + $0x810] sm:$0xff]
    %v12314 = vld [vmem:[%s20 + $0x818] sm:$0xff]
    %v12315 = vld [vmem:[%s20 + $0x820] sm:$0xff]
    %v12316 = vld [vmem:[%s20 + $0x828] sm:$0xff]
    %v12317 = vld [vmem:[%s20 + $0x830] sm:$0xff]
    %v12318 = vld [vmem:[%s20 + $0x838] sm:$0xff]
    %v12319 = vld [vmem:[%s20 + $0x840] sm:$0xff]
    %v12320 = vld [vmem:[%s20 + $0x848] sm:$0xff]
    %v12321 = vld [vmem:[%s20 + $0x850] sm:$0xff]
    %v12322 = vld [vmem:[%s20 + $0x858] sm:$0xff]
    %v12323 = vld [vmem:[%s20 + $0x860] sm:$0xff]
    %v12324 = vld [vmem:[%s20 + $0x868] sm:$0xff]
    %v12325 = vld [vmem:[%s20 + $0x870] sm:$0xff]
    %v12326 = vld [vmem:[%s20 + $0x878] sm:$0xff]
    %v12327 = vld [vmem:[%s20 + $0x880] sm:$0xff]
    %v12328 = vld [vmem:[%s20 + $0x888] sm:$0xff]
    %v12329 = vld [vmem:[%s20 + $0x890] sm:$0xff]
    %v12330 = vld [vmem:[%s20 + $0x898] sm:$0xff]
    %v12331 = vld [vmem:[%s20 + $0x8a0] sm:$0xff]
    %v12332 = vld [vmem:[%s20 + $0x8a8] sm:$0xff]
    %v12333 = vld [vmem:[%s20 + $0x8b0] sm:$0xff]
    %v12334 = vld [vmem:[%s20 + $0x8b8] sm:$0xff]
    %v12335 = vld [vmem:[%s20 + $0x8c0] sm:$0xff]
    %v12336 = vld [vmem:[%s20 + $0x8c8] sm:$0xff]
    %v12337 = vld [vmem:[%s20 + $0x8d0] sm:$0xff]
    %v12338 = vld [vmem:[%s20 + $0x8d8] sm:$0xff]
    %v12339 = vld [vmem:[%s20 + $0x8e0] sm:$0xff]
    %v12340 = vld [vmem:[%s20 + $0x8e8] sm:$0xff]
    %v12341 = vld [vmem:[%s20 + $0x8f0] sm:$0xff]
    %v12342 = vld [vmem:[%s20 + $0x8f8] sm:$0xff]
    %v12343 = vld [vmem:[%s21] sm:$0xf]
    %v12345 = vlaneseq
    %v12346 = vshrl.u32 %v12345, 7
    %v12347 = vsub.s32 0, %v12346
    %v12348 = vrot.slane %v12343, %v12347
    %v12349 = vlaneseq
    %v12350 = vshrl.u32 %v12349, 7
    %v12351 = vsub.s32 1, %v12350
    %v12352 = vrot.slane %v12343, %v12351
    %v12353 = vlaneseq
    %v12354 = vshrl.u32 %v12353, 7
    %v12355 = vsub.s32 2, %v12354
    %v12356 = vrot.slane %v12343, %v12355
    %v12357 = vlaneseq
    %v12358 = vshrl.u32 %v12357, 7
    %v12359 = vsub.s32 3, %v12358
    %v12360 = vrot.slane %v12343, %v12359
    %v12653 = vunpack.c.l.b16 %v12055
    %v12654 = vunpack.c.h.b16 %v12055
    %v12655 = vunpack.c.l.b16 %v12056
    %v12656 = vunpack.c.h.b16 %v12056
    %v12657 = vunpack.c.l.b16 %v12057
    %v12658 = vunpack.c.h.b16 %v12057
    %v12659 = vunpack.c.l.b16 %v12058
    %v12660 = vunpack.c.h.b16 %v12058
    %v12661 = vunpack.c.l.b16 %v12059
    %v12662 = vunpack.c.h.b16 %v12059
    %v12663 = vunpack.c.l.b16 %v12060
    %v12664 = vunpack.c.h.b16 %v12060
    %v12665 = vunpack.c.l.b16 %v12061
    %v12666 = vunpack.c.h.b16 %v12061
    %v12667 = vunpack.c.l.b16 %v12062
    %v12668 = vunpack.c.h.b16 %v12062
    %v12669 = vunpack.c.l.b16 %v12063
    %v12670 = vunpack.c.h.b16 %v12063
    %v12671 = vunpack.c.l.b16 %v12064
    %v12672 = vunpack.c.h.b16 %v12064
    %v12673 = vunpack.c.l.b16 %v12065
    %v12674 = vunpack.c.h.b16 %v12065
    %v12675 = vunpack.c.l.b16 %v12066
    %v12676 = vunpack.c.h.b16 %v12066
    %v12677 = vunpack.c.l.b16 %v12067
    %v12678 = vunpack.c.h.b16 %v12067
    %v12679 = vunpack.c.l.b16 %v12068
    %v12680 = vunpack.c.h.b16 %v12068
    %v12681 = vunpack.c.l.b16 %v12069
    %v12682 = vunpack.c.h.b16 %v12069
    %v12683 = vunpack.c.l.b16 %v12070
    %v12684 = vunpack.c.h.b16 %v12070
    %v12685 = vunpack.c.l.b16 %v12071
    %v12686 = vunpack.c.h.b16 %v12071
    %v12687 = vunpack.c.l.b16 %v12072
    %v12688 = vunpack.c.h.b16 %v12072
    %v12689 = vunpack.c.l.b16 %v12073
    %v12690 = vunpack.c.h.b16 %v12073
    %v12691 = vunpack.c.l.b16 %v12074
    %v12692 = vunpack.c.h.b16 %v12074
    %v12693 = vunpack.c.l.b16 %v12075
    %v12694 = vunpack.c.h.b16 %v12075
    %v12695 = vunpack.c.l.b16 %v12076
    %v12696 = vunpack.c.h.b16 %v12076
    %v12697 = vunpack.c.l.b16 %v12077
    %v12698 = vunpack.c.h.b16 %v12077
    %v12699 = vunpack.c.l.b16 %v12078
    %v12700 = vunpack.c.h.b16 %v12078
    %v12701 = vunpack.c.l.b16 %v12079
    %v12702 = vunpack.c.h.b16 %v12079
    %v12703 = vunpack.c.l.b16 %v12080
    %v12704 = vunpack.c.h.b16 %v12080
    %v12705 = vunpack.c.l.b16 %v12081
    %v12706 = vunpack.c.h.b16 %v12081
    %v12707 = vunpack.c.l.b16 %v12082
    %v12708 = vunpack.c.h.b16 %v12082
    %v12709 = vunpack.c.l.b16 %v12083
    %v12710 = vunpack.c.h.b16 %v12083
    %v12711 = vunpack.c.l.b16 %v12084
    %v12712 = vunpack.c.h.b16 %v12084
    %v12713 = vunpack.c.l.b16 %v12085
    %v12714 = vunpack.c.h.b16 %v12085
    %v12715 = vunpack.c.l.b16 %v12086
    %v12716 = vunpack.c.h.b16 %v12086
    %v12717 = vunpack.c.l.b16 %v12087
    %v12718 = vunpack.c.h.b16 %v12087
    %v12719 = vunpack.c.l.b16 %v12088
    %v12720 = vunpack.c.h.b16 %v12088
    %v12721 = vunpack.c.l.b16 %v12089
    %v12722 = vunpack.c.h.b16 %v12089
    %v12723 = vunpack.c.l.b16 %v12090
    %v12724 = vunpack.c.h.b16 %v12090
    %v12725 = vunpack.c.l.b16 %v12091
    %v12726 = vunpack.c.h.b16 %v12091
    %v12727 = vunpack.c.l.b16 %v12092
    %v12728 = vunpack.c.h.b16 %v12092
    %v12729 = vunpack.c.l.b16 %v12093
    %v12730 = vunpack.c.h.b16 %v12093
    %v12731 = vunpack.c.l.b16 %v12094
    %v12732 = vunpack.c.h.b16 %v12094
    %v12733 = vunpack.c.l.b16 %v12095
    %v12734 = vunpack.c.h.b16 %v12095
    %v12735 = vunpack.c.l.b16 %v12096
    %v12736 = vunpack.c.h.b16 %v12096
    %v12737 = vunpack.c.l.b16 %v12097
    %v12738 = vunpack.c.h.b16 %v12097
    %v12739 = vunpack.c.l.b16 %v12098
    %v12740 = vunpack.c.h.b16 %v12098
    %v12741 = vunpack.c.l.b16 %v12099
    %v12742 = vunpack.c.h.b16 %v12099
    %v12743 = vunpack.c.l.b16 %v12100
    %v12744 = vunpack.c.h.b16 %v12100
    %v12745 = vunpack.c.l.b16 %v12101
    %v12746 = vunpack.c.h.b16 %v12101
    %v12747 = vunpack.c.l.b16 %v12102
    %v12748 = vunpack.c.h.b16 %v12102
    %v12749 = vunpack.c.l.b16 %v12103
    %v12750 = vunpack.c.h.b16 %v12103
    %v12751 = vunpack.c.l.b16 %v12104
    %v12752 = vunpack.c.h.b16 %v12104
    %v12753 = vunpack.c.l.b16 %v12105
    %v12754 = vunpack.c.h.b16 %v12105
    %v12755 = vunpack.c.l.b16 %v12106
    %v12756 = vunpack.c.h.b16 %v12106
    %v12757 = vunpack.c.l.b16 %v12107
    %v12758 = vunpack.c.h.b16 %v12107
    %v12759 = vunpack.c.l.b16 %v12108
    %v12760 = vunpack.c.h.b16 %v12108
    %v12761 = vunpack.c.l.b16 %v12109
    %v12762 = vunpack.c.h.b16 %v12109
    %v12763 = vunpack.c.l.b16 %v12110
    %v12764 = vunpack.c.h.b16 %v12110
    %v12765 = vunpack.c.l.b16 %v12111
    %v12766 = vunpack.c.h.b16 %v12111
    %v12767 = vunpack.c.l.b16 %v12112
    %v12768 = vunpack.c.h.b16 %v12112
    %v12769 = vunpack.c.l.b16 %v12113
    %v12770 = vunpack.c.h.b16 %v12113
    %v12771 = vunpack.c.l.b16 %v12114
    %v12772 = vunpack.c.h.b16 %v12114
    %v12773 = vunpack.c.l.b16 %v12115
    %v12774 = vunpack.c.h.b16 %v12115
    %v12775 = vunpack.c.l.b16 %v12116
    %v12776 = vunpack.c.h.b16 %v12116
    %v12777 = vunpack.c.l.b16 %v12117
    %v12778 = vunpack.c.h.b16 %v12117
    %v12779 = vunpack.c.l.b16 %v12118
    %v12780 = vunpack.c.h.b16 %v12118
    %v12781 = vunpack.c.l.b16 %v12119
    %v12782 = vunpack.c.h.b16 %v12119
    %v12783 = vunpack.c.l.b16 %v12120
    %v12784 = vunpack.c.h.b16 %v12120
    %v12785 = vunpack.c.l.b16 %v12121
    %v12786 = vunpack.c.h.b16 %v12121
    %v12787 = vunpack.c.l.b16 %v12122
    %v12788 = vunpack.c.h.b16 %v12122
    %v12789 = vunpack.c.l.b16 %v12123
    %v12790 = vunpack.c.h.b16 %v12123
    %v12791 = vunpack.c.l.b16 %v12124
    %v12792 = vunpack.c.h.b16 %v12124
    %v12793 = vunpack.c.l.b16 %v12125
    %v12794 = vunpack.c.h.b16 %v12125
    %v12795 = vunpack.c.l.b16 %v12126
    %v12796 = vunpack.c.h.b16 %v12126
    %v12797 = vunpack.c.l.b16 %v12127
    %v12798 = vunpack.c.h.b16 %v12127
    %v12799 = vunpack.c.l.b16 %v12128
    %v12800 = vunpack.c.h.b16 %v12128
    %v12801 = vunpack.c.l.b16 %v12129
    %v12802 = vunpack.c.h.b16 %v12129
    %v12803 = vunpack.c.l.b16 %v12130
    %v12804 = vunpack.c.h.b16 %v12130
    %v12805 = vunpack.c.l.b16 %v12131
    %v12806 = vunpack.c.h.b16 %v12131
    %v12807 = vunpack.c.l.b16 %v12132
    %v12808 = vunpack.c.h.b16 %v12132
    %v12809 = vunpack.c.l.b16 %v12133
    %v12810 = vunpack.c.h.b16 %v12133
    %v12811 = vunpack.c.l.b16 %v12134
    %v12812 = vunpack.c.h.b16 %v12134
    %v12813 = vunpack.c.l.b16 %v12135
    %v12814 = vunpack.c.h.b16 %v12135
    %v12815 = vunpack.c.l.b16 %v12136
    %v12816 = vunpack.c.h.b16 %v12136
    %v12817 = vunpack.c.l.b16 %v12137
    %v12818 = vunpack.c.h.b16 %v12137
    %v12819 = vunpack.c.l.b16 %v12138
    %v12820 = vunpack.c.h.b16 %v12138
    %v12821 = vunpack.c.l.b16 %v12139
    %v12822 = vunpack.c.h.b16 %v12139
    %v12823 = vunpack.c.l.b16 %v12140
    %v12824 = vunpack.c.h.b16 %v12140
    %v12825 = vunpack.c.l.b16 %v12141
    %v12826 = vunpack.c.h.b16 %v12141
    %v12827 = vunpack.c.l.b16 %v12142
    %v12828 = vunpack.c.h.b16 %v12142
    %v12829 = vunpack.c.l.b16 %v12143
    %v12830 = vunpack.c.h.b16 %v12143
    %v12831 = vunpack.c.l.b16 %v12144
    %v12832 = vunpack.c.h.b16 %v12144
    %v12833 = vunpack.c.l.b16 %v12145
    %v12834 = vunpack.c.h.b16 %v12145
    %v12835 = vunpack.c.l.b16 %v12146
    %v12836 = vunpack.c.h.b16 %v12146
    %v12837 = vunpack.c.l.b16 %v12147
    %v12838 = vunpack.c.h.b16 %v12147
    %v12839 = vunpack.c.l.b16 %v12148
    %v12840 = vunpack.c.h.b16 %v12148
    %v12841 = vunpack.c.l.b16 %v12149
    %v12842 = vunpack.c.h.b16 %v12149
    %v12843 = vunpack.c.l.b16 %v12150
    %v12844 = vunpack.c.h.b16 %v12150
    %v12845 = vunpack.c.l.b16 %v12151
    %v12846 = vunpack.c.h.b16 %v12151
    %v12847 = vunpack.c.l.b16 %v12152
    %v12848 = vunpack.c.h.b16 %v12152
    %v12849 = vunpack.c.l.b16 %v12153
    %v12850 = vunpack.c.h.b16 %v12153
    %v12851 = vunpack.c.l.b16 %v12154
    %v12852 = vunpack.c.h.b16 %v12154
    %v12853 = vunpack.c.l.b16 %v12155
    %v12854 = vunpack.c.h.b16 %v12155
    %v12855 = vunpack.c.l.b16 %v12156
    %v12856 = vunpack.c.h.b16 %v12156
    %v12857 = vunpack.c.l.b16 %v12157
    %v12858 = vunpack.c.h.b16 %v12157
    %v12859 = vunpack.c.l.b16 %v12158
    %v12860 = vunpack.c.h.b16 %v12158
    %v12861 = vunpack.c.l.b16 %v12159
    %v12862 = vunpack.c.h.b16 %v12159
    %v12863 = vunpack.c.l.b16 %v12160
    %v12864 = vunpack.c.h.b16 %v12160
    %v12865 = vunpack.c.l.b16 %v12161
    %v12866 = vunpack.c.h.b16 %v12161
    %v12867 = vunpack.c.l.b16 %v12162
    %v12868 = vunpack.c.h.b16 %v12162
    %v12869 = vunpack.c.l.b16 %v12163
    %v12870 = vunpack.c.h.b16 %v12163
    %v12871 = vunpack.c.l.b16 %v12164
    %v12872 = vunpack.c.h.b16 %v12164
    %v12873 = vunpack.c.l.b16 %v12165
    %v12874 = vunpack.c.h.b16 %v12165
    %v12875 = vunpack.c.l.b16 %v12166
    %v12876 = vunpack.c.h.b16 %v12166
    %v12877 = vunpack.c.l.b16 %v12167
    %v12878 = vunpack.c.h.b16 %v12167
    %v12879 = vunpack.c.l.b16 %v12168
    %v12880 = vunpack.c.h.b16 %v12168
    %v12881 = vunpack.c.l.b16 %v12169
    %v12882 = vunpack.c.h.b16 %v12169
    %v12883 = vunpack.c.l.b16 %v12170
    %v12884 = vunpack.c.h.b16 %v12170
    %v12885 = vunpack.c.l.b16 %v12171
    %v12886 = vunpack.c.h.b16 %v12171
    %v12887 = vunpack.c.l.b16 %v12172
    %v12888 = vunpack.c.h.b16 %v12172
    %v12889 = vunpack.c.l.b16 %v12173
    %v12890 = vunpack.c.h.b16 %v12173
    %v12891 = vunpack.c.l.b16 %v12174
    %v12892 = vunpack.c.h.b16 %v12174
    %v12893 = vunpack.c.l.b16 %v12175
    %v12894 = vunpack.c.h.b16 %v12175
    %v12895 = vunpack.c.l.b16 %v12176
    %v12896 = vunpack.c.h.b16 %v12176
    %v12897 = vunpack.c.l.b16 %v12177
    %v12898 = vunpack.c.h.b16 %v12177
    %v12899 = vunpack.c.l.b16 %v12178
    %v12900 = vunpack.c.h.b16 %v12178
    %v12901 = vunpack.c.l.b16 %v12179
    %v12902 = vunpack.c.h.b16 %v12179
    %v12903 = vunpack.c.l.b16 %v12180
    %v12904 = vunpack.c.h.b16 %v12180
    %v12905 = vunpack.c.l.b16 %v12181
    %v12906 = vunpack.c.h.b16 %v12181
    %v12907 = vunpack.c.l.b16 %v12182
    %v12908 = vunpack.c.h.b16 %v12182
    %v12909 = vunpack.c.l.b16 %v12183
    %v12910 = vunpack.c.h.b16 %v12183
    %v12911 = vunpack.c.l.b16 %v12184
    %v12912 = vunpack.c.h.b16 %v12184
    %v12913 = vunpack.c.l.b16 %v12185
    %v12914 = vunpack.c.h.b16 %v12185
    %v12915 = vunpack.c.l.b16 %v12186
    %v12916 = vunpack.c.h.b16 %v12186
    %v12917 = vunpack.c.l.b16 %v12187
    %v12918 = vunpack.c.h.b16 %v12187
    %v12919 = vunpack.c.l.b16 %v12188
    %v12920 = vunpack.c.h.b16 %v12188
    %v12921 = vunpack.c.l.b16 %v12189
    %v12922 = vunpack.c.h.b16 %v12189
    %v12923 = vunpack.c.l.b16 %v12190
    %v12924 = vunpack.c.h.b16 %v12190
    %v12925 = vunpack.c.l.b16 %v12191
    %v12926 = vunpack.c.h.b16 %v12191
    %v12927 = vunpack.c.l.b16 %v12192
    %v12928 = vunpack.c.h.b16 %v12192
    %v12929 = vunpack.c.l.b16 %v12193
    %v12930 = vunpack.c.h.b16 %v12193
    %v12931 = vunpack.c.l.b16 %v12194
    %v12932 = vunpack.c.h.b16 %v12194
    %v12933 = vunpack.c.l.b16 %v12195
    %v12934 = vunpack.c.h.b16 %v12195
    %v12935 = vunpack.c.l.b16 %v12196
    %v12936 = vunpack.c.h.b16 %v12196
    %v12937 = vunpack.c.l.b16 %v12197
    %v12938 = vunpack.c.h.b16 %v12197
    %v12939 = vunpack.c.l.b16 %v12198
    %v12940 = vunpack.c.h.b16 %v12198
    %v12941 = vunpack.c.l.b16 %v12199
    %v12942 = vunpack.c.h.b16 %v12199
    %v12943 = vunpack.c.l.b16 %v12200
    %v12944 = vunpack.c.h.b16 %v12200
    %v12945 = vunpack.c.l.b16 %v12201
    %v12946 = vunpack.c.h.b16 %v12201
    %v12947 = vunpack.c.l.b16 %v12202
    %v12948 = vunpack.c.h.b16 %v12202
    %v12949 = vunpack.c.l.b16 %v12203
    %v12950 = vunpack.c.h.b16 %v12203
    %v12951 = vunpack.c.l.b16 %v12204
    %v12952 = vunpack.c.h.b16 %v12204
    %v12953 = vunpack.c.l.b16 %v12205
    %v12954 = vunpack.c.h.b16 %v12205
    %v12955 = vunpack.c.l.b16 %v12206
    %v12956 = vunpack.c.h.b16 %v12206
    %v12957 = vunpack.c.l.b16 %v12207
    %v12958 = vunpack.c.h.b16 %v12207
    %v12959 = vunpack.c.l.b16 %v12208
    %v12960 = vunpack.c.h.b16 %v12208
    %v12961 = vunpack.c.l.b16 %v12209
    %v12962 = vunpack.c.h.b16 %v12209
    %v12963 = vunpack.c.l.b16 %v12210
    %v12964 = vunpack.c.h.b16 %v12210
    %v12965 = vunpack.c.l.b16 %v12211
    %v12966 = vunpack.c.h.b16 %v12211
    %v12967 = vunpack.c.l.b16 %v12212
    %v12968 = vunpack.c.h.b16 %v12212
    %v12969 = vunpack.c.l.b16 %v12213
    %v12970 = vunpack.c.h.b16 %v12213
    %v12971 = vunpack.c.l.b16 %v12214
    %v12972 = vunpack.c.h.b16 %v12214
    %v12973 = vunpack.c.l.b16 %v12215
    %v12974 = vunpack.c.h.b16 %v12215
    %v12975 = vunpack.c.l.b16 %v12216
    %v12976 = vunpack.c.h.b16 %v12216
    %v12977 = vunpack.c.l.b16 %v12217
    %v12978 = vunpack.c.h.b16 %v12217
    %v12979 = vunpack.c.l.b16 %v12218
    %v12980 = vunpack.c.h.b16 %v12218
    %v12981 = vunpack.c.l.b16 %v12219
    %v12982 = vunpack.c.h.b16 %v12219
    %v12983 = vunpack.c.l.b16 %v12220
    %v12984 = vunpack.c.h.b16 %v12220
    %v12985 = vunpack.c.l.b16 %v12221
    %v12986 = vunpack.c.h.b16 %v12221
    %v12987 = vunpack.c.l.b16 %v12222
    %v12988 = vunpack.c.h.b16 %v12222
    %v12989 = vunpack.c.l.b16 %v12223
    %v12990 = vunpack.c.h.b16 %v12223
    %v12991 = vunpack.c.l.b16 %v12224
    %v12992 = vunpack.c.h.b16 %v12224
    %v12993 = vunpack.c.l.b16 %v12225
    %v12994 = vunpack.c.h.b16 %v12225
    %v12995 = vunpack.c.l.b16 %v12226
    %v12996 = vunpack.c.h.b16 %v12226
    %v12997 = vunpack.c.l.b16 %v12227
    %v12998 = vunpack.c.h.b16 %v12227
    %v12999 = vunpack.c.l.b16 %v12228
    %v13000 = vunpack.c.h.b16 %v12228
    %v13001 = vunpack.c.l.b16 %v12229
    %v13002 = vunpack.c.h.b16 %v12229
    %v13003 = vunpack.c.l.b16 %v12230
    %v13004 = vunpack.c.h.b16 %v12230
    %v13005 = vunpack.c.l.b16 %v12231
    %v13006 = vunpack.c.h.b16 %v12231
    %v13007 = vunpack.c.l.b16 %v12232
    %v13008 = vunpack.c.h.b16 %v12232
    %v13009 = vunpack.c.l.b16 %v12233
    %v13010 = vunpack.c.h.b16 %v12233
    %v13011 = vunpack.c.l.b16 %v12234
    %v13012 = vunpack.c.h.b16 %v12234
    %v13013 = vunpack.c.l.b16 %v12235
    %v13014 = vunpack.c.h.b16 %v12235
    %v13015 = vunpack.c.l.b16 %v12236
    %v13016 = vunpack.c.h.b16 %v12236
    %v13017 = vunpack.c.l.b16 %v12237
    %v13018 = vunpack.c.h.b16 %v12237
    %v13019 = vunpack.c.l.b16 %v12238
    %v13020 = vunpack.c.h.b16 %v12238
    %v13021 = vunpack.c.l.b16 %v12239
    %v13022 = vunpack.c.h.b16 %v12239
    %v13023 = vunpack.c.l.b16 %v12240
    %v13024 = vunpack.c.h.b16 %v12240
    %v13025 = vunpack.c.l.b16 %v12241
    %v13026 = vunpack.c.h.b16 %v12241
    %v13027 = vunpack.c.l.b16 %v12242
    %v13028 = vunpack.c.h.b16 %v12242
    %v13029 = vunpack.c.l.b16 %v12243
    %v13030 = vunpack.c.h.b16 %v12243
    %v13031 = vunpack.c.l.b16 %v12244
    %v13032 = vunpack.c.h.b16 %v12244
    %v13033 = vunpack.c.l.b16 %v12245
    %v13034 = vunpack.c.h.b16 %v12245
    %v13035 = vunpack.c.l.b16 %v12246
    %v13036 = vunpack.c.h.b16 %v12246
    %v13037 = vunpack.c.l.b16 %v12247
    %v13038 = vunpack.c.h.b16 %v12247
    %v13039 = vunpack.c.l.b16 %v12248
    %v13040 = vunpack.c.h.b16 %v12248
    %v13041 = vunpack.c.l.b16 %v12249
    %v13042 = vunpack.c.h.b16 %v12249
    %v13043 = vunpack.c.l.b16 %v12250
    %v13044 = vunpack.c.h.b16 %v12250
    %v13045 = vunpack.c.l.b16 %v12251
    %v13046 = vunpack.c.h.b16 %v12251
    %v13047 = vunpack.c.l.b16 %v12252
    %v13048 = vunpack.c.h.b16 %v12252
    %v13049 = vunpack.c.l.b16 %v12253
    %v13050 = vunpack.c.h.b16 %v12253
    %v13051 = vunpack.c.l.b16 %v12254
    %v13052 = vunpack.c.h.b16 %v12254
    %v13053 = vunpack.c.l.b16 %v12255
    %v13054 = vunpack.c.h.b16 %v12255
    %v13055 = vunpack.c.l.b16 %v12256
    %v13056 = vunpack.c.h.b16 %v12256
    %v13057 = vunpack.c.l.b16 %v12257
    %v13058 = vunpack.c.h.b16 %v12257
    %v13059 = vunpack.c.l.b16 %v12258
    %v13060 = vunpack.c.h.b16 %v12258
    %v13061 = vunpack.c.l.b16 %v12259
    %v13062 = vunpack.c.h.b16 %v12259
    %v13063 = vunpack.c.l.b16 %v12260
    %v13064 = vunpack.c.h.b16 %v12260
    %v13065 = vunpack.c.l.b16 %v12261
    %v13066 = vunpack.c.h.b16 %v12261
    %v13067 = vunpack.c.l.b16 %v12262
    %v13068 = vunpack.c.h.b16 %v12262
    %v13069 = vunpack.c.l.b16 %v12263
    %v13070 = vunpack.c.h.b16 %v12263
    %v13071 = vunpack.c.l.b16 %v12264
    %v13072 = vunpack.c.h.b16 %v12264
    %v13073 = vunpack.c.l.b16 %v12265
    %v13074 = vunpack.c.h.b16 %v12265
    %v13075 = vunpack.c.l.b16 %v12266
    %v13076 = vunpack.c.h.b16 %v12266
    %v13077 = vunpack.c.l.b16 %v12267
    %v13078 = vunpack.c.h.b16 %v12267
    %v13079 = vunpack.c.l.b16 %v12268
    %v13080 = vunpack.c.h.b16 %v12268
    %v13081 = vunpack.c.l.b16 %v12269
    %v13082 = vunpack.c.h.b16 %v12269
    %v13083 = vunpack.c.l.b16 %v12270
    %v13084 = vunpack.c.h.b16 %v12270
    %v13085 = vunpack.c.l.b16 %v12271
    %v13086 = vunpack.c.h.b16 %v12271
    %v13087 = vunpack.c.l.b16 %v12272
    %v13088 = vunpack.c.h.b16 %v12272
    %v13089 = vunpack.c.l.b16 %v12273
    %v13090 = vunpack.c.h.b16 %v12273
    %v13091 = vunpack.c.l.b16 %v12274
    %v13092 = vunpack.c.h.b16 %v12274
    %v13093 = vunpack.c.l.b16 %v12275
    %v13094 = vunpack.c.h.b16 %v12275
    %v13095 = vunpack.c.l.b16 %v12276
    %v13096 = vunpack.c.h.b16 %v12276
    %v13097 = vunpack.c.l.b16 %v12277
    %v13098 = vunpack.c.h.b16 %v12277
    %v13099 = vunpack.c.l.b16 %v12278
    %v13100 = vunpack.c.h.b16 %v12278
    %v13101 = vunpack.c.l.b16 %v12279
    %v13102 = vunpack.c.h.b16 %v12279
    %v13103 = vunpack.c.l.b16 %v12280
    %v13104 = vunpack.c.h.b16 %v12280
    %v13105 = vunpack.c.l.b16 %v12281
    %v13106 = vunpack.c.h.b16 %v12281
    %v13107 = vunpack.c.l.b16 %v12282
    %v13108 = vunpack.c.h.b16 %v12282
    %v13109 = vunpack.c.l.b16 %v12283
    %v13110 = vunpack.c.h.b16 %v12283
    %v13111 = vunpack.c.l.b16 %v12284
    %v13112 = vunpack.c.h.b16 %v12284
    %v13113 = vunpack.c.l.b16 %v12285
    %v13114 = vunpack.c.h.b16 %v12285
    %v13115 = vunpack.c.l.b16 %v12286
    %v13116 = vunpack.c.h.b16 %v12286
    %v13117 = vunpack.c.l.b16 %v12287
    %v13118 = vunpack.c.h.b16 %v12287
    %v13119 = vunpack.c.l.b16 %v12288
    %v13120 = vunpack.c.h.b16 %v12288
    %v13121 = vunpack.c.l.b16 %v12289
    %v13122 = vunpack.c.h.b16 %v12289
    %v13123 = vunpack.c.l.b16 %v12290
    %v13124 = vunpack.c.h.b16 %v12290
    %v13125 = vunpack.c.l.b16 %v12291
    %v13126 = vunpack.c.h.b16 %v12291
    %v13127 = vunpack.c.l.b16 %v12292
    %v13128 = vunpack.c.h.b16 %v12292
    %v13129 = vunpack.c.l.b16 %v12293
    %v13130 = vunpack.c.h.b16 %v12293
    %v13131 = vunpack.c.l.b16 %v12294
    %v13132 = vunpack.c.h.b16 %v12294
    %v13133 = vunpack.c.l.b16 %v12295
    %v13134 = vunpack.c.h.b16 %v12295
    %v13135 = vunpack.c.l.b16 %v12296
    %v13136 = vunpack.c.h.b16 %v12296
    %v13137 = vunpack.c.l.b16 %v12297
    %v13138 = vunpack.c.h.b16 %v12297
    %v13139 = vunpack.c.l.b16 %v12298
    %v13140 = vunpack.c.h.b16 %v12298
    %v13141 = vunpack.c.l.b16 %v12299
    %v13142 = vunpack.c.h.b16 %v12299
    %v13143 = vunpack.c.l.b16 %v12300
    %v13144 = vunpack.c.h.b16 %v12300
    %v13145 = vunpack.c.l.b16 %v12301
    %v13146 = vunpack.c.h.b16 %v12301
    %v13147 = vunpack.c.l.b16 %v12302
    %v13148 = vunpack.c.h.b16 %v12302
    %v13149 = vunpack.c.l.b16 %v12303
    %v13150 = vunpack.c.h.b16 %v12303
    %v13151 = vunpack.c.l.b16 %v12304
    %v13152 = vunpack.c.h.b16 %v12304
    %v13153 = vunpack.c.l.b16 %v12305
    %v13154 = vunpack.c.h.b16 %v12305
    %v13155 = vunpack.c.l.b16 %v12306
    %v13156 = vunpack.c.h.b16 %v12306
    %v13157 = vunpack.c.l.b16 %v12307
    %v13158 = vunpack.c.h.b16 %v12307
    %v13159 = vunpack.c.l.b16 %v12308
    %v13160 = vunpack.c.h.b16 %v12308
    %v13161 = vunpack.c.l.b16 %v12309
    %v13162 = vunpack.c.h.b16 %v12309
    %v13163 = vunpack.c.l.b16 %v12310
    %v13164 = vunpack.c.h.b16 %v12310
    %v13165 = vunpack.c.l.b16 %v12311
    %v13166 = vunpack.c.h.b16 %v12311
    %v13167 = vunpack.c.l.b16 %v12312
    %v13168 = vunpack.c.h.b16 %v12312
    %v13169 = vunpack.c.l.b16 %v12313
    %v13170 = vunpack.c.h.b16 %v12313
    %v13171 = vunpack.c.l.b16 %v12314
    %v13172 = vunpack.c.h.b16 %v12314
    %v13173 = vunpack.c.l.b16 %v12315
    %v13174 = vunpack.c.h.b16 %v12315
    %v13175 = vunpack.c.l.b16 %v12316
    %v13176 = vunpack.c.h.b16 %v12316
    %v13177 = vunpack.c.l.b16 %v12317
    %v13178 = vunpack.c.h.b16 %v12317
    %v13179 = vunpack.c.l.b16 %v12318
    %v13180 = vunpack.c.h.b16 %v12318
    %v13181 = vunpack.c.l.b16 %v12319
    %v13182 = vunpack.c.h.b16 %v12319
    %v13183 = vunpack.c.l.b16 %v12320
    %v13184 = vunpack.c.h.b16 %v12320
    %v13185 = vunpack.c.l.b16 %v12321
    %v13186 = vunpack.c.h.b16 %v12321
    %v13187 = vunpack.c.l.b16 %v12322
    %v13188 = vunpack.c.h.b16 %v12322
    %v13189 = vunpack.c.l.b16 %v12323
    %v13190 = vunpack.c.h.b16 %v12323
    %v13191 = vunpack.c.l.b16 %v12324
    %v13192 = vunpack.c.h.b16 %v12324
    %v13193 = vunpack.c.l.b16 %v12325
    %v13194 = vunpack.c.h.b16 %v12325
    %v13195 = vunpack.c.l.b16 %v12326
    %v13196 = vunpack.c.h.b16 %v12326
    %v13197 = vunpack.c.l.b16 %v12327
    %v13198 = vunpack.c.h.b16 %v12327
    %v13199 = vunpack.c.l.b16 %v12328
    %v13200 = vunpack.c.h.b16 %v12328
    %v13201 = vunpack.c.l.b16 %v12329
    %v13202 = vunpack.c.h.b16 %v12329
    %v13203 = vunpack.c.l.b16 %v12330
    %v13204 = vunpack.c.h.b16 %v12330
    %v13205 = vunpack.c.l.b16 %v12331
    %v13206 = vunpack.c.h.b16 %v12331
    %v13207 = vunpack.c.l.b16 %v12332
    %v13208 = vunpack.c.h.b16 %v12332
    %v13209 = vunpack.c.l.b16 %v12333
    %v13210 = vunpack.c.h.b16 %v12333
    %v13211 = vunpack.c.l.b16 %v12334
    %v13212 = vunpack.c.h.b16 %v12334
    %v13213 = vunpack.c.l.b16 %v12335
    %v13214 = vunpack.c.h.b16 %v12335
    %v13215 = vunpack.c.l.b16 %v12336
    %v13216 = vunpack.c.h.b16 %v12336
    %v13217 = vunpack.c.l.b16 %v12337
    %v13218 = vunpack.c.h.b16 %v12337
    %v13219 = vunpack.c.l.b16 %v12338
    %v13220 = vunpack.c.h.b16 %v12338
    %v13221 = vunpack.c.l.b16 %v12339
    %v13222 = vunpack.c.h.b16 %v12339
    %v13223 = vunpack.c.l.b16 %v12340
    %v13224 = vunpack.c.h.b16 %v12340
    %v13225 = vunpack.c.l.b16 %v12341
    %v13226 = vunpack.c.h.b16 %v12341
    %v13227 = vunpack.c.l.b16 %v12342
    %v13228 = vunpack.c.h.b16 %v12342
    %v13229 = vpack.c.b16 %v12657, %v12653
    %v13230 = vpack.c.b16 %v12658, %v12654
    %v13231 = vpack.c.b16 %v12659, %v12655
    %v13232 = vpack.c.b16 %v12660, %v12656
    %v13233 = vpack.c.b16 %v12665, %v12661
    %v13234 = vpack.c.b16 %v12666, %v12662
    %v13235 = vpack.c.b16 %v12667, %v12663
    %v13236 = vpack.c.b16 %v12668, %v12664
    %v13237 = vpack.c.b16 %v12673, %v12669
    %v13238 = vpack.c.b16 %v12674, %v12670
    %v13239 = vpack.c.b16 %v12675, %v12671
    %v13240 = vpack.c.b16 %v12676, %v12672
    %v13241 = vpack.c.b16 %v12681, %v12677
    %v13242 = vpack.c.b16 %v12682, %v12678
    %v13243 = vpack.c.b16 %v12683, %v12679
    %v13244 = vpack.c.b16 %v12684, %v12680
    %v13245 = vpack.c.b16 %v12689, %v12685
    %v13246 = vpack.c.b16 %v12690, %v12686
    %v13247 = vpack.c.b16 %v12691, %v12687
    %v13248 = vpack.c.b16 %v12692, %v12688
    %v13249 = vpack.c.b16 %v12697, %v12693
    %v13250 = vpack.c.b16 %v12698, %v12694
    %v13251 = vpack.c.b16 %v12699, %v12695
    %v13252 = vpack.c.b16 %v12700, %v12696
    %v13253 = vpack.c.b16 %v12705, %v12701
    %v13254 = vpack.c.b16 %v12706, %v12702
    %v13255 = vpack.c.b16 %v12707, %v12703
    %v13256 = vpack.c.b16 %v12708, %v12704
    %v13257 = vpack.c.b16 %v12713, %v12709
    %v13258 = vpack.c.b16 %v12714, %v12710
    %v13259 = vpack.c.b16 %v12715, %v12711
    %v13260 = vpack.c.b16 %v12716, %v12712
    %v13261 = vpack.c.b16 %v12721, %v12717
    %v13262 = vpack.c.b16 %v12722, %v12718
    %v13263 = vpack.c.b16 %v12723, %v12719
    %v13264 = vpack.c.b16 %v12724, %v12720
    %v13265 = vpack.c.b16 %v12729, %v12725
    %v13266 = vpack.c.b16 %v12730, %v12726
    %v13267 = vpack.c.b16 %v12731, %v12727
    %v13268 = vpack.c.b16 %v12732, %v12728
    %v13269 = vpack.c.b16 %v12737, %v12733
    %v13270 = vpack.c.b16 %v12738, %v12734
    %v13271 = vpack.c.b16 %v12739, %v12735
    %v13272 = vpack.c.b16 %v12740, %v12736
    %v13273 = vpack.c.b16 %v12745, %v12741
    %v13274 = vpack.c.b16 %v12746, %v12742
    %v13275 = vpack.c.b16 %v12747, %v12743
    %v13276 = vpack.c.b16 %v12748, %v12744
    %v13277 = vpack.c.b16 %v12753, %v12749
    %v13278 = vpack.c.b16 %v12754, %v12750
    %v13279 = vpack.c.b16 %v12755, %v12751
    %v13280 = vpack.c.b16 %v12756, %v12752
    %v13281 = vpack.c.b16 %v12761, %v12757
    %v13282 = vpack.c.b16 %v12762, %v12758
    %v13283 = vpack.c.b16 %v12763, %v12759
    %v13284 = vpack.c.b16 %v12764, %v12760
    %v13285 = vpack.c.b16 %v12769, %v12765
    %v13286 = vpack.c.b16 %v12770, %v12766
    %v13287 = vpack.c.b16 %v12771, %v12767
    %v13288 = vpack.c.b16 %v12772, %v12768
    %v13289 = vpack.c.b16 %v12777, %v12773
    %v13290 = vpack.c.b16 %v12778, %v12774
    %v13291 = vpack.c.b16 %v12779, %v12775
    %v13292 = vpack.c.b16 %v12780, %v12776
    %v13293 = vpack.c.b16 %v12785, %v12781
    %v13294 = vpack.c.b16 %v12786, %v12782
    %v13295 = vpack.c.b16 %v12787, %v12783
    %v13296 = vpack.c.b16 %v12788, %v12784
    %v13297 = vpack.c.b16 %v12793, %v12789
    %v13298 = vpack.c.b16 %v12794, %v12790
    %v13299 = vpack.c.b16 %v12795, %v12791
    %v13300 = vpack.c.b16 %v12796, %v12792
    %v13301 = vpack.c.b16 %v12801, %v12797
    %v13302 = vpack.c.b16 %v12802, %v12798
    %v13303 = vpack.c.b16 %v12803, %v12799
    %v13304 = vpack.c.b16 %v12804, %v12800
    %v13305 = vpack.c.b16 %v12809, %v12805
    %v13306 = vpack.c.b16 %v12810, %v12806
    %v13307 = vpack.c.b16 %v12811, %v12807
    %v13308 = vpack.c.b16 %v12812, %v12808
    %v13309 = vpack.c.b16 %v12817, %v12813
    %v13310 = vpack.c.b16 %v12818, %v12814
    %v13311 = vpack.c.b16 %v12819, %v12815
    %v13312 = vpack.c.b16 %v12820, %v12816
    %v13313 = vpack.c.b16 %v12825, %v12821
    %v13314 = vpack.c.b16 %v12826, %v12822
    %v13315 = vpack.c.b16 %v12827, %v12823
    %v13316 = vpack.c.b16 %v12828, %v12824
    %v13317 = vpack.c.b16 %v12833, %v12829
    %v13318 = vpack.c.b16 %v12834, %v12830
    %v13319 = vpack.c.b16 %v12835, %v12831
    %v13320 = vpack.c.b16 %v12836, %v12832
    %v13321 = vpack.c.b16 %v12841, %v12837
    %v13322 = vpack.c.b16 %v12842, %v12838
    %v13323 = vpack.c.b16 %v12843, %v12839
    %v13324 = vpack.c.b16 %v12844, %v12840
    %v13325 = vpack.c.b16 %v12849, %v12845
    %v13326 = vpack.c.b16 %v12850, %v12846
    %v13327 = vpack.c.b16 %v12851, %v12847
    %v13328 = vpack.c.b16 %v12852, %v12848
    %v13329 = vpack.c.b16 %v12857, %v12853
    %v13330 = vpack.c.b16 %v12858, %v12854
    %v13331 = vpack.c.b16 %v12859, %v12855
    %v13332 = vpack.c.b16 %v12860, %v12856
    %v13333 = vpack.c.b16 %v12865, %v12861
    %v13334 = vpack.c.b16 %v12866, %v12862
    %v13335 = vpack.c.b16 %v12867, %v12863
    %v13336 = vpack.c.b16 %v12868, %v12864
    %v13337 = vpack.c.b16 %v12873, %v12869
    %v13338 = vpack.c.b16 %v12874, %v12870
    %v13339 = vpack.c.b16 %v12875, %v12871
    %v13340 = vpack.c.b16 %v12876, %v12872
    %v13341 = vpack.c.b16 %v12881, %v12877
    %v13342 = vpack.c.b16 %v12882, %v12878
    %v13343 = vpack.c.b16 %v12883, %v12879
    %v13344 = vpack.c.b16 %v12884, %v12880
    %v13345 = vpack.c.b16 %v12889, %v12885
    %v13346 = vpack.c.b16 %v12890, %v12886
    %v13347 = vpack.c.b16 %v12891, %v12887
    %v13348 = vpack.c.b16 %v12892, %v12888
    %v13349 = vpack.c.b16 %v12897, %v12893
    %v13350 = vpack.c.b16 %v12898, %v12894
    %v13351 = vpack.c.b16 %v12899, %v12895
    %v13352 = vpack.c.b16 %v12900, %v12896
    %v13353 = vpack.c.b16 %v12905, %v12901
    %v13354 = vpack.c.b16 %v12906, %v12902
    %v13355 = vpack.c.b16 %v12907, %v12903
    %v13356 = vpack.c.b16 %v12908, %v12904
    %v13357 = vpack.c.b16 %v12913, %v12909
    %v13358 = vpack.c.b16 %v12914, %v12910
    %v13359 = vpack.c.b16 %v12915, %v12911
    %v13360 = vpack.c.b16 %v12916, %v12912
    %v13361 = vpack.c.b16 %v12921, %v12917
    %v13362 = vpack.c.b16 %v12922, %v12918
    %v13363 = vpack.c.b16 %v12923, %v12919
    %v13364 = vpack.c.b16 %v12924, %v12920
    %v13365 = vpack.c.b16 %v12929, %v12925
    %v13366 = vpack.c.b16 %v12930, %v12926
    %v13367 = vpack.c.b16 %v12931, %v12927
    %v13368 = vpack.c.b16 %v12932, %v12928
    %v13369 = vpack.c.b16 %v12937, %v12933
    %v13370 = vpack.c.b16 %v12938, %v12934
    %v13371 = vpack.c.b16 %v12939, %v12935
    %v13372 = vpack.c.b16 %v12940, %v12936
    %v13373 = vpack.c.b16 %v12945, %v12941
    %v13374 = vpack.c.b16 %v12946, %v12942
    %v13375 = vpack.c.b16 %v12947, %v12943
    %v13376 = vpack.c.b16 %v12948, %v12944
    %v13377 = vpack.c.b16 %v12953, %v12949
    %v13378 = vpack.c.b16 %v12954, %v12950
    %v13379 = vpack.c.b16 %v12955, %v12951
    %v13380 = vpack.c.b16 %v12956, %v12952
    %v13381 = vpack.c.b16 %v12961, %v12957
    %v13382 = vpack.c.b16 %v12962, %v12958
    %v13383 = vpack.c.b16 %v12963, %v12959
    %v13384 = vpack.c.b16 %v12964, %v12960
    %v13385 = vpack.c.b16 %v12969, %v12965
    %v13386 = vpack.c.b16 %v12970, %v12966
    %v13387 = vpack.c.b16 %v12971, %v12967
    %v13388 = vpack.c.b16 %v12972, %v12968
    %v13389 = vpack.c.b16 %v12977, %v12973
    %v13390 = vpack.c.b16 %v12978, %v12974
    %v13391 = vpack.c.b16 %v12979, %v12975
    %v13392 = vpack.c.b16 %v12980, %v12976
    %v13393 = vpack.c.b16 %v12985, %v12981
    %v13394 = vpack.c.b16 %v12986, %v12982
    %v13395 = vpack.c.b16 %v12987, %v12983
    %v13396 = vpack.c.b16 %v12988, %v12984
    %v13397 = vpack.c.b16 %v12993, %v12989
    %v13398 = vpack.c.b16 %v12994, %v12990
    %v13399 = vpack.c.b16 %v12995, %v12991
    %v13400 = vpack.c.b16 %v12996, %v12992
    %v13401 = vpack.c.b16 %v13001, %v12997
    %v13402 = vpack.c.b16 %v13002, %v12998
    %v13403 = vpack.c.b16 %v13003, %v12999
    %v13404 = vpack.c.b16 %v13004, %v13000
    %v13405 = vpack.c.b16 %v13009, %v13005
    %v13406 = vpack.c.b16 %v13010, %v13006
    %v13407 = vpack.c.b16 %v13011, %v13007
    %v13408 = vpack.c.b16 %v13012, %v13008
    %v13409 = vpack.c.b16 %v13017, %v13013
    %v13410 = vpack.c.b16 %v13018, %v13014
    %v13411 = vpack.c.b16 %v13019, %v13015
    %v13412 = vpack.c.b16 %v13020, %v13016
    %v13413 = vpack.c.b16 %v13025, %v13021
    %v13414 = vpack.c.b16 %v13026, %v13022
    %v13415 = vpack.c.b16 %v13027, %v13023
    %v13416 = vpack.c.b16 %v13028, %v13024
    %v13417 = vpack.c.b16 %v13033, %v13029
    %v13418 = vpack.c.b16 %v13034, %v13030
    %v13419 = vpack.c.b16 %v13035, %v13031
    %v13420 = vpack.c.b16 %v13036, %v13032
    %v13421 = vpack.c.b16 %v13041, %v13037
    %v13422 = vpack.c.b16 %v13042, %v13038
    %v13423 = vpack.c.b16 %v13043, %v13039
    %v13424 = vpack.c.b16 %v13044, %v13040
    %v13425 = vpack.c.b16 %v13049, %v13045
    %v13426 = vpack.c.b16 %v13050, %v13046
    %v13427 = vpack.c.b16 %v13051, %v13047
    %v13428 = vpack.c.b16 %v13052, %v13048
    %v13429 = vpack.c.b16 %v13057, %v13053
    %v13430 = vpack.c.b16 %v13058, %v13054
    %v13431 = vpack.c.b16 %v13059, %v13055
    %v13432 = vpack.c.b16 %v13060, %v13056
    %v13433 = vpack.c.b16 %v13065, %v13061
    %v13434 = vpack.c.b16 %v13066, %v13062
    %v13435 = vpack.c.b16 %v13067, %v13063
    %v13436 = vpack.c.b16 %v13068, %v13064
    %v13437 = vpack.c.b16 %v13073, %v13069
    %v13438 = vpack.c.b16 %v13074, %v13070
    %v13439 = vpack.c.b16 %v13075, %v13071
    %v13440 = vpack.c.b16 %v13076, %v13072
    %v13441 = vpack.c.b16 %v13081, %v13077
    %v13442 = vpack.c.b16 %v13082, %v13078
    %v13443 = vpack.c.b16 %v13083, %v13079
    %v13444 = vpack.c.b16 %v13084, %v13080
    %v13445 = vpack.c.b16 %v13089, %v13085
    %v13446 = vpack.c.b16 %v13090, %v13086
    %v13447 = vpack.c.b16 %v13091, %v13087
    %v13448 = vpack.c.b16 %v13092, %v13088
    %v13449 = vpack.c.b16 %v13097, %v13093
    %v13450 = vpack.c.b16 %v13098, %v13094
    %v13451 = vpack.c.b16 %v13099, %v13095
    %v13452 = vpack.c.b16 %v13100, %v13096
    %v13453 = vpack.c.b16 %v13105, %v13101
    %v13454 = vpack.c.b16 %v13106, %v13102
    %v13455 = vpack.c.b16 %v13107, %v13103
    %v13456 = vpack.c.b16 %v13108, %v13104
    %v13457 = vpack.c.b16 %v13113, %v13109
    %v13458 = vpack.c.b16 %v13114, %v13110
    %v13459 = vpack.c.b16 %v13115, %v13111
    %v13460 = vpack.c.b16 %v13116, %v13112
    %v13461 = vpack.c.b16 %v13121, %v13117
    %v13462 = vpack.c.b16 %v13122, %v13118
    %v13463 = vpack.c.b16 %v13123, %v13119
    %v13464 = vpack.c.b16 %v13124, %v13120
    %v13465 = vpack.c.b16 %v13129, %v13125
    %v13466 = vpack.c.b16 %v13130, %v13126
    %v13467 = vpack.c.b16 %v13131, %v13127
    %v13468 = vpack.c.b16 %v13132, %v13128
    %v13469 = vpack.c.b16 %v13137, %v13133
    %v13470 = vpack.c.b16 %v13138, %v13134
    %v13471 = vpack.c.b16 %v13139, %v13135
    %v13472 = vpack.c.b16 %v13140, %v13136
    %v13473 = vpack.c.b16 %v13145, %v13141
    %v13474 = vpack.c.b16 %v13146, %v13142
    %v13475 = vpack.c.b16 %v13147, %v13143
    %v13476 = vpack.c.b16 %v13148, %v13144
    %v13477 = vpack.c.b16 %v13153, %v13149
    %v13478 = vpack.c.b16 %v13154, %v13150
    %v13479 = vpack.c.b16 %v13155, %v13151
    %v13480 = vpack.c.b16 %v13156, %v13152
    %v13481 = vpack.c.b16 %v13161, %v13157
    %v13482 = vpack.c.b16 %v13162, %v13158
    %v13483 = vpack.c.b16 %v13163, %v13159
    %v13484 = vpack.c.b16 %v13164, %v13160
    %v13485 = vpack.c.b16 %v13169, %v13165
    %v13486 = vpack.c.b16 %v13170, %v13166
    %v13487 = vpack.c.b16 %v13171, %v13167
    %v13488 = vpack.c.b16 %v13172, %v13168
    %v13489 = vpack.c.b16 %v13177, %v13173
    %v13490 = vpack.c.b16 %v13178, %v13174
    %v13491 = vpack.c.b16 %v13179, %v13175
    %v13492 = vpack.c.b16 %v13180, %v13176
    %v13493 = vpack.c.b16 %v13185, %v13181
    %v13494 = vpack.c.b16 %v13186, %v13182
    %v13495 = vpack.c.b16 %v13187, %v13183
    %v13496 = vpack.c.b16 %v13188, %v13184
    %v13497 = vpack.c.b16 %v13193, %v13189
    %v13498 = vpack.c.b16 %v13194, %v13190
    %v13499 = vpack.c.b16 %v13195, %v13191
    %v13500 = vpack.c.b16 %v13196, %v13192
    %v13501 = vpack.c.b16 %v13201, %v13197
    %v13502 = vpack.c.b16 %v13202, %v13198
    %v13503 = vpack.c.b16 %v13203, %v13199
    %v13504 = vpack.c.b16 %v13204, %v13200
    %v13505 = vpack.c.b16 %v13209, %v13205
    %v13506 = vpack.c.b16 %v13210, %v13206
    %v13507 = vpack.c.b16 %v13211, %v13207
    %v13508 = vpack.c.b16 %v13212, %v13208
    %v13509 = vpack.c.b16 %v13217, %v13213
    %v13510 = vpack.c.b16 %v13218, %v13214
    %v13511 = vpack.c.b16 %v13219, %v13215
    %v13512 = vpack.c.b16 %v13220, %v13216
    %v13513 = vpack.c.b16 %v13225, %v13221
    %v13514 = vpack.c.b16 %v13226, %v13222
    %v13515 = vpack.c.b16 %v13227, %v13223
    %v13516 = vpack.c.b16 %v13228, %v13224
    %13805 = vmatprep.subr.bf16.mxu0 %v13230
    %13806 = vmatpush1.bf16.msra.mxu0 %v13229
    %13807 = vmatprep.subr.bf16.mxu0 %v13234
    %13808 = vmatpush1.bf16.msra.mxu0 %v13233
    %13809 = vmatprep.subr.bf16.mxu0 %v13238
    %13810 = vmatpush1.bf16.msra.mxu0 %v13237
    %13811 = vmatprep.subr.bf16.mxu0 %v13242
    %13812 = vmatpush1.bf16.msra.mxu0 %v13241
    %13813 = vmatprep.subr.bf16.mxu0 %v13246
    %13814 = vmatpush1.bf16.msra.mxu0 %v13245
    %13815 = vmatprep.subr.bf16.mxu0 %v13250
    %13816 = vmatpush1.bf16.msra.mxu0 %v13249
    %13817 = vmatprep.subr.bf16.mxu0 %v13254
    %13818 = vmatpush1.bf16.msra.mxu0 %v13253
    %13819 = vmatprep.subr.bf16.mxu0 %v13258
    %13820 = vmatpush1.bf16.msra.mxu0 %v13257
    %13821 = vmatprep.subr.bf16.mxu0 %v13262
    %13822 = vmatpush1.bf16.msra.mxu0 %v13261
    %13823 = vmatprep.subr.bf16.mxu0 %v13266
    %13824 = vmatpush1.bf16.msra.mxu0 %v13265
    %13825 = vmatprep.subr.bf16.mxu0 %v13270
    %13826 = vmatpush1.bf16.msra.mxu0 %v13269
    %13827 = vmatprep.subr.bf16.mxu0 %v13274
    %13828 = vmatpush1.bf16.msra.mxu0 %v13273
    %13829 = vmatprep.subr.bf16.mxu0 %v13278
    %13830 = vmatpush1.bf16.msra.mxu0 %v13277
    %13831 = vmatprep.subr.bf16.mxu0 %v13282
    %13832 = vmatpush1.bf16.msra.mxu0 %v13281
    %13833 = vmatprep.subr.bf16.mxu0 %v13286
    %13834 = vmatpush1.bf16.msra.mxu0 %v13285
    %13835 = vmatprep.subr.bf16.mxu0 %v13290
    %13836 = vmatpush1.bf16.msra.mxu0 %v13289
    %13837 = vmatprep.mubr.bf16.mxu0 %v12047
    %13838 = vmatmul.mubr.bf16.gmra.mrb[0].mxu0 %v12046
    %v13839 = vpop.f32.mrb[0].mxu0
    %v13840 = vadd.f32 %v12348, %v13839
    %v13841 = vpop.f32.mrb[0].mxu0
    %v13842 = vadd.f32 %v12352, %v13841
    %v13843 = vpop.f32.mrb[0].mxu0
    %v13844 = vpop.f32.mrb[0].mxu0
    %13845 = vdwg.mxu0
    %13846 = vmatprep.subr.bf16.mxu0 %v13294
    %13847 = vmatpush1.bf16.msra.mxu0 %v13293
    %13848 = vmatprep.subr.bf16.mxu0 %v13298
    %13849 = vmatpush1.bf16.msra.mxu0 %v13297
    %13850 = vmatprep.subr.bf16.mxu0 %v13302
    %13851 = vmatpush1.bf16.msra.mxu0 %v13301
    %13852 = vmatprep.subr.bf16.mxu0 %v13306
    %13853 = vmatpush1.bf16.msra.mxu0 %v13305
    %13854 = vmatprep.subr.bf16.mxu0 %v13310
    %13855 = vmatpush1.bf16.msra.mxu0 %v13309
    %13856 = vmatprep.subr.bf16.mxu0 %v13314
    %13857 = vmatpush1.bf16.msra.mxu0 %v13313
    %13858 = vmatprep.subr.bf16.mxu0 %v13318
    %13859 = vmatpush1.bf16.msra.mxu0 %v13317
    %13860 = vmatprep.subr.bf16.mxu0 %v13322
    %13861 = vmatpush1.bf16.msra.mxu0 %v13321
    %13862 = vmatprep.subr.bf16.mxu0 %v13326
    %13863 = vmatpush1.bf16.msra.mxu0 %v13325
    %13864 = vmatprep.subr.bf16.mxu0 %v13330
    %13865 = vmatpush1.bf16.msra.mxu0 %v13329
    %13866 = vmatprep.subr.bf16.mxu0 %v13334
    %13867 = vmatpush1.bf16.msra.mxu0 %v13333
    %13868 = vmatprep.subr.bf16.mxu0 %v13338
    %13869 = vmatpush1.bf16.msra.mxu0 %v13337
    %13870 = vmatprep.subr.bf16.mxu0 %v13342
    %13871 = vmatpush1.bf16.msra.mxu0 %v13341
    %13872 = vmatprep.subr.bf16.mxu0 %v13346
    %13873 = vmatpush1.bf16.msra.mxu0 %v13345
    %13874 = vmatprep.subr.bf16.mxu0 %v13350
    %13875 = vmatpush1.bf16.msra.mxu0 %v13349
    %13876 = vmatprep.subr.bf16.mxu0 %v13354
    %13877 = vmatpush1.bf16.msra.mxu0 %v13353
    %13878 = vmatprep.mubr.bf16.mxu0 %v12049
    %13879 = vmatmul.mubr.bf16.gmra.mrb[0].mxu0 %v12048
    %v13880 = vpop.f32.mrb[0].mxu0
    %v13881 = vadd.f32 %v13840, %v13880
    %v13882 = vpop.f32.mrb[0].mxu0
    %v13883 = vadd.f32 %v13842, %v13882
    %v13884 = vpop.f32.mrb[0].mxu0
    %v13885 = vpop.f32.mrb[0].mxu0
    %13886 = vdwg.mxu0
    %13887 = vmatprep.subr.bf16.mxu0 %v13358
    %13888 = vmatpush1.bf16.msra.mxu0 %v13357
    %13889 = vmatprep.subr.bf16.mxu0 %v13362
    %13890 = vmatpush1.bf16.msra.mxu0 %v13361
    %13891 = vmatprep.subr.bf16.mxu0 %v13366
    %13892 = vmatpush1.bf16.msra.mxu0 %v13365
    %13893 = vmatprep.subr.bf16.mxu0 %v13370
    %13894 = vmatpush1.bf16.msra.mxu0 %v13369
    %13895 = vmatprep.subr.bf16.mxu0 %v13374
    %13896 = vmatpush1.bf16.msra.mxu0 %v13373
    %13897 = vmatprep.subr.bf16.mxu0 %v13378
    %13898 = vmatpush1.bf16.msra.mxu0 %v13377
    %13899 = vmatprep.subr.bf16.mxu0 %v13382
    %13900 = vmatpush1.bf16.msra.mxu0 %v13381
    %13901 = vmatprep.subr.bf16.mxu0 %v13386
    %13902 = vmatpush1.bf16.msra.mxu0 %v13385
    %13903 = vmatprep.subr.bf16.mxu0 %v13390
    %13904 = vmatpush1.bf16.msra.mxu0 %v13389
    %13905 = vmatprep.subr.bf16.mxu0 %v13394
    %13906 = vmatpush1.bf16.msra.mxu0 %v13393
    %13907 = vmatprep.subr.bf16.mxu0 %v13398
    %13908 = vmatpush1.bf16.msra.mxu0 %v13397
    %13909 = vmatprep.subr.bf16.mxu0 %v13402
    %13910 = vmatpush1.bf16.msra.mxu0 %v13401
    %13911 = vmatprep.subr.bf16.mxu0 %v13406
    %13912 = vmatpush1.bf16.msra.mxu0 %v13405
    %13913 = vmatprep.subr.bf16.mxu0 %v13410
    %13914 = vmatpush1.bf16.msra.mxu0 %v13409
    %13915 = vmatprep.subr.bf16.mxu0 %v13414
    %13916 = vmatpush1.bf16.msra.mxu0 %v13413
    %13917 = vmatprep.subr.bf16.mxu0 %v13418
    %13918 = vmatpush1.bf16.msra.mxu0 %v13417
    %13919 = vmatprep.mubr.bf16.mxu0 %v12051
    %13920 = vmatmul.mubr.bf16.gmra.mrb[0].mxu0 %v12050
    %v13921 = vpop.f32.mrb[0].mxu0
    %v13922 = vadd.f32 %v13881, %v13921
    %v13923 = vpop.f32.mrb[0].mxu0
    %v13924 = vadd.f32 %v13883, %v13923
    %v13925 = vpop.f32.mrb[0].mxu0
    %v13926 = vpop.f32.mrb[0].mxu0
    %13927 = vdwg.mxu0
    %13928 = vmatprep.subr.bf16.mxu0 %v13422
    %13929 = vmatpush1.bf16.msra.mxu0 %v13421
    %13930 = vmatprep.subr.bf16.mxu0 %v13426
    %13931 = vmatpush1.bf16.msra.mxu0 %v13425
    %13932 = vmatprep.subr.bf16.mxu0 %v13430
    %13933 = vmatpush1.bf16.msra.mxu0 %v13429
    %13934 = vmatprep.subr.bf16.mxu0 %v13434
    %13935 = vmatpush1.bf16.msra.mxu0 %v13433
    %13936 = vmatprep.subr.bf16.mxu0 %v13438
    %13937 = vmatpush1.bf16.msra.mxu0 %v13437
    %13938 = vmatprep.subr.bf16.mxu0 %v13442
    %13939 = vmatpush1.bf16.msra.mxu0 %v13441
    %13940 = vmatprep.subr.bf16.mxu0 %v13446
    %13941 = vmatpush1.bf16.msra.mxu0 %v13445
    %13942 = vmatprep.subr.bf16.mxu0 %v13450
    %13943 = vmatpush1.bf16.msra.mxu0 %v13449
    %13944 = vmatprep.subr.bf16.mxu0 %v13454
    %13945 = vmatpush1.bf16.msra.mxu0 %v13453
    %13946 = vmatprep.subr.bf16.mxu0 %v13458
    %13947 = vmatpush1.bf16.msra.mxu0 %v13457
    %13948 = vmatprep.subr.bf16.mxu0 %v13462
    %13949 = vmatpush1.bf16.msra.mxu0 %v13461
    %13950 = vmatprep.subr.bf16.mxu0 %v13466
    %13951 = vmatpush1.bf16.msra.mxu0 %v13465
    %13952 = vmatprep.subr.bf16.mxu0 %v13470
    %13953 = vmatpush1.bf16.msra.mxu0 %v13469
    %13954 = vmatprep.subr.bf16.mxu0 %v13474
    %13955 = vmatpush1.bf16.msra.mxu0 %v13473
    %13956 = vmatprep.subr.bf16.mxu0 %v13478
    %13957 = vmatpush1.bf16.msra.mxu0 %v13477
    %13958 = vmatprep.subr.bf16.mxu0 %v13482
    %13959 = vmatpush1.bf16.msra.mxu0 %v13481
    %13960 = vmatprep.mubr.bf16.mxu0 %v12053
    %13961 = vmatmul.mubr.bf16.gmra.mrb[0].mxu0 %v12052
    %v13962 = vpop.f32.mrb[0].mxu0
    %v13963 = vadd.f32 %v13922, %v13962
    %v13964 = vpop.f32.mrb[0].mxu0
    %v13965 = vadd.f32 %v13924, %v13964
    %v13966 = vpop.f32.mrb[0].mxu0
    %v13967 = vpop.f32.mrb[0].mxu0
    %13968 = vdwg.mxu0
    %13969 = vmatprep.subr.bf16.mxu0 %v13486
    %13970 = vmatpush1.bf16.msra.mxu0 %v13485
    %13971 = vmatprep.subr.bf16.mxu0 %v13490
    %13972 = vmatpush1.bf16.msra.mxu0 %v13489
    %13973 = vmatprep.subr.bf16.mxu0 %v13494
    %13974 = vmatpush1.bf16.msra.mxu0 %v13493
    %13975 = vmatprep.subr.bf16.mxu0 %v13498
    %13976 = vmatpush1.bf16.msra.mxu0 %v13497
    %13977 = vmatprep.subr.bf16.mxu0 %v13502
    %13978 = vmatpush1.bf16.msra.mxu0 %v13501
    %13979 = vmatprep.subr.bf16.mxu0 %v13506
    %13980 = vmatpush1.bf16.msra.mxu0 %v13505
    %13981 = vmatprep.subr.bf16.mxu0 %v13510
    %13982 = vmatpush1.bf16.msra.mxu0 %v13509
    %13983 = vmatprep.subr.bf16.mxu0 %v13514
    %13984 = vmatpush1.bf16.msra.mxu0 %v13513
    %13985 = vmatprep.subr.bf16.mxu0 0
    %13986 = vmatpush1.bf16.msra.mxu0 0
    %13987 = vmatprep.subr.bf16.mxu0 0
    %13988 = vmatpush1.bf16.msra.mxu0 0
    %13989 = vmatprep.subr.bf16.mxu0 0
    %13990 = vmatpush1.bf16.msra.mxu0 0
    %13991 = vmatprep.subr.bf16.mxu0 0
    %13992 = vmatpush1.bf16.msra.mxu0 0
    %13993 = vmatprep.subr.bf16.mxu0 0
    %13994 = vmatpush1.bf16.msra.mxu0 0
    %13995 = vmatprep.subr.bf16.mxu0 0
    %13996 = vmatpush1.bf16.msra.mxu0 0
    %13997 = vmatprep.subr.bf16.mxu0 0
    %13998 = vmatpush1.bf16.msra.mxu0 0
    %13999 = vmatprep.subr.bf16.mxu0 0
    %14000 = vmatpush1.bf16.msra.mxu0 0
    %14001 = vmatprep.mubr.bf16.mxu0 0
    %14002 = vmatmul.mubr.bf16.gmra.mrb[0].mxu0 %v12054
    %v14003 = vpop.f32.mrb[0].mxu0
    %v14004 = vadd.f32 %v13963, %v14003
    %v14005 = vpop.f32.mrb[0].mxu0
    %v14006 = vadd.f32 %v13965, %v14005
    %v14007 = vpop.f32.mrb[0].mxu0
    %v14008 = vpop.f32.mrb[0].mxu0
    %14009 = vdwg.mxu0
    %14010 = vmatprep.subr.bf16.mxu0 %v13232
    %14011 = vmatpush1.bf16.msra.mxu0 %v13231
    %14012 = vmatprep.subr.bf16.mxu0 %v13236
    %14013 = vmatpush1.bf16.msra.mxu0 %v13235
    %14014 = vmatprep.subr.bf16.mxu0 %v13240
    %14015 = vmatpush1.bf16.msra.mxu0 %v13239
    %14016 = vmatprep.subr.bf16.mxu0 %v13244
    %14017 = vmatpush1.bf16.msra.mxu0 %v13243
    %14018 = vmatprep.subr.bf16.mxu0 %v13248
    %14019 = vmatpush1.bf16.msra.mxu0 %v13247
    %14020 = vmatprep.subr.bf16.mxu0 %v13252
    %14021 = vmatpush1.bf16.msra.mxu0 %v13251
    %14022 = vmatprep.subr.bf16.mxu0 %v13256
    %14023 = vmatpush1.bf16.msra.mxu0 %v13255
    %14024 = vmatprep.subr.bf16.mxu0 %v13260
    %14025 = vmatpush1.bf16.msra.mxu0 %v13259
    %14026 = vmatprep.subr.bf16.mxu0 %v13264
    %14027 = vmatpush1.bf16.msra.mxu0 %v13263
    %14028 = vmatprep.subr.bf16.mxu0 %v13268
    %14029 = vmatpush1.bf16.msra.mxu0 %v13267
    %14030 = vmatprep.subr.bf16.mxu0 %v13272
    %14031 = vmatpush1.bf16.msra.mxu0 %v13271
    %14032 = vmatprep.subr.bf16.mxu0 %v13276
    %14033 = vmatpush1.bf16.msra.mxu0 %v13275
    %14034 = vmatprep.subr.bf16.mxu0 %v13280
    %14035 = vmatpush1.bf16.msra.mxu0 %v13279
    %14036 = vmatprep.subr.bf16.mxu0 %v13284
    %14037 = vmatpush1.bf16.msra.mxu0 %v13283
    %14038 = vmatprep.subr.bf16.mxu0 %v13288
    %14039 = vmatpush1.bf16.msra.mxu0 %v13287
    %14040 = vmatprep.subr.bf16.mxu0 %v13292
    %14041 = vmatpush1.bf16.msra.mxu0 %v13291
    %14042 = vmatprep.mubr.bf16.mxu0 %v12047
    %14043 = vmatmul.mubr.bf16.gmra.mrb[0].mxu0 %v12046
    %v14044 = vpop.f32.mrb[0].mxu0
    %v14045 = vadd.f32 %v12356, %v14044
    %v14046 = vpop.f32.mrb[0].mxu0
    %v14047 = vadd.f32 %v12360, %v14046
    %v14048 = vpop.f32.mrb[0].mxu0
    %v14049 = vpop.f32.mrb[0].mxu0
    %14050 = vdwg.mxu0
    %14051 = vmatprep.subr.bf16.mxu0 %v13296
    %14052 = vmatpush1.bf16.msra.mxu0 %v13295
    %14053 = vmatprep.subr.bf16.mxu0 %v13300
    %14054 = vmatpush1.bf16.msra.mxu0 %v13299
    %14055 = vmatprep.subr.bf16.mxu0 %v13304
    %14056 = vmatpush1.bf16.msra.mxu0 %v13303
    %14057 = vmatprep.subr.bf16.mxu0 %v13308
    %14058 = vmatpush1.bf16.msra.mxu0 %v13307
    %14059 = vmatprep.subr.bf16.mxu0 %v13312
    %14060 = vmatpush1.bf16.msra.mxu0 %v13311
    %14061 = vmatprep.subr.bf16.mxu0 %v13316
    %14062 = vmatpush1.bf16.msra.mxu0 %v13315
    %14063 = vmatprep.subr.bf16.mxu0 %v13320
    %14064 = vmatpush1.bf16.msra.mxu0 %v13319
    %14065 = vmatprep.subr.bf16.mxu0 %v13324
    %14066 = vmatpush1.bf16.msra.mxu0 %v13323
    %14067 = vmatprep.subr.bf16.mxu0 %v13328
    %14068 = vmatpush1.bf16.msra.mxu0 %v13327
    %14069 = vmatprep.subr.bf16.mxu0 %v13332
    %14070 = vmatpush1.bf16.msra.mxu0 %v13331
    %14071 = vmatprep.subr.bf16.mxu0 %v13336
    %14072 = vmatpush1.bf16.msra.mxu0 %v13335
    %14073 = vmatprep.subr.bf16.mxu0 %v13340
    %14074 = vmatpush1.bf16.msra.mxu0 %v13339
    %14075 = vmatprep.subr.bf16.mxu0 %v13344
    %14076 = vmatpush1.bf16.msra.mxu0 %v13343
    %14077 = vmatprep.subr.bf16.mxu0 %v13348
    %14078 = vmatpush1.bf16.msra.mxu0 %v13347
    %14079 = vmatprep.subr.bf16.mxu0 %v13352
    %14080 = vmatpush1.bf16.msra.mxu0 %v13351
    %14081 = vmatprep.subr.bf16.mxu0 %v13356
    %14082 = vmatpush1.bf16.msra.mxu0 %v13355
    %14083 = vmatprep.mubr.bf16.mxu0 %v12049
    %14084 = vmatmul.mubr.bf16.gmra.mrb[0].mxu0 %v12048
    %v14085 = vpop.f32.mrb[0].mxu0
    %v14086 = vadd.f32 %v14045, %v14085
    %v14087 = vpop.f32.mrb[0].mxu0
    %v14088 = vadd.f32 %v14047, %v14087
    %v14089 = vpop.f32.mrb[0].mxu0
    %v14090 = vpop.f32.mrb[0].mxu0
    %14091 = vdwg.mxu0
    %14092 = vmatprep.subr.bf16.mxu0 %v13360
    %14093 = vmatpush1.bf16.msra.mxu0 %v13359
    %14094 = vmatprep.subr.bf16.mxu0 %v13364
    %14095 = vmatpush1.bf16.msra.mxu0 %v13363
    %14096 = vmatprep.subr.bf16.mxu0 %v13368
    %14097 = vmatpush1.bf16.msra.mxu0 %v13367
    %14098 = vmatprep.subr.bf16.mxu0 %v13372
    %14099 = vmatpush1.bf16.msra.mxu0 %v13371
    %14100 = vmatprep.subr.bf16.mxu0 %v13376
    %14101 = vmatpush1.bf16.msra.mxu0 %v13375
    %14102 = vmatprep.subr.bf16.mxu0 %v13380
    %14103 = vmatpush1.bf16.msra.mxu0 %v13379
    %14104 = vmatprep.subr.bf16.mxu0 %v13384
    %14105 = vmatpush1.bf16.msra.mxu0 %v13383
    %14106 = vmatprep.subr.bf16.mxu0 %v13388
    %14107 = vmatpush1.bf16.msra.mxu0 %v13387
    %14108 = vmatprep.subr.bf16.mxu0 %v13392
    %14109 = vmatpush1.bf16.msra.mxu0 %v13391
    %14110 = vmatprep.subr.bf16.mxu0 %v13396
    %14111 = vmatpush1.bf16.msra.mxu0 %v13395
    %14112 = vmatprep.subr.bf16.mxu0 %v13400
    %14113 = vmatpush1.bf16.msra.mxu0 %v13399
    %14114 = vmatprep.subr.bf16.mxu0 %v13404
    %14115 = vmatpush1.bf16.msra.mxu0 %v13403
    %14116 = vmatprep.subr.bf16.mxu0 %v13408
    %14117 = vmatpush1.bf16.msra.mxu0 %v13407
    %14118 = vmatprep.subr.bf16.mxu0 %v13412
    %14119 = vmatpush1.bf16.msra.mxu0 %v13411
    %14120 = vmatprep.subr.bf16.mxu0 %v13416
    %14121 = vmatpush1.bf16.msra.mxu0 %v13415
    %14122 = vmatprep.subr.bf16.mxu0 %v13420
    %14123 = vmatpush1.bf16.msra.mxu0 %v13419
    %14124 = vmatprep.mubr.bf16.mxu0 %v12051
    %14125 = vmatmul.mubr.bf16.gmra.mrb[0].mxu0 %v12050
    %v14126 = vpop.f32.mrb[0].mxu0
    %v14127 = vadd.f32 %v14086, %v14126
    %v14128 = vpop.f32.mrb[0].mxu0
    %v14129 = vadd.f32 %v14088, %v14128
    %v14130 = vpop.f32.mrb[0].mxu0
    %v14131 = vpop.f32.mrb[0].mxu0
    %14132 = vdwg.mxu0
    %14133 = vmatprep.subr.bf16.mxu0 %v13424
    %14134 = vmatpush1.bf16.msra.mxu0 %v13423
    %14135 = vmatprep.subr.bf16.mxu0 %v13428
    %14136 = vmatpush1.bf16.msra.mxu0 %v13427
    %14137 = vmatprep.subr.bf16.mxu0 %v13432
    %14138 = vmatpush1.bf16.msra.mxu0 %v13431
    %14139 = vmatprep.subr.bf16.mxu0 %v13436
    %14140 = vmatpush1.bf16.msra.mxu0 %v13435
    %14141 = vmatprep.subr.bf16.mxu0 %v13440
    %14142 = vmatpush1.bf16.msra.mxu0 %v13439
    %14143 = vmatprep.subr.bf16.mxu0 %v13444
    %14144 = vmatpush1.bf16.msra.mxu0 %v13443
    %14145 = vmatprep.subr.bf16.mxu0 %v13448
    %14146 = vmatpush1.bf16.msra.mxu0 %v13447
    %14147 = vmatprep.subr.bf16.mxu0 %v13452
    %14148 = vmatpush1.bf16.msra.mxu0 %v13451
    %14149 = vmatprep.subr.bf16.mxu0 %v13456
    %14150 = vmatpush1.bf16.msra.mxu0 %v13455
    %14151 = vmatprep.subr.bf16.mxu0 %v13460
    %14152 = vmatpush1.bf16.msra.mxu0 %v13459
    %14153 = vmatprep.subr.bf16.mxu0 %v13464
    %14154 = vmatpush1.bf16.msra.mxu0 %v13463
    %14155 = vmatprep.subr.bf16.mxu0 %v13468
    %14156 = vmatpush1.bf16.msra.mxu0 %v13467
    %14157 = vmatprep.subr.bf16.mxu0 %v13472
    %14158 = vmatpush1.bf16.msra.mxu0 %v13471
    %14159 = vmatprep.subr.bf16.mxu0 %v13476
    %14160 = vmatpush1.bf16.msra.mxu0 %v13475
    %14161 = vmatprep.subr.bf16.mxu0 %v13480
    %14162 = vmatpush1.bf16.msra.mxu0 %v13479
    %14163 = vmatprep.subr.bf16.mxu0 %v13484
    %14164 = vmatpush1.bf16.msra.mxu0 %v13483
    %14165 = vmatprep.mubr.bf16.mxu0 %v12053
    %14166 = vmatmul.mubr.bf16.gmra.mrb[0].mxu0 %v12052
    %v14167 = vpop.f32.mrb[0].mxu0
    %v14168 = vadd.f32 %v14127, %v14167
    %v14169 = vpop.f32.mrb[0].mxu0
    %v14170 = vadd.f32 %v14129, %v14169
    %v14171 = vpop.f32.mrb[0].mxu0
    %v14172 = vpop.f32.mrb[0].mxu0
    %14173 = vdwg.mxu0
    %14174 = vmatprep.subr.bf16.mxu0 %v13488
    %14175 = vmatpush1.bf16.msra.mxu0 %v13487
    %14176 = vmatprep.subr.bf16.mxu0 %v13492
    %14177 = vmatpush1.bf16.msra.mxu0 %v13491
    %14178 = vmatprep.subr.bf16.mxu0 %v13496
    %14179 = vmatpush1.bf16.msra.mxu0 %v13495
    %14180 = vmatprep.subr.bf16.mxu0 %v13500
    %14181 = vmatpush1.bf16.msra.mxu0 %v13499
    %14182 = vmatprep.subr.bf16.mxu0 %v13504
    %14183 = vmatpush1.bf16.msra.mxu0 %v13503
    %14184 = vmatprep.subr.bf16.mxu0 %v13508
    %14185 = vmatpush1.bf16.msra.mxu0 %v13507
    %14186 = vmatprep.subr.bf16.mxu0 %v13512
    %14187 = vmatpush1.bf16.msra.mxu0 %v13511
    %14188 = vmatprep.subr.bf16.mxu0 %v13516
    %14189 = vmatpush1.bf16.msra.mxu0 %v13515
    %14190 = vmatprep.subr.bf16.mxu0 0
    %14191 = vmatpush1.bf16.msra.mxu0 0
    %14192 = vmatprep.subr.bf16.mxu0 0
    %14193 = vmatpush1.bf16.msra.mxu0 0
    %14194 = vmatprep.subr.bf16.mxu0 0
    %14195 = vmatpush1.bf16.msra.mxu0 0
    %14196 = vmatprep.subr.bf16.mxu0 0
    %14197 = vmatpush1.bf16.msra.mxu0 0
    %14198 = vmatprep.subr.bf16.mxu0 0
    %14199 = vmatpush1.bf16.msra.mxu0 0
    %14200 = vmatprep.subr.bf16.mxu0 0
    %14201 = vmatpush1.bf16.msra.mxu0 0
    %14202 = vmatprep.subr.bf16.mxu0 0
    %14203 = vmatpush1.bf16.msra.mxu0 0
    %14204 = vmatprep.subr.bf16.mxu0 0
    %14205 = vmatpush1.bf16.msra.mxu0 0
    %14206 = vmatprep.mubr.bf16.mxu0 0
    %14207 = vmatmul.mubr.bf16.gmra.mrb[0].mxu0 %v12054
    %v14208 = vpop.f32.mrb[0].mxu0
    %v14209 = vadd.f32 %v14168, %v14208
    %v14210 = vpop.f32.mrb[0].mxu0
    %v14211 = vadd.f32 %v14170, %v14210
    %v14212 = vpop.f32.mrb[0].mxu0
    %v14213 = vpop.f32.mrb[0].mxu0
    %14214 = vdwg.mxu0
    %v14215 = vxor.u32 %v14004, 2147483648
    %v14216 = vxor.u32 %v14006, 2147483648
    %v14217 = vxor.u32 %v14209, 2147483648
    %v14218 = vxor.u32 %v14211, 2147483648
    %v14219 = vmul.f32 %v14215, 1.442695
    %v14220 = vpow.pop %v14219
    %v14221 = vmul.f32 %v14216, 1.442695
    %v14222 = vpow.pop %v14221
    %v14223 = vmul.f32 %v14217, 1.442695
    %v14224 = vpow.pop %v14223
    %v14225 = vmul.f32 %v14218, 1.442695
    %v14226 = vpow.pop %v14225
    %v14227 = vadd.f32 %v14220, 1.0
    %v14228 = vadd.f32 %v14222, 1.0
    %v14229 = vadd.f32 %v14224, 1.0
    %v14230 = vadd.f32 %v14226, 1.0
    %v14231 = vrcp.pop %v14227
    %v14232 = vmul.f32 1.0, %v14231
    %v14233 = vrcp.pop %v14228
    %v14234 = vmul.f32 1.0, %v14233
    %v14235 = vrcp.pop %v14229
    %v14236 = vmul.f32 1.0, %v14235
    %v14237 = vrcp.pop %v14230
    %v14238 = vmul.f32 1.0, %v14237
    %14240 = vrot.lane.b32.xlu0 %v3438, 48
    %v14241 = vpop.permute.xlu0 %14240
    %vm14243 = vcmask 392192
    %v14244 = vsel %vm14243, %v14238, %v14241
    %v14249 = vcombine.low %v14232, %v14234
    %v14250 = vcombine.low %v14236, %v14244
    %v14252 = vunpack.c.l.s4 1983009808
    %v14253 = vunpack.c.0.s8 %v14252
    %v14254 = vlaneseq
    %v14255 = vshrl.u32 %v14254, 7
    %v14256 = vsub.s32 %v14253, %v14255
    %v14257 = vrot.slane %v14249, %v14256
    %v14259 = vunpack.c.l.s4 1983009808
    %v14260 = vunpack.c.0.s8 %v14259
    %v14261 = vlaneseq
    %v14262 = vshrl.u32 %v14261, 7
    %v14263 = vsub.s32 %v14260, %v14262
    %v14264 = vrot.slane %v14250, %v14263
    %v14265 = vcombine.low %v14257, %v14264
    %vm14267 = vcmask 1041408
    %vm14268 = vcmask 1043458
    %vm14269 = vmor %vm14268, %vm14267
    %vm14270 = vcmask 1045508
    %vm14271 = vmor %vm14270, %vm14269
    %vm14272 = vcmask 916486
    %vm14273 = vmor %vm14272, %vm14271
    %14274 = vst.msk [vmem:[%s22] sm:$0xff] %vm14273, %v14265
    // Predicated region
    $region106: #{vae_forward.1} parent=1 // pred_check
      _
    $region107: #{vae_forward.1} parent=1 // pred_check_branch
      %14276 = sbr.rel (0) target = $region109
    $region108: #{vae_forward.1} parent=1 // pred_region
      _
    $region109: #{vae_forward.1} parent=1 // pred_fallthru
      _
    // Predicated region
    $region110: #{vae_forward.1} parent=1 // pred_check
      _
    $region111: #{vae_forward.1} parent=1 // pred_check_branch
      %14278 = sbr.rel (0) target = $region113
    $region112: #{vae_forward.1} parent=1 // pred_region
      _
    $region113: #{vae_forward.1} parent=1 // pred_fallthru
      _
    %14279 = vsyncpa [#allocation3], 1
    %14280 = vsyncpa [#allocation5], 1
    %14281 = vsyncpa [#allocation8], 1

</llo_original>
